<compile_context>
chip_gen: v7x
topology: tpu7x:2x2x1
jax: 0.10.0
libtpu: 0.0.40
codegen_flags: <defaults>
</compile_context>

<pallas_src>
import functools

import jax
import jax.numpy as jnp
from jax import lax
from jax.experimental import pallas as pl
from jax.experimental.pallas import tpu as pltpu


_CHUNK = 128  # row-chunk for the conv im2col+matmul (bounds vreg live ranges)


def _round_up(x, m):
    return ((x + m - 1) // m) * m


# -----------------------------------------------------------------------------
# Static network configuration
# -----------------------------------------------------------------------------
def make_config(nf, num_labels, width, height, batch):
    convs = []
    cin, H, W = 1, height, width
    chans = [nf, 2 * nf, 2 * nf, 4 * nf, 4 * nf, 8 * nf, 8 * nf]
    pooled_after = [True, False, True, False, True, False, True]
    for cout, pool in zip(chans, pooled_after):
        assert W & (W - 1) == 0, "kernel assumes power-of-two widths"
        P = _round_up(W + 1, 8)  # 8-aligned halo (review: aligned pad offsets)
        convs.append(dict(cin=cin, cout=cout, H=H, W=W, R=H * W, P=P,
                          pool=pool))
        cin = cout
        if pool:
            H //= 2
            W //= 2
    # TODO(synk): for inputs whose spatial size does not collapse to 1x1 after
    # the 4 pools (e.g. 48x48), the NCHW flatten order before fc1 would need a
    # channel-major transpose; not needed for the 16x16 config used here.
    assert H == 1 and W == 1, "fused kernel assumes spatial collapses to 1x1"
    fcs = [(8 * nf, 8 * nf), (8 * nf, 4 * nf), (4 * nf, 2 * nf),
           (2 * nf, num_labels)]
    return dict(convs=convs, fcs=fcs, batch=batch, labels=num_labels)


# -----------------------------------------------------------------------------
# The fused Pallas kernel (one image per grid step)
# -----------------------------------------------------------------------------
def _emotion_fwd_kernel(cfg, *refs):
    convs = cfg["convs"]
    n_conv = len(convs)
    n_fc = len(cfg["fcs"])

    n_in = 1 + 4 * n_conv + 2 * n_fc
    in_refs = refs[:n_in]
    out_ref = refs[n_in]
    scratch = refs[n_in + 1:]

    x_ref = in_refs[0]
    conv_refs = [in_refs[1 + 4 * i: 1 + 4 * (i + 1)] for i in range(n_conv)]
    fc_base = 1 + 4 * n_conv
    fc_refs = [in_refs[fc_base + 2 * j: fc_base + 2 * (j + 1)]
               for j in range(n_fc)]

    pad_refs = scratch[:n_conv]                  # zero-halo padded conv inputs
    col_refs = scratch[n_conv:2 * n_conv]        # im2col patch buffers
    si = 2 * n_conv
    pool_refs = {}
    for li, c in enumerate(convs):
        if c["pool"]:
            pool_refs[li] = (scratch[si], scratch[si + 1])
            si += 2
    feat_ref = scratch[si]                       # (1, 8*nf) FC input

    def zero_halos(li):
        # Halo-only zeroing: activation rows [P, P+R) are overwritten anyway.
        c = convs[li]
        P, R, Cin = c["P"], c["R"], c["cin"]
        pad = pad_refs[li]
        pad[pl.ds(0, P), :] = jnp.zeros((P, Cin), jnp.float32)
        pad[pl.ds(P + R, P), :] = jnp.zeros((P, Cin), jnp.float32)

    def conv_bn_relu(li, dst_ref, dst_base):
        """conv3x3(+bias) -> ReLU -> eval-BN; row-chunked, one im2col matmul
        per chunk; post-BN rows stored straight into dst_ref."""
        c = convs[li]
        R, H, W, Cin, Cout, P = (c["R"], c["H"], c["W"], c["cin"], c["cout"],
                                 c["P"])
        w_ref, b_ref, s_ref, t_ref = conv_refs[li]
        pad_ref, col_ref = pad_refs[li], col_refs[li]
        CH = min(R, _CHUNK)
        for r0 in range(0, R, CH):                           # static chunks
            # in-kernel tap-validity masks (replaces the old (N*H*W,9) mask DMA)
            col = (lax.broadcasted_iota(jnp.int32, (CH, 1), 0) + r0) & (W - 1)
            left_ok = col > 0                                # dx = -1 valid
            right_ok = col < (W - 1)                         # dx = +1 valid
            for k in range(9):                               # build im2col
                dy, dx = k // 3 - 1, k % 3 - 1
                win = pad_ref[pl.ds(P + dy * W + dx + r0, CH), :]  # (CH, Cin)
                if dx == -1:
                    win = jnp.where(left_ok, win, 0.0)       # wrap-around fix
                elif dx == 1:
                    win = jnp.where(right_ok, win, 0.0)
                col_ref[:, pl.ds(k * Cin, Cin)] = win
            acc = jnp.dot(col_ref[...], w_ref[...],          # (CH,9Cin)@(9Cin,Cout)
                          preferred_element_type=jnp.float32)
            out = jnp.maximum(acc + b_ref[...], 0.0)         # conv+bias -> ReLU
            out = out * s_ref[...] + t_ref[...]              # eval BatchNorm
            dst_ref[pl.ds(dst_base + r0, CH), :] = out       # aligned slab store

    def maxpool2x2(li, dst_ref, dst_base):
        # 2x2 / stride-2 maxpool of layer li's output, written compacted
        # (flat (h, w) rows) into dst_ref starting at dst_base.
        c = convs[li]
        R, H, W = c["R"], c["H"], c["W"]
        Ho, Wo = H // 2, W // 2
        cout_ref, m1_ref = pool_refs[li]
        even = cout_ref[pl.ds(0, R // 2, 2), :]              # w even, vectorized
        odd = cout_ref[pl.ds(1, R // 2, 2), :]               # w odd
        m1_ref[...] = jnp.maximum(even, odd)                 # rows = (h, wo)
        # TODO(synk): full h-direction vectorization needs a sublane-regrouping
        # value reshape; kept as a short (<=8 iteration) static slab loop.
        for ho in range(Ho):
            r0 = m1_ref[pl.ds((2 * ho) * Wo, Wo), :]
            r1 = m1_ref[pl.ds((2 * ho + 1) * Wo, Wo), :]
            dst_ref[pl.ds(dst_base + ho * Wo, Wo), :] = jnp.maximum(r0, r1)

    # ---- conv stack (Dropout2d = identity in eval mode) ----
    zero_halos(0)
    c0 = convs[0]
    pad_refs[0][pl.ds(c0["P"], c0["R"]), :] = x_ref[0]       # (H*W, 1) image
    for li, c in enumerate(convs):
        if li + 1 < n_conv:
            zero_halos(li + 1)
        if c["pool"]:
            cout_ref, _ = pool_refs[li]
            conv_bn_relu(li, cout_ref, 0)
            if li + 1 < n_conv:
                maxpool2x2(li, pad_refs[li + 1], convs[li + 1]["P"])
            else:
                maxpool2x2(li, feat_ref, 0)
        else:
            conv_bn_relu(li, pad_refs[li + 1], convs[li + 1]["P"])

    # ---- FC head (Dropout = identity in eval mode) + LogSoftmax ----
    h = feat_ref[...]                                        # (1, 8*nf)
    for j, (w_ref, b_ref) in enumerate(fc_refs):
        h = jnp.dot(h, w_ref[...],
                    preferred_element_type=jnp.float32) + b_ref[...]
        if j < n_fc - 1:
            h = jnp.maximum(h, 0.0)
    m = jnp.max(h, axis=-1, keepdims=True)
    z = h - m
    lse = jnp.log(jnp.sum(jnp.exp(z), axis=-1, keepdims=True))
    out_ref[0] = (z - lse).astype(out_ref.dtype)


# -----------------------------------------------------------------------------
# Wrapper: pack parameters + one pallas_call
# -----------------------------------------------------------------------------
def _full_spec(a):
    nd = a.ndim
    return pl.BlockSpec(a.shape, lambda b, _nd=nd: (0,) * _nd)


def pack_params(params, cfg):
    """Fold eval-BN into scale/shift, repack conv weights to (9*Cin, Cout)."""
    eps = 1e-5
    packed = []
    for li, c in enumerate(cfg["convs"]):
        p = params["conv%d" % (li + 1)]
        # (Cout, Cin, 3, 3) -> rows ordered (ky, kx, cin), cols = cout
        wmat = jnp.transpose(p["w"], (2, 3, 1, 0)).reshape(9 * c["cin"],
                                                           c["cout"])
        scale = p["gamma"] / jnp.sqrt(p["var"] + eps)
        shift = p["beta"] - p["mean"] * scale
        packed += [wmat,
                   p["b"].reshape(1, c["cout"]),
                   scale.reshape(1, c["cout"]),
                   shift.reshape(1, c["cout"])]
    for j in range(len(cfg["fcs"])):
        w, b = params["fc%d" % (j + 1)]
        packed += [w, b.reshape(1, -1)]
    return packed


def emotion_forward(packed, x_nchw, cfg):
    N = cfg["batch"]
    convs = cfg["convs"]
    labels = cfg["labels"]
    c0 = convs[0]
    R0 = c0["R"]
    # Cin=1 so NCHW == NHWC; per-image rows ordered (h, w), 1 channel lane.
    x3 = x_nchw.astype(jnp.float32).reshape(N, R0, 1)
    args = [x3] + list(packed)

    in_specs = [pl.BlockSpec((1, R0, 1), lambda b: (b, 0, 0))]
    in_specs += [_full_spec(a) for a in packed]

    scratch_shapes = []
    for c in convs:                                   # zero-halo padded inputs
        scratch_shapes.append(
            pltpu.VMEM((c["R"] + 2 * c["P"], c["cin"]), jnp.float32))
    for c in convs:                                   # im2col patch buffers
        scratch_shapes.append(
            pltpu.VMEM((min(c["R"], _CHUNK), 9 * c["cin"]), jnp.float32))
    for c in convs:                                   # pool staging buffers
        if c["pool"]:
            scratch_shapes.append(pltpu.VMEM((c["R"], c["cout"]), jnp.float32))
            scratch_shapes.append(
                pltpu.VMEM((c["R"] // 2, c["cout"]), jnp.float32))
    scratch_shapes.append(pltpu.VMEM((1, cfg["fcs"][0][0]), jnp.float32))

    out = pl.pallas_call(
        functools.partial(_emotion_fwd_kernel, cfg),
        out_shape=jax.ShapeDtypeStruct((N, 1, labels), jnp.float32),
        grid=(N,),
        in_specs=in_specs,
        out_specs=pl.BlockSpec((1, 1, labels), lambda b: (b, 0, 0)),
        scratch_shapes=scratch_shapes,
        compiler_params=pltpu.CompilerParams(
            dimension_semantics=("parallel",),   # 2nd TensorCore on v7x
            vmem_limit_bytes=32 * 1024 * 1024),
    )(*args)
    return out.reshape(N, labels)


# -----------------------------------------------------------------------------
# Deterministic synthetic parameters (PyTorch-layout) + pure-JAX reference
# -----------------------------------------------------------------------------
def init_params(key, nf, num_labels, width, height):
    keys = iter(jax.random.split(key, 64))

    def conv_p(cin, cout):
        return dict(
            w=0.1 * jax.random.normal(next(keys), (cout, cin, 3, 3),
                                      jnp.float32),
            b=0.05 * jax.random.normal(next(keys), (cout,), jnp.float32),
            gamma=1.0 + 0.1 * jax.random.normal(next(keys), (cout,),
                                                jnp.float32),
            beta=0.1 * jax.random.normal(next(keys), (cout,), jnp.float32),
            mean=jnp.zeros((cout,), jnp.float32),   # fresh eval-mode BN stats
            var=jnp.ones((cout,), jnp.float32))

    def fc_p(fin, fout):
        return (0.1 * jax.random.normal(next(keys), (fin, fout), jnp.float32),
                0.05 * jax.random.normal(next(keys), (fout,), jnp.float32))

    p = {}
    chans = [(1, nf), (nf, 2 * nf), (2 * nf, 2 * nf), (2 * nf, 4 * nf),
             (4 * nf, 4 * nf), (4 * nf, 8 * nf), (8 * nf, 8 * nf)]
    for i, (ci, co) in enumerate(chans):
        p["conv%d" % (i + 1)] = conv_p(ci, co)
    flat = 8 * nf * (width // 16) * (height // 16)
    p["fc1"] = fc_p(flat, 8 * nf)
    p["fc2"] = fc_p(8 * nf, 4 * nf)
    p["fc3"] = fc_p(4 * nf, 2 * nf)
    p["fc4"] = fc_p(2 * nf, num_labels)
    return p


def reference_forward(params, x_nchw, cfg):
    """Pure-JAX (XLA) reference matching the PyTorch module in eval mode."""
    eps = 1e-5
    x = jnp.transpose(x_nchw, (0, 2, 3, 1))                   # NCHW -> NHWC
    for li, c in enumerate(cfg["convs"]):
        p = params["conv%d" % (li + 1)]
        w = jnp.transpose(p["w"], (2, 3, 1, 0))               # OIHW -> HWIO
        x = jax.lax.conv_general_dilated(
            x, w, window_strides=(1, 1), padding=((1, 1), (1, 1)),
            dimension_numbers=("NHWC", "HWIO", "NHWC"))
        x = jnp.maximum(x + p["b"], 0.0)                      # relu(conv + b)
        scale = p["gamma"] / jnp.sqrt(p["var"] + eps)
        x = x * scale + (p["beta"] - p["mean"] * scale)       # eval BatchNorm
        if c["pool"]:
            Nb, Hh, Ww, C = x.shape
            x = x.reshape(Nb, Hh // 2, 2, Ww // 2, 2, C).max(axis=(2, 4))
    Nb = x.shape[0]
    x = jnp.transpose(x, (0, 3, 1, 2)).reshape(Nb, -1)        # NCHW flatten
    for j in range(len(cfg["fcs"])):
        w, b = params["fc%d" % (j + 1)]
        x = x @ w + b
        if j < len(cfg["fcs"]) - 1:
            x = jnp.maximum(x, 0.0)
    return jax.nn.log_softmax(x, axis=-1)


# -----------------------------------------------------------------------------
if __name__ == "__main__":
    NF, LABELS, WIDTH, HEIGHT, BATCH = 8, 7, 16, 16, 2
    cfg = make_config(NF, LABELS, WIDTH, HEIGHT, BATCH)

    key = jax.random.PRNGKey(0)
    kp, kx = jax.random.split(key)
    params = init_params(kp, NF, LABELS, WIDTH, HEIGHT)
    x = jax.random.normal(kx, (BATCH, 1, HEIGHT, WIDTH), jnp.float32)  # NCHW

    packed = pack_params(params, cfg)

    run = jax.jit(lambda pk, xx: emotion_forward(pk, xx, cfg))
    out = jax.block_until_ready(run(packed, x))

    ref = jax.block_until_ready(
        jax.jit(lambda p, xx: reference_forward(p, xx, cfg))(params, x))

    assert out.shape == (BATCH, LABELS)
    assert bool(jnp.all(jnp.isfinite(out)))
    assert bool(jnp.allclose(jnp.sum(jnp.exp(out), axis=1), 1.0, atol=1e-4))
    assert bool(jnp.allclose(out, ref, atol=1e-3, rtol=1e-3)), (
        "mismatch vs pure-JAX reference, max abs err = %g"
        % float(jnp.max(jnp.abs(out - ref))))
    print("KERNEL_OK")
</pallas_src>

<mosaic_0001>
module attributes {stable_mosaic.version = 11 : i64} {
  func.func @_emotion_fwd_kernel(%arg0: i32, %arg1: memref<1x256x1xf32, #tpu.memory_space<vmem>>, %arg2: memref<9x8xf32, #tpu.memory_space<vmem>>, %arg3: memref<1x8xf32, #tpu.memory_space<vmem>>, %arg4: memref<1x8xf32, #tpu.memory_space<vmem>>, %arg5: memref<1x8xf32, #tpu.memory_space<vmem>>, %arg6: memref<72x16xf32, #tpu.memory_space<vmem>>, %arg7: memref<1x16xf32, #tpu.memory_space<vmem>>, %arg8: memref<1x16xf32, #tpu.memory_space<vmem>>, %arg9: memref<1x16xf32, #tpu.memory_space<vmem>>, %arg10: memref<144x16xf32, #tpu.memory_space<vmem>>, %arg11: memref<1x16xf32, #tpu.memory_space<vmem>>, %arg12: memref<1x16xf32, #tpu.memory_space<vmem>>, %arg13: memref<1x16xf32, #tpu.memory_space<vmem>>, %arg14: memref<144x32xf32, #tpu.memory_space<vmem>>, %arg15: memref<1x32xf32, #tpu.memory_space<vmem>>, %arg16: memref<1x32xf32, #tpu.memory_space<vmem>>, %arg17: memref<1x32xf32, #tpu.memory_space<vmem>>, %arg18: memref<288x32xf32, #tpu.memory_space<vmem>>, %arg19: memref<1x32xf32, #tpu.memory_space<vmem>>, %arg20: memref<1x32xf32, #tpu.memory_space<vmem>>, %arg21: memref<1x32xf32, #tpu.memory_space<vmem>>, %arg22: memref<288x64xf32, #tpu.memory_space<vmem>>, %arg23: memref<1x64xf32, #tpu.memory_space<vmem>>, %arg24: memref<1x64xf32, #tpu.memory_space<vmem>>, %arg25: memref<1x64xf32, #tpu.memory_space<vmem>>, %arg26: memref<576x64xf32, #tpu.memory_space<vmem>>, %arg27: memref<1x64xf32, #tpu.memory_space<vmem>>, %arg28: memref<1x64xf32, #tpu.memory_space<vmem>>, %arg29: memref<1x64xf32, #tpu.memory_space<vmem>>, %arg30: memref<64x64xf32, #tpu.memory_space<vmem>>, %arg31: memref<1x64xf32, #tpu.memory_space<vmem>>, %arg32: memref<64x32xf32, #tpu.memory_space<vmem>>, %arg33: memref<1x32xf32, #tpu.memory_space<vmem>>, %arg34: memref<32x16xf32, #tpu.memory_space<vmem>>, %arg35: memref<1x16xf32, #tpu.memory_space<vmem>>, %arg36: memref<16x7xf32, #tpu.memory_space<vmem>>, %arg37: memref<1x7xf32, #tpu.memory_space<vmem>>, %arg38: memref<1x1x7xf32, #tpu.memory_space<vmem>>, %arg39: memref<304x1xf32, #tpu.memory_space<vmem>>, %arg40: memref<96x8xf32, #tpu.memory_space<vmem>>, %arg41: memref<96x16xf32, #tpu.memory_space<vmem>>, %arg42: memref<32x16xf32, #tpu.memory_space<vmem>>, %arg43: memref<32x32xf32, #tpu.memory_space<vmem>>, %arg44: memref<20x32xf32, #tpu.memory_space<vmem>>, %arg45: memref<20x64xf32, #tpu.memory_space<vmem>>, %arg46: memref<128x9xf32, #tpu.memory_space<vmem>>, %arg47: memref<64x72xf32, #tpu.memory_space<vmem>>, %arg48: memref<64x144xf32, #tpu.memory_space<vmem>>, %arg49: memref<16x144xf32, #tpu.memory_space<vmem>>, %arg50: memref<16x288xf32, #tpu.memory_space<vmem>>, %arg51: memref<4x288xf32, #tpu.memory_space<vmem>>, %arg52: memref<4x576xf32, #tpu.memory_space<vmem>>, %arg53: memref<256x8xf32, #tpu.memory_space<vmem>>, %arg54: memref<128x8xf32, #tpu.memory_space<vmem>>, %arg55: memref<64x16xf32, #tpu.memory_space<vmem>>, %arg56: memref<32x16xf32, #tpu.memory_space<vmem>>, %arg57: memref<16x32xf32, #tpu.memory_space<vmem>>, %arg58: memref<8x32xf32, #tpu.memory_space<vmem>>, %arg59: memref<4x64xf32, #tpu.memory_space<vmem>>, %arg60: memref<2x64xf32, #tpu.memory_space<vmem>>, %arg61: memref<1x64xf32, #tpu.memory_space<vmem>>) attributes {dimension_semantics = [#tpu.dimension_semantics<parallel>], iteration_bounds = array<i64: 2>, scalar_prefetch = 0 : i64, scratch_operands = 23 : i64, tpu.core_type = #tpu.core_type<tc>, window_params = [{transform_indices = @transform_0, window_bounds = array<i64: 1, 256, 1>}, {pipeline_mode = #tpu.pipeline_mode<synchronous>, transform_indices = @transform_1, window_bounds = array<i64: 9, 8>}, {pipeline_mode = #tpu.pipeline_mode<synchronous>, transform_indices = @transform_2, window_bounds = array<i64: 1, 8>}, {pipeline_mode = #tpu.pipeline_mode<synchronous>, transform_indices = @transform_3, window_bounds = array<i64: 1, 8>}, {pipeline_mode = #tpu.pipeline_mode<synchronous>, transform_indices = @transform_4, window_bounds = array<i64: 1, 8>}, {pipeline_mode = #tpu.pipeline_mode<synchronous>, transform_indices = @transform_5, window_bounds = array<i64: 72, 16>}, {pipeline_mode = #tpu.pipeline_mode<synchronous>, transform_indices = @transform_6, window_bounds = array<i64: 1, 16>}, {pipeline_mode = #tpu.pipeline_mode<synchronous>, transform_indices = @transform_7, window_bounds = array<i64: 1, 16>}, {pipeline_mode = #tpu.pipeline_mode<synchronous>, transform_indices = @transform_8, window_bounds = array<i64: 1, 16>}, {pipeline_mode = #tpu.pipeline_mode<synchronous>, transform_indices = @transform_9, window_bounds = array<i64: 144, 16>}, {pipeline_mode = #tpu.pipeline_mode<synchronous>, transform_indices = @transform_10, window_bounds = array<i64: 1, 16>}, {pipeline_mode = #tpu.pipeline_mode<synchronous>, transform_indices = @transform_11, window_bounds = array<i64: 1, 16>}, {pipeline_mode = #tpu.pipeline_mode<synchronous>, transform_indices = @transform_12, window_bounds = array<i64: 1, 16>}, {pipeline_mode = #tpu.pipeline_mode<synchronous>, transform_indices = @transform_13, window_bounds = array<i64: 144, 32>}, {pipeline_mode = #tpu.pipeline_mode<synchronous>, transform_indices = @transform_14, window_bounds = array<i64: 1, 32>}, {pipeline_mode = #tpu.pipeline_mode<synchronous>, transform_indices = @transform_15, window_bounds = array<i64: 1, 32>}, {pipeline_mode = #tpu.pipeline_mode<synchronous>, transform_indices = @transform_16, window_bounds = array<i64: 1, 32>}, {pipeline_mode = #tpu.pipeline_mode<synchronous>, transform_indices = @transform_17, window_bounds = array<i64: 288, 32>}, {pipeline_mode = #tpu.pipeline_mode<synchronous>, transform_indices = @transform_18, window_bounds = array<i64: 1, 32>}, {pipeline_mode = #tpu.pipeline_mode<synchronous>, transform_indices = @transform_19, window_bounds = array<i64: 1, 32>}, {pipeline_mode = #tpu.pipeline_mode<synchronous>, transform_indices = @transform_20, window_bounds = array<i64: 1, 32>}, {pipeline_mode = #tpu.pipeline_mode<synchronous>, transform_indices = @transform_21, window_bounds = array<i64: 288, 64>}, {pipeline_mode = #tpu.pipeline_mode<synchronous>, transform_indices = @transform_22, window_bounds = array<i64: 1, 64>}, {pipeline_mode = #tpu.pipeline_mode<synchronous>, transform_indices = @transform_23, window_bounds = array<i64: 1, 64>}, {pipeline_mode = #tpu.pipeline_mode<synchronous>, transform_indices = @transform_24, window_bounds = array<i64: 1, 64>}, {pipeline_mode = #tpu.pipeline_mode<synchronous>, transform_indices = @transform_25, window_bounds = array<i64: 576, 64>}, {pipeline_mode = #tpu.pipeline_mode<synchronous>, transform_indices = @transform_26, window_bounds = array<i64: 1, 64>}, {pipeline_mode = #tpu.pipeline_mode<synchronous>, transform_indices = @transform_27, window_bounds = array<i64: 1, 64>}, {pipeline_mode = #tpu.pipeline_mode<synchronous>, transform_indices = @transform_28, window_bounds = array<i64: 1, 64>}, {pipeline_mode = #tpu.pipeline_mode<synchronous>, transform_indices = @transform_29, window_bounds = array<i64: 64, 64>}, {pipeline_mode = #tpu.pipeline_mode<synchronous>, transform_indices = @transform_30, window_bounds = array<i64: 1, 64>}, {pipeline_mode = #tpu.pipeline_mode<synchronous>, transform_indices = @transform_31, window_bounds = array<i64: 64, 32>}, {pipeline_mode = #tpu.pipeline_mode<synchronous>, transform_indices = @transform_32, window_bounds = array<i64: 1, 32>}, {pipeline_mode = #tpu.pipeline_mode<synchronous>, transform_indices = @transform_33, window_bounds = array<i64: 32, 16>}, {pipeline_mode = #tpu.pipeline_mode<synchronous>, transform_indices = @transform_34, window_bounds = array<i64: 1, 16>}, {pipeline_mode = #tpu.pipeline_mode<synchronous>, transform_indices = @transform_35, window_bounds = array<i64: 16, 7>}, {pipeline_mode = #tpu.pipeline_mode<synchronous>, transform_indices = @transform_36, window_bounds = array<i64: 1, 7>}, {transform_indices = @transform_37, window_bounds = array<i64: 1, 1, 7>}]} {
    %cst = arith.constant 0.000000e+00 : f32
    %0 = vector.broadcast %cst : f32 to vector<24x1xf32>
    %c0 = arith.constant 0 : index
    %c0_0 = arith.constant 0 : index
    %1 = vector.load %arg39[%c0, %c0_0] : memref<304x1xf32, #tpu.memory_space<vmem>>, vector<24x1xf32>
    tpu.vector_store %arg39[%c0, %c0_0], %0 {strides = array<i32>} : memref<304x1xf32, #tpu.memory_space<vmem>>, vector<24x1xf32>,
    %cst_1 = arith.constant 0.000000e+00 : f32
    %2 = vector.broadcast %cst_1 : f32 to vector<24x1xf32>
    %c280 = arith.constant 280 : index
    %c0_2 = arith.constant 0 : index
    %3 = vector.load %arg39[%c280, %c0_2] : memref<304x1xf32, #tpu.memory_space<vmem>>, vector<24x1xf32>
    tpu.vector_store %arg39[%c280, %c0_2], %2 {strides = array<i32>} : memref<304x1xf32, #tpu.memory_space<vmem>>, vector<24x1xf32>,
    %c0_3 = arith.constant 0 : index
    %c0_4 = arith.constant 0 : index
    %c0_5 = arith.constant 0 : index
    %4 = vector.load %arg1[%c0_3, %c0_4, %c0_5] : memref<1x256x1xf32, #tpu.memory_space<vmem>>, vector<1x256x1xf32>
    %5 = vector.shape_cast %4 : vector<1x256x1xf32> to vector<256x1xf32>
    %c24 = arith.constant 24 : index
    %c0_6 = arith.constant 0 : index
    %6 = vector.load %arg39[%c24, %c0_6] : memref<304x1xf32, #tpu.memory_space<vmem>>, vector<256x1xf32>
    tpu.vector_store %arg39[%c24, %c0_6], %5 {strides = array<i32>} : memref<304x1xf32, #tpu.memory_space<vmem>>, vector<256x1xf32>,
    %cst_7 = arith.constant 0.000000e+00 : f32
    %7 = vector.broadcast %cst_7 : f32 to vector<16x8xf32>
    %c0_8 = arith.constant 0 : index
    %c0_9 = arith.constant 0 : index
    %8 = vector.load %arg40[%c0_8, %c0_9] : memref<96x8xf32, #tpu.memory_space<vmem>>, vector<16x8xf32>
    tpu.vector_store %arg40[%c0_8, %c0_9], %7 {strides = array<i32>} : memref<96x8xf32, #tpu.memory_space<vmem>>, vector<16x8xf32>,
    %cst_10 = arith.constant 0.000000e+00 : f32
    %9 = vector.broadcast %cst_10 : f32 to vector<16x8xf32>
    %c80 = arith.constant 80 : index
    %c0_11 = arith.constant 0 : index
    %10 = vector.load %arg40[%c80, %c0_11] : memref<96x8xf32, #tpu.memory_space<vmem>>, vector<16x8xf32>
    tpu.vector_store %arg40[%c80, %c0_11], %9 {strides = array<i32>} : memref<96x8xf32, #tpu.memory_space<vmem>>, vector<16x8xf32>,
    %11 = tpu.iota {dimensions = array<i32: 0>} : vector<128x1xi32>
    %c0_i32 = arith.constant 0 : i32
    %12 = vector.broadcast %c0_i32 : i32 to vector<128x1xi32>
    %13 = arith.addi %11, %12 : vector<128x1xi32>
    %c15_i32 = arith.constant 15 : i32
    %14 = vector.broadcast %c15_i32 : i32 to vector<128x1xi32>
    %15 = arith.andi %13, %14 : vector<128x1xi32>
    %c0_i32_12 = arith.constant 0 : i32
    %16 = vector.broadcast %c0_i32_12 : i32 to vector<128x1xi32>
    %17 = arith.cmpi sgt, %15, %16 : vector<128x1xi32>
    %c15_i32_13 = arith.constant 15 : i32
    %18 = vector.broadcast %c15_i32_13 : i32 to vector<128x1xi32>
    %19 = arith.cmpi slt, %15, %18 : vector<128x1xi32>
    %c7 = arith.constant 7 : index
    %c0_14 = arith.constant 0 : index
    %20 = vector.load %arg39[%c7, %c0_14] : memref<304x1xf32, #tpu.memory_space<vmem>>, vector<128x1xf32>
    %cst_15 = arith.constant 0.000000e+00 : f32
    %21 = vector.broadcast %cst_15 : f32 to vector<128x1xf32>
    %22 = arith.select %17, %20, %21 : vector<128x1xi1>, vector<128x1xf32>
    %c0_16 = arith.constant 0 : index
    %c0_17 = arith.constant 0 : index
    %23 = vector.load %arg46[%c0_16, %c0_17] : memref<128x9xf32, #tpu.memory_space<vmem>>, vector<128x1xf32>
    tpu.vector_store %arg46[%c0_16, %c0_17], %22 {strides = array<i32>} : memref<128x9xf32, #tpu.memory_space<vmem>>, vector<128x1xf32>,
    %c8 = arith.constant 8 : index
    %c0_18 = arith.constant 0 : index
    %24 = vector.load %arg39[%c8, %c0_18] : memref<304x1xf32, #tpu.memory_space<vmem>>, vector<128x1xf32>
    %c0_19 = arith.constant 0 : index
    %c1 = arith.constant 1 : index
    %25 = vector.load %arg46[%c0_19, %c1] : memref<128x9xf32, #tpu.memory_space<vmem>>, vector<128x1xf32>
    tpu.vector_store %arg46[%c0_19, %c1], %24 {strides = array<i32>} : memref<128x9xf32, #tpu.memory_space<vmem>>, vector<128x1xf32>,
    %c9 = arith.constant 9 : index
    %c0_20 = arith.constant 0 : index
    %26 = vector.load %arg39[%c9, %c0_20] : memref<304x1xf32, #tpu.memory_space<vmem>>, vector<128x1xf32>
    %cst_21 = arith.constant 0.000000e+00 : f32
    %27 = vector.broadcast %cst_21 : f32 to vector<128x1xf32>
    %28 = arith.select %19, %26, %27 : vector<128x1xi1>, vector<128x1xf32>
    %c0_22 = arith.constant 0 : index
    %c2 = arith.constant 2 : index
    %29 = vector.load %arg46[%c0_22, %c2] : memref<128x9xf32, #tpu.memory_space<vmem>>, vector<128x1xf32>
    tpu.vector_store %arg46[%c0_22, %c2], %28 {strides = array<i32>} : memref<128x9xf32, #tpu.memory_space<vmem>>, vector<128x1xf32>,
    %c23 = arith.constant 23 : index
    %c0_23 = arith.constant 0 : index
    %30 = vector.load %arg39[%c23, %c0_23] : memref<304x1xf32, #tpu.memory_space<vmem>>, vector<128x1xf32>
    %cst_24 = arith.constant 0.000000e+00 : f32
    %31 = vector.broadcast %cst_24 : f32 to vector<128x1xf32>
    %32 = arith.select %17, %30, %31 : vector<128x1xi1>, vector<128x1xf32>
    %c0_25 = arith.constant 0 : index
    %c3 = arith.constant 3 : index
    %33 = vector.load %arg46[%c0_25, %c3] : memref<128x9xf32, #tpu.memory_space<vmem>>, vector<128x1xf32>
    tpu.vector_store %arg46[%c0_25, %c3], %32 {strides = array<i32>} : memref<128x9xf32, #tpu.memory_space<vmem>>, vector<128x1xf32>,
    %c24_26 = arith.constant 24 : index
    %c0_27 = arith.constant 0 : index
    %34 = vector.load %arg39[%c24_26, %c0_27] : memref<304x1xf32, #tpu.memory_space<vmem>>, vector<128x1xf32>
    %c0_28 = arith.constant 0 : index
    %c4 = arith.constant 4 : index
    %35 = vector.load %arg46[%c0_28, %c4] : memref<128x9xf32, #tpu.memory_space<vmem>>, vector<128x1xf32>
    tpu.vector_store %arg46[%c0_28, %c4], %34 {strides = array<i32>} : memref<128x9xf32, #tpu.memory_space<vmem>>, vector<128x1xf32>,
    %c25 = arith.constant 25 : index
    %c0_29 = arith.constant 0 : index
    %36 = vector.load %arg39[%c25, %c0_29] : memref<304x1xf32, #tpu.memory_space<vmem>>, vector<128x1xf32>
    %cst_30 = arith.constant 0.000000e+00 : f32
    %37 = vector.broadcast %cst_30 : f32 to vector<128x1xf32>
    %38 = arith.select %19, %36, %37 : vector<128x1xi1>, vector<128x1xf32>
    %c0_31 = arith.constant 0 : index
    %c5 = arith.constant 5 : index
    %39 = vector.load %arg46[%c0_31, %c5] : memref<128x9xf32, #tpu.memory_space<vmem>>, vector<128x1xf32>
    tpu.vector_store %arg46[%c0_31, %c5], %38 {strides = array<i32>} : memref<128x9xf32, #tpu.memory_space<vmem>>, vector<128x1xf32>,
    %c39 = arith.constant 39 : index
    %c0_32 = arith.constant 0 : index
    %40 = vector.load %arg39[%c39, %c0_32] : memref<304x1xf32, #tpu.memory_space<vmem>>, vector<128x1xf32>
    %cst_33 = arith.constant 0.000000e+00 : f32
    %41 = vector.broadcast %cst_33 : f32 to vector<128x1xf32>
    %42 = arith.select %17, %40, %41 : vector<128x1xi1>, vector<128x1xf32>
    %c0_34 = arith.constant 0 : index
    %c6 = arith.constant 6 : index
    %43 = vector.load %arg46[%c0_34, %c6] : memref<128x9xf32, #tpu.memory_space<vmem>>, vector<128x1xf32>
    tpu.vector_store %arg46[%c0_34, %c6], %42 {strides = array<i32>} : memref<128x9xf32, #tpu.memory_space<vmem>>, vector<128x1xf32>,
    %c40 = arith.constant 40 : index
    %c0_35 = arith.constant 0 : index
    %44 = vector.load %arg39[%c40, %c0_35] : memref<304x1xf32, #tpu.memory_space<vmem>>, vector<128x1xf32>
    %c0_36 = arith.constant 0 : index
    %c7_37 = arith.constant 7 : index
    %45 = vector.load %arg46[%c0_36, %c7_37] : memref<128x9xf32, #tpu.memory_space<vmem>>, vector<128x1xf32>
    tpu.vector_store %arg46[%c0_36, %c7_37], %44 {strides = array<i32>} : memref<128x9xf32, #tpu.memory_space<vmem>>, vector<128x1xf32>,
    %c41 = arith.constant 41 : index
    %c0_38 = arith.constant 0 : index
    %46 = vector.load %arg39[%c41, %c0_38] : memref<304x1xf32, #tpu.memory_space<vmem>>, vector<128x1xf32>
    %cst_39 = arith.constant 0.000000e+00 : f32
    %47 = vector.broadcast %cst_39 : f32 to vector<128x1xf32>
    %48 = arith.select %19, %46, %47 : vector<128x1xi1>, vector<128x1xf32>
    %c0_40 = arith.constant 0 : index
    %c8_41 = arith.constant 8 : index
    %49 = vector.load %arg46[%c0_40, %c8_41] : memref<128x9xf32, #tpu.memory_space<vmem>>, vector<128x1xf32>
    tpu.vector_store %arg46[%c0_40, %c8_41], %48 {strides = array<i32>} : memref<128x9xf32, #tpu.memory_space<vmem>>, vector<128x1xf32>,
    %c0_42 = arith.constant 0 : index
    %c0_43 = arith.constant 0 : index
    %50 = vector.load %arg46[%c0_42, %c0_43] : memref<128x9xf32, #tpu.memory_space<vmem>>, vector<128x9xf32>
    %c0_44 = arith.constant 0 : index
    %c0_45 = arith.constant 0 : index
    %51 = vector.load %arg2[%c0_44, %c0_45] : memref<9x8xf32, #tpu.memory_space<vmem>>, vector<9x8xf32>
    %cst_46 = arith.constant dense<0.000000e+00> : vector<128x8xf32>
    %52 = tpu.matmul %50, %51, %cst_46 {dimension_numbers = #tpu.dot_dimension_numbers<[1], [0], [0], [1], [0, 0, 1, 1], [], []>} : vector<128x9xf32>, vector<9x8xf32>, vector<128x8xf32> -> vector<128x8xf32>
    %c0_47 = arith.constant 0 : index
    %c0_48 = arith.constant 0 : index
    %53 = vector.load %arg3[%c0_47, %c0_48] : memref<1x8xf32, #tpu.memory_space<vmem>>, vector<1x8xf32>
    %54 = vector.broadcast %53 : vector<1x8xf32> to vector<128x8xf32>
    %55 = arith.addf %52, %54 : vector<128x8xf32>
    %cst_49 = arith.constant 0.000000e+00 : f32
    %56 = vector.broadcast %cst_49 : f32 to vector<128x8xf32>
    %57 = arith.maximumf %55, %56 : vector<128x8xf32>
    %c0_50 = arith.constant 0 : index
    %c0_51 = arith.constant 0 : index
    %58 = vector.load %arg4[%c0_50, %c0_51] : memref<1x8xf32, #tpu.memory_space<vmem>>, vector<1x8xf32>
    %59 = vector.broadcast %58 : vector<1x8xf32> to vector<128x8xf32>
    %60 = arith.mulf %57, %59 : vector<128x8xf32>
    %c0_52 = arith.constant 0 : index
    %c0_53 = arith.constant 0 : index
    %61 = vector.load %arg5[%c0_52, %c0_53] : memref<1x8xf32, #tpu.memory_space<vmem>>, vector<1x8xf32>
    %62 = vector.broadcast %61 : vector<1x8xf32> to vector<128x8xf32>
    %63 = arith.addf %60, %62 : vector<128x8xf32>
    %c0_54 = arith.constant 0 : index
    %c0_55 = arith.constant 0 : index
    %64 = vector.load %arg53[%c0_54, %c0_55] : memref<256x8xf32, #tpu.memory_space<vmem>>, vector<128x8xf32>
    tpu.vector_store %arg53[%c0_54, %c0_55], %63 {strides = array<i32>} : memref<256x8xf32, #tpu.memory_space<vmem>>, vector<128x8xf32>,
    %65 = tpu.iota {dimensions = array<i32: 0>} : vector<128x1xi32>
    %c128_i32 = arith.constant 128 : i32
    %66 = vector.broadcast %c128_i32 : i32 to vector<128x1xi32>
    %67 = arith.addi %65, %66 : vector<128x1xi32>
    %c15_i32_56 = arith.constant 15 : i32
    %68 = vector.broadcast %c15_i32_56 : i32 to vector<128x1xi32>
    %69 = arith.andi %67, %68 : vector<128x1xi32>
    %c0_i32_57 = arith.constant 0 : i32
    %70 = vector.broadcast %c0_i32_57 : i32 to vector<128x1xi32>
    %71 = arith.cmpi sgt, %69, %70 : vector<128x1xi32>
    %c15_i32_58 = arith.constant 15 : i32
    %72 = vector.broadcast %c15_i32_58 : i32 to vector<128x1xi32>
    %73 = arith.cmpi slt, %69, %72 : vector<128x1xi32>
    %c135 = arith.constant 135 : index
    %c0_59 = arith.constant 0 : index
    %74 = vector.load %arg39[%c135, %c0_59] : memref<304x1xf32, #tpu.memory_space<vmem>>, vector<128x1xf32>
    %cst_60 = arith.constant 0.000000e+00 : f32
    %75 = vector.broadcast %cst_60 : f32 to vector<128x1xf32>
    %76 = arith.select %71, %74, %75 : vector<128x1xi1>, vector<128x1xf32>
    %c0_61 = arith.constant 0 : index
    %c0_62 = arith.constant 0 : index
    %77 = vector.load %arg46[%c0_61, %c0_62] : memref<128x9xf32, #tpu.memory_space<vmem>>, vector<128x1xf32>
    tpu.vector_store %arg46[%c0_61, %c0_62], %76 {strides = array<i32>} : memref<128x9xf32, #tpu.memory_space<vmem>>, vector<128x1xf32>,
    %c136 = arith.constant 136 : index
    %c0_63 = arith.constant 0 : index
    %78 = vector.load %arg39[%c136, %c0_63] : memref<304x1xf32, #tpu.memory_space<vmem>>, vector<128x1xf32>
    %c0_64 = arith.constant 0 : index
    %c1_65 = arith.constant 1 : index
    %79 = vector.load %arg46[%c0_64, %c1_65] : memref<128x9xf32, #tpu.memory_space<vmem>>, vector<128x1xf32>
    tpu.vector_store %arg46[%c0_64, %c1_65], %78 {strides = array<i32>} : memref<128x9xf32, #tpu.memory_space<vmem>>, vector<128x1xf32>,
    %c137 = arith.constant 137 : index
    %c0_66 = arith.constant 0 : index
    %80 = vector.load %arg39[%c137, %c0_66] : memref<304x1xf32, #tpu.memory_space<vmem>>, vector<128x1xf32>
    %cst_67 = arith.constant 0.000000e+00 : f32
    %81 = vector.broadcast %cst_67 : f32 to vector<128x1xf32>
    %82 = arith.select %73, %80, %81 : vector<128x1xi1>, vector<128x1xf32>
    %c0_68 = arith.constant 0 : index
    %c2_69 = arith.constant 2 : index
    %83 = vector.load %arg46[%c0_68, %c2_69] : memref<128x9xf32, #tpu.memory_space<vmem>>, vector<128x1xf32>
    tpu.vector_store %arg46[%c0_68, %c2_69], %82 {strides = array<i32>} : memref<128x9xf32, #tpu.memory_space<vmem>>, vector<128x1xf32>,
    %c151 = arith.constant 151 : index
    %c0_70 = arith.constant 0 : index
    %84 = vector.load %arg39[%c151, %c0_70] : memref<304x1xf32, #tpu.memory_space<vmem>>, vector<128x1xf32>
    %cst_71 = arith.constant 0.000000e+00 : f32
    %85 = vector.broadcast %cst_71 : f32 to vector<128x1xf32>
    %86 = arith.select %71, %84, %85 : vector<128x1xi1>, vector<128x1xf32>
    %c0_72 = arith.constant 0 : index
    %c3_73 = arith.constant 3 : index
    %87 = vector.load %arg46[%c0_72, %c3_73] : memref<128x9xf32, #tpu.memory_space<vmem>>, vector<128x1xf32>
    tpu.vector_store %arg46[%c0_72, %c3_73], %86 {strides = array<i32>} : memref<128x9xf32, #tpu.memory_space<vmem>>, vector<128x1xf32>,
    %c152 = arith.constant 152 : index
    %c0_74 = arith.constant 0 : index
    %88 = vector.load %arg39[%c152, %c0_74] : memref<304x1xf32, #tpu.memory_space<vmem>>, vector<128x1xf32>
    %c0_75 = arith.constant 0 : index
    %c4_76 = arith.constant 4 : index
    %89 = vector.load %arg46[%c0_75, %c4_76] : memref<128x9xf32, #tpu.memory_space<vmem>>, vector<128x1xf32>
    tpu.vector_store %arg46[%c0_75, %c4_76], %88 {strides = array<i32>} : memref<128x9xf32, #tpu.memory_space<vmem>>, vector<128x1xf32>,
    %c153 = arith.constant 153 : index
    %c0_77 = arith.constant 0 : index
    %90 = vector.load %arg39[%c153, %c0_77] : memref<304x1xf32, #tpu.memory_space<vmem>>, vector<128x1xf32>
    %cst_78 = arith.constant 0.000000e+00 : f32
    %91 = vector.broadcast %cst_78 : f32 to vector<128x1xf32>
    %92 = arith.select %73, %90, %91 : vector<128x1xi1>, vector<128x1xf32>
    %c0_79 = arith.constant 0 : index
    %c5_80 = arith.constant 5 : index
    %93 = vector.load %arg46[%c0_79, %c5_80] : memref<128x9xf32, #tpu.memory_space<vmem>>, vector<128x1xf32>
    tpu.vector_store %arg46[%c0_79, %c5_80], %92 {strides = array<i32>} : memref<128x9xf32, #tpu.memory_space<vmem>>, vector<128x1xf32>,
    %c167 = arith.constant 167 : index
    %c0_81 = arith.constant 0 : index
    %94 = vector.load %arg39[%c167, %c0_81] : memref<304x1xf32, #tpu.memory_space<vmem>>, vector<128x1xf32>
    %cst_82 = arith.constant 0.000000e+00 : f32
    %95 = vector.broadcast %cst_82 : f32 to vector<128x1xf32>
    %96 = arith.select %71, %94, %95 : vector<128x1xi1>, vector<128x1xf32>
    %c0_83 = arith.constant 0 : index
    %c6_84 = arith.constant 6 : index
    %97 = vector.load %arg46[%c0_83, %c6_84] : memref<128x9xf32, #tpu.memory_space<vmem>>, vector<128x1xf32>
    tpu.vector_store %arg46[%c0_83, %c6_84], %96 {strides = array<i32>} : memref<128x9xf32, #tpu.memory_space<vmem>>, vector<128x1xf32>,
    %c168 = arith.constant 168 : index
    %c0_85 = arith.constant 0 : index
    %98 = vector.load %arg39[%c168, %c0_85] : memref<304x1xf32, #tpu.memory_space<vmem>>, vector<128x1xf32>
    %c0_86 = arith.constant 0 : index
    %c7_87 = arith.constant 7 : index
    %99 = vector.load %arg46[%c0_86, %c7_87] : memref<128x9xf32, #tpu.memory_space<vmem>>, vector<128x1xf32>
    tpu.vector_store %arg46[%c0_86, %c7_87], %98 {strides = array<i32>} : memref<128x9xf32, #tpu.memory_space<vmem>>, vector<128x1xf32>,
    %c169 = arith.constant 169 : index
    %c0_88 = arith.constant 0 : index
    %100 = vector.load %arg39[%c169, %c0_88] : memref<304x1xf32, #tpu.memory_space<vmem>>, vector<128x1xf32>
    %cst_89 = arith.constant 0.000000e+00 : f32
    %101 = vector.broadcast %cst_89 : f32 to vector<128x1xf32>
    %102 = arith.select %73, %100, %101 : vector<128x1xi1>, vector<128x1xf32>
    %c0_90 = arith.constant 0 : index
    %c8_91 = arith.constant 8 : index
    %103 = vector.load %arg46[%c0_90, %c8_91] : memref<128x9xf32, #tpu.memory_space<vmem>>, vector<128x1xf32>
    tpu.vector_store %arg46[%c0_90, %c8_91], %102 {strides = array<i32>} : memref<128x9xf32, #tpu.memory_space<vmem>>, vector<128x1xf32>,
    %c0_92 = arith.constant 0 : index
    %c0_93 = arith.constant 0 : index
    %104 = vector.load %arg46[%c0_92, %c0_93] : memref<128x9xf32, #tpu.memory_space<vmem>>, vector<128x9xf32>
    %c0_94 = arith.constant 0 : index
    %c0_95 = arith.constant 0 : index
    %105 = vector.load %arg2[%c0_94, %c0_95] : memref<9x8xf32, #tpu.memory_space<vmem>>, vector<9x8xf32>
    %cst_96 = arith.constant dense<0.000000e+00> : vector<128x8xf32>
    %106 = tpu.matmul %104, %105, %cst_96 {dimension_numbers = #tpu.dot_dimension_numbers<[1], [0], [0], [1], [0, 0, 1, 1], [], []>} : vector<128x9xf32>, vector<9x8xf32>, vector<128x8xf32> -> vector<128x8xf32>
    %c0_97 = arith.constant 0 : index
    %c0_98 = arith.constant 0 : index
    %107 = vector.load %arg3[%c0_97, %c0_98] : memref<1x8xf32, #tpu.memory_space<vmem>>, vector<1x8xf32>
    %108 = vector.broadcast %107 : vector<1x8xf32> to vector<128x8xf32>
    %109 = arith.addf %106, %108 : vector<128x8xf32>
    %cst_99 = arith.constant 0.000000e+00 : f32
    %110 = vector.broadcast %cst_99 : f32 to vector<128x8xf32>
    %111 = arith.maximumf %109, %110 : vector<128x8xf32>
    %c0_100 = arith.constant 0 : index
    %c0_101 = arith.constant 0 : index
    %112 = vector.load %arg4[%c0_100, %c0_101] : memref<1x8xf32, #tpu.memory_space<vmem>>, vector<1x8xf32>
    %113 = vector.broadcast %112 : vector<1x8xf32> to vector<128x8xf32>
    %114 = arith.mulf %111, %113 : vector<128x8xf32>
    %c0_102 = arith.constant 0 : index
    %c0_103 = arith.constant 0 : index
    %115 = vector.load %arg5[%c0_102, %c0_103] : memref<1x8xf32, #tpu.memory_space<vmem>>, vector<1x8xf32>
    %116 = vector.broadcast %115 : vector<1x8xf32> to vector<128x8xf32>
    %117 = arith.addf %114, %116 : vector<128x8xf32>
    %c128 = arith.constant 128 : index
    %c0_104 = arith.constant 0 : index
    %118 = vector.load %arg53[%c128, %c0_104] : memref<256x8xf32, #tpu.memory_space<vmem>>, vector<128x8xf32>
    tpu.vector_store %arg53[%c128, %c0_104], %117 {strides = array<i32>} : memref<256x8xf32, #tpu.memory_space<vmem>>, vector<128x8xf32>,
    %c0_105 = arith.constant 0 : index
    %c0_106 = arith.constant 0 : index
    %119 = tpu.strided_load %arg53[%c0_105, %c0_106] {strides = array<i32: 2, 1>} : memref<256x8xf32, #tpu.memory_space<vmem>>, vector<128x8xf32>
    %c1_107 = arith.constant 1 : index
    %c0_108 = arith.constant 0 : index
    %120 = tpu.strided_load %arg53[%c1_107, %c0_108] {strides = array<i32: 2, 1>} : memref<256x8xf32, #tpu.memory_space<vmem>>, vector<128x8xf32>
    %121 = arith.maximumf %119, %120 : vector<128x8xf32>
    %c0_109 = arith.constant 0 : index
    %c0_110 = arith.constant 0 : index
    %122 = vector.load %arg54[%c0_109, %c0_110] : memref<128x8xf32, #tpu.memory_space<vmem>>, vector<128x8xf32>
    tpu.vector_store %arg54[%c0_109, %c0_110], %121 {strides = array<i32>} : memref<128x8xf32, #tpu.memory_space<vmem>>, vector<128x8xf32>,
    %c0_111 = arith.constant 0 : index
    %c0_112 = arith.constant 0 : index
    %123 = vector.load %arg54[%c0_111, %c0_112] : memref<128x8xf32, #tpu.memory_space<vmem>>, vector<8x8xf32>
    %c8_113 = arith.constant 8 : index
    %c0_114 = arith.constant 0 : index
    %124 = vector.load %arg54[%c8_113, %c0_114] : memref<128x8xf32, #tpu.memory_space<vmem>>, vector<8x8xf32>
    %125 = arith.maximumf %123, %124 : vector<8x8xf32>
    %c16 = arith.constant 16 : index
    %c0_115 = arith.constant 0 : index
    %126 = vector.load %arg40[%c16, %c0_115] : memref<96x8xf32, #tpu.memory_space<vmem>>, vector<8x8xf32>
    tpu.vector_store %arg40[%c16, %c0_115], %125 {strides = array<i32>} : memref<96x8xf32, #tpu.memory_space<vmem>>, vector<8x8xf32>,
    %c16_116 = arith.constant 16 : index
    %c0_117 = arith.constant 0 : index
    %127 = vector.load %arg54[%c16_116, %c0_117] : memref<128x8xf32, #tpu.memory_space<vmem>>, vector<8x8xf32>
    %c24_118 = arith.constant 24 : index
    %c0_119 = arith.constant 0 : index
    %128 = vector.load %arg54[%c24_118, %c0_119] : memref<128x8xf32, #tpu.memory_space<vmem>>, vector<8x8xf32>
    %129 = arith.maximumf %127, %128 : vector<8x8xf32>
    %c24_120 = arith.constant 24 : index
    %c0_121 = arith.constant 0 : index
    %130 = vector.load %arg40[%c24_120, %c0_121] : memref<96x8xf32, #tpu.memory_space<vmem>>, vector<8x8xf32>
    tpu.vector_store %arg40[%c24_120, %c0_121], %129 {strides = array<i32>} : memref<96x8xf32, #tpu.memory_space<vmem>>, vector<8x8xf32>,
    %c32 = arith.constant 32 : index
    %c0_122 = arith.constant 0 : index
    %131 = vector.load %arg54[%c32, %c0_122] : memref<128x8xf32, #tpu.memory_space<vmem>>, vector<8x8xf32>
    %c40_123 = arith.constant 40 : index
    %c0_124 = arith.constant 0 : index
    %132 = vector.load %arg54[%c40_123, %c0_124] : memref<128x8xf32, #tpu.memory_space<vmem>>, vector<8x8xf32>
    %133 = arith.maximumf %131, %132 : vector<8x8xf32>
    %c32_125 = arith.constant 32 : index
    %c0_126 = arith.constant 0 : index
    %134 = vector.load %arg40[%c32_125, %c0_126] : memref<96x8xf32, #tpu.memory_space<vmem>>, vector<8x8xf32>
    tpu.vector_store %arg40[%c32_125, %c0_126], %133 {strides = array<i32>} : memref<96x8xf32, #tpu.memory_space<vmem>>, vector<8x8xf32>,
    %c48 = arith.constant 48 : index
    %c0_127 = arith.constant 0 : index
    %135 = vector.load %arg54[%c48, %c0_127] : memref<128x8xf32, #tpu.memory_space<vmem>>, vector<8x8xf32>
    %c56 = arith.constant 56 : index
    %c0_128 = arith.constant 0 : index
    %136 = vector.load %arg54[%c56, %c0_128] : memref<128x8xf32, #tpu.memory_space<vmem>>, vector<8x8xf32>
    %137 = arith.maximumf %135, %136 : vector<8x8xf32>
    %c40_129 = arith.constant 40 : index
    %c0_130 = arith.constant 0 : index
    %138 = vector.load %arg40[%c40_129, %c0_130] : memref<96x8xf32, #tpu.memory_space<vmem>>, vector<8x8xf32>
    tpu.vector_store %arg40[%c40_129, %c0_130], %137 {strides = array<i32>} : memref<96x8xf32, #tpu.memory_space<vmem>>, vector<8x8xf32>,
    %c64 = arith.constant 64 : index
    %c0_131 = arith.constant 0 : index
    %139 = vector.load %arg54[%c64, %c0_131] : memref<128x8xf32, #tpu.memory_space<vmem>>, vector<8x8xf32>
    %c72 = arith.constant 72 : index
    %c0_132 = arith.constant 0 : index
    %140 = vector.load %arg54[%c72, %c0_132] : memref<128x8xf32, #tpu.memory_space<vmem>>, vector<8x8xf32>
    %141 = arith.maximumf %139, %140 : vector<8x8xf32>
    %c48_133 = arith.constant 48 : index
    %c0_134 = arith.constant 0 : index
    %142 = vector.load %arg40[%c48_133, %c0_134] : memref<96x8xf32, #tpu.memory_space<vmem>>, vector<8x8xf32>
    tpu.vector_store %arg40[%c48_133, %c0_134], %141 {strides = array<i32>} : memref<96x8xf32, #tpu.memory_space<vmem>>, vector<8x8xf32>,
    %c80_135 = arith.constant 80 : index
    %c0_136 = arith.constant 0 : index
    %143 = vector.load %arg54[%c80_135, %c0_136] : memref<128x8xf32, #tpu.memory_space<vmem>>, vector<8x8xf32>
    %c88 = arith.constant 88 : index
    %c0_137 = arith.constant 0 : index
    %144 = vector.load %arg54[%c88, %c0_137] : memref<128x8xf32, #tpu.memory_space<vmem>>, vector<8x8xf32>
    %145 = arith.maximumf %143, %144 : vector<8x8xf32>
    %c56_138 = arith.constant 56 : index
    %c0_139 = arith.constant 0 : index
    %146 = vector.load %arg40[%c56_138, %c0_139] : memref<96x8xf32, #tpu.memory_space<vmem>>, vector<8x8xf32>
    tpu.vector_store %arg40[%c56_138, %c0_139], %145 {strides = array<i32>} : memref<96x8xf32, #tpu.memory_space<vmem>>, vector<8x8xf32>,
    %c96 = arith.constant 96 : index
    %c0_140 = arith.constant 0 : index
    %147 = vector.load %arg54[%c96, %c0_140] : memref<128x8xf32, #tpu.memory_space<vmem>>, vector<8x8xf32>
    %c104 = arith.constant 104 : index
    %c0_141 = arith.constant 0 : index
    %148 = vector.load %arg54[%c104, %c0_141] : memref<128x8xf32, #tpu.memory_space<vmem>>, vector<8x8xf32>
    %149 = arith.maximumf %147, %148 : vector<8x8xf32>
    %c64_142 = arith.constant 64 : index
    %c0_143 = arith.constant 0 : index
    %150 = vector.load %arg40[%c64_142, %c0_143] : memref<96x8xf32, #tpu.memory_space<vmem>>, vector<8x8xf32>
    tpu.vector_store %arg40[%c64_142, %c0_143], %149 {strides = array<i32>} : memref<96x8xf32, #tpu.memory_space<vmem>>, vector<8x8xf32>,
    %c112 = arith.constant 112 : index
    %c0_144 = arith.constant 0 : index
    %151 = vector.load %arg54[%c112, %c0_144] : memref<128x8xf32, #tpu.memory_space<vmem>>, vector<8x8xf32>
    %c120 = arith.constant 120 : index
    %c0_145 = arith.constant 0 : index
    %152 = vector.load %arg54[%c120, %c0_145] : memref<128x8xf32, #tpu.memory_space<vmem>>, vector<8x8xf32>
    %153 = arith.maximumf %151, %152 : vector<8x8xf32>
    %c72_146 = arith.constant 72 : index
    %c0_147 = arith.constant 0 : index
    %154 = vector.load %arg40[%c72_146, %c0_147] : memref<96x8xf32, #tpu.memory_space<vmem>>, vector<8x8xf32>
    tpu.vector_store %arg40[%c72_146, %c0_147], %153 {strides = array<i32>} : memref<96x8xf32, #tpu.memory_space<vmem>>, vector<8x8xf32>,
    %cst_148 = arith.constant 0.000000e+00 : f32
    %155 = vector.broadcast %cst_148 : f32 to vector<16x16xf32>
    %c0_149 = arith.constant 0 : index
    %c0_150 = arith.constant 0 : index
    %156 = vector.load %arg41[%c0_149, %c0_150] : memref<96x16xf32, #tpu.memory_space<vmem>>, vector<16x16xf32>
    tpu.vector_store %arg41[%c0_149, %c0_150], %155 {strides = array<i32>} : memref<96x16xf32, #tpu.memory_space<vmem>>, vector<16x16xf32>,
    %cst_151 = arith.constant 0.000000e+00 : f32
    %157 = vector.broadcast %cst_151 : f32 to vector<16x16xf32>
    %c80_152 = arith.constant 80 : index
    %c0_153 = arith.constant 0 : index
    %158 = vector.load %arg41[%c80_152, %c0_153] : memref<96x16xf32, #tpu.memory_space<vmem>>, vector<16x16xf32>
    tpu.vector_store %arg41[%c80_152, %c0_153], %157 {strides = array<i32>} : memref<96x16xf32, #tpu.memory_space<vmem>>, vector<16x16xf32>,
    %159 = tpu.iota {dimensions = array<i32: 0>} : vector<64x1xi32>
    %c0_i32_154 = arith.constant 0 : i32
    %160 = vector.broadcast %c0_i32_154 : i32 to vector<64x1xi32>
    %161 = arith.addi %159, %160 : vector<64x1xi32>
    %c7_i32 = arith.constant 7 : i32
    %162 = vector.broadcast %c7_i32 : i32 to vector<64x1xi32>
    %163 = arith.andi %161, %162 : vector<64x1xi32>
    %c0_i32_155 = arith.constant 0 : i32
    %164 = vector.broadcast %c0_i32_155 : i32 to vector<64x1xi32>
    %165 = arith.cmpi sgt, %163, %164 : vector<64x1xi32>
    %c7_i32_156 = arith.constant 7 : i32
    %166 = vector.broadcast %c7_i32_156 : i32 to vector<64x1xi32>
    %167 = arith.cmpi slt, %163, %166 : vector<64x1xi32>
    %c7_157 = arith.constant 7 : index
    %c0_158 = arith.constant 0 : index
    %168 = vector.load %arg40[%c7_157, %c0_158] : memref<96x8xf32, #tpu.memory_space<vmem>>, vector<64x8xf32>
    %cst_159 = arith.constant 0.000000e+00 : f32
    %169 = vector.shape_cast %165 : vector<64x1xi1> to vector<64x1xi1>
    %170 = vector.broadcast %169 : vector<64x1xi1> to vector<64x8xi1>
    %171 = vector.broadcast %cst_159 : f32 to vector<64x8xf32>
    %172 = arith.select %170, %168, %171 : vector<64x8xi1>, vector<64x8xf32>
    %c0_160 = arith.constant 0 : index
    %c0_161 = arith.constant 0 : index
    %173 = vector.load %arg47[%c0_160, %c0_161] : memref<64x72xf32, #tpu.memory_space<vmem>>, vector<64x8xf32>
    tpu.vector_store %arg47[%c0_160, %c0_161], %172 {strides = array<i32>} : memref<64x72xf32, #tpu.memory_space<vmem>>, vector<64x8xf32>,
    %c8_162 = arith.constant 8 : index
    %c0_163 = arith.constant 0 : index
    %174 = vector.load %arg40[%c8_162, %c0_163] : memref<96x8xf32, #tpu.memory_space<vmem>>, vector<64x8xf32>
    %c0_164 = arith.constant 0 : index
    %c8_165 = arith.constant 8 : index
    %175 = vector.load %arg47[%c0_164, %c8_165] : memref<64x72xf32, #tpu.memory_space<vmem>>, vector<64x8xf32>
    tpu.vector_store %arg47[%c0_164, %c8_165], %174 {strides = array<i32>} : memref<64x72xf32, #tpu.memory_space<vmem>>, vector<64x8xf32>,
    %c9_166 = arith.constant 9 : index
    %c0_167 = arith.constant 0 : index
    %176 = vector.load %arg40[%c9_166, %c0_167] : memref<96x8xf32, #tpu.memory_space<vmem>>, vector<64x8xf32>
    %cst_168 = arith.constant 0.000000e+00 : f32
    %177 = vector.shape_cast %167 : vector<64x1xi1> to vector<64x1xi1>
    %178 = vector.broadcast %177 : vector<64x1xi1> to vector<64x8xi1>
    %179 = vector.broadcast %cst_168 : f32 to vector<64x8xf32>
    %180 = arith.select %178, %176, %179 : vector<64x8xi1>, vector<64x8xf32>
    %c0_169 = arith.constant 0 : index
    %c16_170 = arith.constant 16 : index
    %181 = vector.load %arg47[%c0_169, %c16_170] : memref<64x72xf32, #tpu.memory_space<vmem>>, vector<64x8xf32>
    tpu.vector_store %arg47[%c0_169, %c16_170], %180 {strides = array<i32>} : memref<64x72xf32, #tpu.memory_space<vmem>>, vector<64x8xf32>,
    %c15 = arith.constant 15 : index
    %c0_171 = arith.constant 0 : index
    %182 = vector.load %arg40[%c15, %c0_171] : memref<96x8xf32, #tpu.memory_space<vmem>>, vector<64x8xf32>
    %cst_172 = arith.constant 0.000000e+00 : f32
    %183 = vector.shape_cast %165 : vector<64x1xi1> to vector<64x1xi1>
    %184 = vector.broadcast %183 : vector<64x1xi1> to vector<64x8xi1>
    %185 = vector.broadcast %cst_172 : f32 to vector<64x8xf32>
    %186 = arith.select %184, %182, %185 : vector<64x8xi1>, vector<64x8xf32>
    %c0_173 = arith.constant 0 : index
    %c24_174 = arith.constant 24 : index
    %187 = vector.load %arg47[%c0_173, %c24_174] : memref<64x72xf32, #tpu.memory_space<vmem>>, vector<64x8xf32>
    tpu.vector_store %arg47[%c0_173, %c24_174], %186 {strides = array<i32>} : memref<64x72xf32, #tpu.memory_space<vmem>>, vector<64x8xf32>,
    %c16_175 = arith.constant 16 : index
    %c0_176 = arith.constant 0 : index
    %188 = vector.load %arg40[%c16_175, %c0_176] : memref<96x8xf32, #tpu.memory_space<vmem>>, vector<64x8xf32>
    %c0_177 = arith.constant 0 : index
    %c32_178 = arith.constant 32 : index
    %189 = vector.load %arg47[%c0_177, %c32_178] : memref<64x72xf32, #tpu.memory_space<vmem>>, vector<64x8xf32>
    tpu.vector_store %arg47[%c0_177, %c32_178], %188 {strides = array<i32>} : memref<64x72xf32, #tpu.memory_space<vmem>>, vector<64x8xf32>,
    %c17 = arith.constant 17 : index
    %c0_179 = arith.constant 0 : index
    %190 = vector.load %arg40[%c17, %c0_179] : memref<96x8xf32, #tpu.memory_space<vmem>>, vector<64x8xf32>
    %cst_180 = arith.constant 0.000000e+00 : f32
    %191 = vector.shape_cast %167 : vector<64x1xi1> to vector<64x1xi1>
    %192 = vector.broadcast %191 : vector<64x1xi1> to vector<64x8xi1>
    %193 = vector.broadcast %cst_180 : f32 to vector<64x8xf32>
    %194 = arith.select %192, %190, %193 : vector<64x8xi1>, vector<64x8xf32>
    %c0_181 = arith.constant 0 : index
    %c40_182 = arith.constant 40 : index
    %195 = vector.load %arg47[%c0_181, %c40_182] : memref<64x72xf32, #tpu.memory_space<vmem>>, vector<64x8xf32>
    tpu.vector_store %arg47[%c0_181, %c40_182], %194 {strides = array<i32>} : memref<64x72xf32, #tpu.memory_space<vmem>>, vector<64x8xf32>,
    %c23_183 = arith.constant 23 : index
    %c0_184 = arith.constant 0 : index
    %196 = vector.load %arg40[%c23_183, %c0_184] : memref<96x8xf32, #tpu.memory_space<vmem>>, vector<64x8xf32>
    %cst_185 = arith.constant 0.000000e+00 : f32
    %197 = vector.shape_cast %165 : vector<64x1xi1> to vector<64x1xi1>
    %198 = vector.broadcast %197 : vector<64x1xi1> to vector<64x8xi1>
    %199 = vector.broadcast %cst_185 : f32 to vector<64x8xf32>
    %200 = arith.select %198, %196, %199 : vector<64x8xi1>, vector<64x8xf32>
    %c0_186 = arith.constant 0 : index
    %c48_187 = arith.constant 48 : index
    %201 = vector.load %arg47[%c0_186, %c48_187] : memref<64x72xf32, #tpu.memory_space<vmem>>, vector<64x8xf32>
    tpu.vector_store %arg47[%c0_186, %c48_187], %200 {strides = array<i32>} : memref<64x72xf32, #tpu.memory_space<vmem>>, vector<64x8xf32>,
    %c24_188 = arith.constant 24 : index
    %c0_189 = arith.constant 0 : index
    %202 = vector.load %arg40[%c24_188, %c0_189] : memref<96x8xf32, #tpu.memory_space<vmem>>, vector<64x8xf32>
    %c0_190 = arith.constant 0 : index
    %c56_191 = arith.constant 56 : index
    %203 = vector.load %arg47[%c0_190, %c56_191] : memref<64x72xf32, #tpu.memory_space<vmem>>, vector<64x8xf32>
    tpu.vector_store %arg47[%c0_190, %c56_191], %202 {strides = array<i32>} : memref<64x72xf32, #tpu.memory_space<vmem>>, vector<64x8xf32>,
    %c25_192 = arith.constant 25 : index
    %c0_193 = arith.constant 0 : index
    %204 = vector.load %arg40[%c25_192, %c0_193] : memref<96x8xf32, #tpu.memory_space<vmem>>, vector<64x8xf32>
    %cst_194 = arith.constant 0.000000e+00 : f32
    %205 = vector.shape_cast %167 : vector<64x1xi1> to vector<64x1xi1>
    %206 = vector.broadcast %205 : vector<64x1xi1> to vector<64x8xi1>
    %207 = vector.broadcast %cst_194 : f32 to vector<64x8xf32>
    %208 = arith.select %206, %204, %207 : vector<64x8xi1>, vector<64x8xf32>
    %c0_195 = arith.constant 0 : index
    %c64_196 = arith.constant 64 : index
    %209 = vector.load %arg47[%c0_195, %c64_196] : memref<64x72xf32, #tpu.memory_space<vmem>>, vector<64x8xf32>
    tpu.vector_store %arg47[%c0_195, %c64_196], %208 {strides = array<i32>} : memref<64x72xf32, #tpu.memory_space<vmem>>, vector<64x8xf32>,
    %c0_197 = arith.constant 0 : index
    %c0_198 = arith.constant 0 : index
    %210 = vector.load %arg47[%c0_197, %c0_198] : memref<64x72xf32, #tpu.memory_space<vmem>>, vector<64x72xf32>
    %c0_199 = arith.constant 0 : index
    %c0_200 = arith.constant 0 : index
    %211 = vector.load %arg6[%c0_199, %c0_200] : memref<72x16xf32, #tpu.memory_space<vmem>>, vector<72x16xf32>
    %cst_201 = arith.constant dense<0.000000e+00> : vector<64x16xf32>
    %212 = tpu.matmul %210, %211, %cst_201 {dimension_numbers = #tpu.dot_dimension_numbers<[1], [0], [0], [1], [0, 0, 1, 1], [], []>} : vector<64x72xf32>, vector<72x16xf32>, vector<64x16xf32> -> vector<64x16xf32>
    %c0_202 = arith.constant 0 : index
    %c0_203 = arith.constant 0 : index
    %213 = vector.load %arg7[%c0_202, %c0_203] : memref<1x16xf32, #tpu.memory_space<vmem>>, vector<1x16xf32>
    %214 = vector.broadcast %213 : vector<1x16xf32> to vector<64x16xf32>
    %215 = arith.addf %212, %214 : vector<64x16xf32>
    %cst_204 = arith.constant 0.000000e+00 : f32
    %216 = vector.broadcast %cst_204 : f32 to vector<64x16xf32>
    %217 = arith.maximumf %215, %216 : vector<64x16xf32>
    %c0_205 = arith.constant 0 : index
    %c0_206 = arith.constant 0 : index
    %218 = vector.load %arg8[%c0_205, %c0_206] : memref<1x16xf32, #tpu.memory_space<vmem>>, vector<1x16xf32>
    %219 = vector.broadcast %218 : vector<1x16xf32> to vector<64x16xf32>
    %220 = arith.mulf %217, %219 : vector<64x16xf32>
    %c0_207 = arith.constant 0 : index
    %c0_208 = arith.constant 0 : index
    %221 = vector.load %arg9[%c0_207, %c0_208] : memref<1x16xf32, #tpu.memory_space<vmem>>, vector<1x16xf32>
    %222 = vector.broadcast %221 : vector<1x16xf32> to vector<64x16xf32>
    %223 = arith.addf %220, %222 : vector<64x16xf32>
    %c16_209 = arith.constant 16 : index
    %c0_210 = arith.constant 0 : index
    %224 = vector.load %arg41[%c16_209, %c0_210] : memref<96x16xf32, #tpu.memory_space<vmem>>, vector<64x16xf32>
    tpu.vector_store %arg41[%c16_209, %c0_210], %223 {strides = array<i32>} : memref<96x16xf32, #tpu.memory_space<vmem>>, vector<64x16xf32>,
    %cst_211 = arith.constant 0.000000e+00 : f32
    %225 = vector.broadcast %cst_211 : f32 to vector<8x16xf32>
    %c0_212 = arith.constant 0 : index
    %c0_213 = arith.constant 0 : index
    %226 = vector.load %arg42[%c0_212, %c0_213] : memref<32x16xf32, #tpu.memory_space<vmem>>, vector<8x16xf32>
    tpu.vector_store %arg42[%c0_212, %c0_213], %225 {strides = array<i32>} : memref<32x16xf32, #tpu.memory_space<vmem>>, vector<8x16xf32>,
    %cst_214 = arith.constant 0.000000e+00 : f32
    %227 = vector.broadcast %cst_214 : f32 to vector<8x16xf32>
    %c24_215 = arith.constant 24 : index
    %c0_216 = arith.constant 0 : index
    %228 = vector.load %arg42[%c24_215, %c0_216] : memref<32x16xf32, #tpu.memory_space<vmem>>, vector<8x16xf32>
    tpu.vector_store %arg42[%c24_215, %c0_216], %227 {strides = array<i32>} : memref<32x16xf32, #tpu.memory_space<vmem>>, vector<8x16xf32>,
    %229 = tpu.iota {dimensions = array<i32: 0>} : vector<64x1xi32>
    %c0_i32_217 = arith.constant 0 : i32
    %230 = vector.broadcast %c0_i32_217 : i32 to vector<64x1xi32>
    %231 = arith.addi %229, %230 : vector<64x1xi32>
    %c7_i32_218 = arith.constant 7 : i32
    %232 = vector.broadcast %c7_i32_218 : i32 to vector<64x1xi32>
    %233 = arith.andi %231, %232 : vector<64x1xi32>
    %c0_i32_219 = arith.constant 0 : i32
    %234 = vector.broadcast %c0_i32_219 : i32 to vector<64x1xi32>
    %235 = arith.cmpi sgt, %233, %234 : vector<64x1xi32>
    %c7_i32_220 = arith.constant 7 : i32
    %236 = vector.broadcast %c7_i32_220 : i32 to vector<64x1xi32>
    %237 = arith.cmpi slt, %233, %236 : vector<64x1xi32>
    %c7_221 = arith.constant 7 : index
    %c0_222 = arith.constant 0 : index
    %238 = vector.load %arg41[%c7_221, %c0_222] : memref<96x16xf32, #tpu.memory_space<vmem>>, vector<64x16xf32>
    %cst_223 = arith.constant 0.000000e+00 : f32
    %239 = vector.shape_cast %235 : vector<64x1xi1> to vector<64x1xi1>
    %240 = vector.broadcast %239 : vector<64x1xi1> to vector<64x16xi1>
    %241 = vector.broadcast %cst_223 : f32 to vector<64x16xf32>
    %242 = arith.select %240, %238, %241 : vector<64x16xi1>, vector<64x16xf32>
    %c0_224 = arith.constant 0 : index
    %c0_225 = arith.constant 0 : index
    %243 = vector.load %arg48[%c0_224, %c0_225] : memref<64x144xf32, #tpu.memory_space<vmem>>, vector<64x16xf32>
    tpu.vector_store %arg48[%c0_224, %c0_225], %242 {strides = array<i32>} : memref<64x144xf32, #tpu.memory_space<vmem>>, vector<64x16xf32>,
    %c8_226 = arith.constant 8 : index
    %c0_227 = arith.constant 0 : index
    %244 = vector.load %arg41[%c8_226, %c0_227] : memref<96x16xf32, #tpu.memory_space<vmem>>, vector<64x16xf32>
    %c0_228 = arith.constant 0 : index
    %c16_229 = arith.constant 16 : index
    %245 = vector.load %arg48[%c0_228, %c16_229] : memref<64x144xf32, #tpu.memory_space<vmem>>, vector<64x16xf32>
    tpu.vector_store %arg48[%c0_228, %c16_229], %244 {strides = array<i32>} : memref<64x144xf32, #tpu.memory_space<vmem>>, vector<64x16xf32>,
    %c9_230 = arith.constant 9 : index
    %c0_231 = arith.constant 0 : index
    %246 = vector.load %arg41[%c9_230, %c0_231] : memref<96x16xf32, #tpu.memory_space<vmem>>, vector<64x16xf32>
    %cst_232 = arith.constant 0.000000e+00 : f32
    %247 = vector.shape_cast %237 : vector<64x1xi1> to vector<64x1xi1>
    %248 = vector.broadcast %247 : vector<64x1xi1> to vector<64x16xi1>
    %249 = vector.broadcast %cst_232 : f32 to vector<64x16xf32>
    %250 = arith.select %248, %246, %249 : vector<64x16xi1>, vector<64x16xf32>
    %c0_233 = arith.constant 0 : index
    %c32_234 = arith.constant 32 : index
    %251 = vector.load %arg48[%c0_233, %c32_234] : memref<64x144xf32, #tpu.memory_space<vmem>>, vector<64x16xf32>
    tpu.vector_store %arg48[%c0_233, %c32_234], %250 {strides = array<i32>} : memref<64x144xf32, #tpu.memory_space<vmem>>, vector<64x16xf32>,
    %c15_235 = arith.constant 15 : index
    %c0_236 = arith.constant 0 : index
    %252 = vector.load %arg41[%c15_235, %c0_236] : memref<96x16xf32, #tpu.memory_space<vmem>>, vector<64x16xf32>
    %cst_237 = arith.constant 0.000000e+00 : f32
    %253 = vector.shape_cast %235 : vector<64x1xi1> to vector<64x1xi1>
    %254 = vector.broadcast %253 : vector<64x1xi1> to vector<64x16xi1>
    %255 = vector.broadcast %cst_237 : f32 to vector<64x16xf32>
    %256 = arith.select %254, %252, %255 : vector<64x16xi1>, vector<64x16xf32>
    %c0_238 = arith.constant 0 : index
    %c48_239 = arith.constant 48 : index
    %257 = vector.load %arg48[%c0_238, %c48_239] : memref<64x144xf32, #tpu.memory_space<vmem>>, vector<64x16xf32>
    tpu.vector_store %arg48[%c0_238, %c48_239], %256 {strides = array<i32>} : memref<64x144xf32, #tpu.memory_space<vmem>>, vector<64x16xf32>,
    %c16_240 = arith.constant 16 : index
    %c0_241 = arith.constant 0 : index
    %258 = vector.load %arg41[%c16_240, %c0_241] : memref<96x16xf32, #tpu.memory_space<vmem>>, vector<64x16xf32>
    %c0_242 = arith.constant 0 : index
    %c64_243 = arith.constant 64 : index
    %259 = vector.load %arg48[%c0_242, %c64_243] : memref<64x144xf32, #tpu.memory_space<vmem>>, vector<64x16xf32>
    tpu.vector_store %arg48[%c0_242, %c64_243], %258 {strides = array<i32>} : memref<64x144xf32, #tpu.memory_space<vmem>>, vector<64x16xf32>,
    %c17_244 = arith.constant 17 : index
    %c0_245 = arith.constant 0 : index
    %260 = vector.load %arg41[%c17_244, %c0_245] : memref<96x16xf32, #tpu.memory_space<vmem>>, vector<64x16xf32>
    %cst_246 = arith.constant 0.000000e+00 : f32
    %261 = vector.shape_cast %237 : vector<64x1xi1> to vector<64x1xi1>
    %262 = vector.broadcast %261 : vector<64x1xi1> to vector<64x16xi1>
    %263 = vector.broadcast %cst_246 : f32 to vector<64x16xf32>
    %264 = arith.select %262, %260, %263 : vector<64x16xi1>, vector<64x16xf32>
    %c0_247 = arith.constant 0 : index
    %c80_248 = arith.constant 80 : index
    %265 = vector.load %arg48[%c0_247, %c80_248] : memref<64x144xf32, #tpu.memory_space<vmem>>, vector<64x16xf32>
    tpu.vector_store %arg48[%c0_247, %c80_248], %264 {strides = array<i32>} : memref<64x144xf32, #tpu.memory_space<vmem>>, vector<64x16xf32>,
    %c23_249 = arith.constant 23 : index
    %c0_250 = arith.constant 0 : index
    %266 = vector.load %arg41[%c23_249, %c0_250] : memref<96x16xf32, #tpu.memory_space<vmem>>, vector<64x16xf32>
    %cst_251 = arith.constant 0.000000e+00 : f32
    %267 = vector.shape_cast %235 : vector<64x1xi1> to vector<64x1xi1>
    %268 = vector.broadcast %267 : vector<64x1xi1> to vector<64x16xi1>
    %269 = vector.broadcast %cst_251 : f32 to vector<64x16xf32>
    %270 = arith.select %268, %266, %269 : vector<64x16xi1>, vector<64x16xf32>
    %c0_252 = arith.constant 0 : index
    %c96_253 = arith.constant 96 : index
    %271 = vector.load %arg48[%c0_252, %c96_253] : memref<64x144xf32, #tpu.memory_space<vmem>>, vector<64x16xf32>
    tpu.vector_store %arg48[%c0_252, %c96_253], %270 {strides = array<i32>} : memref<64x144xf32, #tpu.memory_space<vmem>>, vector<64x16xf32>,
    %c24_254 = arith.constant 24 : index
    %c0_255 = arith.constant 0 : index
    %272 = vector.load %arg41[%c24_254, %c0_255] : memref<96x16xf32, #tpu.memory_space<vmem>>, vector<64x16xf32>
    %c0_256 = arith.constant 0 : index
    %c112_257 = arith.constant 112 : index
    %273 = vector.load %arg48[%c0_256, %c112_257] : memref<64x144xf32, #tpu.memory_space<vmem>>, vector<64x16xf32>
    tpu.vector_store %arg48[%c0_256, %c112_257], %272 {strides = array<i32>} : memref<64x144xf32, #tpu.memory_space<vmem>>, vector<64x16xf32>,
    %c25_258 = arith.constant 25 : index
    %c0_259 = arith.constant 0 : index
    %274 = vector.load %arg41[%c25_258, %c0_259] : memref<96x16xf32, #tpu.memory_space<vmem>>, vector<64x16xf32>
    %cst_260 = arith.constant 0.000000e+00 : f32
    %275 = vector.shape_cast %237 : vector<64x1xi1> to vector<64x1xi1>
    %276 = vector.broadcast %275 : vector<64x1xi1> to vector<64x16xi1>
    %277 = vector.broadcast %cst_260 : f32 to vector<64x16xf32>
    %278 = arith.select %276, %274, %277 : vector<64x16xi1>, vector<64x16xf32>
    %c0_261 = arith.constant 0 : index
    %c128_262 = arith.constant 128 : index
    %279 = vector.load %arg48[%c0_261, %c128_262] : memref<64x144xf32, #tpu.memory_space<vmem>>, vector<64x16xf32>
    tpu.vector_store %arg48[%c0_261, %c128_262], %278 {strides = array<i32>} : memref<64x144xf32, #tpu.memory_space<vmem>>, vector<64x16xf32>,
    %c0_263 = arith.constant 0 : index
    %c0_264 = arith.constant 0 : index
    %280 = vector.load %arg48[%c0_263, %c0_264] : memref<64x144xf32, #tpu.memory_space<vmem>>, vector<64x144xf32>
    %c0_265 = arith.constant 0 : index
    %c0_266 = arith.constant 0 : index
    %281 = vector.load %arg10[%c0_265, %c0_266] : memref<144x16xf32, #tpu.memory_space<vmem>>, vector<144x16xf32>
    %cst_267 = arith.constant dense<0.000000e+00> : vector<64x16xf32>
    %282 = tpu.matmul %280, %281, %cst_267 {dimension_numbers = #tpu.dot_dimension_numbers<[1], [0], [0], [1], [0, 0, 1, 1], [], []>} : vector<64x144xf32>, vector<144x16xf32>, vector<64x16xf32> -> vector<64x16xf32>
    %c0_268 = arith.constant 0 : index
    %c0_269 = arith.constant 0 : index
    %283 = vector.load %arg11[%c0_268, %c0_269] : memref<1x16xf32, #tpu.memory_space<vmem>>, vector<1x16xf32>
    %284 = vector.broadcast %283 : vector<1x16xf32> to vector<64x16xf32>
    %285 = arith.addf %282, %284 : vector<64x16xf32>
    %cst_270 = arith.constant 0.000000e+00 : f32
    %286 = vector.broadcast %cst_270 : f32 to vector<64x16xf32>
    %287 = arith.maximumf %285, %286 : vector<64x16xf32>
    %c0_271 = arith.constant 0 : index
    %c0_272 = arith.constant 0 : index
    %288 = vector.load %arg12[%c0_271, %c0_272] : memref<1x16xf32, #tpu.memory_space<vmem>>, vector<1x16xf32>
    %289 = vector.broadcast %288 : vector<1x16xf32> to vector<64x16xf32>
    %290 = arith.mulf %287, %289 : vector<64x16xf32>
    %c0_273 = arith.constant 0 : index
    %c0_274 = arith.constant 0 : index
    %291 = vector.load %arg13[%c0_273, %c0_274] : memref<1x16xf32, #tpu.memory_space<vmem>>, vector<1x16xf32>
    %292 = vector.broadcast %291 : vector<1x16xf32> to vector<64x16xf32>
    %293 = arith.addf %290, %292 : vector<64x16xf32>
    %c0_275 = arith.constant 0 : index
    %c0_276 = arith.constant 0 : index
    %294 = vector.load %arg55[%c0_275, %c0_276] : memref<64x16xf32, #tpu.memory_space<vmem>>, vector<64x16xf32>
    tpu.vector_store %arg55[%c0_275, %c0_276], %293 {strides = array<i32>} : memref<64x16xf32, #tpu.memory_space<vmem>>, vector<64x16xf32>,
    %c0_277 = arith.constant 0 : index
    %c0_278 = arith.constant 0 : index
    %295 = tpu.strided_load %arg55[%c0_277, %c0_278] {strides = array<i32: 2, 1>} : memref<64x16xf32, #tpu.memory_space<vmem>>, vector<32x16xf32>
    %c1_279 = arith.constant 1 : index
    %c0_280 = arith.constant 0 : index
    %296 = tpu.strided_load %arg55[%c1_279, %c0_280] {strides = array<i32: 2, 1>} : memref<64x16xf32, #tpu.memory_space<vmem>>, vector<32x16xf32>
    %297 = arith.maximumf %295, %296 : vector<32x16xf32>
    %c0_281 = arith.constant 0 : index
    %c0_282 = arith.constant 0 : index
    %298 = vector.load %arg56[%c0_281, %c0_282] : memref<32x16xf32, #tpu.memory_space<vmem>>, vector<32x16xf32>
    tpu.vector_store %arg56[%c0_281, %c0_282], %297 {strides = array<i32>} : memref<32x16xf32, #tpu.memory_space<vmem>>, vector<32x16xf32>,
    %c0_283 = arith.constant 0 : index
    %c0_284 = arith.constant 0 : index
    %299 = vector.load %arg56[%c0_283, %c0_284] : memref<32x16xf32, #tpu.memory_space<vmem>>, vector<4x16xf32>
    %c4_285 = arith.constant 4 : index
    %c0_286 = arith.constant 0 : index
    %300 = vector.load %arg56[%c4_285, %c0_286] : memref<32x16xf32, #tpu.memory_space<vmem>>, vector<4x16xf32>
    %301 = arith.maximumf %299, %300 : vector<4x16xf32>
    %c8_287 = arith.constant 8 : index
    %c0_288 = arith.constant 0 : index
    %302 = vector.load %arg42[%c8_287, %c0_288] : memref<32x16xf32, #tpu.memory_space<vmem>>, vector<4x16xf32>
    tpu.vector_store %arg42[%c8_287, %c0_288], %301 {strides = array<i32>} : memref<32x16xf32, #tpu.memory_space<vmem>>, vector<4x16xf32>,
    %c8_289 = arith.constant 8 : index
    %c0_290 = arith.constant 0 : index
    %303 = vector.load %arg56[%c8_289, %c0_290] : memref<32x16xf32, #tpu.memory_space<vmem>>, vector<4x16xf32>
    %c12 = arith.constant 12 : index
    %c0_291 = arith.constant 0 : index
    %304 = vector.load %arg56[%c12, %c0_291] : memref<32x16xf32, #tpu.memory_space<vmem>>, vector<4x16xf32>
    %305 = arith.maximumf %303, %304 : vector<4x16xf32>
    %c12_292 = arith.constant 12 : index
    %c0_293 = arith.constant 0 : index
    %306 = vector.load %arg42[%c12_292, %c0_293] : memref<32x16xf32, #tpu.memory_space<vmem>>, vector<4x16xf32>
    tpu.vector_store %arg42[%c12_292, %c0_293], %305 {strides = array<i32>} : memref<32x16xf32, #tpu.memory_space<vmem>>, vector<4x16xf32>,
    %c16_294 = arith.constant 16 : index
    %c0_295 = arith.constant 0 : index
    %307 = vector.load %arg56[%c16_294, %c0_295] : memref<32x16xf32, #tpu.memory_space<vmem>>, vector<4x16xf32>
    %c20 = arith.constant 20 : index
    %c0_296 = arith.constant 0 : index
    %308 = vector.load %arg56[%c20, %c0_296] : memref<32x16xf32, #tpu.memory_space<vmem>>, vector<4x16xf32>
    %309 = arith.maximumf %307, %308 : vector<4x16xf32>
    %c16_297 = arith.constant 16 : index
    %c0_298 = arith.constant 0 : index
    %310 = vector.load %arg42[%c16_297, %c0_298] : memref<32x16xf32, #tpu.memory_space<vmem>>, vector<4x16xf32>
    tpu.vector_store %arg42[%c16_297, %c0_298], %309 {strides = array<i32>} : memref<32x16xf32, #tpu.memory_space<vmem>>, vector<4x16xf32>,
    %c24_299 = arith.constant 24 : index
    %c0_300 = arith.constant 0 : index
    %311 = vector.load %arg56[%c24_299, %c0_300] : memref<32x16xf32, #tpu.memory_space<vmem>>, vector<4x16xf32>
    %c28 = arith.constant 28 : index
    %c0_301 = arith.constant 0 : index
    %312 = vector.load %arg56[%c28, %c0_301] : memref<32x16xf32, #tpu.memory_space<vmem>>, vector<4x16xf32>
    %313 = arith.maximumf %311, %312 : vector<4x16xf32>
    %c20_302 = arith.constant 20 : index
    %c0_303 = arith.constant 0 : index
    %314 = vector.load %arg42[%c20_302, %c0_303] : memref<32x16xf32, #tpu.memory_space<vmem>>, vector<4x16xf32>
    tpu.vector_store %arg42[%c20_302, %c0_303], %313 {strides = array<i32>} : memref<32x16xf32, #tpu.memory_space<vmem>>, vector<4x16xf32>,
    %cst_304 = arith.constant 0.000000e+00 : f32
    %315 = vector.broadcast %cst_304 : f32 to vector<8x32xf32>
    %c0_305 = arith.constant 0 : index
    %c0_306 = arith.constant 0 : index
    %316 = vector.load %arg43[%c0_305, %c0_306] : memref<32x32xf32, #tpu.memory_space<vmem>>, vector<8x32xf32>
    tpu.vector_store %arg43[%c0_305, %c0_306], %315 {strides = array<i32>} : memref<32x32xf32, #tpu.memory_space<vmem>>, vector<8x32xf32>,
    %cst_307 = arith.constant 0.000000e+00 : f32
    %317 = vector.broadcast %cst_307 : f32 to vector<8x32xf32>
    %c24_308 = arith.constant 24 : index
    %c0_309 = arith.constant 0 : index
    %318 = vector.load %arg43[%c24_308, %c0_309] : memref<32x32xf32, #tpu.memory_space<vmem>>, vector<8x32xf32>
    tpu.vector_store %arg43[%c24_308, %c0_309], %317 {strides = array<i32>} : memref<32x32xf32, #tpu.memory_space<vmem>>, vector<8x32xf32>,
    %319 = tpu.iota {dimensions = array<i32: 0>} : vector<16x1xi32>
    %c0_i32_310 = arith.constant 0 : i32
    %320 = vector.broadcast %c0_i32_310 : i32 to vector<16x1xi32>
    %321 = arith.addi %319, %320 : vector<16x1xi32>
    %c3_i32 = arith.constant 3 : i32
    %322 = vector.broadcast %c3_i32 : i32 to vector<16x1xi32>
    %323 = arith.andi %321, %322 : vector<16x1xi32>
    %c0_i32_311 = arith.constant 0 : i32
    %324 = vector.broadcast %c0_i32_311 : i32 to vector<16x1xi32>
    %325 = arith.cmpi sgt, %323, %324 : vector<16x1xi32>
    %c3_i32_312 = arith.constant 3 : i32
    %326 = vector.broadcast %c3_i32_312 : i32 to vector<16x1xi32>
    %327 = arith.cmpi slt, %323, %326 : vector<16x1xi32>
    %c3_313 = arith.constant 3 : index
    %c0_314 = arith.constant 0 : index
    %328 = vector.load %arg42[%c3_313, %c0_314] : memref<32x16xf32, #tpu.memory_space<vmem>>, vector<16x16xf32>
    %cst_315 = arith.constant 0.000000e+00 : f32
    %329 = vector.shape_cast %325 : vector<16x1xi1> to vector<16x1xi1>
    %330 = vector.broadcast %329 : vector<16x1xi1> to vector<16x16xi1>
    %331 = vector.broadcast %cst_315 : f32 to vector<16x16xf32>
    %332 = arith.select %330, %328, %331 : vector<16x16xi1>, vector<16x16xf32>
    %c0_316 = arith.constant 0 : index
    %c0_317 = arith.constant 0 : index
    %333 = vector.load %arg49[%c0_316, %c0_317] : memref<16x144xf32, #tpu.memory_space<vmem>>, vector<16x16xf32>
    tpu.vector_store %arg49[%c0_316, %c0_317], %332 {strides = array<i32>} : memref<16x144xf32, #tpu.memory_space<vmem>>, vector<16x16xf32>,
    %c4_318 = arith.constant 4 : index
    %c0_319 = arith.constant 0 : index
    %334 = vector.load %arg42[%c4_318, %c0_319] : memref<32x16xf32, #tpu.memory_space<vmem>>, vector<16x16xf32>
    %c0_320 = arith.constant 0 : index
    %c16_321 = arith.constant 16 : index
    %335 = vector.load %arg49[%c0_320, %c16_321] : memref<16x144xf32, #tpu.memory_space<vmem>>, vector<16x16xf32>
    tpu.vector_store %arg49[%c0_320, %c16_321], %334 {strides = array<i32>} : memref<16x144xf32, #tpu.memory_space<vmem>>, vector<16x16xf32>,
    %c5_322 = arith.constant 5 : index
    %c0_323 = arith.constant 0 : index
    %336 = vector.load %arg42[%c5_322, %c0_323] : memref<32x16xf32, #tpu.memory_space<vmem>>, vector<16x16xf32>
    %cst_324 = arith.constant 0.000000e+00 : f32
    %337 = vector.shape_cast %327 : vector<16x1xi1> to vector<16x1xi1>
    %338 = vector.broadcast %337 : vector<16x1xi1> to vector<16x16xi1>
    %339 = vector.broadcast %cst_324 : f32 to vector<16x16xf32>
    %340 = arith.select %338, %336, %339 : vector<16x16xi1>, vector<16x16xf32>
    %c0_325 = arith.constant 0 : index
    %c32_326 = arith.constant 32 : index
    %341 = vector.load %arg49[%c0_325, %c32_326] : memref<16x144xf32, #tpu.memory_space<vmem>>, vector<16x16xf32>
    tpu.vector_store %arg49[%c0_325, %c32_326], %340 {strides = array<i32>} : memref<16x144xf32, #tpu.memory_space<vmem>>, vector<16x16xf32>,
    %c7_327 = arith.constant 7 : index
    %c0_328 = arith.constant 0 : index
    %342 = vector.load %arg42[%c7_327, %c0_328] : memref<32x16xf32, #tpu.memory_space<vmem>>, vector<16x16xf32>
    %cst_329 = arith.constant 0.000000e+00 : f32
    %343 = vector.shape_cast %325 : vector<16x1xi1> to vector<16x1xi1>
    %344 = vector.broadcast %343 : vector<16x1xi1> to vector<16x16xi1>
    %345 = vector.broadcast %cst_329 : f32 to vector<16x16xf32>
    %346 = arith.select %344, %342, %345 : vector<16x16xi1>, vector<16x16xf32>
    %c0_330 = arith.constant 0 : index
    %c48_331 = arith.constant 48 : index
    %347 = vector.load %arg49[%c0_330, %c48_331] : memref<16x144xf32, #tpu.memory_space<vmem>>, vector<16x16xf32>
    tpu.vector_store %arg49[%c0_330, %c48_331], %346 {strides = array<i32>} : memref<16x144xf32, #tpu.memory_space<vmem>>, vector<16x16xf32>,
    %c8_332 = arith.constant 8 : index
    %c0_333 = arith.constant 0 : index
    %348 = vector.load %arg42[%c8_332, %c0_333] : memref<32x16xf32, #tpu.memory_space<vmem>>, vector<16x16xf32>
    %c0_334 = arith.constant 0 : index
    %c64_335 = arith.constant 64 : index
    %349 = vector.load %arg49[%c0_334, %c64_335] : memref<16x144xf32, #tpu.memory_space<vmem>>, vector<16x16xf32>
    tpu.vector_store %arg49[%c0_334, %c64_335], %348 {strides = array<i32>} : memref<16x144xf32, #tpu.memory_space<vmem>>, vector<16x16xf32>,
    %c9_336 = arith.constant 9 : index
    %c0_337 = arith.constant 0 : index
    %350 = vector.load %arg42[%c9_336, %c0_337] : memref<32x16xf32, #tpu.memory_space<vmem>>, vector<16x16xf32>
    %cst_338 = arith.constant 0.000000e+00 : f32
    %351 = vector.shape_cast %327 : vector<16x1xi1> to vector<16x1xi1>
    %352 = vector.broadcast %351 : vector<16x1xi1> to vector<16x16xi1>
    %353 = vector.broadcast %cst_338 : f32 to vector<16x16xf32>
    %354 = arith.select %352, %350, %353 : vector<16x16xi1>, vector<16x16xf32>
    %c0_339 = arith.constant 0 : index
    %c80_340 = arith.constant 80 : index
    %355 = vector.load %arg49[%c0_339, %c80_340] : memref<16x144xf32, #tpu.memory_space<vmem>>, vector<16x16xf32>
    tpu.vector_store %arg49[%c0_339, %c80_340], %354 {strides = array<i32>} : memref<16x144xf32, #tpu.memory_space<vmem>>, vector<16x16xf32>,
    %c11 = arith.constant 11 : index
    %c0_341 = arith.constant 0 : index
    %356 = vector.load %arg42[%c11, %c0_341] : memref<32x16xf32, #tpu.memory_space<vmem>>, vector<16x16xf32>
    %cst_342 = arith.constant 0.000000e+00 : f32
    %357 = vector.shape_cast %325 : vector<16x1xi1> to vector<16x1xi1>
    %358 = vector.broadcast %357 : vector<16x1xi1> to vector<16x16xi1>
    %359 = vector.broadcast %cst_342 : f32 to vector<16x16xf32>
    %360 = arith.select %358, %356, %359 : vector<16x16xi1>, vector<16x16xf32>
    %c0_343 = arith.constant 0 : index
    %c96_344 = arith.constant 96 : index
    %361 = vector.load %arg49[%c0_343, %c96_344] : memref<16x144xf32, #tpu.memory_space<vmem>>, vector<16x16xf32>
    tpu.vector_store %arg49[%c0_343, %c96_344], %360 {strides = array<i32>} : memref<16x144xf32, #tpu.memory_space<vmem>>, vector<16x16xf32>,
    %c12_345 = arith.constant 12 : index
    %c0_346 = arith.constant 0 : index
    %362 = vector.load %arg42[%c12_345, %c0_346] : memref<32x16xf32, #tpu.memory_space<vmem>>, vector<16x16xf32>
    %c0_347 = arith.constant 0 : index
    %c112_348 = arith.constant 112 : index
    %363 = vector.load %arg49[%c0_347, %c112_348] : memref<16x144xf32, #tpu.memory_space<vmem>>, vector<16x16xf32>
    tpu.vector_store %arg49[%c0_347, %c112_348], %362 {strides = array<i32>} : memref<16x144xf32, #tpu.memory_space<vmem>>, vector<16x16xf32>,
    %c13 = arith.constant 13 : index
    %c0_349 = arith.constant 0 : index
    %364 = vector.load %arg42[%c13, %c0_349] : memref<32x16xf32, #tpu.memory_space<vmem>>, vector<16x16xf32>
    %cst_350 = arith.constant 0.000000e+00 : f32
    %365 = vector.shape_cast %327 : vector<16x1xi1> to vector<16x1xi1>
    %366 = vector.broadcast %365 : vector<16x1xi1> to vector<16x16xi1>
    %367 = vector.broadcast %cst_350 : f32 to vector<16x16xf32>
    %368 = arith.select %366, %364, %367 : vector<16x16xi1>, vector<16x16xf32>
    %c0_351 = arith.constant 0 : index
    %c128_352 = arith.constant 128 : index
    %369 = vector.load %arg49[%c0_351, %c128_352] : memref<16x144xf32, #tpu.memory_space<vmem>>, vector<16x16xf32>
    tpu.vector_store %arg49[%c0_351, %c128_352], %368 {strides = array<i32>} : memref<16x144xf32, #tpu.memory_space<vmem>>, vector<16x16xf32>,
    %c0_353 = arith.constant 0 : index
    %c0_354 = arith.constant 0 : index
    %370 = vector.load %arg49[%c0_353, %c0_354] : memref<16x144xf32, #tpu.memory_space<vmem>>, vector<16x144xf32>
    %c0_355 = arith.constant 0 : index
    %c0_356 = arith.constant 0 : index
    %371 = vector.load %arg14[%c0_355, %c0_356] : memref<144x32xf32, #tpu.memory_space<vmem>>, vector<144x32xf32>
    %cst_357 = arith.constant dense<0.000000e+00> : vector<16x32xf32>
    %372 = tpu.matmul %370, %371, %cst_357 {dimension_numbers = #tpu.dot_dimension_numbers<[1], [0], [0], [1], [0, 0, 1, 1], [], []>} : vector<16x144xf32>, vector<144x32xf32>, vector<16x32xf32> -> vector<16x32xf32>
    %c0_358 = arith.constant 0 : index
    %c0_359 = arith.constant 0 : index
    %373 = vector.load %arg15[%c0_358, %c0_359] : memref<1x32xf32, #tpu.memory_space<vmem>>, vector<1x32xf32>
    %374 = vector.broadcast %373 : vector<1x32xf32> to vector<16x32xf32>
    %375 = arith.addf %372, %374 : vector<16x32xf32>
    %cst_360 = arith.constant 0.000000e+00 : f32
    %376 = vector.broadcast %cst_360 : f32 to vector<16x32xf32>
    %377 = arith.maximumf %375, %376 : vector<16x32xf32>
    %c0_361 = arith.constant 0 : index
    %c0_362 = arith.constant 0 : index
    %378 = vector.load %arg16[%c0_361, %c0_362] : memref<1x32xf32, #tpu.memory_space<vmem>>, vector<1x32xf32>
    %379 = vector.broadcast %378 : vector<1x32xf32> to vector<16x32xf32>
    %380 = arith.mulf %377, %379 : vector<16x32xf32>
    %c0_363 = arith.constant 0 : index
    %c0_364 = arith.constant 0 : index
    %381 = vector.load %arg17[%c0_363, %c0_364] : memref<1x32xf32, #tpu.memory_space<vmem>>, vector<1x32xf32>
    %382 = vector.broadcast %381 : vector<1x32xf32> to vector<16x32xf32>
    %383 = arith.addf %380, %382 : vector<16x32xf32>
    %c8_365 = arith.constant 8 : index
    %c0_366 = arith.constant 0 : index
    %384 = vector.load %arg43[%c8_365, %c0_366] : memref<32x32xf32, #tpu.memory_space<vmem>>, vector<16x32xf32>
    tpu.vector_store %arg43[%c8_365, %c0_366], %383 {strides = array<i32>} : memref<32x32xf32, #tpu.memory_space<vmem>>, vector<16x32xf32>,
    %cst_367 = arith.constant 0.000000e+00 : f32
    %385 = vector.broadcast %cst_367 : f32 to vector<8x32xf32>
    %c0_368 = arith.constant 0 : index
    %c0_369 = arith.constant 0 : index
    %386 = vector.load %arg44[%c0_368, %c0_369] : memref<20x32xf32, #tpu.memory_space<vmem>>, vector<8x32xf32>
    tpu.vector_store %arg44[%c0_368, %c0_369], %385 {strides = array<i32>} : memref<20x32xf32, #tpu.memory_space<vmem>>, vector<8x32xf32>,
    %cst_370 = arith.constant 0.000000e+00 : f32
    %387 = vector.broadcast %cst_370 : f32 to vector<8x32xf32>
    %c12_371 = arith.constant 12 : index
    %c0_372 = arith.constant 0 : index
    %388 = vector.load %arg44[%c12_371, %c0_372] : memref<20x32xf32, #tpu.memory_space<vmem>>, vector<8x32xf32>
    tpu.vector_store %arg44[%c12_371, %c0_372], %387 {strides = array<i32>} : memref<20x32xf32, #tpu.memory_space<vmem>>, vector<8x32xf32>,
    %389 = tpu.iota {dimensions = array<i32: 0>} : vector<16x1xi32>
    %c0_i32_373 = arith.constant 0 : i32
    %390 = vector.broadcast %c0_i32_373 : i32 to vector<16x1xi32>
    %391 = arith.addi %389, %390 : vector<16x1xi32>
    %c3_i32_374 = arith.constant 3 : i32
    %392 = vector.broadcast %c3_i32_374 : i32 to vector<16x1xi32>
    %393 = arith.andi %391, %392 : vector<16x1xi32>
    %c0_i32_375 = arith.constant 0 : i32
    %394 = vector.broadcast %c0_i32_375 : i32 to vector<16x1xi32>
    %395 = arith.cmpi sgt, %393, %394 : vector<16x1xi32>
    %c3_i32_376 = arith.constant 3 : i32
    %396 = vector.broadcast %c3_i32_376 : i32 to vector<16x1xi32>
    %397 = arith.cmpi slt, %393, %396 : vector<16x1xi32>
    %c3_377 = arith.constant 3 : index
    %c0_378 = arith.constant 0 : index
    %398 = vector.load %arg43[%c3_377, %c0_378] : memref<32x32xf32, #tpu.memory_space<vmem>>, vector<16x32xf32>
    %cst_379 = arith.constant 0.000000e+00 : f32
    %399 = vector.shape_cast %395 : vector<16x1xi1> to vector<16x1xi1>
    %400 = vector.broadcast %399 : vector<16x1xi1> to vector<16x32xi1>
    %401 = vector.broadcast %cst_379 : f32 to vector<16x32xf32>
    %402 = arith.select %400, %398, %401 : vector<16x32xi1>, vector<16x32xf32>
    %c0_380 = arith.constant 0 : index
    %c0_381 = arith.constant 0 : index
    %403 = vector.load %arg50[%c0_380, %c0_381] : memref<16x288xf32, #tpu.memory_space<vmem>>, vector<16x32xf32>
    tpu.vector_store %arg50[%c0_380, %c0_381], %402 {strides = array<i32>} : memref<16x288xf32, #tpu.memory_space<vmem>>, vector<16x32xf32>,
    %c4_382 = arith.constant 4 : index
    %c0_383 = arith.constant 0 : index
    %404 = vector.load %arg43[%c4_382, %c0_383] : memref<32x32xf32, #tpu.memory_space<vmem>>, vector<16x32xf32>
    %c0_384 = arith.constant 0 : index
    %c32_385 = arith.constant 32 : index
    %405 = vector.load %arg50[%c0_384, %c32_385] : memref<16x288xf32, #tpu.memory_space<vmem>>, vector<16x32xf32>
    tpu.vector_store %arg50[%c0_384, %c32_385], %404 {strides = array<i32>} : memref<16x288xf32, #tpu.memory_space<vmem>>, vector<16x32xf32>,
    %c5_386 = arith.constant 5 : index
    %c0_387 = arith.constant 0 : index
    %406 = vector.load %arg43[%c5_386, %c0_387] : memref<32x32xf32, #tpu.memory_space<vmem>>, vector<16x32xf32>
    %cst_388 = arith.constant 0.000000e+00 : f32
    %407 = vector.shape_cast %397 : vector<16x1xi1> to vector<16x1xi1>
    %408 = vector.broadcast %407 : vector<16x1xi1> to vector<16x32xi1>
    %409 = vector.broadcast %cst_388 : f32 to vector<16x32xf32>
    %410 = arith.select %408, %406, %409 : vector<16x32xi1>, vector<16x32xf32>
    %c0_389 = arith.constant 0 : index
    %c64_390 = arith.constant 64 : index
    %411 = vector.load %arg50[%c0_389, %c64_390] : memref<16x288xf32, #tpu.memory_space<vmem>>, vector<16x32xf32>
    tpu.vector_store %arg50[%c0_389, %c64_390], %410 {strides = array<i32>} : memref<16x288xf32, #tpu.memory_space<vmem>>, vector<16x32xf32>,
    %c7_391 = arith.constant 7 : index
    %c0_392 = arith.constant 0 : index
    %412 = vector.load %arg43[%c7_391, %c0_392] : memref<32x32xf32, #tpu.memory_space<vmem>>, vector<16x32xf32>
    %cst_393 = arith.constant 0.000000e+00 : f32
    %413 = vector.shape_cast %395 : vector<16x1xi1> to vector<16x1xi1>
    %414 = vector.broadcast %413 : vector<16x1xi1> to vector<16x32xi1>
    %415 = vector.broadcast %cst_393 : f32 to vector<16x32xf32>
    %416 = arith.select %414, %412, %415 : vector<16x32xi1>, vector<16x32xf32>
    %c0_394 = arith.constant 0 : index
    %c96_395 = arith.constant 96 : index
    %417 = vector.load %arg50[%c0_394, %c96_395] : memref<16x288xf32, #tpu.memory_space<vmem>>, vector<16x32xf32>
    tpu.vector_store %arg50[%c0_394, %c96_395], %416 {strides = array<i32>} : memref<16x288xf32, #tpu.memory_space<vmem>>, vector<16x32xf32>,
    %c8_396 = arith.constant 8 : index
    %c0_397 = arith.constant 0 : index
    %418 = vector.load %arg43[%c8_396, %c0_397] : memref<32x32xf32, #tpu.memory_space<vmem>>, vector<16x32xf32>
    %c0_398 = arith.constant 0 : index
    %c128_399 = arith.constant 128 : index
    %419 = vector.load %arg50[%c0_398, %c128_399] : memref<16x288xf32, #tpu.memory_space<vmem>>, vector<16x32xf32>
    tpu.vector_store %arg50[%c0_398, %c128_399], %418 {strides = array<i32>} : memref<16x288xf32, #tpu.memory_space<vmem>>, vector<16x32xf32>,
    %c9_400 = arith.constant 9 : index
    %c0_401 = arith.constant 0 : index
    %420 = vector.load %arg43[%c9_400, %c0_401] : memref<32x32xf32, #tpu.memory_space<vmem>>, vector<16x32xf32>
    %cst_402 = arith.constant 0.000000e+00 : f32
    %421 = vector.shape_cast %397 : vector<16x1xi1> to vector<16x1xi1>
    %422 = vector.broadcast %421 : vector<16x1xi1> to vector<16x32xi1>
    %423 = vector.broadcast %cst_402 : f32 to vector<16x32xf32>
    %424 = arith.select %422, %420, %423 : vector<16x32xi1>, vector<16x32xf32>
    %c0_403 = arith.constant 0 : index
    %c160 = arith.constant 160 : index
    %425 = vector.load %arg50[%c0_403, %c160] : memref<16x288xf32, #tpu.memory_space<vmem>>, vector<16x32xf32>
    tpu.vector_store %arg50[%c0_403, %c160], %424 {strides = array<i32>} : memref<16x288xf32, #tpu.memory_space<vmem>>, vector<16x32xf32>,
    %c11_404 = arith.constant 11 : index
    %c0_405 = arith.constant 0 : index
    %426 = vector.load %arg43[%c11_404, %c0_405] : memref<32x32xf32, #tpu.memory_space<vmem>>, vector<16x32xf32>
    %cst_406 = arith.constant 0.000000e+00 : f32
    %427 = vector.shape_cast %395 : vector<16x1xi1> to vector<16x1xi1>
    %428 = vector.broadcast %427 : vector<16x1xi1> to vector<16x32xi1>
    %429 = vector.broadcast %cst_406 : f32 to vector<16x32xf32>
    %430 = arith.select %428, %426, %429 : vector<16x32xi1>, vector<16x32xf32>
    %c0_407 = arith.constant 0 : index
    %c192 = arith.constant 192 : index
    %431 = vector.load %arg50[%c0_407, %c192] : memref<16x288xf32, #tpu.memory_space<vmem>>, vector<16x32xf32>
    tpu.vector_store %arg50[%c0_407, %c192], %430 {strides = array<i32>} : memref<16x288xf32, #tpu.memory_space<vmem>>, vector<16x32xf32>,
    %c12_408 = arith.constant 12 : index
    %c0_409 = arith.constant 0 : index
    %432 = vector.load %arg43[%c12_408, %c0_409] : memref<32x32xf32, #tpu.memory_space<vmem>>, vector<16x32xf32>
    %c0_410 = arith.constant 0 : index
    %c224 = arith.constant 224 : index
    %433 = vector.load %arg50[%c0_410, %c224] : memref<16x288xf32, #tpu.memory_space<vmem>>, vector<16x32xf32>
    tpu.vector_store %arg50[%c0_410, %c224], %432 {strides = array<i32>} : memref<16x288xf32, #tpu.memory_space<vmem>>, vector<16x32xf32>,
    %c13_411 = arith.constant 13 : index
    %c0_412 = arith.constant 0 : index
    %434 = vector.load %arg43[%c13_411, %c0_412] : memref<32x32xf32, #tpu.memory_space<vmem>>, vector<16x32xf32>
    %cst_413 = arith.constant 0.000000e+00 : f32
    %435 = vector.shape_cast %397 : vector<16x1xi1> to vector<16x1xi1>
    %436 = vector.broadcast %435 : vector<16x1xi1> to vector<16x32xi1>
    %437 = vector.broadcast %cst_413 : f32 to vector<16x32xf32>
    %438 = arith.select %436, %434, %437 : vector<16x32xi1>, vector<16x32xf32>
    %c0_414 = arith.constant 0 : index
    %c256 = arith.constant 256 : index
    %439 = vector.load %arg50[%c0_414, %c256] : memref<16x288xf32, #tpu.memory_space<vmem>>, vector<16x32xf32>
    tpu.vector_store %arg50[%c0_414, %c256], %438 {strides = array<i32>} : memref<16x288xf32, #tpu.memory_space<vmem>>, vector<16x32xf32>,
    %c0_415 = arith.constant 0 : index
    %c0_416 = arith.constant 0 : index
    %440 = vector.load %arg50[%c0_415, %c0_416] : memref<16x288xf32, #tpu.memory_space<vmem>>, vector<16x288xf32>
    %c0_417 = arith.constant 0 : index
    %c0_418 = arith.constant 0 : index
    %441 = vector.load %arg18[%c0_417, %c0_418] : memref<288x32xf32, #tpu.memory_space<vmem>>, vector<288x32xf32>
    %cst_419 = arith.constant dense<0.000000e+00> : vector<16x32xf32>
    %442 = tpu.matmul %440, %441, %cst_419 {dimension_numbers = #tpu.dot_dimension_numbers<[1], [0], [0], [1], [0, 0, 1, 1], [], []>} : vector<16x288xf32>, vector<288x32xf32>, vector<16x32xf32> -> vector<16x32xf32>
    %c0_420 = arith.constant 0 : index
    %c0_421 = arith.constant 0 : index
    %443 = vector.load %arg19[%c0_420, %c0_421] : memref<1x32xf32, #tpu.memory_space<vmem>>, vector<1x32xf32>
    %444 = vector.broadcast %443 : vector<1x32xf32> to vector<16x32xf32>
    %445 = arith.addf %442, %444 : vector<16x32xf32>
    %cst_422 = arith.constant 0.000000e+00 : f32
    %446 = vector.broadcast %cst_422 : f32 to vector<16x32xf32>
    %447 = arith.maximumf %445, %446 : vector<16x32xf32>
    %c0_423 = arith.constant 0 : index
    %c0_424 = arith.constant 0 : index
    %448 = vector.load %arg20[%c0_423, %c0_424] : memref<1x32xf32, #tpu.memory_space<vmem>>, vector<1x32xf32>
    %449 = vector.broadcast %448 : vector<1x32xf32> to vector<16x32xf32>
    %450 = arith.mulf %447, %449 : vector<16x32xf32>
    %c0_425 = arith.constant 0 : index
    %c0_426 = arith.constant 0 : index
    %451 = vector.load %arg21[%c0_425, %c0_426] : memref<1x32xf32, #tpu.memory_space<vmem>>, vector<1x32xf32>
    %452 = vector.broadcast %451 : vector<1x32xf32> to vector<16x32xf32>
    %453 = arith.addf %450, %452 : vector<16x32xf32>
    %c0_427 = arith.constant 0 : index
    %c0_428 = arith.constant 0 : index
    %454 = vector.load %arg57[%c0_427, %c0_428] : memref<16x32xf32, #tpu.memory_space<vmem>>, vector<16x32xf32>
    tpu.vector_store %arg57[%c0_427, %c0_428], %453 {strides = array<i32>} : memref<16x32xf32, #tpu.memory_space<vmem>>, vector<16x32xf32>,
    %c0_429 = arith.constant 0 : index
    %c0_430 = arith.constant 0 : index
    %455 = tpu.strided_load %arg57[%c0_429, %c0_430] {strides = array<i32: 2, 1>} : memref<16x32xf32, #tpu.memory_space<vmem>>, vector<8x32xf32>
    %c1_431 = arith.constant 1 : index
    %c0_432 = arith.constant 0 : index
    %456 = tpu.strided_load %arg57[%c1_431, %c0_432] {strides = array<i32: 2, 1>} : memref<16x32xf32, #tpu.memory_space<vmem>>, vector<8x32xf32>
    %457 = arith.maximumf %455, %456 : vector<8x32xf32>
    %c0_433 = arith.constant 0 : index
    %c0_434 = arith.constant 0 : index
    %458 = vector.load %arg58[%c0_433, %c0_434] : memref<8x32xf32, #tpu.memory_space<vmem>>, vector<8x32xf32>
    tpu.vector_store %arg58[%c0_433, %c0_434], %457 {strides = array<i32>} : memref<8x32xf32, #tpu.memory_space<vmem>>, vector<8x32xf32>,
    %c0_435 = arith.constant 0 : index
    %c0_436 = arith.constant 0 : index
    %459 = vector.load %arg58[%c0_435, %c0_436] : memref<8x32xf32, #tpu.memory_space<vmem>>, vector<2x32xf32>
    %c2_437 = arith.constant 2 : index
    %c0_438 = arith.constant 0 : index
    %460 = vector.load %arg58[%c2_437, %c0_438] : memref<8x32xf32, #tpu.memory_space<vmem>>, vector<2x32xf32>
    %461 = arith.maximumf %459, %460 : vector<2x32xf32>
    %c8_439 = arith.constant 8 : index
    %c0_440 = arith.constant 0 : index
    %462 = vector.load %arg44[%c8_439, %c0_440] : memref<20x32xf32, #tpu.memory_space<vmem>>, vector<2x32xf32>
    tpu.vector_store %arg44[%c8_439, %c0_440], %461 {strides = array<i32>} : memref<20x32xf32, #tpu.memory_space<vmem>>, vector<2x32xf32>,
    %c4_441 = arith.constant 4 : index
    %c0_442 = arith.constant 0 : index
    %463 = vector.load %arg58[%c4_441, %c0_442] : memref<8x32xf32, #tpu.memory_space<vmem>>, vector<2x32xf32>
    %c6_443 = arith.constant 6 : index
    %c0_444 = arith.constant 0 : index
    %464 = vector.load %arg58[%c6_443, %c0_444] : memref<8x32xf32, #tpu.memory_space<vmem>>, vector<2x32xf32>
    %465 = arith.maximumf %463, %464 : vector<2x32xf32>
    %c10 = arith.constant 10 : index
    %c0_445 = arith.constant 0 : index
    %466 = vector.load %arg44[%c10, %c0_445] : memref<20x32xf32, #tpu.memory_space<vmem>>, vector<2x32xf32>
    tpu.vector_store %arg44[%c10, %c0_445], %465 {strides = array<i32>} : memref<20x32xf32, #tpu.memory_space<vmem>>, vector<2x32xf32>,
    %cst_446 = arith.constant 0.000000e+00 : f32
    %467 = vector.broadcast %cst_446 : f32 to vector<8x64xf32>
    %c0_447 = arith.constant 0 : index
    %c0_448 = arith.constant 0 : index
    %468 = vector.load %arg45[%c0_447, %c0_448] : memref<20x64xf32, #tpu.memory_space<vmem>>, vector<8x64xf32>
    tpu.vector_store %arg45[%c0_447, %c0_448], %467 {strides = array<i32>} : memref<20x64xf32, #tpu.memory_space<vmem>>, vector<8x64xf32>,
    %cst_449 = arith.constant 0.000000e+00 : f32
    %469 = vector.broadcast %cst_449 : f32 to vector<8x64xf32>
    %c12_450 = arith.constant 12 : index
    %c0_451 = arith.constant 0 : index
    %470 = vector.load %arg45[%c12_450, %c0_451] : memref<20x64xf32, #tpu.memory_space<vmem>>, vector<8x64xf32>
    tpu.vector_store %arg45[%c12_450, %c0_451], %469 {strides = array<i32>} : memref<20x64xf32, #tpu.memory_space<vmem>>, vector<8x64xf32>,
    %471 = tpu.iota {dimensions = array<i32: 0>} : vector<4x1xi32>
    %c0_i32_452 = arith.constant 0 : i32
    %472 = vector.broadcast %c0_i32_452 : i32 to vector<4x1xi32>
    %473 = arith.addi %471, %472 : vector<4x1xi32>
    %c1_i32 = arith.constant 1 : i32
    %474 = vector.broadcast %c1_i32 : i32 to vector<4x1xi32>
    %475 = arith.andi %473, %474 : vector<4x1xi32>
    %c0_i32_453 = arith.constant 0 : i32
    %476 = vector.broadcast %c0_i32_453 : i32 to vector<4x1xi32>
    %477 = arith.cmpi sgt, %475, %476 : vector<4x1xi32>
    %c1_i32_454 = arith.constant 1 : i32
    %478 = vector.broadcast %c1_i32_454 : i32 to vector<4x1xi32>
    %479 = arith.cmpi slt, %475, %478 : vector<4x1xi32>
    %c5_455 = arith.constant 5 : index
    %c0_456 = arith.constant 0 : index
    %480 = vector.load %arg44[%c5_455, %c0_456] : memref<20x32xf32, #tpu.memory_space<vmem>>, vector<4x32xf32>
    %cst_457 = arith.constant 0.000000e+00 : f32
    %481 = vector.shape_cast %477 : vector<4x1xi1> to vector<4x1xi1>
    %482 = vector.broadcast %481 : vector<4x1xi1> to vector<4x32xi1>
    %483 = vector.broadcast %cst_457 : f32 to vector<4x32xf32>
    %484 = arith.select %482, %480, %483 : vector<4x32xi1>, vector<4x32xf32>
    %c0_458 = arith.constant 0 : index
    %c0_459 = arith.constant 0 : index
    %485 = vector.load %arg51[%c0_458, %c0_459] : memref<4x288xf32, #tpu.memory_space<vmem>>, vector<4x32xf32>
    tpu.vector_store %arg51[%c0_458, %c0_459], %484 {strides = array<i32>} : memref<4x288xf32, #tpu.memory_space<vmem>>, vector<4x32xf32>,
    %c6_460 = arith.constant 6 : index
    %c0_461 = arith.constant 0 : index
    %486 = vector.load %arg44[%c6_460, %c0_461] : memref<20x32xf32, #tpu.memory_space<vmem>>, vector<4x32xf32>
    %c0_462 = arith.constant 0 : index
    %c32_463 = arith.constant 32 : index
    %487 = vector.load %arg51[%c0_462, %c32_463] : memref<4x288xf32, #tpu.memory_space<vmem>>, vector<4x32xf32>
    tpu.vector_store %arg51[%c0_462, %c32_463], %486 {strides = array<i32>} : memref<4x288xf32, #tpu.memory_space<vmem>>, vector<4x32xf32>,
    %c7_464 = arith.constant 7 : index
    %c0_465 = arith.constant 0 : index
    %488 = vector.load %arg44[%c7_464, %c0_465] : memref<20x32xf32, #tpu.memory_space<vmem>>, vector<4x32xf32>
    %cst_466 = arith.constant 0.000000e+00 : f32
    %489 = vector.shape_cast %479 : vector<4x1xi1> to vector<4x1xi1>
    %490 = vector.broadcast %489 : vector<4x1xi1> to vector<4x32xi1>
    %491 = vector.broadcast %cst_466 : f32 to vector<4x32xf32>
    %492 = arith.select %490, %488, %491 : vector<4x32xi1>, vector<4x32xf32>
    %c0_467 = arith.constant 0 : index
    %c64_468 = arith.constant 64 : index
    %493 = vector.load %arg51[%c0_467, %c64_468] : memref<4x288xf32, #tpu.memory_space<vmem>>, vector<4x32xf32>
    tpu.vector_store %arg51[%c0_467, %c64_468], %492 {strides = array<i32>} : memref<4x288xf32, #tpu.memory_space<vmem>>, vector<4x32xf32>,
    %c7_469 = arith.constant 7 : index
    %c0_470 = arith.constant 0 : index
    %494 = vector.load %arg44[%c7_469, %c0_470] : memref<20x32xf32, #tpu.memory_space<vmem>>, vector<4x32xf32>
    %cst_471 = arith.constant 0.000000e+00 : f32
    %495 = vector.shape_cast %477 : vector<4x1xi1> to vector<4x1xi1>
    %496 = vector.broadcast %495 : vector<4x1xi1> to vector<4x32xi1>
    %497 = vector.broadcast %cst_471 : f32 to vector<4x32xf32>
    %498 = arith.select %496, %494, %497 : vector<4x32xi1>, vector<4x32xf32>
    %c0_472 = arith.constant 0 : index
    %c96_473 = arith.constant 96 : index
    %499 = vector.load %arg51[%c0_472, %c96_473] : memref<4x288xf32, #tpu.memory_space<vmem>>, vector<4x32xf32>
    tpu.vector_store %arg51[%c0_472, %c96_473], %498 {strides = array<i32>} : memref<4x288xf32, #tpu.memory_space<vmem>>, vector<4x32xf32>,
    %c8_474 = arith.constant 8 : index
    %c0_475 = arith.constant 0 : index
    %500 = vector.load %arg44[%c8_474, %c0_475] : memref<20x32xf32, #tpu.memory_space<vmem>>, vector<4x32xf32>
    %c0_476 = arith.constant 0 : index
    %c128_477 = arith.constant 128 : index
    %501 = vector.load %arg51[%c0_476, %c128_477] : memref<4x288xf32, #tpu.memory_space<vmem>>, vector<4x32xf32>
    tpu.vector_store %arg51[%c0_476, %c128_477], %500 {strides = array<i32>} : memref<4x288xf32, #tpu.memory_space<vmem>>, vector<4x32xf32>,
    %c9_478 = arith.constant 9 : index
    %c0_479 = arith.constant 0 : index
    %502 = vector.load %arg44[%c9_478, %c0_479] : memref<20x32xf32, #tpu.memory_space<vmem>>, vector<4x32xf32>
    %cst_480 = arith.constant 0.000000e+00 : f32
    %503 = vector.shape_cast %479 : vector<4x1xi1> to vector<4x1xi1>
    %504 = vector.broadcast %503 : vector<4x1xi1> to vector<4x32xi1>
    %505 = vector.broadcast %cst_480 : f32 to vector<4x32xf32>
    %506 = arith.select %504, %502, %505 : vector<4x32xi1>, vector<4x32xf32>
    %c0_481 = arith.constant 0 : index
    %c160_482 = arith.constant 160 : index
    %507 = vector.load %arg51[%c0_481, %c160_482] : memref<4x288xf32, #tpu.memory_space<vmem>>, vector<4x32xf32>
    tpu.vector_store %arg51[%c0_481, %c160_482], %506 {strides = array<i32>} : memref<4x288xf32, #tpu.memory_space<vmem>>, vector<4x32xf32>,
    %c9_483 = arith.constant 9 : index
    %c0_484 = arith.constant 0 : index
    %508 = vector.load %arg44[%c9_483, %c0_484] : memref<20x32xf32, #tpu.memory_space<vmem>>, vector<4x32xf32>
    %cst_485 = arith.constant 0.000000e+00 : f32
    %509 = vector.shape_cast %477 : vector<4x1xi1> to vector<4x1xi1>
    %510 = vector.broadcast %509 : vector<4x1xi1> to vector<4x32xi1>
    %511 = vector.broadcast %cst_485 : f32 to vector<4x32xf32>
    %512 = arith.select %510, %508, %511 : vector<4x32xi1>, vector<4x32xf32>
    %c0_486 = arith.constant 0 : index
    %c192_487 = arith.constant 192 : index
    %513 = vector.load %arg51[%c0_486, %c192_487] : memref<4x288xf32, #tpu.memory_space<vmem>>, vector<4x32xf32>
    tpu.vector_store %arg51[%c0_486, %c192_487], %512 {strides = array<i32>} : memref<4x288xf32, #tpu.memory_space<vmem>>, vector<4x32xf32>,
    %c10_488 = arith.constant 10 : index
    %c0_489 = arith.constant 0 : index
    %514 = vector.load %arg44[%c10_488, %c0_489] : memref<20x32xf32, #tpu.memory_space<vmem>>, vector<4x32xf32>
    %c0_490 = arith.constant 0 : index
    %c224_491 = arith.constant 224 : index
    %515 = vector.load %arg51[%c0_490, %c224_491] : memref<4x288xf32, #tpu.memory_space<vmem>>, vector<4x32xf32>
    tpu.vector_store %arg51[%c0_490, %c224_491], %514 {strides = array<i32>} : memref<4x288xf32, #tpu.memory_space<vmem>>, vector<4x32xf32>,
    %c11_492 = arith.constant 11 : index
    %c0_493 = arith.constant 0 : index
    %516 = vector.load %arg44[%c11_492, %c0_493] : memref<20x32xf32, #tpu.memory_space<vmem>>, vector<4x32xf32>
    %cst_494 = arith.constant 0.000000e+00 : f32
    %517 = vector.shape_cast %479 : vector<4x1xi1> to vector<4x1xi1>
    %518 = vector.broadcast %517 : vector<4x1xi1> to vector<4x32xi1>
    %519 = vector.broadcast %cst_494 : f32 to vector<4x32xf32>
    %520 = arith.select %518, %516, %519 : vector<4x32xi1>, vector<4x32xf32>
    %c0_495 = arith.constant 0 : index
    %c256_496 = arith.constant 256 : index
    %521 = vector.load %arg51[%c0_495, %c256_496] : memref<4x288xf32, #tpu.memory_space<vmem>>, vector<4x32xf32>
    tpu.vector_store %arg51[%c0_495, %c256_496], %520 {strides = array<i32>} : memref<4x288xf32, #tpu.memory_space<vmem>>, vector<4x32xf32>,
    %c0_497 = arith.constant 0 : index
    %c0_498 = arith.constant 0 : index
    %522 = vector.load %arg51[%c0_497, %c0_498] : memref<4x288xf32, #tpu.memory_space<vmem>>, vector<4x288xf32>
    %c0_499 = arith.constant 0 : index
    %c0_500 = arith.constant 0 : index
    %523 = vector.load %arg22[%c0_499, %c0_500] : memref<288x64xf32, #tpu.memory_space<vmem>>, vector<288x64xf32>
    %cst_501 = arith.constant dense<0.000000e+00> : vector<4x64xf32>
    %524 = tpu.matmul %522, %523, %cst_501 {dimension_numbers = #tpu.dot_dimension_numbers<[1], [0], [0], [1], [0, 0, 1, 1], [], []>} : vector<4x288xf32>, vector<288x64xf32>, vector<4x64xf32> -> vector<4x64xf32>
    %c0_502 = arith.constant 0 : index
    %c0_503 = arith.constant 0 : index
    %525 = vector.load %arg23[%c0_502, %c0_503] : memref<1x64xf32, #tpu.memory_space<vmem>>, vector<1x64xf32>
    %526 = vector.broadcast %525 : vector<1x64xf32> to vector<4x64xf32>
    %527 = arith.addf %524, %526 : vector<4x64xf32>
    %cst_504 = arith.constant 0.000000e+00 : f32
    %528 = vector.broadcast %cst_504 : f32 to vector<4x64xf32>
    %529 = arith.maximumf %527, %528 : vector<4x64xf32>
    %c0_505 = arith.constant 0 : index
    %c0_506 = arith.constant 0 : index
    %530 = vector.load %arg24[%c0_505, %c0_506] : memref<1x64xf32, #tpu.memory_space<vmem>>, vector<1x64xf32>
    %531 = vector.broadcast %530 : vector<1x64xf32> to vector<4x64xf32>
    %532 = arith.mulf %529, %531 : vector<4x64xf32>
    %c0_507 = arith.constant 0 : index
    %c0_508 = arith.constant 0 : index
    %533 = vector.load %arg25[%c0_507, %c0_508] : memref<1x64xf32, #tpu.memory_space<vmem>>, vector<1x64xf32>
    %534 = vector.broadcast %533 : vector<1x64xf32> to vector<4x64xf32>
    %535 = arith.addf %532, %534 : vector<4x64xf32>
    %c8_509 = arith.constant 8 : index
    %c0_510 = arith.constant 0 : index
    %536 = vector.load %arg45[%c8_509, %c0_510] : memref<20x64xf32, #tpu.memory_space<vmem>>, vector<4x64xf32>
    tpu.vector_store %arg45[%c8_509, %c0_510], %535 {strides = array<i32>} : memref<20x64xf32, #tpu.memory_space<vmem>>, vector<4x64xf32>,
    %537 = tpu.iota {dimensions = array<i32: 0>} : vector<4x1xi32>
    %c0_i32_511 = arith.constant 0 : i32
    %538 = vector.broadcast %c0_i32_511 : i32 to vector<4x1xi32>
    %539 = arith.addi %537, %538 : vector<4x1xi32>
    %c1_i32_512 = arith.constant 1 : i32
    %540 = vector.broadcast %c1_i32_512 : i32 to vector<4x1xi32>
    %541 = arith.andi %539, %540 : vector<4x1xi32>
    %c0_i32_513 = arith.constant 0 : i32
    %542 = vector.broadcast %c0_i32_513 : i32 to vector<4x1xi32>
    %543 = arith.cmpi sgt, %541, %542 : vector<4x1xi32>
    %c1_i32_514 = arith.constant 1 : i32
    %544 = vector.broadcast %c1_i32_514 : i32 to vector<4x1xi32>
    %545 = arith.cmpi slt, %541, %544 : vector<4x1xi32>
    %c5_515 = arith.constant 5 : index
    %c0_516 = arith.constant 0 : index
    %546 = vector.load %arg45[%c5_515, %c0_516] : memref<20x64xf32, #tpu.memory_space<vmem>>, vector<4x64xf32>
    %cst_517 = arith.constant 0.000000e+00 : f32
    %547 = vector.shape_cast %543 : vector<4x1xi1> to vector<4x1xi1>
    %548 = vector.broadcast %547 : vector<4x1xi1> to vector<4x64xi1>
    %549 = vector.broadcast %cst_517 : f32 to vector<4x64xf32>
    %550 = arith.select %548, %546, %549 : vector<4x64xi1>, vector<4x64xf32>
    %c0_518 = arith.constant 0 : index
    %c0_519 = arith.constant 0 : index
    %551 = vector.load %arg52[%c0_518, %c0_519] : memref<4x576xf32, #tpu.memory_space<vmem>>, vector<4x64xf32>
    tpu.vector_store %arg52[%c0_518, %c0_519], %550 {strides = array<i32>} : memref<4x576xf32, #tpu.memory_space<vmem>>, vector<4x64xf32>,
    %c6_520 = arith.constant 6 : index
    %c0_521 = arith.constant 0 : index
    %552 = vector.load %arg45[%c6_520, %c0_521] : memref<20x64xf32, #tpu.memory_space<vmem>>, vector<4x64xf32>
    %c0_522 = arith.constant 0 : index
    %c64_523 = arith.constant 64 : index
    %553 = vector.load %arg52[%c0_522, %c64_523] : memref<4x576xf32, #tpu.memory_space<vmem>>, vector<4x64xf32>
    tpu.vector_store %arg52[%c0_522, %c64_523], %552 {strides = array<i32>} : memref<4x576xf32, #tpu.memory_space<vmem>>, vector<4x64xf32>,
    %c7_524 = arith.constant 7 : index
    %c0_525 = arith.constant 0 : index
    %554 = vector.load %arg45[%c7_524, %c0_525] : memref<20x64xf32, #tpu.memory_space<vmem>>, vector<4x64xf32>
    %cst_526 = arith.constant 0.000000e+00 : f32
    %555 = vector.shape_cast %545 : vector<4x1xi1> to vector<4x1xi1>
    %556 = vector.broadcast %555 : vector<4x1xi1> to vector<4x64xi1>
    %557 = vector.broadcast %cst_526 : f32 to vector<4x64xf32>
    %558 = arith.select %556, %554, %557 : vector<4x64xi1>, vector<4x64xf32>
    %c0_527 = arith.constant 0 : index
    %c128_528 = arith.constant 128 : index
    %559 = vector.load %arg52[%c0_527, %c128_528] : memref<4x576xf32, #tpu.memory_space<vmem>>, vector<4x64xf32>
    tpu.vector_store %arg52[%c0_527, %c128_528], %558 {strides = array<i32>} : memref<4x576xf32, #tpu.memory_space<vmem>>, vector<4x64xf32>,
    %c7_529 = arith.constant 7 : index
    %c0_530 = arith.constant 0 : index
    %560 = vector.load %arg45[%c7_529, %c0_530] : memref<20x64xf32, #tpu.memory_space<vmem>>, vector<4x64xf32>
    %cst_531 = arith.constant 0.000000e+00 : f32
    %561 = vector.shape_cast %543 : vector<4x1xi1> to vector<4x1xi1>
    %562 = vector.broadcast %561 : vector<4x1xi1> to vector<4x64xi1>
    %563 = vector.broadcast %cst_531 : f32 to vector<4x64xf32>
    %564 = arith.select %562, %560, %563 : vector<4x64xi1>, vector<4x64xf32>
    %c0_532 = arith.constant 0 : index
    %c192_533 = arith.constant 192 : index
    %565 = vector.load %arg52[%c0_532, %c192_533] : memref<4x576xf32, #tpu.memory_space<vmem>>, vector<4x64xf32>
    tpu.vector_store %arg52[%c0_532, %c192_533], %564 {strides = array<i32>} : memref<4x576xf32, #tpu.memory_space<vmem>>, vector<4x64xf32>,
    %c8_534 = arith.constant 8 : index
    %c0_535 = arith.constant 0 : index
    %566 = vector.load %arg45[%c8_534, %c0_535] : memref<20x64xf32, #tpu.memory_space<vmem>>, vector<4x64xf32>
    %c0_536 = arith.constant 0 : index
    %c256_537 = arith.constant 256 : index
    %567 = vector.load %arg52[%c0_536, %c256_537] : memref<4x576xf32, #tpu.memory_space<vmem>>, vector<4x64xf32>
    tpu.vector_store %arg52[%c0_536, %c256_537], %566 {strides = array<i32>} : memref<4x576xf32, #tpu.memory_space<vmem>>, vector<4x64xf32>,
    %c9_538 = arith.constant 9 : index
    %c0_539 = arith.constant 0 : index
    %568 = vector.load %arg45[%c9_538, %c0_539] : memref<20x64xf32, #tpu.memory_space<vmem>>, vector<4x64xf32>
    %cst_540 = arith.constant 0.000000e+00 : f32
    %569 = vector.shape_cast %545 : vector<4x1xi1> to vector<4x1xi1>
    %570 = vector.broadcast %569 : vector<4x1xi1> to vector<4x64xi1>
    %571 = vector.broadcast %cst_540 : f32 to vector<4x64xf32>
    %572 = arith.select %570, %568, %571 : vector<4x64xi1>, vector<4x64xf32>
    %c0_541 = arith.constant 0 : index
    %c320 = arith.constant 320 : index
    %573 = vector.load %arg52[%c0_541, %c320] : memref<4x576xf32, #tpu.memory_space<vmem>>, vector<4x64xf32>
    tpu.vector_store %arg52[%c0_541, %c320], %572 {strides = array<i32>} : memref<4x576xf32, #tpu.memory_space<vmem>>, vector<4x64xf32>,
    %c9_542 = arith.constant 9 : index
    %c0_543 = arith.constant 0 : index
    %574 = vector.load %arg45[%c9_542, %c0_543] : memref<20x64xf32, #tpu.memory_space<vmem>>, vector<4x64xf32>
    %cst_544 = arith.constant 0.000000e+00 : f32
    %575 = vector.shape_cast %543 : vector<4x1xi1> to vector<4x1xi1>
    %576 = vector.broadcast %575 : vector<4x1xi1> to vector<4x64xi1>
    %577 = vector.broadcast %cst_544 : f32 to vector<4x64xf32>
    %578 = arith.select %576, %574, %577 : vector<4x64xi1>, vector<4x64xf32>
    %c0_545 = arith.constant 0 : index
    %c384 = arith.constant 384 : index
    %579 = vector.load %arg52[%c0_545, %c384] : memref<4x576xf32, #tpu.memory_space<vmem>>, vector<4x64xf32>
    tpu.vector_store %arg52[%c0_545, %c384], %578 {strides = array<i32>} : memref<4x576xf32, #tpu.memory_space<vmem>>, vector<4x64xf32>,
    %c10_546 = arith.constant 10 : index
    %c0_547 = arith.constant 0 : index
    %580 = vector.load %arg45[%c10_546, %c0_547] : memref<20x64xf32, #tpu.memory_space<vmem>>, vector<4x64xf32>
    %c0_548 = arith.constant 0 : index
    %c448 = arith.constant 448 : index
    %581 = vector.load %arg52[%c0_548, %c448] : memref<4x576xf32, #tpu.memory_space<vmem>>, vector<4x64xf32>
    tpu.vector_store %arg52[%c0_548, %c448], %580 {strides = array<i32>} : memref<4x576xf32, #tpu.memory_space<vmem>>, vector<4x64xf32>,
    %c11_549 = arith.constant 11 : index
    %c0_550 = arith.constant 0 : index
    %582 = vector.load %arg45[%c11_549, %c0_550] : memref<20x64xf32, #tpu.memory_space<vmem>>, vector<4x64xf32>
    %cst_551 = arith.constant 0.000000e+00 : f32
    %583 = vector.shape_cast %545 : vector<4x1xi1> to vector<4x1xi1>
    %584 = vector.broadcast %583 : vector<4x1xi1> to vector<4x64xi1>
    %585 = vector.broadcast %cst_551 : f32 to vector<4x64xf32>
    %586 = arith.select %584, %582, %585 : vector<4x64xi1>, vector<4x64xf32>
    %c0_552 = arith.constant 0 : index
    %c512 = arith.constant 512 : index
    %587 = vector.load %arg52[%c0_552, %c512] : memref<4x576xf32, #tpu.memory_space<vmem>>, vector<4x64xf32>
    tpu.vector_store %arg52[%c0_552, %c512], %586 {strides = array<i32>} : memref<4x576xf32, #tpu.memory_space<vmem>>, vector<4x64xf32>,
    %c0_553 = arith.constant 0 : index
    %c0_554 = arith.constant 0 : index
    %588 = vector.load %arg52[%c0_553, %c0_554] : memref<4x576xf32, #tpu.memory_space<vmem>>, vector<4x576xf32>
    %c0_555 = arith.constant 0 : index
    %c0_556 = arith.constant 0 : index
    %589 = vector.load %arg26[%c0_555, %c0_556] : memref<576x64xf32, #tpu.memory_space<vmem>>, vector<576x64xf32>
    %cst_557 = arith.constant dense<0.000000e+00> : vector<4x64xf32>
    %590 = tpu.matmul %588, %589, %cst_557 {dimension_numbers = #tpu.dot_dimension_numbers<[1], [0], [0], [1], [0, 0, 1, 1], [], []>} : vector<4x576xf32>, vector<576x64xf32>, vector<4x64xf32> -> vector<4x64xf32>
    %c0_558 = arith.constant 0 : index
    %c0_559 = arith.constant 0 : index
    %591 = vector.load %arg27[%c0_558, %c0_559] : memref<1x64xf32, #tpu.memory_space<vmem>>, vector<1x64xf32>
    %592 = vector.broadcast %591 : vector<1x64xf32> to vector<4x64xf32>
    %593 = arith.addf %590, %592 : vector<4x64xf32>
    %cst_560 = arith.constant 0.000000e+00 : f32
    %594 = vector.broadcast %cst_560 : f32 to vector<4x64xf32>
    %595 = arith.maximumf %593, %594 : vector<4x64xf32>
    %c0_561 = arith.constant 0 : index
    %c0_562 = arith.constant 0 : index
    %596 = vector.load %arg28[%c0_561, %c0_562] : memref<1x64xf32, #tpu.memory_space<vmem>>, vector<1x64xf32>
    %597 = vector.broadcast %596 : vector<1x64xf32> to vector<4x64xf32>
    %598 = arith.mulf %595, %597 : vector<4x64xf32>
    %c0_563 = arith.constant 0 : index
    %c0_564 = arith.constant 0 : index
    %599 = vector.load %arg29[%c0_563, %c0_564] : memref<1x64xf32, #tpu.memory_space<vmem>>, vector<1x64xf32>
    %600 = vector.broadcast %599 : vector<1x64xf32> to vector<4x64xf32>
    %601 = arith.addf %598, %600 : vector<4x64xf32>
    %c0_565 = arith.constant 0 : index
    %c0_566 = arith.constant 0 : index
    %602 = vector.load %arg59[%c0_565, %c0_566] : memref<4x64xf32, #tpu.memory_space<vmem>>, vector<4x64xf32>
    tpu.vector_store %arg59[%c0_565, %c0_566], %601 {strides = array<i32>} : memref<4x64xf32, #tpu.memory_space<vmem>>, vector<4x64xf32>,
    %c0_567 = arith.constant 0 : index
    %c0_568 = arith.constant 0 : index
    %603 = tpu.strided_load %arg59[%c0_567, %c0_568] {strides = array<i32: 2, 1>} : memref<4x64xf32, #tpu.memory_space<vmem>>, vector<2x64xf32>
    %c1_569 = arith.constant 1 : index
    %c0_570 = arith.constant 0 : index
    %604 = tpu.strided_load %arg59[%c1_569, %c0_570] {strides = array<i32: 2, 1>} : memref<4x64xf32, #tpu.memory_space<vmem>>, vector<2x64xf32>
    %605 = arith.maximumf %603, %604 : vector<2x64xf32>
    %c0_571 = arith.constant 0 : index
    %c0_572 = arith.constant 0 : index
    %606 = vector.load %arg60[%c0_571, %c0_572] : memref<2x64xf32, #tpu.memory_space<vmem>>, vector<2x64xf32>
    tpu.vector_store %arg60[%c0_571, %c0_572], %605 {strides = array<i32>} : memref<2x64xf32, #tpu.memory_space<vmem>>, vector<2x64xf32>,
    %c0_573 = arith.constant 0 : index
    %c0_574 = arith.constant 0 : index
    %607 = vector.load %arg60[%c0_573, %c0_574] : memref<2x64xf32, #tpu.memory_space<vmem>>, vector<1x64xf32>
    %c1_575 = arith.constant 1 : index
    %c0_576 = arith.constant 0 : index
    %608 = vector.load %arg60[%c1_575, %c0_576] : memref<2x64xf32, #tpu.memory_space<vmem>>, vector<1x64xf32>
    %609 = arith.maximumf %607, %608 : vector<1x64xf32>
    %c0_577 = arith.constant 0 : index
    %c0_578 = arith.constant 0 : index
    %610 = vector.load %arg61[%c0_577, %c0_578] : memref<1x64xf32, #tpu.memory_space<vmem>>, vector<1x64xf32>
    tpu.vector_store %arg61[%c0_577, %c0_578], %609 {strides = array<i32>} : memref<1x64xf32, #tpu.memory_space<vmem>>, vector<1x64xf32>,
    %c0_579 = arith.constant 0 : index
    %c0_580 = arith.constant 0 : index
    %611 = vector.load %arg61[%c0_579, %c0_580] : memref<1x64xf32, #tpu.memory_space<vmem>>, vector<1x64xf32>
    %c0_581 = arith.constant 0 : index
    %c0_582 = arith.constant 0 : index
    %612 = vector.load %arg30[%c0_581, %c0_582] : memref<64x64xf32, #tpu.memory_space<vmem>>, vector<64x64xf32>
    %cst_583 = arith.constant dense<0.000000e+00> : vector<1x64xf32>
    %613 = tpu.matmul %611, %612, %cst_583 {dimension_numbers = #tpu.dot_dimension_numbers<[1], [0], [0], [1], [0, 0, 1, 1], [], []>} : vector<1x64xf32>, vector<64x64xf32>, vector<1x64xf32> -> vector<1x64xf32>
    %c0_584 = arith.constant 0 : index
    %c0_585 = arith.constant 0 : index
    %614 = vector.load %arg31[%c0_584, %c0_585] : memref<1x64xf32, #tpu.memory_space<vmem>>, vector<1x64xf32>
    %615 = arith.addf %613, %614 : vector<1x64xf32>
    %cst_586 = arith.constant 0.000000e+00 : f32
    %616 = vector.broadcast %cst_586 : f32 to vector<1x64xf32>
    %617 = arith.maximumf %615, %616 : vector<1x64xf32>
    %c0_587 = arith.constant 0 : index
    %c0_588 = arith.constant 0 : index
    %618 = vector.load %arg32[%c0_587, %c0_588] : memref<64x32xf32, #tpu.memory_space<vmem>>, vector<64x32xf32>
    %cst_589 = arith.constant dense<0.000000e+00> : vector<1x32xf32>
    %619 = tpu.matmul %617, %618, %cst_589 {dimension_numbers = #tpu.dot_dimension_numbers<[1], [0], [0], [1], [0, 0, 1, 1], [], []>} : vector<1x64xf32>, vector<64x32xf32>, vector<1x32xf32> -> vector<1x32xf32>
    %c0_590 = arith.constant 0 : index
    %c0_591 = arith.constant 0 : index
    %620 = vector.load %arg33[%c0_590, %c0_591] : memref<1x32xf32, #tpu.memory_space<vmem>>, vector<1x32xf32>
    %621 = arith.addf %619, %620 : vector<1x32xf32>
    %cst_592 = arith.constant 0.000000e+00 : f32
    %622 = vector.broadcast %cst_592 : f32 to vector<1x32xf32>
    %623 = arith.maximumf %621, %622 : vector<1x32xf32>
    %c0_593 = arith.constant 0 : index
    %c0_594 = arith.constant 0 : index
    %624 = vector.load %arg34[%c0_593, %c0_594] : memref<32x16xf32, #tpu.memory_space<vmem>>, vector<32x16xf32>
    %cst_595 = arith.constant dense<0.000000e+00> : vector<1x16xf32>
    %625 = tpu.matmul %623, %624, %cst_595 {dimension_numbers = #tpu.dot_dimension_numbers<[1], [0], [0], [1], [0, 0, 1, 1], [], []>} : vector<1x32xf32>, vector<32x16xf32>, vector<1x16xf32> -> vector<1x16xf32>
    %c0_596 = arith.constant 0 : index
    %c0_597 = arith.constant 0 : index
    %626 = vector.load %arg35[%c0_596, %c0_597] : memref<1x16xf32, #tpu.memory_space<vmem>>, vector<1x16xf32>
    %627 = arith.addf %625, %626 : vector<1x16xf32>
    %cst_598 = arith.constant 0.000000e+00 : f32
    %628 = vector.broadcast %cst_598 : f32 to vector<1x16xf32>
    %629 = arith.maximumf %627, %628 : vector<1x16xf32>
    %c0_599 = arith.constant 0 : index
    %c0_600 = arith.constant 0 : index
    %630 = vector.load %arg36[%c0_599, %c0_600] : memref<16x7xf32, #tpu.memory_space<vmem>>, vector<16x7xf32>
    %cst_601 = arith.constant dense<0.000000e+00> : vector<1x7xf32>
    %631 = tpu.matmul %629, %630, %cst_601 {dimension_numbers = #tpu.dot_dimension_numbers<[1], [0], [0], [1], [0, 0, 1, 1], [], []>} : vector<1x16xf32>, vector<16x7xf32>, vector<1x7xf32> -> vector<1x7xf32>
    %c0_602 = arith.constant 0 : index
    %c0_603 = arith.constant 0 : index
    %632 = vector.load %arg37[%c0_602, %c0_603] : memref<1x7xf32, #tpu.memory_space<vmem>>, vector<1x7xf32>
    %633 = arith.addf %631, %632 : vector<1x7xf32>
    %cst_604 = arith.constant dense<0xFF800000> : vector<1xf32>
    %634 = vector.multi_reduction <maximumf>, %633, %cst_604 [1] : vector<1x7xf32> to vector<1xf32>
    %635 = vector.shape_cast %634 : vector<1xf32> to vector<1x1xf32>
    %636 = vector.broadcast %635 : vector<1x1xf32> to vector<1x7xf32>
    %637 = arith.subf %633, %636 : vector<1x7xf32>
    %638 = math.exp %637 : vector<1x7xf32>
    %cst_605 = arith.constant dense<0.000000e+00> : vector<1xf32>
    %639 = vector.multi_reduction <add>, %638, %cst_605 [1] : vector<1x7xf32> to vector<1xf32>
    %640 = vector.shape_cast %639 : vector<1xf32> to vector<1x1xf32>
    %641 = math.log %640 : vector<1x1xf32>
    %642 = vector.broadcast %641 : vector<1x1xf32> to vector<1x7xf32>
    %643 = arith.subf %637, %642 : vector<1x7xf32>
    %c0_606 = arith.constant 0 : index
    %c0_607 = arith.constant 0 : index
    %c0_608 = arith.constant 0 : index
    %644 = vector.load %arg38[%c0_606, %c0_607, %c0_608] : memref<1x1x7xf32, #tpu.memory_space<vmem>>, vector<1x1x7xf32>
    %645 = vector.shape_cast %644 : vector<1x1x7xf32> to vector<1x7xf32>
    %646 = vector.shape_cast %643 : vector<1x7xf32> to vector<1x1x7xf32>
    tpu.vector_store %arg38[%c0_606, %c0_607, %c0_608], %646 {strides = array<i32>} : memref<1x1x7xf32, #tpu.memory_space<vmem>>, vector<1x1x7xf32>,
    return
  }
  func.func @transform_0(%arg0: i32) -> (i32, i32, i32) {
    %c0_i32 = arith.constant 0 : i32
    %c0_i32_0 = arith.constant 0 : i32
    %c0_i32_1 = arith.constant 0 : i32
    return %arg0, %c0_i32, %c0_i32_0 : i32, i32, i32
  }
  func.func @transform_1(%arg0: i32) -> (i32, i32) {
    %c0_i32 = arith.constant 0 : i32
    %c0_i32_0 = arith.constant 0 : i32
    %c0_i32_1 = arith.constant 0 : i32
    return %c0_i32, %c0_i32_0 : i32, i32
  }
  func.func @transform_2(%arg0: i32) -> (i32, i32) {
    %c0_i32 = arith.constant 0 : i32
    %c0_i32_0 = arith.constant 0 : i32
    %c0_i32_1 = arith.constant 0 : i32
    return %c0_i32, %c0_i32_0 : i32, i32
  }
  func.func @transform_3(%arg0: i32) -> (i32, i32) {
    %c0_i32 = arith.constant 0 : i32
    %c0_i32_0 = arith.constant 0 : i32
    %c0_i32_1 = arith.constant 0 : i32
    return %c0_i32, %c0_i32_0 : i32, i32
  }
  func.func @transform_4(%arg0: i32) -> (i32, i32) {
    %c0_i32 = arith.constant 0 : i32
    %c0_i32_0 = arith.constant 0 : i32
    %c0_i32_1 = arith.constant 0 : i32
    return %c0_i32, %c0_i32_0 : i32, i32
  }
  func.func @transform_5(%arg0: i32) -> (i32, i32) {
    %c0_i32 = arith.constant 0 : i32
    %c0_i32_0 = arith.constant 0 : i32
    %c0_i32_1 = arith.constant 0 : i32
    return %c0_i32, %c0_i32_0 : i32, i32
  }
  func.func @transform_6(%arg0: i32) -> (i32, i32) {
    %c0_i32 = arith.constant 0 : i32
    %c0_i32_0 = arith.constant 0 : i32
    %c0_i32_1 = arith.constant 0 : i32
    return %c0_i32, %c0_i32_0 : i32, i32
  }
  func.func @transform_7(%arg0: i32) -> (i32, i32) {
    %c0_i32 = arith.constant 0 : i32
    %c0_i32_0 = arith.constant 0 : i32
    %c0_i32_1 = arith.constant 0 : i32
    return %c0_i32, %c0_i32_0 : i32, i32
  }
  func.func @transform_8(%arg0: i32) -> (i32, i32) {
    %c0_i32 = arith.constant 0 : i32
    %c0_i32_0 = arith.constant 0 : i32
    %c0_i32_1 = arith.constant 0 : i32
    return %c0_i32, %c0_i32_0 : i32, i32
  }
  func.func @transform_9(%arg0: i32) -> (i32, i32) {
    %c0_i32 = arith.constant 0 : i32
    %c0_i32_0 = arith.constant 0 : i32
    %c0_i32_1 = arith.constant 0 : i32
    return %c0_i32, %c0_i32_0 : i32, i32
  }
  func.func @transform_10(%arg0: i32) -> (i32, i32) {
    %c0_i32 = arith.constant 0 : i32
    %c0_i32_0 = arith.constant 0 : i32
    %c0_i32_1 = arith.constant 0 : i32
    return %c0_i32, %c0_i32_0 : i32, i32
  }
  func.func @transform_11(%arg0: i32) -> (i32, i32) {
    %c0_i32 = arith.constant 0 : i32
    %c0_i32_0 = arith.constant 0 : i32
    %c0_i32_1 = arith.constant 0 : i32
    return %c0_i32, %c0_i32_0 : i32, i32
  }
  func.func @transform_12(%arg0: i32) -> (i32, i32) {
    %c0_i32 = arith.constant 0 : i32
    %c0_i32_0 = arith.constant 0 : i32
    %c0_i32_1 = arith.constant 0 : i32
    return %c0_i32, %c0_i32_0 : i32, i32
  }
  func.func @transform_13(%arg0: i32) -> (i32, i32) {
    %c0_i32 = arith.constant 0 : i32
    %c0_i32_0 = arith.constant 0 : i32
    %c0_i32_1 = arith.constant 0 : i32
    return %c0_i32, %c0_i32_0 : i32, i32
  }
  func.func @transform_14(%arg0: i32) -> (i32, i32) {
    %c0_i32 = arith.constant 0 : i32
    %c0_i32_0 = arith.constant 0 : i32
    %c0_i32_1 = arith.constant 0 : i32
    return %c0_i32, %c0_i32_0 : i32, i32
  }
  func.func @transform_15(%arg0: i32) -> (i32, i32) {
    %c0_i32 = arith.constant 0 : i32
    %c0_i32_0 = arith.constant 0 : i32
    %c0_i32_1 = arith.constant 0 : i32
    return %c0_i32, %c0_i32_0 : i32, i32
  }
  func.func @transform_16(%arg0: i32) -> (i32, i32) {
    %c0_i32 = arith.constant 0 : i32
    %c0_i32_0 = arith.constant 0 : i32
    %c0_i32_1 = arith.constant 0 : i32
    return %c0_i32, %c0_i32_0 : i32, i32
  }
  func.func @transform_17(%arg0: i32) -> (i32, i32) {
    %c0_i32 = arith.constant 0 : i32
    %c0_i32_0 = arith.constant 0 : i32
    %c0_i32_1 = arith.constant 0 : i32
    return %c0_i32, %c0_i32_0 : i32, i32
  }
  func.func @transform_18(%arg0: i32) -> (i32, i32) {
    %c0_i32 = arith.constant 0 : i32
    %c0_i32_0 = arith.constant 0 : i32
    %c0_i32_1 = arith.constant 0 : i32
    return %c0_i32, %c0_i32_0 : i32, i32
  }
  func.func @transform_19(%arg0: i32) -> (i32, i32) {
    %c0_i32 = arith.constant 0 : i32
    %c0_i32_0 = arith.constant 0 : i32
    %c0_i32_1 = arith.constant 0 : i32
    return %c0_i32, %c0_i32_0 : i32, i32
  }
  func.func @transform_20(%arg0: i32) -> (i32, i32) {
    %c0_i32 = arith.constant 0 : i32
    %c0_i32_0 = arith.constant 0 : i32
    %c0_i32_1 = arith.constant 0 : i32
    return %c0_i32, %c0_i32_0 : i32, i32
  }
  func.func @transform_21(%arg0: i32) -> (i32, i32) {
    %c0_i32 = arith.constant 0 : i32
    %c0_i32_0 = arith.constant 0 : i32
    %c0_i32_1 = arith.constant 0 : i32
    return %c0_i32, %c0_i32_0 : i32, i32
  }
  func.func @transform_22(%arg0: i32) -> (i32, i32) {
    %c0_i32 = arith.constant 0 : i32
    %c0_i32_0 = arith.constant 0 : i32
    %c0_i32_1 = arith.constant 0 : i32
    return %c0_i32, %c0_i32_0 : i32, i32
  }
  func.func @transform_23(%arg0: i32) -> (i32, i32) {
    %c0_i32 = arith.constant 0 : i32
    %c0_i32_0 = arith.constant 0 : i32
    %c0_i32_1 = arith.constant 0 : i32
    return %c0_i32, %c0_i32_0 : i32, i32
  }
  func.func @transform_24(%arg0: i32) -> (i32, i32) {
    %c0_i32 = arith.constant 0 : i32
    %c0_i32_0 = arith.constant 0 : i32
    %c0_i32_1 = arith.constant 0 : i32
    return %c0_i32, %c0_i32_0 : i32, i32
  }
  func.func @transform_25(%arg0: i32) -> (i32, i32) {
    %c0_i32 = arith.constant 0 : i32
    %c0_i32_0 = arith.constant 0 : i32
    %c0_i32_1 = arith.constant 0 : i32
    return %c0_i32, %c0_i32_0 : i32, i32
  }
  func.func @transform_26(%arg0: i32) -> (i32, i32) {
    %c0_i32 = arith.constant 0 : i32
    %c0_i32_0 = arith.constant 0 : i32
    %c0_i32_1 = arith.constant 0 : i32
    return %c0_i32, %c0_i32_0 : i32, i32
  }
  func.func @transform_27(%arg0: i32) -> (i32, i32) {
    %c0_i32 = arith.constant 0 : i32
    %c0_i32_0 = arith.constant 0 : i32
    %c0_i32_1 = arith.constant 0 : i32
    return %c0_i32, %c0_i32_0 : i32, i32
  }
  func.func @transform_28(%arg0: i32) -> (i32, i32) {
    %c0_i32 = arith.constant 0 : i32
    %c0_i32_0 = arith.constant 0 : i32
    %c0_i32_1 = arith.constant 0 : i32
    return %c0_i32, %c0_i32_0 : i32, i32
  }
  func.func @transform_29(%arg0: i32) -> (i32, i32) {
    %c0_i32 = arith.constant 0 : i32
    %c0_i32_0 = arith.constant 0 : i32
    %c0_i32_1 = arith.constant 0 : i32
    return %c0_i32, %c0_i32_0 : i32, i32
  }
  func.func @transform_30(%arg0: i32) -> (i32, i32) {
    %c0_i32 = arith.constant 0 : i32
    %c0_i32_0 = arith.constant 0 : i32
    %c0_i32_1 = arith.constant 0 : i32
    return %c0_i32, %c0_i32_0 : i32, i32
  }
  func.func @transform_31(%arg0: i32) -> (i32, i32) {
    %c0_i32 = arith.constant 0 : i32
    %c0_i32_0 = arith.constant 0 : i32
    %c0_i32_1 = arith.constant 0 : i32
    return %c0_i32, %c0_i32_0 : i32, i32
  }
  func.func @transform_32(%arg0: i32) -> (i32, i32) {
    %c0_i32 = arith.constant 0 : i32
    %c0_i32_0 = arith.constant 0 : i32
    %c0_i32_1 = arith.constant 0 : i32
    return %c0_i32, %c0_i32_0 : i32, i32
  }
  func.func @transform_33(%arg0: i32) -> (i32, i32) {
    %c0_i32 = arith.constant 0 : i32
    %c0_i32_0 = arith.constant 0 : i32
    %c0_i32_1 = arith.constant 0 : i32
    return %c0_i32, %c0_i32_0 : i32, i32
  }
  func.func @transform_34(%arg0: i32) -> (i32, i32) {
    %c0_i32 = arith.constant 0 : i32
    %c0_i32_0 = arith.constant 0 : i32
    %c0_i32_1 = arith.constant 0 : i32
    return %c0_i32, %c0_i32_0 : i32, i32
  }
  func.func @transform_35(%arg0: i32) -> (i32, i32) {
    %c0_i32 = arith.constant 0 : i32
    %c0_i32_0 = arith.constant 0 : i32
    %c0_i32_1 = arith.constant 0 : i32
    return %c0_i32, %c0_i32_0 : i32, i32
  }
  func.func @transform_36(%arg0: i32) -> (i32, i32) {
    %c0_i32 = arith.constant 0 : i32
    %c0_i32_0 = arith.constant 0 : i32
    %c0_i32_1 = arith.constant 0 : i32
    return %c0_i32, %c0_i32_0 : i32, i32
  }
  func.func @transform_37(%arg0: i32) -> (i32, i32, i32) {
    %c0_i32 = arith.constant 0 : i32
    %c0_i32_0 = arith.constant 0 : i32
    %c0_i32_1 = arith.constant 0 : i32
    return %arg0, %c0_i32, %c0_i32_0 : i32, i32, i32
  }
}

</mosaic_0001>

<llo_original>
// kernel: _lambda_.1
$region0: #{_lambda_.1}
  #allocation0 [shape = 'u32[]', space=smem, size = 0x4, offset = 0x4, fixed_abs, tag = 'smem constant byte address 0x4 - core index']
  #allocation1 [shape = 'u32[144,128]{1,0:T(1,128)}', space=vmem, size = 0x12000, scoped, tag = 'internal scratch']
  #allocation2 [shape = 'f32[304,1]{1,0:T(8,128)}', space=vmem, size = 0x26000, scoped, tag = 'scratch operand']
  #allocation3 [shape = 'f32[96,8]{1,0:T(8,128)}', space=vmem, size = 0xc000, scoped, tag = 'scratch operand']
  #allocation4 [shape = 'f32[96,16]{1,0:T(8,128)}', space=vmem, size = 0xc000, scoped, tag = 'scratch operand']
  #allocation5 [shape = 'f32[32,16]{1,0:T(8,128)}', space=vmem, size = 0x4000, scoped, tag = 'scratch operand']
  #allocation6 [shape = 'f32[32,32]{1,0:T(8,128)}', space=vmem, size = 0x4000, scoped, tag = 'scratch operand']
  #allocation7 [shape = 'f32[20,32]{1,0:T(8,128)}', space=vmem, size = 0x3000, scoped, tag = 'scratch operand']
  #allocation8 [shape = 'f32[20,64]{1,0:T(8,128)}', space=vmem, size = 0x3000, scoped, tag = 'scratch operand']
  #allocation9 [shape = 'f32[128,9]{1,0:T(8,128)}', space=vmem, size = 0x10000, scoped, tag = 'scratch operand']
  #allocation10 [shape = 'f32[64,72]{1,0:T(8,128)}', space=vmem, size = 0x8000, scoped, tag = 'scratch operand']
  #allocation11 [shape = 'f32[64,144]{1,0:T(8,128)}', space=vmem, size = 0x10000, scoped, tag = 'scratch operand']
  #allocation12 [shape = 'f32[16,144]{1,0:T(8,128)}', space=vmem, size = 0x4000, scoped, tag = 'scratch operand']
  #allocation13 [shape = 'f32[16,288]{1,0:T(8,128)}', space=vmem, size = 0x6000, scoped, tag = 'scratch operand']
  #allocation14 [shape = 'f32[4,288]{1,0:T(4,128)}', space=vmem, size = 0x1800, scoped, tag = 'scratch operand']
  #allocation15 [shape = 'f32[4,576]{1,0:T(4,128)}', space=vmem, size = 0x2800, scoped, tag = 'scratch operand']
  #allocation16 [shape = 'f32[256,8]{1,0:T(8,128)}', space=vmem, size = 0x20000, scoped, tag = 'scratch operand']
  #allocation17 [shape = 'f32[128,8]{1,0:T(8,128)}', space=vmem, size = 0x10000, scoped, tag = 'scratch operand']
  #allocation18 [shape = 'f32[64,16]{1,0:T(8,128)}', space=vmem, size = 0x8000, scoped, tag = 'scratch operand']
  #allocation19 [shape = 'f32[32,16]{1,0:T(8,128)}', space=vmem, size = 0x4000, scoped, tag = 'scratch operand']
  #allocation20 [shape = 'f32[16,32]{1,0:T(8,128)}', space=vmem, size = 0x2000, scoped, tag = 'scratch operand']
  #allocation21 [shape = 'f32[8,32]{1,0:T(8,128)}', space=vmem, size = 0x1000, scoped, tag = 'scratch operand']
  #allocation22 [shape = 'f32[4,64]{1,0:T(4,128)}', space=vmem, size = 0x800, scoped, tag = 'scratch operand']
  #allocation23 [shape = 'f32[2,64]{1,0:T(2,128)}', space=vmem, size = 0x400, scoped, tag = 'scratch operand']
  #allocation24 [shape = 'f32[1,64]{1,0:T(1,128)}', space=vmem, size = 0x200, scoped, tag = 'scratch operand']
  %s0 = inlined_call_operand.smem [shape: u32[38], index: -1, kind: input, shape index: {}]
  %s1 = sld [smem:[%s0]]
  %s2 = scalar_lea.smem %s0, 1
  %s3 = sld [smem:[%s2]]
  %s4 = scalar_lea.smem %s0, 2
  %s5 = sld [smem:[%s4]]
  %s6 = scalar_lea.smem %s0, 3
  %s7 = sld [smem:[%s6]]
  %s8 = scalar_lea.smem %s0, 4
  %s9 = sld [smem:[%s8]]
  %s10 = scalar_lea.smem %s0, 5
  %s11 = sld [smem:[%s10]]
  %s12 = scalar_lea.smem %s0, 6
  %s13 = sld [smem:[%s12]]
  %s14 = scalar_lea.smem %s0, 7
  %s15 = sld [smem:[%s14]]
  %s16 = scalar_lea.smem %s0, 8
  %s17 = sld [smem:[%s16]]
  %s18 = scalar_lea.smem %s0, 9
  %s19 = sld [smem:[%s18]]
  %s20 = scalar_lea.smem %s0, 10
  %s21 = sld [smem:[%s20]]
  %s22 = scalar_lea.smem %s0, 11
  %s23 = sld [smem:[%s22]]
  %s24 = scalar_lea.smem %s0, 12
  %s25 = sld [smem:[%s24]]
  %s26 = scalar_lea.smem %s0, 13
  %s27 = sld [smem:[%s26]]
  %s28 = scalar_lea.smem %s0, 14
  %s29 = sld [smem:[%s28]]
  %s30 = scalar_lea.smem %s0, 15
  %s31 = sld [smem:[%s30]]
  %s32 = scalar_lea.smem %s0, 16
  %s33 = sld [smem:[%s32]]
  %s34 = scalar_lea.smem %s0, 17
  %s35 = sld [smem:[%s34]]
  %s36 = scalar_lea.smem %s0, 18
  %s37 = sld [smem:[%s36]]
  %s38 = scalar_lea.smem %s0, 19
  %s39 = sld [smem:[%s38]]
  %s40 = scalar_lea.smem %s0, 20
  %s41 = sld [smem:[%s40]]
  %s42 = scalar_lea.smem %s0, 21
  %s43 = sld [smem:[%s42]]
  %s44 = scalar_lea.smem %s0, 22
  %s45 = sld [smem:[%s44]]
  %s46 = scalar_lea.smem %s0, 23
  %s47 = sld [smem:[%s46]]
  %s48 = scalar_lea.smem %s0, 24
  %s49 = sld [smem:[%s48]]
  %s50 = scalar_lea.smem %s0, 25
  %s51 = sld [smem:[%s50]]
  %s52 = scalar_lea.smem %s0, 26
  %s53 = sld [smem:[%s52]]
  %s54 = scalar_lea.smem %s0, 27
  %s55 = sld [smem:[%s54]]
  %s56 = scalar_lea.smem %s0, 28
  %s57 = sld [smem:[%s56]]
  %s58 = scalar_lea.smem %s0, 29
  %s59 = sld [smem:[%s58]]
  %s60 = scalar_lea.smem %s0, 30
  %s61 = sld [smem:[%s60]]
  %s62 = scalar_lea.smem %s0, 31
  %s63 = sld [smem:[%s62]]
  %s64 = scalar_lea.smem %s0, 32
  %s65 = sld [smem:[%s64]]
  %s66 = scalar_lea.smem %s0, 33
  %s67 = sld [smem:[%s66]]
  %s68 = scalar_lea.smem %s0, 34
  %s69 = sld [smem:[%s68]]
  %s70 = scalar_lea.smem %s0, 35
  %s71 = sld [smem:[%s70]]
  %s72 = scalar_lea.smem %s0, 36
  %s73 = sld [smem:[%s72]]
  %s74 = scalar_lea.smem %s0, 37
  %s75 = sld [smem:[%s74]]
  %s76 = sld [smem:[#allocation0]]
  $region181: #{_lambda_.1} parent=0
    _
  %s78 = ssub.s32 1, %s76
  %s79 = scalar_select 0, %s78, %s76
  $region1: #{_lambda_.1} parent=0
    #allocation25 [shape = 'u8[1024]{0}', space=vmem, size = 0x400, scoped, tag = 'output window, operand 0']
    #allocation26 [shape = 's32[2]{0}', space=sflag, size = 0x8, scoped, tag = 'scoped memory for _lambda_.1']
    %80 = vsyncpa [#allocation26], 0
    %s81 = scalar_lea.sflag [#allocation26], 1
    %82 = vsyncpa %s81, 0
    loop: start=0, step=1, limit=4
    $region2: #{_lambda_.1} parent=1 // loop_pre_header
      _
    $region3: #{_lambda_.1} parent=1 // loop_header
      %s84 = sphi 0, %s88
      %p85 = scmp.ge.s32.totalorder %s84, 4
      %s94 = sphi 0, %s96
      %s97 = sphi 0, %s94
      %s98 = sphi 0, %s97
      %s114 = sphi 0, %s98
      %s118 = sphi 0, %s118
      %s120 = sphi 0, %s118
      %s121 = sphi 0, %s120
      %s135 = sphi 0, %s121
      %s139 = sphi 0, %s139
      %s141 = sphi 0, %s139
      %s142 = sphi 0, %s141
      %s156 = sphi 0, %s142
      %s160 = sphi 0, %s160
      %s162 = sphi 0, %s160
      %s163 = sphi 0, %s162
      %s177 = sphi 0, %s163
      %s181 = sphi 0, %s181
      %s183 = sphi 0, %s181
      %s184 = sphi 0, %s183
      %s198 = sphi 0, %s184
      %s202 = sphi 0, %s202
      %s204 = sphi 0, %s202
      %s205 = sphi 0, %s204
      %s219 = sphi 0, %s205
      %s223 = sphi 0, %s223
      %s225 = sphi 0, %s223
      %s226 = sphi 0, %s225
      %s240 = sphi 0, %s226
      %s244 = sphi 0, %s244
      %s246 = sphi 0, %s244
      %s247 = sphi 0, %s246
      %s261 = sphi 0, %s247
      %s265 = sphi 0, %s265
      %s267 = sphi 0, %s265
      %s268 = sphi 0, %s267
      %s282 = sphi 0, %s268
      %s286 = sphi 0, %s286
      %s288 = sphi 0, %s286
      %s289 = sphi 0, %s288
      %s303 = sphi 0, %s289
      %s307 = sphi 0, %s307
      %s309 = sphi 0, %s307
      %s310 = sphi 0, %s309
      %s324 = sphi 0, %s310
      %s328 = sphi 0, %s328
      %s330 = sphi 0, %s328
      %s331 = sphi 0, %s330
      %s345 = sphi 0, %s331
      %s349 = sphi 0, %s349
      %s351 = sphi 0, %s349
      %s352 = sphi 0, %s351
      %s366 = sphi 0, %s352
      %s370 = sphi 0, %s370
      %s372 = sphi 0, %s370
      %s373 = sphi 0, %s372
      %s387 = sphi 0, %s373
      %s391 = sphi 0, %s391
      %s393 = sphi 0, %s391
      %s394 = sphi 0, %s393
      %s408 = sphi 0, %s394
      %s412 = sphi 0, %s412
      %s414 = sphi 0, %s412
      %s415 = sphi 0, %s414
      %s429 = sphi 0, %s415
      %s433 = sphi 0, %s433
      %s435 = sphi 0, %s433
      %s436 = sphi 0, %s435
      %s450 = sphi 0, %s436
      %s454 = sphi 0, %s454
      %s456 = sphi 0, %s454
      %s457 = sphi 0, %s456
      %s471 = sphi 0, %s457
      %s475 = sphi 0, %s475
      %s477 = sphi 0, %s475
      %s478 = sphi 0, %s477
      %s492 = sphi 0, %s478
      %s496 = sphi 0, %s496
      %s498 = sphi 0, %s496
      %s499 = sphi 0, %s498
      %s513 = sphi 0, %s499
      %s517 = sphi 0, %s517
      %s519 = sphi 0, %s517
      %s520 = sphi 0, %s519
      %s534 = sphi 0, %s520
      %s538 = sphi 0, %s538
      %s540 = sphi 0, %s538
      %s541 = sphi 0, %s540
      %s555 = sphi 0, %s541
      %s559 = sphi 0, %s559
      %s561 = sphi 0, %s559
      %s562 = sphi 0, %s561
      %s576 = sphi 0, %s562
      %s580 = sphi 0, %s580
      %s582 = sphi 0, %s580
      %s583 = sphi 0, %s582
      %s597 = sphi 0, %s583
      %s601 = sphi 0, %s601
      %s603 = sphi 0, %s601
      %s604 = sphi 0, %s603
      %s618 = sphi 0, %s604
      %s622 = sphi 0, %s622
      %s624 = sphi 0, %s622
      %s625 = sphi 0, %s624
      %s639 = sphi 0, %s625
      %s643 = sphi 0, %s643
      %s645 = sphi 0, %s643
      %s646 = sphi 0, %s645
      %s660 = sphi 0, %s646
      %s664 = sphi 0, %s664
      %s666 = sphi 0, %s664
      %s667 = sphi 0, %s666
      %s681 = sphi 0, %s667
      %s685 = sphi 0, %s685
      %s687 = sphi 0, %s685
      %s688 = sphi 0, %s687
      %s702 = sphi 0, %s688
      %s706 = sphi 0, %s706
      %s708 = sphi 0, %s706
      %s709 = sphi 0, %s708
      %s723 = sphi 0, %s709
      %s727 = sphi 0, %s727
      %s729 = sphi 0, %s727
      %s730 = sphi 0, %s729
      %s744 = sphi 0, %s730
      %s748 = sphi 0, %s748
      %s750 = sphi 0, %s748
      %s751 = sphi 0, %s750
      %s765 = sphi 0, %s751
      %s769 = sphi 0, %s769
      %s771 = sphi 0, %s769
      %s772 = sphi 0, %s771
      %s786 = sphi 0, %s772
      %s790 = sphi 0, %s790
      %s792 = sphi 0, %s790
      %s793 = sphi 0, %s792
      %s807 = sphi 0, %s793
      %s811 = sphi 0, %s811
      %s813 = sphi 0, %s811
      %s814 = sphi 0, %s813
      %s828 = sphi 0, %s814
      %s832 = sphi 0, %s832
      %s834 = sphi 0, %s832
      %s835 = sphi 0, %s834
      %s849 = sphi 0, %s835
      %s853 = sphi 0, %s853
      %s855 = sphi 0, %s853
      %s856 = sphi 0, %s855
      %s870 = sphi 0, %s856
      %s876 = sphi 0, %s878
      %s879 = sphi 0, %s876
      %s880 = sphi 0, %s879
      %s896 = sphi 0, %s880
    $region4: #{_lambda_.1} parent=1 // loop_header_branch
      %87 = sbr.rel (%p85) target = $region8
    $region5: #{_lambda_.1} parent=1 // loop_body
      %s89 = ssub.s32 %s84, 1
      %s90 = ssub.s32 %s84, 2
      %s91 = sadd.s32 %s84, 1
      %s92 = ssub.s32 %s84, %s91
      %p93 = scmp.eq.s32.totalorder %s92, 0
      %s95 = sadd.s32 %s94, 1
      %s96 = scalar_select %p93, %s94, %s95
      %p99 = pneg %p93
      %p100 = scmp.eq.s32.totalorder %s84, 1
      %p101 = por %p99, %p100
      %p102 = scmp.ne.s32.totalorder %s94, %s97
      %p103 = scmp.eq.s32.totalorder %s84, 0
      %p104 = por %p102, %p103
      %p105 = scmp.ne.s32.totalorder %s94, %s97
      %p106 = scmp.eq.s32.totalorder %s89, 1
      %p107 = por %p105, %p106
      %p108 = scmp.ne.s32.totalorder %s97, %s98
      %p109 = scmp.eq.s32.totalorder %s89, 0
      %p110 = por %p108, %p109
      %p111 = scmp.ne.s32.totalorder %s97, %s98
      %p112 = scmp.eq.s32.totalorder %s90, 1
      %p113 = por %p111, %p112
      %p115 = scmp.ne.s32.totalorder %s98, %s114
      %p116 = scmp.eq.s32.totalorder %s90, 0
      %p117 = por %p115, %p116
      %s119 = sadd.s32 %s118, 1
      %p122 = scmp.eq.s32.totalorder %s84, 1
      %p123 = scmp.ne.s32.totalorder %s118, %s120
      %p124 = scmp.eq.s32.totalorder %s84, 0
      %p125 = por %p123, %p124
      %p126 = scmp.ne.s32.totalorder %s118, %s120
      %p127 = scmp.eq.s32.totalorder %s89, 1
      %p128 = por %p126, %p127
      %p129 = scmp.ne.s32.totalorder %s120, %s121
      %p130 = scmp.eq.s32.totalorder %s89, 0
      %p131 = por %p129, %p130
      %p132 = scmp.ne.s32.totalorder %s120, %s121
      %p133 = scmp.eq.s32.totalorder %s90, 1
      %p134 = por %p132, %p133
      %p136 = scmp.ne.s32.totalorder %s121, %s135
      %p137 = scmp.eq.s32.totalorder %s90, 0
      %p138 = por %p136, %p137
      %s140 = sadd.s32 %s139, 1
      %p143 = scmp.eq.s32.totalorder %s84, 1
      %p144 = scmp.ne.s32.totalorder %s139, %s141
      %p145 = scmp.eq.s32.totalorder %s84, 0
      %p146 = por %p144, %p145
      %p147 = scmp.ne.s32.totalorder %s139, %s141
      %p148 = scmp.eq.s32.totalorder %s89, 1
      %p149 = por %p147, %p148
      %p150 = scmp.ne.s32.totalorder %s141, %s142
      %p151 = scmp.eq.s32.totalorder %s89, 0
      %p152 = por %p150, %p151
      %p153 = scmp.ne.s32.totalorder %s141, %s142
      %p154 = scmp.eq.s32.totalorder %s90, 1
      %p155 = por %p153, %p154
      %p157 = scmp.ne.s32.totalorder %s142, %s156
      %p158 = scmp.eq.s32.totalorder %s90, 0
      %p159 = por %p157, %p158
      %s161 = sadd.s32 %s160, 1
      %p164 = scmp.eq.s32.totalorder %s84, 1
      %p165 = scmp.ne.s32.totalorder %s160, %s162
      %p166 = scmp.eq.s32.totalorder %s84, 0
      %p167 = por %p165, %p166
      %p168 = scmp.ne.s32.totalorder %s160, %s162
      %p169 = scmp.eq.s32.totalorder %s89, 1
      %p170 = por %p168, %p169
      %p171 = scmp.ne.s32.totalorder %s162, %s163
      %p172 = scmp.eq.s32.totalorder %s89, 0
      %p173 = por %p171, %p172
      %p174 = scmp.ne.s32.totalorder %s162, %s163
      %p175 = scmp.eq.s32.totalorder %s90, 1
      %p176 = por %p174, %p175
      %p178 = scmp.ne.s32.totalorder %s163, %s177
      %p179 = scmp.eq.s32.totalorder %s90, 0
      %p180 = por %p178, %p179
      %s182 = sadd.s32 %s181, 1
      %p185 = scmp.eq.s32.totalorder %s84, 1
      %p186 = scmp.ne.s32.totalorder %s181, %s183
      %p187 = scmp.eq.s32.totalorder %s84, 0
      %p188 = por %p186, %p187
      %p189 = scmp.ne.s32.totalorder %s181, %s183
      %p190 = scmp.eq.s32.totalorder %s89, 1
      %p191 = por %p189, %p190
      %p192 = scmp.ne.s32.totalorder %s183, %s184
      %p193 = scmp.eq.s32.totalorder %s89, 0
      %p194 = por %p192, %p193
      %p195 = scmp.ne.s32.totalorder %s183, %s184
      %p196 = scmp.eq.s32.totalorder %s90, 1
      %p197 = por %p195, %p196
      %p199 = scmp.ne.s32.totalorder %s184, %s198
      %p200 = scmp.eq.s32.totalorder %s90, 0
      %p201 = por %p199, %p200
      %s203 = sadd.s32 %s202, 1
      %p206 = scmp.eq.s32.totalorder %s84, 1
      %p207 = scmp.ne.s32.totalorder %s202, %s204
      %p208 = scmp.eq.s32.totalorder %s84, 0
      %p209 = por %p207, %p208
      %p210 = scmp.ne.s32.totalorder %s202, %s204
      %p211 = scmp.eq.s32.totalorder %s89, 1
      %p212 = por %p210, %p211
      %p213 = scmp.ne.s32.totalorder %s204, %s205
      %p214 = scmp.eq.s32.totalorder %s89, 0
      %p215 = por %p213, %p214
      %p216 = scmp.ne.s32.totalorder %s204, %s205
      %p217 = scmp.eq.s32.totalorder %s90, 1
      %p218 = por %p216, %p217
      %p220 = scmp.ne.s32.totalorder %s205, %s219
      %p221 = scmp.eq.s32.totalorder %s90, 0
      %p222 = por %p220, %p221
      %s224 = sadd.s32 %s223, 1
      %p227 = scmp.eq.s32.totalorder %s84, 1
      %p228 = scmp.ne.s32.totalorder %s223, %s225
      %p229 = scmp.eq.s32.totalorder %s84, 0
      %p230 = por %p228, %p229
      %p231 = scmp.ne.s32.totalorder %s223, %s225
      %p232 = scmp.eq.s32.totalorder %s89, 1
      %p233 = por %p231, %p232
      %p234 = scmp.ne.s32.totalorder %s225, %s226
      %p235 = scmp.eq.s32.totalorder %s89, 0
      %p236 = por %p234, %p235
      %p237 = scmp.ne.s32.totalorder %s225, %s226
      %p238 = scmp.eq.s32.totalorder %s90, 1
      %p239 = por %p237, %p238
      %p241 = scmp.ne.s32.totalorder %s226, %s240
      %p242 = scmp.eq.s32.totalorder %s90, 0
      %p243 = por %p241, %p242
      %s245 = sadd.s32 %s244, 1
      %p248 = scmp.eq.s32.totalorder %s84, 1
      %p249 = scmp.ne.s32.totalorder %s244, %s246
      %p250 = scmp.eq.s32.totalorder %s84, 0
      %p251 = por %p249, %p250
      %p252 = scmp.ne.s32.totalorder %s244, %s246
      %p253 = scmp.eq.s32.totalorder %s89, 1
      %p254 = por %p252, %p253
      %p255 = scmp.ne.s32.totalorder %s246, %s247
      %p256 = scmp.eq.s32.totalorder %s89, 0
      %p257 = por %p255, %p256
      %p258 = scmp.ne.s32.totalorder %s246, %s247
      %p259 = scmp.eq.s32.totalorder %s90, 1
      %p260 = por %p258, %p259
      %p262 = scmp.ne.s32.totalorder %s247, %s261
      %p263 = scmp.eq.s32.totalorder %s90, 0
      %p264 = por %p262, %p263
      %s266 = sadd.s32 %s265, 1
      %p269 = scmp.eq.s32.totalorder %s84, 1
      %p270 = scmp.ne.s32.totalorder %s265, %s267
      %p271 = scmp.eq.s32.totalorder %s84, 0
      %p272 = por %p270, %p271
      %p273 = scmp.ne.s32.totalorder %s265, %s267
      %p274 = scmp.eq.s32.totalorder %s89, 1
      %p275 = por %p273, %p274
      %p276 = scmp.ne.s32.totalorder %s267, %s268
      %p277 = scmp.eq.s32.totalorder %s89, 0
      %p278 = por %p276, %p277
      %p279 = scmp.ne.s32.totalorder %s267, %s268
      %p280 = scmp.eq.s32.totalorder %s90, 1
      %p281 = por %p279, %p280
      %p283 = scmp.ne.s32.totalorder %s268, %s282
      %p284 = scmp.eq.s32.totalorder %s90, 0
      %p285 = por %p283, %p284
      %s287 = sadd.s32 %s286, 1
      %p290 = scmp.eq.s32.totalorder %s84, 1
      %p291 = scmp.ne.s32.totalorder %s286, %s288
      %p292 = scmp.eq.s32.totalorder %s84, 0
      %p293 = por %p291, %p292
      %p294 = scmp.ne.s32.totalorder %s286, %s288
      %p295 = scmp.eq.s32.totalorder %s89, 1
      %p296 = por %p294, %p295
      %p297 = scmp.ne.s32.totalorder %s288, %s289
      %p298 = scmp.eq.s32.totalorder %s89, 0
      %p299 = por %p297, %p298
      %p300 = scmp.ne.s32.totalorder %s288, %s289
      %p301 = scmp.eq.s32.totalorder %s90, 1
      %p302 = por %p300, %p301
      %p304 = scmp.ne.s32.totalorder %s289, %s303
      %p305 = scmp.eq.s32.totalorder %s90, 0
      %p306 = por %p304, %p305
      %s308 = sadd.s32 %s307, 1
      %p311 = scmp.eq.s32.totalorder %s84, 1
      %p312 = scmp.ne.s32.totalorder %s307, %s309
      %p313 = scmp.eq.s32.totalorder %s84, 0
      %p314 = por %p312, %p313
      %p315 = scmp.ne.s32.totalorder %s307, %s309
      %p316 = scmp.eq.s32.totalorder %s89, 1
      %p317 = por %p315, %p316
      %p318 = scmp.ne.s32.totalorder %s309, %s310
      %p319 = scmp.eq.s32.totalorder %s89, 0
      %p320 = por %p318, %p319
      %p321 = scmp.ne.s32.totalorder %s309, %s310
      %p322 = scmp.eq.s32.totalorder %s90, 1
      %p323 = por %p321, %p322
      %p325 = scmp.ne.s32.totalorder %s310, %s324
      %p326 = scmp.eq.s32.totalorder %s90, 0
      %p327 = por %p325, %p326
      %s329 = sadd.s32 %s328, 1
      %p332 = scmp.eq.s32.totalorder %s84, 1
      %p333 = scmp.ne.s32.totalorder %s328, %s330
      %p334 = scmp.eq.s32.totalorder %s84, 0
      %p335 = por %p333, %p334
      %p336 = scmp.ne.s32.totalorder %s328, %s330
      %p337 = scmp.eq.s32.totalorder %s89, 1
      %p338 = por %p336, %p337
      %p339 = scmp.ne.s32.totalorder %s330, %s331
      %p340 = scmp.eq.s32.totalorder %s89, 0
      %p341 = por %p339, %p340
      %p342 = scmp.ne.s32.totalorder %s330, %s331
      %p343 = scmp.eq.s32.totalorder %s90, 1
      %p344 = por %p342, %p343
      %p346 = scmp.ne.s32.totalorder %s331, %s345
      %p347 = scmp.eq.s32.totalorder %s90, 0
      %p348 = por %p346, %p347
      %s350 = sadd.s32 %s349, 1
      %p353 = scmp.eq.s32.totalorder %s84, 1
      %p354 = scmp.ne.s32.totalorder %s349, %s351
      %p355 = scmp.eq.s32.totalorder %s84, 0
      %p356 = por %p354, %p355
      %p357 = scmp.ne.s32.totalorder %s349, %s351
      %p358 = scmp.eq.s32.totalorder %s89, 1
      %p359 = por %p357, %p358
      %p360 = scmp.ne.s32.totalorder %s351, %s352
      %p361 = scmp.eq.s32.totalorder %s89, 0
      %p362 = por %p360, %p361
      %p363 = scmp.ne.s32.totalorder %s351, %s352
      %p364 = scmp.eq.s32.totalorder %s90, 1
      %p365 = por %p363, %p364
      %p367 = scmp.ne.s32.totalorder %s352, %s366
      %p368 = scmp.eq.s32.totalorder %s90, 0
      %p369 = por %p367, %p368
      %s371 = sadd.s32 %s370, 1
      %p374 = scmp.eq.s32.totalorder %s84, 1
      %p375 = scmp.ne.s32.totalorder %s370, %s372
      %p376 = scmp.eq.s32.totalorder %s84, 0
      %p377 = por %p375, %p376
      %p378 = scmp.ne.s32.totalorder %s370, %s372
      %p379 = scmp.eq.s32.totalorder %s89, 1
      %p380 = por %p378, %p379
      %p381 = scmp.ne.s32.totalorder %s372, %s373
      %p382 = scmp.eq.s32.totalorder %s89, 0
      %p383 = por %p381, %p382
      %p384 = scmp.ne.s32.totalorder %s372, %s373
      %p385 = scmp.eq.s32.totalorder %s90, 1
      %p386 = por %p384, %p385
      %p388 = scmp.ne.s32.totalorder %s373, %s387
      %p389 = scmp.eq.s32.totalorder %s90, 0
      %p390 = por %p388, %p389
      %s392 = sadd.s32 %s391, 1
      %p395 = scmp.eq.s32.totalorder %s84, 1
      %p396 = scmp.ne.s32.totalorder %s391, %s393
      %p397 = scmp.eq.s32.totalorder %s84, 0
      %p398 = por %p396, %p397
      %p399 = scmp.ne.s32.totalorder %s391, %s393
      %p400 = scmp.eq.s32.totalorder %s89, 1
      %p401 = por %p399, %p400
      %p402 = scmp.ne.s32.totalorder %s393, %s394
      %p403 = scmp.eq.s32.totalorder %s89, 0
      %p404 = por %p402, %p403
      %p405 = scmp.ne.s32.totalorder %s393, %s394
      %p406 = scmp.eq.s32.totalorder %s90, 1
      %p407 = por %p405, %p406
      %p409 = scmp.ne.s32.totalorder %s394, %s408
      %p410 = scmp.eq.s32.totalorder %s90, 0
      %p411 = por %p409, %p410
      %s413 = sadd.s32 %s412, 1
      %p416 = scmp.eq.s32.totalorder %s84, 1
      %p417 = scmp.ne.s32.totalorder %s412, %s414
      %p418 = scmp.eq.s32.totalorder %s84, 0
      %p419 = por %p417, %p418
      %p420 = scmp.ne.s32.totalorder %s412, %s414
      %p421 = scmp.eq.s32.totalorder %s89, 1
      %p422 = por %p420, %p421
      %p423 = scmp.ne.s32.totalorder %s414, %s415
      %p424 = scmp.eq.s32.totalorder %s89, 0
      %p425 = por %p423, %p424
      %p426 = scmp.ne.s32.totalorder %s414, %s415
      %p427 = scmp.eq.s32.totalorder %s90, 1
      %p428 = por %p426, %p427
      %p430 = scmp.ne.s32.totalorder %s415, %s429
      %p431 = scmp.eq.s32.totalorder %s90, 0
      %p432 = por %p430, %p431
      %s434 = sadd.s32 %s433, 1
      %p437 = scmp.eq.s32.totalorder %s84, 1
      %p438 = scmp.ne.s32.totalorder %s433, %s435
      %p439 = scmp.eq.s32.totalorder %s84, 0
      %p440 = por %p438, %p439
      %p441 = scmp.ne.s32.totalorder %s433, %s435
      %p442 = scmp.eq.s32.totalorder %s89, 1
      %p443 = por %p441, %p442
      %p444 = scmp.ne.s32.totalorder %s435, %s436
      %p445 = scmp.eq.s32.totalorder %s89, 0
      %p446 = por %p444, %p445
      %p447 = scmp.ne.s32.totalorder %s435, %s436
      %p448 = scmp.eq.s32.totalorder %s90, 1
      %p449 = por %p447, %p448
      %p451 = scmp.ne.s32.totalorder %s436, %s450
      %p452 = scmp.eq.s32.totalorder %s90, 0
      %p453 = por %p451, %p452
      %s455 = sadd.s32 %s454, 1
      %p458 = scmp.eq.s32.totalorder %s84, 1
      %p459 = scmp.ne.s32.totalorder %s454, %s456
      %p460 = scmp.eq.s32.totalorder %s84, 0
      %p461 = por %p459, %p460
      %p462 = scmp.ne.s32.totalorder %s454, %s456
      %p463 = scmp.eq.s32.totalorder %s89, 1
      %p464 = por %p462, %p463
      %p465 = scmp.ne.s32.totalorder %s456, %s457
      %p466 = scmp.eq.s32.totalorder %s89, 0
      %p467 = por %p465, %p466
      %p468 = scmp.ne.s32.totalorder %s456, %s457
      %p469 = scmp.eq.s32.totalorder %s90, 1
      %p470 = por %p468, %p469
      %p472 = scmp.ne.s32.totalorder %s457, %s471
      %p473 = scmp.eq.s32.totalorder %s90, 0
      %p474 = por %p472, %p473
      %s476 = sadd.s32 %s475, 1
      %p479 = scmp.eq.s32.totalorder %s84, 1
      %p480 = scmp.ne.s32.totalorder %s475, %s477
      %p481 = scmp.eq.s32.totalorder %s84, 0
      %p482 = por %p480, %p481
      %p483 = scmp.ne.s32.totalorder %s475, %s477
      %p484 = scmp.eq.s32.totalorder %s89, 1
      %p485 = por %p483, %p484
      %p486 = scmp.ne.s32.totalorder %s477, %s478
      %p487 = scmp.eq.s32.totalorder %s89, 0
      %p488 = por %p486, %p487
      %p489 = scmp.ne.s32.totalorder %s477, %s478
      %p490 = scmp.eq.s32.totalorder %s90, 1
      %p491 = por %p489, %p490
      %p493 = scmp.ne.s32.totalorder %s478, %s492
      %p494 = scmp.eq.s32.totalorder %s90, 0
      %p495 = por %p493, %p494
      %s497 = sadd.s32 %s496, 1
      %p500 = scmp.eq.s32.totalorder %s84, 1
      %p501 = scmp.ne.s32.totalorder %s496, %s498
      %p502 = scmp.eq.s32.totalorder %s84, 0
      %p503 = por %p501, %p502
      %p504 = scmp.ne.s32.totalorder %s496, %s498
      %p505 = scmp.eq.s32.totalorder %s89, 1
      %p506 = por %p504, %p505
      %p507 = scmp.ne.s32.totalorder %s498, %s499
      %p508 = scmp.eq.s32.totalorder %s89, 0
      %p509 = por %p507, %p508
      %p510 = scmp.ne.s32.totalorder %s498, %s499
      %p511 = scmp.eq.s32.totalorder %s90, 1
      %p512 = por %p510, %p511
      %p514 = scmp.ne.s32.totalorder %s499, %s513
      %p515 = scmp.eq.s32.totalorder %s90, 0
      %p516 = por %p514, %p515
      %s518 = sadd.s32 %s517, 1
      %p521 = scmp.eq.s32.totalorder %s84, 1
      %p522 = scmp.ne.s32.totalorder %s517, %s519
      %p523 = scmp.eq.s32.totalorder %s84, 0
      %p524 = por %p522, %p523
      %p525 = scmp.ne.s32.totalorder %s517, %s519
      %p526 = scmp.eq.s32.totalorder %s89, 1
      %p527 = por %p525, %p526
      %p528 = scmp.ne.s32.totalorder %s519, %s520
      %p529 = scmp.eq.s32.totalorder %s89, 0
      %p530 = por %p528, %p529
      %p531 = scmp.ne.s32.totalorder %s519, %s520
      %p532 = scmp.eq.s32.totalorder %s90, 1
      %p533 = por %p531, %p532
      %p535 = scmp.ne.s32.totalorder %s520, %s534
      %p536 = scmp.eq.s32.totalorder %s90, 0
      %p537 = por %p535, %p536
      %s539 = sadd.s32 %s538, 1
      %p542 = scmp.eq.s32.totalorder %s84, 1
      %p543 = scmp.ne.s32.totalorder %s538, %s540
      %p544 = scmp.eq.s32.totalorder %s84, 0
      %p545 = por %p543, %p544
      %p546 = scmp.ne.s32.totalorder %s538, %s540
      %p547 = scmp.eq.s32.totalorder %s89, 1
      %p548 = por %p546, %p547
      %p549 = scmp.ne.s32.totalorder %s540, %s541
      %p550 = scmp.eq.s32.totalorder %s89, 0
      %p551 = por %p549, %p550
      %p552 = scmp.ne.s32.totalorder %s540, %s541
      %p553 = scmp.eq.s32.totalorder %s90, 1
      %p554 = por %p552, %p553
      %p556 = scmp.ne.s32.totalorder %s541, %s555
      %p557 = scmp.eq.s32.totalorder %s90, 0
      %p558 = por %p556, %p557
      %s560 = sadd.s32 %s559, 1
      %p563 = scmp.eq.s32.totalorder %s84, 1
      %p564 = scmp.ne.s32.totalorder %s559, %s561
      %p565 = scmp.eq.s32.totalorder %s84, 0
      %p566 = por %p564, %p565
      %p567 = scmp.ne.s32.totalorder %s559, %s561
      %p568 = scmp.eq.s32.totalorder %s89, 1
      %p569 = por %p567, %p568
      %p570 = scmp.ne.s32.totalorder %s561, %s562
      %p571 = scmp.eq.s32.totalorder %s89, 0
      %p572 = por %p570, %p571
      %p573 = scmp.ne.s32.totalorder %s561, %s562
      %p574 = scmp.eq.s32.totalorder %s90, 1
      %p575 = por %p573, %p574
      %p577 = scmp.ne.s32.totalorder %s562, %s576
      %p578 = scmp.eq.s32.totalorder %s90, 0
      %p579 = por %p577, %p578
      %s581 = sadd.s32 %s580, 1
      %p584 = scmp.eq.s32.totalorder %s84, 1
      %p585 = scmp.ne.s32.totalorder %s580, %s582
      %p586 = scmp.eq.s32.totalorder %s84, 0
      %p587 = por %p585, %p586
      %p588 = scmp.ne.s32.totalorder %s580, %s582
      %p589 = scmp.eq.s32.totalorder %s89, 1
      %p590 = por %p588, %p589
      %p591 = scmp.ne.s32.totalorder %s582, %s583
      %p592 = scmp.eq.s32.totalorder %s89, 0
      %p593 = por %p591, %p592
      %p594 = scmp.ne.s32.totalorder %s582, %s583
      %p595 = scmp.eq.s32.totalorder %s90, 1
      %p596 = por %p594, %p595
      %p598 = scmp.ne.s32.totalorder %s583, %s597
      %p599 = scmp.eq.s32.totalorder %s90, 0
      %p600 = por %p598, %p599
      %s602 = sadd.s32 %s601, 1
      %p605 = scmp.eq.s32.totalorder %s84, 1
      %p606 = scmp.ne.s32.totalorder %s601, %s603
      %p607 = scmp.eq.s32.totalorder %s84, 0
      %p608 = por %p606, %p607
      %p609 = scmp.ne.s32.totalorder %s601, %s603
      %p610 = scmp.eq.s32.totalorder %s89, 1
      %p611 = por %p609, %p610
      %p612 = scmp.ne.s32.totalorder %s603, %s604
      %p613 = scmp.eq.s32.totalorder %s89, 0
      %p614 = por %p612, %p613
      %p615 = scmp.ne.s32.totalorder %s603, %s604
      %p616 = scmp.eq.s32.totalorder %s90, 1
      %p617 = por %p615, %p616
      %p619 = scmp.ne.s32.totalorder %s604, %s618
      %p620 = scmp.eq.s32.totalorder %s90, 0
      %p621 = por %p619, %p620
      %s623 = sadd.s32 %s622, 1
      %p626 = scmp.eq.s32.totalorder %s84, 1
      %p627 = scmp.ne.s32.totalorder %s622, %s624
      %p628 = scmp.eq.s32.totalorder %s84, 0
      %p629 = por %p627, %p628
      %p630 = scmp.ne.s32.totalorder %s622, %s624
      %p631 = scmp.eq.s32.totalorder %s89, 1
      %p632 = por %p630, %p631
      %p633 = scmp.ne.s32.totalorder %s624, %s625
      %p634 = scmp.eq.s32.totalorder %s89, 0
      %p635 = por %p633, %p634
      %p636 = scmp.ne.s32.totalorder %s624, %s625
      %p637 = scmp.eq.s32.totalorder %s90, 1
      %p638 = por %p636, %p637
      %p640 = scmp.ne.s32.totalorder %s625, %s639
      %p641 = scmp.eq.s32.totalorder %s90, 0
      %p642 = por %p640, %p641
      %s644 = sadd.s32 %s643, 1
      %p647 = scmp.eq.s32.totalorder %s84, 1
      %p648 = scmp.ne.s32.totalorder %s643, %s645
      %p649 = scmp.eq.s32.totalorder %s84, 0
      %p650 = por %p648, %p649
      %p651 = scmp.ne.s32.totalorder %s643, %s645
      %p652 = scmp.eq.s32.totalorder %s89, 1
      %p653 = por %p651, %p652
      %p654 = scmp.ne.s32.totalorder %s645, %s646
      %p655 = scmp.eq.s32.totalorder %s89, 0
      %p656 = por %p654, %p655
      %p657 = scmp.ne.s32.totalorder %s645, %s646
      %p658 = scmp.eq.s32.totalorder %s90, 1
      %p659 = por %p657, %p658
      %p661 = scmp.ne.s32.totalorder %s646, %s660
      %p662 = scmp.eq.s32.totalorder %s90, 0
      %p663 = por %p661, %p662
      %s665 = sadd.s32 %s664, 1
      %p668 = scmp.eq.s32.totalorder %s84, 1
      %p669 = scmp.ne.s32.totalorder %s664, %s666
      %p670 = scmp.eq.s32.totalorder %s84, 0
      %p671 = por %p669, %p670
      %p672 = scmp.ne.s32.totalorder %s664, %s666
      %p673 = scmp.eq.s32.totalorder %s89, 1
      %p674 = por %p672, %p673
      %p675 = scmp.ne.s32.totalorder %s666, %s667
      %p676 = scmp.eq.s32.totalorder %s89, 0
      %p677 = por %p675, %p676
      %p678 = scmp.ne.s32.totalorder %s666, %s667
      %p679 = scmp.eq.s32.totalorder %s90, 1
      %p680 = por %p678, %p679
      %p682 = scmp.ne.s32.totalorder %s667, %s681
      %p683 = scmp.eq.s32.totalorder %s90, 0
      %p684 = por %p682, %p683
      %s686 = sadd.s32 %s685, 1
      %p689 = scmp.eq.s32.totalorder %s84, 1
      %p690 = scmp.ne.s32.totalorder %s685, %s687
      %p691 = scmp.eq.s32.totalorder %s84, 0
      %p692 = por %p690, %p691
      %p693 = scmp.ne.s32.totalorder %s685, %s687
      %p694 = scmp.eq.s32.totalorder %s89, 1
      %p695 = por %p693, %p694
      %p696 = scmp.ne.s32.totalorder %s687, %s688
      %p697 = scmp.eq.s32.totalorder %s89, 0
      %p698 = por %p696, %p697
      %p699 = scmp.ne.s32.totalorder %s687, %s688
      %p700 = scmp.eq.s32.totalorder %s90, 1
      %p701 = por %p699, %p700
      %p703 = scmp.ne.s32.totalorder %s688, %s702
      %p704 = scmp.eq.s32.totalorder %s90, 0
      %p705 = por %p703, %p704
      %s707 = sadd.s32 %s706, 1
      %p710 = scmp.eq.s32.totalorder %s84, 1
      %p711 = scmp.ne.s32.totalorder %s706, %s708
      %p712 = scmp.eq.s32.totalorder %s84, 0
      %p713 = por %p711, %p712
      %p714 = scmp.ne.s32.totalorder %s706, %s708
      %p715 = scmp.eq.s32.totalorder %s89, 1
      %p716 = por %p714, %p715
      %p717 = scmp.ne.s32.totalorder %s708, %s709
      %p718 = scmp.eq.s32.totalorder %s89, 0
      %p719 = por %p717, %p718
      %p720 = scmp.ne.s32.totalorder %s708, %s709
      %p721 = scmp.eq.s32.totalorder %s90, 1
      %p722 = por %p720, %p721
      %p724 = scmp.ne.s32.totalorder %s709, %s723
      %p725 = scmp.eq.s32.totalorder %s90, 0
      %p726 = por %p724, %p725
      %s728 = sadd.s32 %s727, 1
      %p731 = scmp.eq.s32.totalorder %s84, 1
      %p732 = scmp.ne.s32.totalorder %s727, %s729
      %p733 = scmp.eq.s32.totalorder %s84, 0
      %p734 = por %p732, %p733
      %p735 = scmp.ne.s32.totalorder %s727, %s729
      %p736 = scmp.eq.s32.totalorder %s89, 1
      %p737 = por %p735, %p736
      %p738 = scmp.ne.s32.totalorder %s729, %s730
      %p739 = scmp.eq.s32.totalorder %s89, 0
      %p740 = por %p738, %p739
      %p741 = scmp.ne.s32.totalorder %s729, %s730
      %p742 = scmp.eq.s32.totalorder %s90, 1
      %p743 = por %p741, %p742
      %p745 = scmp.ne.s32.totalorder %s730, %s744
      %p746 = scmp.eq.s32.totalorder %s90, 0
      %p747 = por %p745, %p746
      %s749 = sadd.s32 %s748, 1
      %p752 = scmp.eq.s32.totalorder %s84, 1
      %p753 = scmp.ne.s32.totalorder %s748, %s750
      %p754 = scmp.eq.s32.totalorder %s84, 0
      %p755 = por %p753, %p754
      %p756 = scmp.ne.s32.totalorder %s748, %s750
      %p757 = scmp.eq.s32.totalorder %s89, 1
      %p758 = por %p756, %p757
      %p759 = scmp.ne.s32.totalorder %s750, %s751
      %p760 = scmp.eq.s32.totalorder %s89, 0
      %p761 = por %p759, %p760
      %p762 = scmp.ne.s32.totalorder %s750, %s751
      %p763 = scmp.eq.s32.totalorder %s90, 1
      %p764 = por %p762, %p763
      %p766 = scmp.ne.s32.totalorder %s751, %s765
      %p767 = scmp.eq.s32.totalorder %s90, 0
      %p768 = por %p766, %p767
      %s770 = sadd.s32 %s769, 1
      %p773 = scmp.eq.s32.totalorder %s84, 1
      %p774 = scmp.ne.s32.totalorder %s769, %s771
      %p775 = scmp.eq.s32.totalorder %s84, 0
      %p776 = por %p774, %p775
      %p777 = scmp.ne.s32.totalorder %s769, %s771
      %p778 = scmp.eq.s32.totalorder %s89, 1
      %p779 = por %p777, %p778
      %p780 = scmp.ne.s32.totalorder %s771, %s772
      %p781 = scmp.eq.s32.totalorder %s89, 0
      %p782 = por %p780, %p781
      %p783 = scmp.ne.s32.totalorder %s771, %s772
      %p784 = scmp.eq.s32.totalorder %s90, 1
      %p785 = por %p783, %p784
      %p787 = scmp.ne.s32.totalorder %s772, %s786
      %p788 = scmp.eq.s32.totalorder %s90, 0
      %p789 = por %p787, %p788
      %s791 = sadd.s32 %s790, 1
      %p794 = scmp.eq.s32.totalorder %s84, 1
      %p795 = scmp.ne.s32.totalorder %s790, %s792
      %p796 = scmp.eq.s32.totalorder %s84, 0
      %p797 = por %p795, %p796
      %p798 = scmp.ne.s32.totalorder %s790, %s792
      %p799 = scmp.eq.s32.totalorder %s89, 1
      %p800 = por %p798, %p799
      %p801 = scmp.ne.s32.totalorder %s792, %s793
      %p802 = scmp.eq.s32.totalorder %s89, 0
      %p803 = por %p801, %p802
      %p804 = scmp.ne.s32.totalorder %s792, %s793
      %p805 = scmp.eq.s32.totalorder %s90, 1
      %p806 = por %p804, %p805
      %p808 = scmp.ne.s32.totalorder %s793, %s807
      %p809 = scmp.eq.s32.totalorder %s90, 0
      %p810 = por %p808, %p809
      %s812 = sadd.s32 %s811, 1
      %p815 = scmp.eq.s32.totalorder %s84, 1
      %p816 = scmp.ne.s32.totalorder %s811, %s813
      %p817 = scmp.eq.s32.totalorder %s84, 0
      %p818 = por %p816, %p817
      %p819 = scmp.ne.s32.totalorder %s811, %s813
      %p820 = scmp.eq.s32.totalorder %s89, 1
      %p821 = por %p819, %p820
      %p822 = scmp.ne.s32.totalorder %s813, %s814
      %p823 = scmp.eq.s32.totalorder %s89, 0
      %p824 = por %p822, %p823
      %p825 = scmp.ne.s32.totalorder %s813, %s814
      %p826 = scmp.eq.s32.totalorder %s90, 1
      %p827 = por %p825, %p826
      %p829 = scmp.ne.s32.totalorder %s814, %s828
      %p830 = scmp.eq.s32.totalorder %s90, 0
      %p831 = por %p829, %p830
      %s833 = sadd.s32 %s832, 1
      %p836 = scmp.eq.s32.totalorder %s84, 1
      %p837 = scmp.ne.s32.totalorder %s832, %s834
      %p838 = scmp.eq.s32.totalorder %s84, 0
      %p839 = por %p837, %p838
      %p840 = scmp.ne.s32.totalorder %s832, %s834
      %p841 = scmp.eq.s32.totalorder %s89, 1
      %p842 = por %p840, %p841
      %p843 = scmp.ne.s32.totalorder %s834, %s835
      %p844 = scmp.eq.s32.totalorder %s89, 0
      %p845 = por %p843, %p844
      %p846 = scmp.ne.s32.totalorder %s834, %s835
      %p847 = scmp.eq.s32.totalorder %s90, 1
      %p848 = por %p846, %p847
      %p850 = scmp.ne.s32.totalorder %s835, %s849
      %p851 = scmp.eq.s32.totalorder %s90, 0
      %p852 = por %p850, %p851
      %s854 = sadd.s32 %s853, 1
      %p857 = scmp.eq.s32.totalorder %s84, 1
      %p858 = scmp.ne.s32.totalorder %s853, %s855
      %p859 = scmp.eq.s32.totalorder %s84, 0
      %p860 = por %p858, %p859
      %p861 = scmp.ne.s32.totalorder %s853, %s855
      %p862 = scmp.eq.s32.totalorder %s89, 1
      %p863 = por %p861, %p862
      %p864 = scmp.ne.s32.totalorder %s855, %s856
      %p865 = scmp.eq.s32.totalorder %s89, 0
      %p866 = por %p864, %p865
      %p867 = scmp.ne.s32.totalorder %s855, %s856
      %p868 = scmp.eq.s32.totalorder %s90, 1
      %p869 = por %p867, %p868
      %p871 = scmp.ne.s32.totalorder %s856, %s870
      %p872 = scmp.eq.s32.totalorder %s90, 0
      %p873 = por %p871, %p872
      %s874 = ssub.s32 %s84, %s91
      %p875 = scmp.eq.s32.totalorder %s874, 0
      %s877 = sadd.s32 %s876, 1
      %s878 = scalar_select %p875, %s876, %s877
      %p881 = pneg %p875
      %p882 = scmp.eq.s32.totalorder %s84, 1
      %p883 = por %p881, %p882
      %p884 = scmp.ne.s32.totalorder %s876, %s879
      %p885 = scmp.eq.s32.totalorder %s84, 0
      %p886 = por %p884, %p885
      %p887 = scmp.ne.s32.totalorder %s876, %s879
      %p888 = scmp.eq.s32.totalorder %s89, 1
      %p889 = por %p887, %p888
      %p890 = scmp.ne.s32.totalorder %s879, %s880
      %p891 = scmp.eq.s32.totalorder %s89, 0
      %p892 = por %p890, %p891
      %p893 = scmp.ne.s32.totalorder %s879, %s880
      %p894 = scmp.eq.s32.totalorder %s90, 1
      %p895 = por %p893, %p894
      %p897 = scmp.ne.s32.totalorder %s880, %s896
      %p898 = scmp.eq.s32.totalorder %s90, 0
      %p899 = por %p897, %p898
      %p900 = scmp.le.s32.totalorder 1, %s84
      %p901 = scmp.lt.s32.totalorder %s84, 3
      %p902 = pnand %p900, %p901
      %p903 = pneg %p902
      // Predicated region
      $region9: #{_lambda_.1} parent=5 // pred_check
        _
      $region10: #{_lambda_.1} parent=5 // pred_check_branch
        %905 = sbr.rel (%p902) target = $region12
      $region11: #{_lambda_.1} parent=5 // pred_region
        %s906 = ssub.s32 %s84, 1
        // Predicated region
        $region13: #{_lambda_.1} parent=11 // pred_check
          %p907 = pneg %p131
        $region14: #{_lambda_.1} parent=11 // pred_check_branch
          %909 = sbr.rel (%p907) target = $region16
        $region15: #{_lambda_.1} parent=11 // pred_region
          _
        $region16: #{_lambda_.1} parent=11 // pred_fallthru
          _
        // Predicated region
        $region17: #{_lambda_.1} parent=11 // pred_check
          %p910 = pneg %p152
        $region18: #{_lambda_.1} parent=11 // pred_check_branch
          %912 = sbr.rel (%p910) target = $region20
        $region19: #{_lambda_.1} parent=11 // pred_region
          _
        $region20: #{_lambda_.1} parent=11 // pred_fallthru
          _
        // Predicated region
        $region21: #{_lambda_.1} parent=11 // pred_check
          %p913 = pneg %p173
        $region22: #{_lambda_.1} parent=11 // pred_check_branch
          %915 = sbr.rel (%p913) target = $region24
        $region23: #{_lambda_.1} parent=11 // pred_region
          _
        $region24: #{_lambda_.1} parent=11 // pred_fallthru
          _
        // Predicated region
        $region25: #{_lambda_.1} parent=11 // pred_check
          %p916 = pneg %p194
        $region26: #{_lambda_.1} parent=11 // pred_check_branch
          %918 = sbr.rel (%p916) target = $region28
        $region27: #{_lambda_.1} parent=11 // pred_region
          _
        $region28: #{_lambda_.1} parent=11 // pred_fallthru
          _
        // Predicated region
        $region29: #{_lambda_.1} parent=11 // pred_check
          %p919 = pneg %p215
        $region30: #{_lambda_.1} parent=11 // pred_check_branch
          %921 = sbr.rel (%p919) target = $region32
        $region31: #{_lambda_.1} parent=11 // pred_region
          _
        $region32: #{_lambda_.1} parent=11 // pred_fallthru
          _
        // Predicated region
        $region33: #{_lambda_.1} parent=11 // pred_check
          %p922 = pneg %p236
        $region34: #{_lambda_.1} parent=11 // pred_check_branch
          %924 = sbr.rel (%p922) target = $region36
        $region35: #{_lambda_.1} parent=11 // pred_region
          _
        $region36: #{_lambda_.1} parent=11 // pred_fallthru
          _
        // Predicated region
        $region37: #{_lambda_.1} parent=11 // pred_check
          %p925 = pneg %p257
        $region38: #{_lambda_.1} parent=11 // pred_check_branch
          %927 = sbr.rel (%p925) target = $region40
        $region39: #{_lambda_.1} parent=11 // pred_region
          _
        $region40: #{_lambda_.1} parent=11 // pred_fallthru
          _
        // Predicated region
        $region41: #{_lambda_.1} parent=11 // pred_check
          %p928 = pneg %p278
        $region42: #{_lambda_.1} parent=11 // pred_check_branch
          %930 = sbr.rel (%p928) target = $region44
        $region43: #{_lambda_.1} parent=11 // pred_region
          _
        $region44: #{_lambda_.1} parent=11 // pred_fallthru
          _
        // Predicated region
        $region45: #{_lambda_.1} parent=11 // pred_check
          %p931 = pneg %p299
        $region46: #{_lambda_.1} parent=11 // pred_check_branch
          %933 = sbr.rel (%p931) target = $region48
        $region47: #{_lambda_.1} parent=11 // pred_region
          _
        $region48: #{_lambda_.1} parent=11 // pred_fallthru
          _
        // Predicated region
        $region49: #{_lambda_.1} parent=11 // pred_check
          %p934 = pneg %p320
        $region50: #{_lambda_.1} parent=11 // pred_check_branch
          %936 = sbr.rel (%p934) target = $region52
        $region51: #{_lambda_.1} parent=11 // pred_region
          _
        $region52: #{_lambda_.1} parent=11 // pred_fallthru
          _
        // Predicated region
        $region53: #{_lambda_.1} parent=11 // pred_check
          %p937 = pneg %p341
        $region54: #{_lambda_.1} parent=11 // pred_check_branch
          %939 = sbr.rel (%p937) target = $region56
        $region55: #{_lambda_.1} parent=11 // pred_region
          _
        $region56: #{_lambda_.1} parent=11 // pred_fallthru
          _
        // Predicated region
        $region57: #{_lambda_.1} parent=11 // pred_check
          %p940 = pneg %p362
        $region58: #{_lambda_.1} parent=11 // pred_check_branch
          %942 = sbr.rel (%p940) target = $region60
        $region59: #{_lambda_.1} parent=11 // pred_region
          _
        $region60: #{_lambda_.1} parent=11 // pred_fallthru
          _
        // Predicated region
        $region61: #{_lambda_.1} parent=11 // pred_check
          %p943 = pneg %p383
        $region62: #{_lambda_.1} parent=11 // pred_check_branch
          %945 = sbr.rel (%p943) target = $region64
        $region63: #{_lambda_.1} parent=11 // pred_region
          _
        $region64: #{_lambda_.1} parent=11 // pred_fallthru
          _
        // Predicated region
        $region65: #{_lambda_.1} parent=11 // pred_check
          %p946 = pneg %p404
        $region66: #{_lambda_.1} parent=11 // pred_check_branch
          %948 = sbr.rel (%p946) target = $region68
        $region67: #{_lambda_.1} parent=11 // pred_region
          _
        $region68: #{_lambda_.1} parent=11 // pred_fallthru
          _
        // Predicated region
        $region69: #{_lambda_.1} parent=11 // pred_check
          %p949 = pneg %p425
        $region70: #{_lambda_.1} parent=11 // pred_check_branch
          %951 = sbr.rel (%p949) target = $region72
        $region71: #{_lambda_.1} parent=11 // pred_region
          _
        $region72: #{_lambda_.1} parent=11 // pred_fallthru
          _
        // Predicated region
        $region73: #{_lambda_.1} parent=11 // pred_check
          %p952 = pneg %p446
        $region74: #{_lambda_.1} parent=11 // pred_check_branch
          %954 = sbr.rel (%p952) target = $region76
        $region75: #{_lambda_.1} parent=11 // pred_region
          _
        $region76: #{_lambda_.1} parent=11 // pred_fallthru
          _
        // Predicated region
        $region77: #{_lambda_.1} parent=11 // pred_check
          %p955 = pneg %p467
        $region78: #{_lambda_.1} parent=11 // pred_check_branch
          %957 = sbr.rel (%p955) target = $region80
        $region79: #{_lambda_.1} parent=11 // pred_region
          _
        $region80: #{_lambda_.1} parent=11 // pred_fallthru
          _
        // Predicated region
        $region81: #{_lambda_.1} parent=11 // pred_check
          %p958 = pneg %p488
        $region82: #{_lambda_.1} parent=11 // pred_check_branch
          %960 = sbr.rel (%p958) target = $region84
        $region83: #{_lambda_.1} parent=11 // pred_region
          _
        $region84: #{_lambda_.1} parent=11 // pred_fallthru
          _
        // Predicated region
        $region85: #{_lambda_.1} parent=11 // pred_check
          %p961 = pneg %p509
        $region86: #{_lambda_.1} parent=11 // pred_check_branch
          %963 = sbr.rel (%p961) target = $region88
        $region87: #{_lambda_.1} parent=11 // pred_region
          _
        $region88: #{_lambda_.1} parent=11 // pred_fallthru
          _
        // Predicated region
        $region89: #{_lambda_.1} parent=11 // pred_check
          %p964 = pneg %p530
        $region90: #{_lambda_.1} parent=11 // pred_check_branch
          %966 = sbr.rel (%p964) target = $region92
        $region91: #{_lambda_.1} parent=11 // pred_region
          _
        $region92: #{_lambda_.1} parent=11 // pred_fallthru
          _
        // Predicated region
        $region93: #{_lambda_.1} parent=11 // pred_check
          %p967 = pneg %p551
        $region94: #{_lambda_.1} parent=11 // pred_check_branch
          %969 = sbr.rel (%p967) target = $region96
        $region95: #{_lambda_.1} parent=11 // pred_region
          _
        $region96: #{_lambda_.1} parent=11 // pred_fallthru
          _
        // Predicated region
        $region97: #{_lambda_.1} parent=11 // pred_check
          %p970 = pneg %p572
        $region98: #{_lambda_.1} parent=11 // pred_check_branch
          %972 = sbr.rel (%p970) target = $region100
        $region99: #{_lambda_.1} parent=11 // pred_region
          _
        $region100: #{_lambda_.1} parent=11 // pred_fallthru
          _
        // Predicated region
        $region101: #{_lambda_.1} parent=11 // pred_check
          %p973 = pneg %p593
        $region102: #{_lambda_.1} parent=11 // pred_check_branch
          %975 = sbr.rel (%p973) target = $region104
        $region103: #{_lambda_.1} parent=11 // pred_region
          _
        $region104: #{_lambda_.1} parent=11 // pred_fallthru
          _
        // Predicated region
        $region105: #{_lambda_.1} parent=11 // pred_check
          %p976 = pneg %p614
        $region106: #{_lambda_.1} parent=11 // pred_check_branch
          %978 = sbr.rel (%p976) target = $region108
        $region107: #{_lambda_.1} parent=11 // pred_region
          _
        $region108: #{_lambda_.1} parent=11 // pred_fallthru
          _
        // Predicated region
        $region109: #{_lambda_.1} parent=11 // pred_check
          %p979 = pneg %p635
        $region110: #{_lambda_.1} parent=11 // pred_check_branch
          %981 = sbr.rel (%p979) target = $region112
        $region111: #{_lambda_.1} parent=11 // pred_region
          _
        $region112: #{_lambda_.1} parent=11 // pred_fallthru
          _
        // Predicated region
        $region113: #{_lambda_.1} parent=11 // pred_check
          %p982 = pneg %p656
        $region114: #{_lambda_.1} parent=11 // pred_check_branch
          %984 = sbr.rel (%p982) target = $region116
        $region115: #{_lambda_.1} parent=11 // pred_region
          _
        $region116: #{_lambda_.1} parent=11 // pred_fallthru
          _
        // Predicated region
        $region117: #{_lambda_.1} parent=11 // pred_check
          %p985 = pneg %p677
        $region118: #{_lambda_.1} parent=11 // pred_check_branch
          %987 = sbr.rel (%p985) target = $region120
        $region119: #{_lambda_.1} parent=11 // pred_region
          _
        $region120: #{_lambda_.1} parent=11 // pred_fallthru
          _
        // Predicated region
        $region121: #{_lambda_.1} parent=11 // pred_check
          %p988 = pneg %p698
        $region122: #{_lambda_.1} parent=11 // pred_check_branch
          %990 = sbr.rel (%p988) target = $region124
        $region123: #{_lambda_.1} parent=11 // pred_region
          _
        $region124: #{_lambda_.1} parent=11 // pred_fallthru
          _
        // Predicated region
        $region125: #{_lambda_.1} parent=11 // pred_check
          %p991 = pneg %p719
        $region126: #{_lambda_.1} parent=11 // pred_check_branch
          %993 = sbr.rel (%p991) target = $region128
        $region127: #{_lambda_.1} parent=11 // pred_region
          _
        $region128: #{_lambda_.1} parent=11 // pred_fallthru
          _
        // Predicated region
        $region129: #{_lambda_.1} parent=11 // pred_check
          %p994 = pneg %p740
        $region130: #{_lambda_.1} parent=11 // pred_check_branch
          %996 = sbr.rel (%p994) target = $region132
        $region131: #{_lambda_.1} parent=11 // pred_region
          _
        $region132: #{_lambda_.1} parent=11 // pred_fallthru
          _
        // Predicated region
        $region133: #{_lambda_.1} parent=11 // pred_check
          %p997 = pneg %p761
        $region134: #{_lambda_.1} parent=11 // pred_check_branch
          %999 = sbr.rel (%p997) target = $region136
        $region135: #{_lambda_.1} parent=11 // pred_region
          _
        $region136: #{_lambda_.1} parent=11 // pred_fallthru
          _
        // Predicated region
        $region137: #{_lambda_.1} parent=11 // pred_check
          %p1000 = pneg %p782
        $region138: #{_lambda_.1} parent=11 // pred_check_branch
          %1002 = sbr.rel (%p1000) target = $region140
        $region139: #{_lambda_.1} parent=11 // pred_region
          _
        $region140: #{_lambda_.1} parent=11 // pred_fallthru
          _
        // Predicated region
        $region141: #{_lambda_.1} parent=11 // pred_check
          %p1003 = pneg %p803
        $region142: #{_lambda_.1} parent=11 // pred_check_branch
          %1005 = sbr.rel (%p1003) target = $region144
        $region143: #{_lambda_.1} parent=11 // pred_region
          _
        $region144: #{_lambda_.1} parent=11 // pred_fallthru
          _
        // Predicated region
        $region145: #{_lambda_.1} parent=11 // pred_check
          %p1006 = pneg %p824
        $region146: #{_lambda_.1} parent=11 // pred_check_branch
          %1008 = sbr.rel (%p1006) target = $region148
        $region147: #{_lambda_.1} parent=11 // pred_region
          _
        $region148: #{_lambda_.1} parent=11 // pred_fallthru
          _
        // Predicated region
        $region149: #{_lambda_.1} parent=11 // pred_check
          %p1009 = pneg %p845
        $region150: #{_lambda_.1} parent=11 // pred_check_branch
          %1011 = sbr.rel (%p1009) target = $region152
        $region151: #{_lambda_.1} parent=11 // pred_region
          _
        $region152: #{_lambda_.1} parent=11 // pred_fallthru
          _
        // Predicated region
        $region153: #{_lambda_.1} parent=11 // pred_check
          %p1012 = pneg %p866
        $region154: #{_lambda_.1} parent=11 // pred_check_branch
          %1014 = sbr.rel (%p1012) target = $region156
        $region155: #{_lambda_.1} parent=11 // pred_region
          _
        $region156: #{_lambda_.1} parent=11 // pred_fallthru
          _
      $region12: #{_lambda_.1} parent=5 // pred_fallthru
        _
      %p1015 = scmp.lt.s32.totalorder %s84, 2
      // Predicated region
      $region157: #{_lambda_.1} parent=5 // pred_check
        %p1016 = pneg %p1015
      $region158: #{_lambda_.1} parent=5 // pred_check_branch
        %1018 = sbr.rel (%p1016) target = $region160
      $region159: #{_lambda_.1} parent=5 // pred_region
        // Predicated region
        $region161: #{_lambda_.1} parent=159 // pred_check
          %p1019 = pneg %p104
        $region162: #{_lambda_.1} parent=159 // pred_check_branch
          %1021 = sbr.rel (%p1019) target = $region164
        $region163: #{_lambda_.1} parent=159 // pred_region
          %p1022 = scmp.lt.s32.totalorder %s84, 1
          %s1023 = scalar_select %p1022, %s84, 1
          %s1024 = smul.addr %s1023, 32
          %s1025 = smul.addr %s1024, 8
          %s1026 = scalar_lea.vmem %s1, %s1025
        $region164: #{_lambda_.1} parent=159 // pred_fallthru
          _
      $region160: #{_lambda_.1} parent=5 // pred_fallthru
        _
      %p1027 = scmp.le.s32.totalorder 1, %s84
      %p1028 = scmp.lt.s32.totalorder %s84, 3
      %p1029 = pnand %p1027, %p1028
      %p1030 = pneg %p1029
      // Predicated region
      $region165: #{_lambda_.1} parent=5 // pred_check
        _
      $region166: #{_lambda_.1} parent=5 // pred_check_branch
        %1032 = sbr.rel (%p1029) target = $region168
      $region167: #{_lambda_.1} parent=5 // pred_region
        %s1033 = ssub.s32 %s84, 1
        %p1034 = scmp.lt.s32.totalorder %s89, 1
        %s1035 = scalar_select %p1034, %s89, 1
        %s1036 = smul.addr %s1035, 32
        %s1037 = smul.addr %s1036, 8
        %s1038 = scalar_lea.vmem %s1, %s1037
        %p1039 = pneg %p110
        %p1040 = pneg %p107
        %p1041 = pneg %p131
        %p1042 = pneg %p128
        %p1043 = pneg %p152
        %p1044 = pneg %p149
        %p1045 = pneg %p173
        %p1046 = pneg %p170
        %p1047 = pneg %p194
        %p1048 = pneg %p191
        %p1049 = pneg %p215
        %p1050 = pneg %p212
        %p1051 = pneg %p236
        %p1052 = pneg %p233
        %p1053 = pneg %p257
        %p1054 = pneg %p254
        %p1055 = pneg %p278
        %p1056 = pneg %p275
        %p1057 = pneg %p299
        %p1058 = pneg %p296
        %p1059 = pneg %p320
        %p1060 = pneg %p317
        %p1061 = pneg %p341
        %p1062 = pneg %p338
        %p1063 = pneg %p362
        %p1064 = pneg %p359
        %p1065 = pneg %p383
        %p1066 = pneg %p380
        %p1067 = pneg %p404
        %p1068 = pneg %p401
        %p1069 = pneg %p425
        %p1070 = pneg %p422
        %p1071 = pneg %p446
        %p1072 = pneg %p443
        %p1073 = pneg %p467
        %p1074 = pneg %p464
        %p1075 = pneg %p488
        %p1076 = pneg %p485
        %p1077 = pneg %p509
        %p1078 = pneg %p506
        %p1079 = pneg %p530
        %p1080 = pneg %p527
        %p1081 = pneg %p551
        %p1082 = pneg %p548
        %p1083 = pneg %p572
        %p1084 = pneg %p569
        %p1085 = pneg %p593
        %p1086 = pneg %p590
        %p1087 = pneg %p614
        %p1088 = pneg %p611
        %p1089 = pneg %p635
        %p1090 = pneg %p632
        %p1091 = pneg %p656
        %p1092 = pneg %p653
        %p1093 = pneg %p677
        %p1094 = pneg %p674
        %p1095 = pneg %p698
        %p1096 = pneg %p695
        %p1097 = pneg %p719
        %p1098 = pneg %p716
        %p1099 = pneg %p740
        %p1100 = pneg %p737
        %p1101 = pneg %p761
        %p1102 = pneg %p758
        %p1103 = pneg %p782
        %p1104 = pneg %p779
        %p1105 = pneg %p803
        %p1106 = pneg %p800
        %p1107 = pneg %p824
        %p1108 = pneg %p821
        %p1109 = pneg %p845
        %p1110 = pneg %p842
        %p1111 = pneg %p866
        %p1112 = pneg %p863
        %p1113 = pneg %p892
        %p1114 = pneg %p889
        %s1115 = sand.u32 %s879, 1
        %s1116 = scalar_lea.sflag [#allocation26], %s1115
        %s1117 = sand.u32 %s879, 1
        %s1118 = scalar_lea.vmem [#allocation25], %s1117
        %p1119 = scmp.lt.s32.totalorder %s89, 1
        %s1120 = scalar_select %p1119, %s89, 1
        %s1121 = smul.addr %s1120, 32
        %s1122 = smul.addr %s1121, 8
        %s1123 = scalar_lea.vmem %s1, %s1122
        %vm1124 = vcmask 7168
        %1125 = vst.msk [vmem:[#allocation2] sm:$0xff] %vm1124, 0.0
        %1126 = vst.msk [vmem:[#allocation2 + $0x8] sm:$0xff] %vm1124, 0.0
        %1127 = vst.msk [vmem:[#allocation2 + $0x10] sm:$0xff] %vm1124, 0.0
        %1128 = vst.msk [vmem:[#allocation2 + $0x118] sm:$0xff] %vm1124, 0.0
        %1129 = vst.msk [vmem:[#allocation2 + $0x120] sm:$0xff] %vm1124, 0.0
        %1130 = vst.msk [vmem:[#allocation2 + $0x128] sm:$0xff] %vm1124, 0.0
        %v1131 = vld [vmem:[%s1123] sm:$0xff]
        %v1132 = vld [vmem:[%s1123 + $0x8] sm:$0xff]
        %v1133 = vld [vmem:[%s1123 + $0x10] sm:$0xff]
        %v1134 = vld [vmem:[%s1123 + $0x18] sm:$0xff]
        %v1135 = vld [vmem:[%s1123 + $0x20] sm:$0xff]
        %v1136 = vld [vmem:[%s1123 + $0x28] sm:$0xff]
        %v1137 = vld [vmem:[%s1123 + $0x30] sm:$0xff]
        %v1138 = vld [vmem:[%s1123 + $0x38] sm:$0xff]
        %v1139 = vld [vmem:[%s1123 + $0x40] sm:$0xff]
        %v1140 = vld [vmem:[%s1123 + $0x48] sm:$0xff]
        %v1141 = vld [vmem:[%s1123 + $0x50] sm:$0xff]
        %v1142 = vld [vmem:[%s1123 + $0x58] sm:$0xff]
        %v1143 = vld [vmem:[%s1123 + $0x60] sm:$0xff]
        %v1144 = vld [vmem:[%s1123 + $0x68] sm:$0xff]
        %v1145 = vld [vmem:[%s1123 + $0x70] sm:$0xff]
        %v1146 = vld [vmem:[%s1123 + $0x78] sm:$0xff]
        %v1147 = vld [vmem:[%s1123 + $0x80] sm:$0xff]
        %v1148 = vld [vmem:[%s1123 + $0x88] sm:$0xff]
        %v1149 = vld [vmem:[%s1123 + $0x90] sm:$0xff]
        %v1150 = vld [vmem:[%s1123 + $0x98] sm:$0xff]
        %v1151 = vld [vmem:[%s1123 + $0xa0] sm:$0xff]
        %v1152 = vld [vmem:[%s1123 + $0xa8] sm:$0xff]
        %v1153 = vld [vmem:[%s1123 + $0xb0] sm:$0xff]
        %v1154 = vld [vmem:[%s1123 + $0xb8] sm:$0xff]
        %v1155 = vld [vmem:[%s1123 + $0xc0] sm:$0xff]
        %v1156 = vld [vmem:[%s1123 + $0xc8] sm:$0xff]
        %v1157 = vld [vmem:[%s1123 + $0xd0] sm:$0xff]
        %v1158 = vld [vmem:[%s1123 + $0xd8] sm:$0xff]
        %v1159 = vld [vmem:[%s1123 + $0xe0] sm:$0xff]
        %v1160 = vld [vmem:[%s1123 + $0xe8] sm:$0xff]
        %v1161 = vld [vmem:[%s1123 + $0xf0] sm:$0xff]
        %v1162 = vld [vmem:[%s1123 + $0xf8] sm:$0xff]
        %1163 = vst.msk [vmem:[#allocation2 + $0x18] sm:$0xff] %vm1124, %v1131
        %1164 = vst.msk [vmem:[#allocation2 + $0x20] sm:$0xff] %vm1124, %v1132
        %1165 = vst.msk [vmem:[#allocation2 + $0x28] sm:$0xff] %vm1124, %v1133
        %1166 = vst.msk [vmem:[#allocation2 + $0x30] sm:$0xff] %vm1124, %v1134
        %1167 = vst.msk [vmem:[#allocation2 + $0x38] sm:$0xff] %vm1124, %v1135
        %1168 = vst.msk [vmem:[#allocation2 + $0x40] sm:$0xff] %vm1124, %v1136
        %1169 = vst.msk [vmem:[#allocation2 + $0x48] sm:$0xff] %vm1124, %v1137
        %1170 = vst.msk [vmem:[#allocation2 + $0x50] sm:$0xff] %vm1124, %v1138
        %1171 = vst.msk [vmem:[#allocation2 + $0x58] sm:$0xff] %vm1124, %v1139
        %1172 = vst.msk [vmem:[#allocation2 + $0x60] sm:$0xff] %vm1124, %v1140
        %1173 = vst.msk [vmem:[#allocation2 + $0x68] sm:$0xff] %vm1124, %v1141
        %1174 = vst.msk [vmem:[#allocation2 + $0x70] sm:$0xff] %vm1124, %v1142
        %1175 = vst.msk [vmem:[#allocation2 + $0x78] sm:$0xff] %vm1124, %v1143
        %1176 = vst.msk [vmem:[#allocation2 + $0x80] sm:$0xff] %vm1124, %v1144
        %1177 = vst.msk [vmem:[#allocation2 + $0x88] sm:$0xff] %vm1124, %v1145
        %1178 = vst.msk [vmem:[#allocation2 + $0x90] sm:$0xff] %vm1124, %v1146
        %1179 = vst.msk [vmem:[#allocation2 + $0x98] sm:$0xff] %vm1124, %v1147
        %1180 = vst.msk [vmem:[#allocation2 + $0xa0] sm:$0xff] %vm1124, %v1148
        %1181 = vst.msk [vmem:[#allocation2 + $0xa8] sm:$0xff] %vm1124, %v1149
        %1182 = vst.msk [vmem:[#allocation2 + $0xb0] sm:$0xff] %vm1124, %v1150
        %1183 = vst.msk [vmem:[#allocation2 + $0xb8] sm:$0xff] %vm1124, %v1151
        %1184 = vst.msk [vmem:[#allocation2 + $0xc0] sm:$0xff] %vm1124, %v1152
        %1185 = vst.msk [vmem:[#allocation2 + $0xc8] sm:$0xff] %vm1124, %v1153
        %1186 = vst.msk [vmem:[#allocation2 + $0xd0] sm:$0xff] %vm1124, %v1154
        %1187 = vst.msk [vmem:[#allocation2 + $0xd8] sm:$0xff] %vm1124, %v1155
        %1188 = vst.msk [vmem:[#allocation2 + $0xe0] sm:$0xff] %vm1124, %v1156
        %1189 = vst.msk [vmem:[#allocation2 + $0xe8] sm:$0xff] %vm1124, %v1157
        %1190 = vst.msk [vmem:[#allocation2 + $0xf0] sm:$0xff] %vm1124, %v1158
        %1191 = vst.msk [vmem:[#allocation2 + $0xf8] sm:$0xff] %vm1124, %v1159
        %1192 = vst.msk [vmem:[#allocation2 + $0x100] sm:$0xff] %vm1124, %v1160
        %1193 = vst.msk [vmem:[#allocation2 + $0x108] sm:$0xff] %vm1124, %v1161
        %1194 = vst.msk [vmem:[#allocation2 + $0x110] sm:$0xff] %vm1124, %v1162
        %vm1195 = vcmask 64512
        %1196 = vst.msk [vmem:[#allocation3] sm:$0xff] %vm1195, 0.0
        %1197 = vst.msk [vmem:[#allocation3 + $0x8] sm:$0xff] %vm1195, 0.0
        %1198 = vst.msk [vmem:[#allocation3 + $0x50] sm:$0xff] %vm1195, 0.0
        %1199 = vst.msk [vmem:[#allocation3 + $0x58] sm:$0xff] %vm1195, 0.0
        %v1200 = vlaneseq
        %v1201 = vshrl.u32 %v1200, 7
        %v1202 = vadd.s32 %v1201, 8
        %v1203 = vadd.s32 %v1201, 16
        %v1204 = vadd.s32 %v1201, 24
        %v1205 = vadd.s32 %v1201, 32
        %v1206 = vadd.s32 %v1201, 40
        %v1207 = vadd.s32 %v1201, 48
        %v1208 = vadd.s32 %v1201, 56
        %v1209 = vadd.s32 %v1201, 64
        %v1210 = vadd.s32 %v1201, 72
        %v1211 = vadd.s32 %v1201, 80
        %v1212 = vadd.s32 %v1201, 88
        %v1213 = vadd.s32 %v1201, 96
        %v1214 = vadd.s32 %v1201, 104
        %v1215 = vadd.s32 %v1201, 112
        %v1216 = vadd.s32 %v1201, 120
        %v1217 = vand.u32 %v1201, 15
        %v1218 = vand.u32 %v1202, 15
        %v1219 = vand.u32 %v1203, 15
        %v1220 = vand.u32 %v1204, 15
        %v1221 = vand.u32 %v1205, 15
        %v1222 = vand.u32 %v1206, 15
        %v1223 = vand.u32 %v1207, 15
        %v1224 = vand.u32 %v1208, 15
        %v1225 = vand.u32 %v1209, 15
        %v1226 = vand.u32 %v1210, 15
        %v1227 = vand.u32 %v1211, 15
        %v1228 = vand.u32 %v1212, 15
        %v1229 = vand.u32 %v1213, 15
        %v1230 = vand.u32 %v1214, 15
        %v1231 = vand.u32 %v1215, 15
        %v1232 = vand.u32 %v1216, 15
        %vm1233 = vcmp.gt.s32.totalorder %v1217, 0
        %vm1234 = vcmp.gt.s32.totalorder %v1218, 0
        %vm1235 = vcmp.gt.s32.totalorder %v1219, 0
        %vm1236 = vcmp.gt.s32.totalorder %v1220, 0
        %vm1237 = vcmp.gt.s32.totalorder %v1221, 0
        %vm1238 = vcmp.gt.s32.totalorder %v1222, 0
        %vm1239 = vcmp.gt.s32.totalorder %v1223, 0
        %vm1240 = vcmp.gt.s32.totalorder %v1224, 0
        %vm1241 = vcmp.gt.s32.totalorder %v1225, 0
        %vm1242 = vcmp.gt.s32.totalorder %v1226, 0
        %vm1243 = vcmp.gt.s32.totalorder %v1227, 0
        %vm1244 = vcmp.gt.s32.totalorder %v1228, 0
        %vm1245 = vcmp.gt.s32.totalorder %v1229, 0
        %vm1246 = vcmp.gt.s32.totalorder %v1230, 0
        %vm1247 = vcmp.gt.s32.totalorder %v1231, 0
        %vm1248 = vcmp.gt.s32.totalorder %v1232, 0
        %vm1249 = vcmp.lt.s32.totalorder %v1217, 15
        %vm1250 = vcmp.lt.s32.totalorder %v1218, 15
        %vm1251 = vcmp.lt.s32.totalorder %v1219, 15
        %vm1252 = vcmp.lt.s32.totalorder %v1220, 15
        %vm1253 = vcmp.lt.s32.totalorder %v1221, 15
        %vm1254 = vcmp.lt.s32.totalorder %v1222, 15
        %vm1255 = vcmp.lt.s32.totalorder %v1223, 15
        %vm1256 = vcmp.lt.s32.totalorder %v1224, 15
        %vm1257 = vcmp.lt.s32.totalorder %v1225, 15
        %vm1258 = vcmp.lt.s32.totalorder %v1226, 15
        %vm1259 = vcmp.lt.s32.totalorder %v1227, 15
        %vm1260 = vcmp.lt.s32.totalorder %v1228, 15
        %vm1261 = vcmp.lt.s32.totalorder %v1229, 15
        %vm1262 = vcmp.lt.s32.totalorder %v1230, 15
        %vm1263 = vcmp.lt.s32.totalorder %v1231, 15
        %vm1264 = vcmp.lt.s32.totalorder %v1232, 15
        %v1265 = vld [vmem:[#allocation2 + $0x7] sm:$0xff]
        %v1266 = vld [vmem:[#allocation2 + $0xf] sm:$0xff]
        %v1267 = vld [vmem:[#allocation2 + $0x17] sm:$0xff]
        %v1268 = vld [vmem:[#allocation2 + $0x1f] sm:$0xff]
        %v1269 = vld [vmem:[#allocation2 + $0x27] sm:$0xff]
        %v1270 = vld [vmem:[#allocation2 + $0x2f] sm:$0xff]
        %v1271 = vld [vmem:[#allocation2 + $0x37] sm:$0xff]
        %v1272 = vld [vmem:[#allocation2 + $0x3f] sm:$0xff]
        %v1273 = vld [vmem:[#allocation2 + $0x47] sm:$0xff]
        %v1274 = vld [vmem:[#allocation2 + $0x4f] sm:$0xff]
        %v1275 = vld [vmem:[#allocation2 + $0x57] sm:$0xff]
        %v1276 = vld [vmem:[#allocation2 + $0x5f] sm:$0xff]
        %v1277 = vld [vmem:[#allocation2 + $0x67] sm:$0xff]
        %v1278 = vld [vmem:[#allocation2 + $0x6f] sm:$0xff]
        %v1279 = vld [vmem:[#allocation2 + $0x77] sm:$0xff]
        %v1280 = vld [vmem:[#allocation2 + $0x7f] sm:$0xff]
        %v1281 = vsel %vm1233, %v1265, 0.0
        %v1282 = vsel %vm1234, %v1266, 0.0
        %v1283 = vsel %vm1235, %v1267, 0.0
        %v1284 = vsel %vm1236, %v1268, 0.0
        %v1285 = vsel %vm1237, %v1269, 0.0
        %v1286 = vsel %vm1238, %v1270, 0.0
        %v1287 = vsel %vm1239, %v1271, 0.0
        %v1288 = vsel %vm1240, %v1272, 0.0
        %v1289 = vsel %vm1241, %v1273, 0.0
        %v1290 = vsel %vm1242, %v1274, 0.0
        %v1291 = vsel %vm1243, %v1275, 0.0
        %v1292 = vsel %vm1244, %v1276, 0.0
        %v1293 = vsel %vm1245, %v1277, 0.0
        %v1294 = vsel %vm1246, %v1278, 0.0
        %v1295 = vsel %vm1247, %v1279, 0.0
        %v1296 = vsel %vm1248, %v1280, 0.0
        %1297 = vst.msk [vmem:[#allocation9] sm:$0xff] %vm1124, %v1281
        %1298 = vst.msk [vmem:[#allocation9 + $0x8] sm:$0xff] %vm1124, %v1282
        %1299 = vst.msk [vmem:[#allocation9 + $0x10] sm:$0xff] %vm1124, %v1283
        %1300 = vst.msk [vmem:[#allocation9 + $0x18] sm:$0xff] %vm1124, %v1284
        %1301 = vst.msk [vmem:[#allocation9 + $0x20] sm:$0xff] %vm1124, %v1285
        %1302 = vst.msk [vmem:[#allocation9 + $0x28] sm:$0xff] %vm1124, %v1286
        %1303 = vst.msk [vmem:[#allocation9 + $0x30] sm:$0xff] %vm1124, %v1287
        %1304 = vst.msk [vmem:[#allocation9 + $0x38] sm:$0xff] %vm1124, %v1288
        %1305 = vst.msk [vmem:[#allocation9 + $0x40] sm:$0xff] %vm1124, %v1289
        %1306 = vst.msk [vmem:[#allocation9 + $0x48] sm:$0xff] %vm1124, %v1290
        %1307 = vst.msk [vmem:[#allocation9 + $0x50] sm:$0xff] %vm1124, %v1291
        %1308 = vst.msk [vmem:[#allocation9 + $0x58] sm:$0xff] %vm1124, %v1292
        %1309 = vst.msk [vmem:[#allocation9 + $0x60] sm:$0xff] %vm1124, %v1293
        %1310 = vst.msk [vmem:[#allocation9 + $0x68] sm:$0xff] %vm1124, %v1294
        %1311 = vst.msk [vmem:[#allocation9 + $0x70] sm:$0xff] %vm1124, %v1295
        %1312 = vst.msk [vmem:[#allocation9 + $0x78] sm:$0xff] %vm1124, %v1296
        %v1313 = vld [vmem:[#allocation2 + $0x8] sm:$0xff]
        %v1314 = vld [vmem:[#allocation2 + $0x10] sm:$0xff]
        %v1315 = vld [vmem:[#allocation2 + $0x18] sm:$0xff]
        %v1316 = vld [vmem:[#allocation2 + $0x20] sm:$0xff]
        %v1317 = vld [vmem:[#allocation2 + $0x28] sm:$0xff]
        %v1318 = vld [vmem:[#allocation2 + $0x30] sm:$0xff]
        %v1319 = vld [vmem:[#allocation2 + $0x38] sm:$0xff]
        %v1320 = vld [vmem:[#allocation2 + $0x40] sm:$0xff]
        %v1321 = vld [vmem:[#allocation2 + $0x48] sm:$0xff]
        %v1322 = vld [vmem:[#allocation2 + $0x50] sm:$0xff]
        %v1323 = vld [vmem:[#allocation2 + $0x58] sm:$0xff]
        %v1324 = vld [vmem:[#allocation2 + $0x60] sm:$0xff]
        %v1325 = vld [vmem:[#allocation2 + $0x68] sm:$0xff]
        %v1326 = vld [vmem:[#allocation2 + $0x70] sm:$0xff]
        %v1327 = vld [vmem:[#allocation2 + $0x78] sm:$0xff]
        %v1328 = vld [vmem:[#allocation2 + $0x80] sm:$0xff]
        %1345 = vrot.lane.b32.xlu0 %v1313, 1
        %v1346 = vpop.permute.xlu0 %1345
        %1347 = vrot.lane.b32.xlu0 %v1314, 1
        %v1348 = vpop.permute.xlu0 %1347
        %1349 = vrot.lane.b32.xlu0 %v1315, 1
        %v1350 = vpop.permute.xlu0 %1349
        %1351 = vrot.lane.b32.xlu0 %v1316, 1
        %v1352 = vpop.permute.xlu0 %1351
        %1353 = vrot.lane.b32.xlu0 %v1317, 1
        %v1354 = vpop.permute.xlu0 %1353
        %1355 = vrot.lane.b32.xlu0 %v1318, 1
        %v1356 = vpop.permute.xlu0 %1355
        %1357 = vrot.lane.b32.xlu0 %v1319, 1
        %v1358 = vpop.permute.xlu0 %1357
        %1359 = vrot.lane.b32.xlu0 %v1320, 1
        %v1360 = vpop.permute.xlu0 %1359
        %1361 = vrot.lane.b32.xlu0 %v1321, 1
        %v1362 = vpop.permute.xlu0 %1361
        %1363 = vrot.lane.b32.xlu0 %v1322, 1
        %v1364 = vpop.permute.xlu0 %1363
        %1365 = vrot.lane.b32.xlu0 %v1323, 1
        %v1366 = vpop.permute.xlu0 %1365
        %1367 = vrot.lane.b32.xlu0 %v1324, 1
        %v1368 = vpop.permute.xlu0 %1367
        %1369 = vrot.lane.b32.xlu0 %v1325, 1
        %v1370 = vpop.permute.xlu0 %1369
        %1371 = vrot.lane.b32.xlu0 %v1326, 1
        %v1372 = vpop.permute.xlu0 %1371
        %1373 = vrot.lane.b32.xlu0 %v1327, 1
        %v1374 = vpop.permute.xlu0 %1373
        %1375 = vrot.lane.b32.xlu0 %v1328, 1
        %v1376 = vpop.permute.xlu0 %1375
        %vm1393 = vcmask 15368
        %1394 = vst.msk [vmem:[#allocation9] sm:$0xff] %vm1393, %v1346
        %1395 = vst.msk [vmem:[#allocation9 + $0x8] sm:$0xff] %vm1393, %v1348
        %1396 = vst.msk [vmem:[#allocation9 + $0x10] sm:$0xff] %vm1393, %v1350
        %1397 = vst.msk [vmem:[#allocation9 + $0x18] sm:$0xff] %vm1393, %v1352
        %1398 = vst.msk [vmem:[#allocation9 + $0x20] sm:$0xff] %vm1393, %v1354
        %1399 = vst.msk [vmem:[#allocation9 + $0x28] sm:$0xff] %vm1393, %v1356
        %1400 = vst.msk [vmem:[#allocation9 + $0x30] sm:$0xff] %vm1393, %v1358
        %1401 = vst.msk [vmem:[#allocation9 + $0x38] sm:$0xff] %vm1393, %v1360
        %1402 = vst.msk [vmem:[#allocation9 + $0x40] sm:$0xff] %vm1393, %v1362
        %1403 = vst.msk [vmem:[#allocation9 + $0x48] sm:$0xff] %vm1393, %v1364
        %1404 = vst.msk [vmem:[#allocation9 + $0x50] sm:$0xff] %vm1393, %v1366
        %1405 = vst.msk [vmem:[#allocation9 + $0x58] sm:$0xff] %vm1393, %v1368
        %1406 = vst.msk [vmem:[#allocation9 + $0x60] sm:$0xff] %vm1393, %v1370
        %1407 = vst.msk [vmem:[#allocation9 + $0x68] sm:$0xff] %vm1393, %v1372
        %1408 = vst.msk [vmem:[#allocation9 + $0x70] sm:$0xff] %vm1393, %v1374
        %1409 = vst.msk [vmem:[#allocation9 + $0x78] sm:$0xff] %vm1393, %v1376
        %v1410 = vld [vmem:[#allocation2 + $0x9] sm:$0xff]
        %v1411 = vld [vmem:[#allocation2 + $0x11] sm:$0xff]
        %v1412 = vld [vmem:[#allocation2 + $0x19] sm:$0xff]
        %v1413 = vld [vmem:[#allocation2 + $0x21] sm:$0xff]
        %v1414 = vld [vmem:[#allocation2 + $0x29] sm:$0xff]
        %v1415 = vld [vmem:[#allocation2 + $0x31] sm:$0xff]
        %v1416 = vld [vmem:[#allocation2 + $0x39] sm:$0xff]
        %v1417 = vld [vmem:[#allocation2 + $0x41] sm:$0xff]
        %v1418 = vld [vmem:[#allocation2 + $0x49] sm:$0xff]
        %v1419 = vld [vmem:[#allocation2 + $0x51] sm:$0xff]
        %v1420 = vld [vmem:[#allocation2 + $0x59] sm:$0xff]
        %v1421 = vld [vmem:[#allocation2 + $0x61] sm:$0xff]
        %v1422 = vld [vmem:[#allocation2 + $0x69] sm:$0xff]
        %v1423 = vld [vmem:[#allocation2 + $0x71] sm:$0xff]
        %v1424 = vld [vmem:[#allocation2 + $0x79] sm:$0xff]
        %v1425 = vld [vmem:[#allocation2 + $0x81] sm:$0xff]
        %v1426 = vsel %vm1249, %v1410, 0.0
        %v1427 = vsel %vm1250, %v1411, 0.0
        %v1428 = vsel %vm1251, %v1412, 0.0
        %v1429 = vsel %vm1252, %v1413, 0.0
        %v1430 = vsel %vm1253, %v1414, 0.0
        %v1431 = vsel %vm1254, %v1415, 0.0
        %v1432 = vsel %vm1255, %v1416, 0.0
        %v1433 = vsel %vm1256, %v1417, 0.0
        %v1434 = vsel %vm1257, %v1418, 0.0
        %v1435 = vsel %vm1258, %v1419, 0.0
        %v1436 = vsel %vm1259, %v1420, 0.0
        %v1437 = vsel %vm1260, %v1421, 0.0
        %v1438 = vsel %vm1261, %v1422, 0.0
        %v1439 = vsel %vm1262, %v1423, 0.0
        %v1440 = vsel %vm1263, %v1424, 0.0
        %v1441 = vsel %vm1264, %v1425, 0.0
        %1458 = vrot.lane.b32.xlu0 %v1426, 2
        %v1459 = vpop.permute.xlu0 %1458
        %1460 = vrot.lane.b32.xlu0 %v1427, 2
        %v1461 = vpop.permute.xlu0 %1460
        %1462 = vrot.lane.b32.xlu0 %v1428, 2
        %v1463 = vpop.permute.xlu0 %1462
        %1464 = vrot.lane.b32.xlu0 %v1429, 2
        %v1465 = vpop.permute.xlu0 %1464
        %1466 = vrot.lane.b32.xlu0 %v1430, 2
        %v1467 = vpop.permute.xlu0 %1466
        %1468 = vrot.lane.b32.xlu0 %v1431, 2
        %v1469 = vpop.permute.xlu0 %1468
        %1470 = vrot.lane.b32.xlu0 %v1432, 2
        %v1471 = vpop.permute.xlu0 %1470
        %1472 = vrot.lane.b32.xlu0 %v1433, 2
        %v1473 = vpop.permute.xlu0 %1472
        %1474 = vrot.lane.b32.xlu0 %v1434, 2
        %v1475 = vpop.permute.xlu0 %1474
        %1476 = vrot.lane.b32.xlu0 %v1435, 2
        %v1477 = vpop.permute.xlu0 %1476
        %1478 = vrot.lane.b32.xlu0 %v1436, 2
        %v1479 = vpop.permute.xlu0 %1478
        %1480 = vrot.lane.b32.xlu0 %v1437, 2
        %v1481 = vpop.permute.xlu0 %1480
        %1482 = vrot.lane.b32.xlu0 %v1438, 2
        %v1483 = vpop.permute.xlu0 %1482
        %1484 = vrot.lane.b32.xlu0 %v1439, 2
        %v1485 = vpop.permute.xlu0 %1484
        %1486 = vrot.lane.b32.xlu0 %v1440, 2
        %v1487 = vpop.permute.xlu0 %1486
        %1488 = vrot.lane.b32.xlu0 %v1441, 2
        %v1489 = vpop.permute.xlu0 %1488
        %vm1506 = vcmask 23568
        %1507 = vst.msk [vmem:[#allocation9] sm:$0xff] %vm1506, %v1459
        %1508 = vst.msk [vmem:[#allocation9 + $0x8] sm:$0xff] %vm1506, %v1461
        %1509 = vst.msk [vmem:[#allocation9 + $0x10] sm:$0xff] %vm1506, %v1463
        %1510 = vst.msk [vmem:[#allocation9 + $0x18] sm:$0xff] %vm1506, %v1465
        %1511 = vst.msk [vmem:[#allocation9 + $0x20] sm:$0xff] %vm1506, %v1467
        %1512 = vst.msk [vmem:[#allocation9 + $0x28] sm:$0xff] %vm1506, %v1469
        %1513 = vst.msk [vmem:[#allocation9 + $0x30] sm:$0xff] %vm1506, %v1471
        %1514 = vst.msk [vmem:[#allocation9 + $0x38] sm:$0xff] %vm1506, %v1473
        %1515 = vst.msk [vmem:[#allocation9 + $0x40] sm:$0xff] %vm1506, %v1475
        %1516 = vst.msk [vmem:[#allocation9 + $0x48] sm:$0xff] %vm1506, %v1477
        %1517 = vst.msk [vmem:[#allocation9 + $0x50] sm:$0xff] %vm1506, %v1479
        %1518 = vst.msk [vmem:[#allocation9 + $0x58] sm:$0xff] %vm1506, %v1481
        %1519 = vst.msk [vmem:[#allocation9 + $0x60] sm:$0xff] %vm1506, %v1483
        %1520 = vst.msk [vmem:[#allocation9 + $0x68] sm:$0xff] %vm1506, %v1485
        %1521 = vst.msk [vmem:[#allocation9 + $0x70] sm:$0xff] %vm1506, %v1487
        %1522 = vst.msk [vmem:[#allocation9 + $0x78] sm:$0xff] %vm1506, %v1489
        %v1523 = vld [vmem:[#allocation2 + $0x17] sm:$0xff]
        %v1524 = vld [vmem:[#allocation2 + $0x1f] sm:$0xff]
        %v1525 = vld [vmem:[#allocation2 + $0x27] sm:$0xff]
        %v1526 = vld [vmem:[#allocation2 + $0x2f] sm:$0xff]
        %v1527 = vld [vmem:[#allocation2 + $0x37] sm:$0xff]
        %v1528 = vld [vmem:[#allocation2 + $0x3f] sm:$0xff]
        %v1529 = vld [vmem:[#allocation2 + $0x47] sm:$0xff]
        %v1530 = vld [vmem:[#allocation2 + $0x4f] sm:$0xff]
        %v1531 = vld [vmem:[#allocation2 + $0x57] sm:$0xff]
        %v1532 = vld [vmem:[#allocation2 + $0x5f] sm:$0xff]
        %v1533 = vld [vmem:[#allocation2 + $0x67] sm:$0xff]
        %v1534 = vld [vmem:[#allocation2 + $0x6f] sm:$0xff]
        %v1535 = vld [vmem:[#allocation2 + $0x77] sm:$0xff]
        %v1536 = vld [vmem:[#allocation2 + $0x7f] sm:$0xff]
        %v1537 = vld [vmem:[#allocation2 + $0x87] sm:$0xff]
        %v1538 = vld [vmem:[#allocation2 + $0x8f] sm:$0xff]
        %v1539 = vsel %vm1233, %v1523, 0.0
        %v1540 = vsel %vm1234, %v1524, 0.0
        %v1541 = vsel %vm1235, %v1525, 0.0
        %v1542 = vsel %vm1236, %v1526, 0.0
        %v1543 = vsel %vm1237, %v1527, 0.0
        %v1544 = vsel %vm1238, %v1528, 0.0
        %v1545 = vsel %vm1239, %v1529, 0.0
        %v1546 = vsel %vm1240, %v1530, 0.0
        %v1547 = vsel %vm1241, %v1531, 0.0
        %v1548 = vsel %vm1242, %v1532, 0.0
        %v1549 = vsel %vm1243, %v1533, 0.0
        %v1550 = vsel %vm1244, %v1534, 0.0
        %v1551 = vsel %vm1245, %v1535, 0.0
        %v1552 = vsel %vm1246, %v1536, 0.0
        %v1553 = vsel %vm1247, %v1537, 0.0
        %v1554 = vsel %vm1248, %v1538, 0.0
        %1571 = vrot.lane.b32.xlu0 %v1539, 3
        %v1572 = vpop.permute.xlu0 %1571
        %1573 = vrot.lane.b32.xlu0 %v1540, 3
        %v1574 = vpop.permute.xlu0 %1573
        %1575 = vrot.lane.b32.xlu0 %v1541, 3
        %v1576 = vpop.permute.xlu0 %1575
        %1577 = vrot.lane.b32.xlu0 %v1542, 3
        %v1578 = vpop.permute.xlu0 %1577
        %1579 = vrot.lane.b32.xlu0 %v1543, 3
        %v1580 = vpop.permute.xlu0 %1579
        %1581 = vrot.lane.b32.xlu0 %v1544, 3
        %v1582 = vpop.permute.xlu0 %1581
        %1583 = vrot.lane.b32.xlu0 %v1545, 3
        %v1584 = vpop.permute.xlu0 %1583
        %1585 = vrot.lane.b32.xlu0 %v1546, 3
        %v1586 = vpop.permute.xlu0 %1585
        %1587 = vrot.lane.b32.xlu0 %v1547, 3
        %v1588 = vpop.permute.xlu0 %1587
        %1589 = vrot.lane.b32.xlu0 %v1548, 3
        %v1590 = vpop.permute.xlu0 %1589
        %1591 = vrot.lane.b32.xlu0 %v1549, 3
        %v1592 = vpop.permute.xlu0 %1591
        %1593 = vrot.lane.b32.xlu0 %v1550, 3
        %v1594 = vpop.permute.xlu0 %1593
        %1595 = vrot.lane.b32.xlu0 %v1551, 3
        %v1596 = vpop.permute.xlu0 %1595
        %1597 = vrot.lane.b32.xlu0 %v1552, 3
        %v1598 = vpop.permute.xlu0 %1597
        %1599 = vrot.lane.b32.xlu0 %v1553, 3
        %v1600 = vpop.permute.xlu0 %1599
        %1601 = vrot.lane.b32.xlu0 %v1554, 3
        %v1602 = vpop.permute.xlu0 %1601
        %vm1619 = vcmask 31768
        %1620 = vst.msk [vmem:[#allocation9] sm:$0xff] %vm1619, %v1572
        %1621 = vst.msk [vmem:[#allocation9 + $0x8] sm:$0xff] %vm1619, %v1574
        %1622 = vst.msk [vmem:[#allocation9 + $0x10] sm:$0xff] %vm1619, %v1576
        %1623 = vst.msk [vmem:[#allocation9 + $0x18] sm:$0xff] %vm1619, %v1578
        %1624 = vst.msk [vmem:[#allocation9 + $0x20] sm:$0xff] %vm1619, %v1580
        %1625 = vst.msk [vmem:[#allocation9 + $0x28] sm:$0xff] %vm1619, %v1582
        %1626 = vst.msk [vmem:[#allocation9 + $0x30] sm:$0xff] %vm1619, %v1584
        %1627 = vst.msk [vmem:[#allocation9 + $0x38] sm:$0xff] %vm1619, %v1586
        %1628 = vst.msk [vmem:[#allocation9 + $0x40] sm:$0xff] %vm1619, %v1588
        %1629 = vst.msk [vmem:[#allocation9 + $0x48] sm:$0xff] %vm1619, %v1590
        %1630 = vst.msk [vmem:[#allocation9 + $0x50] sm:$0xff] %vm1619, %v1592
        %1631 = vst.msk [vmem:[#allocation9 + $0x58] sm:$0xff] %vm1619, %v1594
        %1632 = vst.msk [vmem:[#allocation9 + $0x60] sm:$0xff] %vm1619, %v1596
        %1633 = vst.msk [vmem:[#allocation9 + $0x68] sm:$0xff] %vm1619, %v1598
        %1634 = vst.msk [vmem:[#allocation9 + $0x70] sm:$0xff] %vm1619, %v1600
        %1635 = vst.msk [vmem:[#allocation9 + $0x78] sm:$0xff] %vm1619, %v1602
        %v1636 = vld [vmem:[#allocation2 + $0x18] sm:$0xff]
        %v1637 = vld [vmem:[#allocation2 + $0x20] sm:$0xff]
        %v1638 = vld [vmem:[#allocation2 + $0x28] sm:$0xff]
        %v1639 = vld [vmem:[#allocation2 + $0x30] sm:$0xff]
        %v1640 = vld [vmem:[#allocation2 + $0x38] sm:$0xff]
        %v1641 = vld [vmem:[#allocation2 + $0x40] sm:$0xff]
        %v1642 = vld [vmem:[#allocation2 + $0x48] sm:$0xff]
        %v1643 = vld [vmem:[#allocation2 + $0x50] sm:$0xff]
        %v1644 = vld [vmem:[#allocation2 + $0x58] sm:$0xff]
        %v1645 = vld [vmem:[#allocation2 + $0x60] sm:$0xff]
        %v1646 = vld [vmem:[#allocation2 + $0x68] sm:$0xff]
        %v1647 = vld [vmem:[#allocation2 + $0x70] sm:$0xff]
        %v1648 = vld [vmem:[#allocation2 + $0x78] sm:$0xff]
        %v1649 = vld [vmem:[#allocation2 + $0x80] sm:$0xff]
        %v1650 = vld [vmem:[#allocation2 + $0x88] sm:$0xff]
        %v1651 = vld [vmem:[#allocation2 + $0x90] sm:$0xff]
        %1668 = vrot.lane.b32.xlu0 %v1636, 4
        %v1669 = vpop.permute.xlu0 %1668
        %1670 = vrot.lane.b32.xlu0 %v1637, 4
        %v1671 = vpop.permute.xlu0 %1670
        %1672 = vrot.lane.b32.xlu0 %v1638, 4
        %v1673 = vpop.permute.xlu0 %1672
        %1674 = vrot.lane.b32.xlu0 %v1639, 4
        %v1675 = vpop.permute.xlu0 %1674
        %1676 = vrot.lane.b32.xlu0 %v1640, 4
        %v1677 = vpop.permute.xlu0 %1676
        %1678 = vrot.lane.b32.xlu0 %v1641, 4
        %v1679 = vpop.permute.xlu0 %1678
        %1680 = vrot.lane.b32.xlu0 %v1642, 4
        %v1681 = vpop.permute.xlu0 %1680
        %1682 = vrot.lane.b32.xlu0 %v1643, 4
        %v1683 = vpop.permute.xlu0 %1682
        %1684 = vrot.lane.b32.xlu0 %v1644, 4
        %v1685 = vpop.permute.xlu0 %1684
        %1686 = vrot.lane.b32.xlu0 %v1645, 4
        %v1687 = vpop.permute.xlu0 %1686
        %1688 = vrot.lane.b32.xlu0 %v1646, 4
        %v1689 = vpop.permute.xlu0 %1688
        %1690 = vrot.lane.b32.xlu0 %v1647, 4
        %v1691 = vpop.permute.xlu0 %1690
        %1692 = vrot.lane.b32.xlu0 %v1648, 4
        %v1693 = vpop.permute.xlu0 %1692
        %1694 = vrot.lane.b32.xlu0 %v1649, 4
        %v1695 = vpop.permute.xlu0 %1694
        %1696 = vrot.lane.b32.xlu0 %v1650, 4
        %v1697 = vpop.permute.xlu0 %1696
        %1698 = vrot.lane.b32.xlu0 %v1651, 4
        %v1699 = vpop.permute.xlu0 %1698
        %vm1716 = vcmask 39968
        %1717 = vst.msk [vmem:[#allocation9] sm:$0xff] %vm1716, %v1669
        %1718 = vst.msk [vmem:[#allocation9 + $0x8] sm:$0xff] %vm1716, %v1671
        %1719 = vst.msk [vmem:[#allocation9 + $0x10] sm:$0xff] %vm1716, %v1673
        %1720 = vst.msk [vmem:[#allocation9 + $0x18] sm:$0xff] %vm1716, %v1675
        %1721 = vst.msk [vmem:[#allocation9 + $0x20] sm:$0xff] %vm1716, %v1677
        %1722 = vst.msk [vmem:[#allocation9 + $0x28] sm:$0xff] %vm1716, %v1679
        %1723 = vst.msk [vmem:[#allocation9 + $0x30] sm:$0xff] %vm1716, %v1681
        %1724 = vst.msk [vmem:[#allocation9 + $0x38] sm:$0xff] %vm1716, %v1683
        %1725 = vst.msk [vmem:[#allocation9 + $0x40] sm:$0xff] %vm1716, %v1685
        %1726 = vst.msk [vmem:[#allocation9 + $0x48] sm:$0xff] %vm1716, %v1687
        %1727 = vst.msk [vmem:[#allocation9 + $0x50] sm:$0xff] %vm1716, %v1689
        %1728 = vst.msk [vmem:[#allocation9 + $0x58] sm:$0xff] %vm1716, %v1691
        %1729 = vst.msk [vmem:[#allocation9 + $0x60] sm:$0xff] %vm1716, %v1693
        %1730 = vst.msk [vmem:[#allocation9 + $0x68] sm:$0xff] %vm1716, %v1695
        %1731 = vst.msk [vmem:[#allocation9 + $0x70] sm:$0xff] %vm1716, %v1697
        %1732 = vst.msk [vmem:[#allocation9 + $0x78] sm:$0xff] %vm1716, %v1699
        %v1733 = vld [vmem:[#allocation2 + $0x19] sm:$0xff]
        %v1734 = vld [vmem:[#allocation2 + $0x21] sm:$0xff]
        %v1735 = vld [vmem:[#allocation2 + $0x29] sm:$0xff]
        %v1736 = vld [vmem:[#allocation2 + $0x31] sm:$0xff]
        %v1737 = vld [vmem:[#allocation2 + $0x39] sm:$0xff]
        %v1738 = vld [vmem:[#allocation2 + $0x41] sm:$0xff]
        %v1739 = vld [vmem:[#allocation2 + $0x49] sm:$0xff]
        %v1740 = vld [vmem:[#allocation2 + $0x51] sm:$0xff]
        %v1741 = vld [vmem:[#allocation2 + $0x59] sm:$0xff]
        %v1742 = vld [vmem:[#allocation2 + $0x61] sm:$0xff]
        %v1743 = vld [vmem:[#allocation2 + $0x69] sm:$0xff]
        %v1744 = vld [vmem:[#allocation2 + $0x71] sm:$0xff]
        %v1745 = vld [vmem:[#allocation2 + $0x79] sm:$0xff]
        %v1746 = vld [vmem:[#allocation2 + $0x81] sm:$0xff]
        %v1747 = vld [vmem:[#allocation2 + $0x89] sm:$0xff]
        %v1748 = vld [vmem:[#allocation2 + $0x91] sm:$0xff]
        %v1749 = vsel %vm1249, %v1733, 0.0
        %v1750 = vsel %vm1250, %v1734, 0.0
        %v1751 = vsel %vm1251, %v1735, 0.0
        %v1752 = vsel %vm1252, %v1736, 0.0
        %v1753 = vsel %vm1253, %v1737, 0.0
        %v1754 = vsel %vm1254, %v1738, 0.0
        %v1755 = vsel %vm1255, %v1739, 0.0
        %v1756 = vsel %vm1256, %v1740, 0.0
        %v1757 = vsel %vm1257, %v1741, 0.0
        %v1758 = vsel %vm1258, %v1742, 0.0
        %v1759 = vsel %vm1259, %v1743, 0.0
        %v1760 = vsel %vm1260, %v1744, 0.0
        %v1761 = vsel %vm1261, %v1745, 0.0
        %v1762 = vsel %vm1262, %v1746, 0.0
        %v1763 = vsel %vm1263, %v1747, 0.0
        %v1764 = vsel %vm1264, %v1748, 0.0
        %1781 = vrot.lane.b32.xlu0 %v1749, 5
        %v1782 = vpop.permute.xlu0 %1781
        %1783 = vrot.lane.b32.xlu0 %v1750, 5
        %v1784 = vpop.permute.xlu0 %1783
        %1785 = vrot.lane.b32.xlu0 %v1751, 5
        %v1786 = vpop.permute.xlu0 %1785
        %1787 = vrot.lane.b32.xlu0 %v1752, 5
        %v1788 = vpop.permute.xlu0 %1787
        %1789 = vrot.lane.b32.xlu0 %v1753, 5
        %v1790 = vpop.permute.xlu0 %1789
        %1791 = vrot.lane.b32.xlu0 %v1754, 5
        %v1792 = vpop.permute.xlu0 %1791
        %1793 = vrot.lane.b32.xlu0 %v1755, 5
        %v1794 = vpop.permute.xlu0 %1793
        %1795 = vrot.lane.b32.xlu0 %v1756, 5
        %v1796 = vpop.permute.xlu0 %1795
        %1797 = vrot.lane.b32.xlu0 %v1757, 5
        %v1798 = vpop.permute.xlu0 %1797
        %1799 = vrot.lane.b32.xlu0 %v1758, 5
        %v1800 = vpop.permute.xlu0 %1799
        %1801 = vrot.lane.b32.xlu0 %v1759, 5
        %v1802 = vpop.permute.xlu0 %1801
        %1803 = vrot.lane.b32.xlu0 %v1760, 5
        %v1804 = vpop.permute.xlu0 %1803
        %1805 = vrot.lane.b32.xlu0 %v1761, 5
        %v1806 = vpop.permute.xlu0 %1805
        %1807 = vrot.lane.b32.xlu0 %v1762, 5
        %v1808 = vpop.permute.xlu0 %1807
        %1809 = vrot.lane.b32.xlu0 %v1763, 5
        %v1810 = vpop.permute.xlu0 %1809
        %1811 = vrot.lane.b32.xlu0 %v1764, 5
        %v1812 = vpop.permute.xlu0 %1811
        %vm1829 = vcmask 48168
        %1830 = vst.msk [vmem:[#allocation9] sm:$0xff] %vm1829, %v1782
        %1831 = vst.msk [vmem:[#allocation9 + $0x8] sm:$0xff] %vm1829, %v1784
        %1832 = vst.msk [vmem:[#allocation9 + $0x10] sm:$0xff] %vm1829, %v1786
        %1833 = vst.msk [vmem:[#allocation9 + $0x18] sm:$0xff] %vm1829, %v1788
        %1834 = vst.msk [vmem:[#allocation9 + $0x20] sm:$0xff] %vm1829, %v1790
        %1835 = vst.msk [vmem:[#allocation9 + $0x28] sm:$0xff] %vm1829, %v1792
        %1836 = vst.msk [vmem:[#allocation9 + $0x30] sm:$0xff] %vm1829, %v1794
        %1837 = vst.msk [vmem:[#allocation9 + $0x38] sm:$0xff] %vm1829, %v1796
        %1838 = vst.msk [vmem:[#allocation9 + $0x40] sm:$0xff] %vm1829, %v1798
        %1839 = vst.msk [vmem:[#allocation9 + $0x48] sm:$0xff] %vm1829, %v1800
        %1840 = vst.msk [vmem:[#allocation9 + $0x50] sm:$0xff] %vm1829, %v1802
        %1841 = vst.msk [vmem:[#allocation9 + $0x58] sm:$0xff] %vm1829, %v1804
        %1842 = vst.msk [vmem:[#allocation9 + $0x60] sm:$0xff] %vm1829, %v1806
        %1843 = vst.msk [vmem:[#allocation9 + $0x68] sm:$0xff] %vm1829, %v1808
        %1844 = vst.msk [vmem:[#allocation9 + $0x70] sm:$0xff] %vm1829, %v1810
        %1845 = vst.msk [vmem:[#allocation9 + $0x78] sm:$0xff] %vm1829, %v1812
        %v1846 = vld [vmem:[#allocation2 + $0x27] sm:$0xff]
        %v1847 = vld [vmem:[#allocation2 + $0x2f] sm:$0xff]
        %v1848 = vld [vmem:[#allocation2 + $0x37] sm:$0xff]
        %v1849 = vld [vmem:[#allocation2 + $0x3f] sm:$0xff]
        %v1850 = vld [vmem:[#allocation2 + $0x47] sm:$0xff]
        %v1851 = vld [vmem:[#allocation2 + $0x4f] sm:$0xff]
        %v1852 = vld [vmem:[#allocation2 + $0x57] sm:$0xff]
        %v1853 = vld [vmem:[#allocation2 + $0x5f] sm:$0xff]
        %v1854 = vld [vmem:[#allocation2 + $0x67] sm:$0xff]
        %v1855 = vld [vmem:[#allocation2 + $0x6f] sm:$0xff]
        %v1856 = vld [vmem:[#allocation2 + $0x77] sm:$0xff]
        %v1857 = vld [vmem:[#allocation2 + $0x7f] sm:$0xff]
        %v1858 = vld [vmem:[#allocation2 + $0x87] sm:$0xff]
        %v1859 = vld [vmem:[#allocation2 + $0x8f] sm:$0xff]
        %v1860 = vld [vmem:[#allocation2 + $0x97] sm:$0xff]
        %v1861 = vld [vmem:[#allocation2 + $0x9f] sm:$0xff]
        %v1862 = vsel %vm1233, %v1846, 0.0
        %v1863 = vsel %vm1234, %v1847, 0.0
        %v1864 = vsel %vm1235, %v1848, 0.0
        %v1865 = vsel %vm1236, %v1849, 0.0
        %v1866 = vsel %vm1237, %v1850, 0.0
        %v1867 = vsel %vm1238, %v1851, 0.0
        %v1868 = vsel %vm1239, %v1852, 0.0
        %v1869 = vsel %vm1240, %v1853, 0.0
        %v1870 = vsel %vm1241, %v1854, 0.0
        %v1871 = vsel %vm1242, %v1855, 0.0
        %v1872 = vsel %vm1243, %v1856, 0.0
        %v1873 = vsel %vm1244, %v1857, 0.0
        %v1874 = vsel %vm1245, %v1858, 0.0
        %v1875 = vsel %vm1246, %v1859, 0.0
        %v1876 = vsel %vm1247, %v1860, 0.0
        %v1877 = vsel %vm1248, %v1861, 0.0
        %1894 = vrot.lane.b32.xlu0 %v1862, 6
        %v1895 = vpop.permute.xlu0 %1894
        %1896 = vrot.lane.b32.xlu0 %v1863, 6
        %v1897 = vpop.permute.xlu0 %1896
        %1898 = vrot.lane.b32.xlu0 %v1864, 6
        %v1899 = vpop.permute.xlu0 %1898
        %1900 = vrot.lane.b32.xlu0 %v1865, 6
        %v1901 = vpop.permute.xlu0 %1900
        %1902 = vrot.lane.b32.xlu0 %v1866, 6
        %v1903 = vpop.permute.xlu0 %1902
        %1904 = vrot.lane.b32.xlu0 %v1867, 6
        %v1905 = vpop.permute.xlu0 %1904
        %1906 = vrot.lane.b32.xlu0 %v1868, 6
        %v1907 = vpop.permute.xlu0 %1906
        %1908 = vrot.lane.b32.xlu0 %v1869, 6
        %v1909 = vpop.permute.xlu0 %1908
        %1910 = vrot.lane.b32.xlu0 %v1870, 6
        %v1911 = vpop.permute.xlu0 %1910
        %1912 = vrot.lane.b32.xlu0 %v1871, 6
        %v1913 = vpop.permute.xlu0 %1912
        %1914 = vrot.lane.b32.xlu0 %v1872, 6
        %v1915 = vpop.permute.xlu0 %1914
        %1916 = vrot.lane.b32.xlu0 %v1873, 6
        %v1917 = vpop.permute.xlu0 %1916
        %1918 = vrot.lane.b32.xlu0 %v1874, 6
        %v1919 = vpop.permute.xlu0 %1918
        %1920 = vrot.lane.b32.xlu0 %v1875, 6
        %v1921 = vpop.permute.xlu0 %1920
        %1922 = vrot.lane.b32.xlu0 %v1876, 6
        %v1923 = vpop.permute.xlu0 %1922
        %1924 = vrot.lane.b32.xlu0 %v1877, 6
        %v1925 = vpop.permute.xlu0 %1924
        %vm1942 = vcmask 56368
        %1943 = vst.msk [vmem:[#allocation9] sm:$0xff] %vm1942, %v1895
        %1944 = vst.msk [vmem:[#allocation9 + $0x8] sm:$0xff] %vm1942, %v1897
        %1945 = vst.msk [vmem:[#allocation9 + $0x10] sm:$0xff] %vm1942, %v1899
        %1946 = vst.msk [vmem:[#allocation9 + $0x18] sm:$0xff] %vm1942, %v1901
        %1947 = vst.msk [vmem:[#allocation9 + $0x20] sm:$0xff] %vm1942, %v1903
        %1948 = vst.msk [vmem:[#allocation9 + $0x28] sm:$0xff] %vm1942, %v1905
        %1949 = vst.msk [vmem:[#allocation9 + $0x30] sm:$0xff] %vm1942, %v1907
        %1950 = vst.msk [vmem:[#allocation9 + $0x38] sm:$0xff] %vm1942, %v1909
        %1951 = vst.msk [vmem:[#allocation9 + $0x40] sm:$0xff] %vm1942, %v1911
        %1952 = vst.msk [vmem:[#allocation9 + $0x48] sm:$0xff] %vm1942, %v1913
        %1953 = vst.msk [vmem:[#allocation9 + $0x50] sm:$0xff] %vm1942, %v1915
        %1954 = vst.msk [vmem:[#allocation9 + $0x58] sm:$0xff] %vm1942, %v1917
        %1955 = vst.msk [vmem:[#allocation9 + $0x60] sm:$0xff] %vm1942, %v1919
        %1956 = vst.msk [vmem:[#allocation9 + $0x68] sm:$0xff] %vm1942, %v1921
        %1957 = vst.msk [vmem:[#allocation9 + $0x70] sm:$0xff] %vm1942, %v1923
        %1958 = vst.msk [vmem:[#allocation9 + $0x78] sm:$0xff] %vm1942, %v1925
        %v1959 = vld [vmem:[#allocation2 + $0x28] sm:$0xff]
        %v1960 = vld [vmem:[#allocation2 + $0x30] sm:$0xff]
        %v1961 = vld [vmem:[#allocation2 + $0x38] sm:$0xff]
        %v1962 = vld [vmem:[#allocation2 + $0x40] sm:$0xff]
        %v1963 = vld [vmem:[#allocation2 + $0x48] sm:$0xff]
        %v1964 = vld [vmem:[#allocation2 + $0x50] sm:$0xff]
        %v1965 = vld [vmem:[#allocation2 + $0x58] sm:$0xff]
        %v1966 = vld [vmem:[#allocation2 + $0x60] sm:$0xff]
        %v1967 = vld [vmem:[#allocation2 + $0x68] sm:$0xff]
        %v1968 = vld [vmem:[#allocation2 + $0x70] sm:$0xff]
        %v1969 = vld [vmem:[#allocation2 + $0x78] sm:$0xff]
        %v1970 = vld [vmem:[#allocation2 + $0x80] sm:$0xff]
        %v1971 = vld [vmem:[#allocation2 + $0x88] sm:$0xff]
        %v1972 = vld [vmem:[#allocation2 + $0x90] sm:$0xff]
        %v1973 = vld [vmem:[#allocation2 + $0x98] sm:$0xff]
        %v1974 = vld [vmem:[#allocation2 + $0xa0] sm:$0xff]
        %1991 = vrot.lane.b32.xlu0 %v1959, 7
        %v1992 = vpop.permute.xlu0 %1991
        %1993 = vrot.lane.b32.xlu0 %v1960, 7
        %v1994 = vpop.permute.xlu0 %1993
        %1995 = vrot.lane.b32.xlu0 %v1961, 7
        %v1996 = vpop.permute.xlu0 %1995
        %1997 = vrot.lane.b32.xlu0 %v1962, 7
        %v1998 = vpop.permute.xlu0 %1997
        %1999 = vrot.lane.b32.xlu0 %v1963, 7
        %v2000 = vpop.permute.xlu0 %1999
        %2001 = vrot.lane.b32.xlu0 %v1964, 7
        %v2002 = vpop.permute.xlu0 %2001
        %2003 = vrot.lane.b32.xlu0 %v1965, 7
        %v2004 = vpop.permute.xlu0 %2003
        %2005 = vrot.lane.b32.xlu0 %v1966, 7
        %v2006 = vpop.permute.xlu0 %2005
        %2007 = vrot.lane.b32.xlu0 %v1967, 7
        %v2008 = vpop.permute.xlu0 %2007
        %2009 = vrot.lane.b32.xlu0 %v1968, 7
        %v2010 = vpop.permute.xlu0 %2009
        %2011 = vrot.lane.b32.xlu0 %v1969, 7
        %v2012 = vpop.permute.xlu0 %2011
        %2013 = vrot.lane.b32.xlu0 %v1970, 7
        %v2014 = vpop.permute.xlu0 %2013
        %2015 = vrot.lane.b32.xlu0 %v1971, 7
        %v2016 = vpop.permute.xlu0 %2015
        %2017 = vrot.lane.b32.xlu0 %v1972, 7
        %v2018 = vpop.permute.xlu0 %2017
        %2019 = vrot.lane.b32.xlu0 %v1973, 7
        %v2020 = vpop.permute.xlu0 %2019
        %2021 = vrot.lane.b32.xlu0 %v1974, 7
        %v2022 = vpop.permute.xlu0 %2021
        %vm2039 = vcmask 64568
        %2040 = vst.msk [vmem:[#allocation9] sm:$0xff] %vm2039, %v1992
        %2041 = vst.msk [vmem:[#allocation9 + $0x8] sm:$0xff] %vm2039, %v1994
        %2042 = vst.msk [vmem:[#allocation9 + $0x10] sm:$0xff] %vm2039, %v1996
        %2043 = vst.msk [vmem:[#allocation9 + $0x18] sm:$0xff] %vm2039, %v1998
        %2044 = vst.msk [vmem:[#allocation9 + $0x20] sm:$0xff] %vm2039, %v2000
        %2045 = vst.msk [vmem:[#allocation9 + $0x28] sm:$0xff] %vm2039, %v2002
        %2046 = vst.msk [vmem:[#allocation9 + $0x30] sm:$0xff] %vm2039, %v2004
        %2047 = vst.msk [vmem:[#allocation9 + $0x38] sm:$0xff] %vm2039, %v2006
        %2048 = vst.msk [vmem:[#allocation9 + $0x40] sm:$0xff] %vm2039, %v2008
        %2049 = vst.msk [vmem:[#allocation9 + $0x48] sm:$0xff] %vm2039, %v2010
        %2050 = vst.msk [vmem:[#allocation9 + $0x50] sm:$0xff] %vm2039, %v2012
        %2051 = vst.msk [vmem:[#allocation9 + $0x58] sm:$0xff] %vm2039, %v2014
        %2052 = vst.msk [vmem:[#allocation9 + $0x60] sm:$0xff] %vm2039, %v2016
        %2053 = vst.msk [vmem:[#allocation9 + $0x68] sm:$0xff] %vm2039, %v2018
        %2054 = vst.msk [vmem:[#allocation9 + $0x70] sm:$0xff] %vm2039, %v2020
        %2055 = vst.msk [vmem:[#allocation9 + $0x78] sm:$0xff] %vm2039, %v2022
        %v2056 = vld [vmem:[#allocation2 + $0x29] sm:$0xff]
        %v2057 = vld [vmem:[#allocation2 + $0x31] sm:$0xff]
        %v2058 = vld [vmem:[#allocation2 + $0x39] sm:$0xff]
        %v2059 = vld [vmem:[#allocation2 + $0x41] sm:$0xff]
        %v2060 = vld [vmem:[#allocation2 + $0x49] sm:$0xff]
        %v2061 = vld [vmem:[#allocation2 + $0x51] sm:$0xff]
        %v2062 = vld [vmem:[#allocation2 + $0x59] sm:$0xff]
        %v2063 = vld [vmem:[#allocation2 + $0x61] sm:$0xff]
        %v2064 = vld [vmem:[#allocation2 + $0x69] sm:$0xff]
        %v2065 = vld [vmem:[#allocation2 + $0x71] sm:$0xff]
        %v2066 = vld [vmem:[#allocation2 + $0x79] sm:$0xff]
        %v2067 = vld [vmem:[#allocation2 + $0x81] sm:$0xff]
        %v2068 = vld [vmem:[#allocation2 + $0x89] sm:$0xff]
        %v2069 = vld [vmem:[#allocation2 + $0x91] sm:$0xff]
        %v2070 = vld [vmem:[#allocation2 + $0x99] sm:$0xff]
        %v2071 = vld [vmem:[#allocation2 + $0xa1] sm:$0xff]
        %v2072 = vsel %vm1249, %v2056, 0.0
        %v2073 = vsel %vm1250, %v2057, 0.0
        %v2074 = vsel %vm1251, %v2058, 0.0
        %v2075 = vsel %vm1252, %v2059, 0.0
        %v2076 = vsel %vm1253, %v2060, 0.0
        %v2077 = vsel %vm1254, %v2061, 0.0
        %v2078 = vsel %vm1255, %v2062, 0.0
        %v2079 = vsel %vm1256, %v2063, 0.0
        %v2080 = vsel %vm1257, %v2064, 0.0
        %v2081 = vsel %vm1258, %v2065, 0.0
        %v2082 = vsel %vm1259, %v2066, 0.0
        %v2083 = vsel %vm1260, %v2067, 0.0
        %v2084 = vsel %vm1261, %v2068, 0.0
        %v2085 = vsel %vm1262, %v2069, 0.0
        %v2086 = vsel %vm1263, %v2070, 0.0
        %v2087 = vsel %vm1264, %v2071, 0.0
        %2104 = vrot.lane.b32.xlu0 %v2072, 8
        %v2105 = vpop.permute.xlu0 %2104
        %2106 = vrot.lane.b32.xlu0 %v2073, 8
        %v2107 = vpop.permute.xlu0 %2106
        %2108 = vrot.lane.b32.xlu0 %v2074, 8
        %v2109 = vpop.permute.xlu0 %2108
        %2110 = vrot.lane.b32.xlu0 %v2075, 8
        %v2111 = vpop.permute.xlu0 %2110
        %2112 = vrot.lane.b32.xlu0 %v2076, 8
        %v2113 = vpop.permute.xlu0 %2112
        %2114 = vrot.lane.b32.xlu0 %v2077, 8
        %v2115 = vpop.permute.xlu0 %2114
        %2116 = vrot.lane.b32.xlu0 %v2078, 8
        %v2117 = vpop.permute.xlu0 %2116
        %2118 = vrot.lane.b32.xlu0 %v2079, 8
        %v2119 = vpop.permute.xlu0 %2118
        %2120 = vrot.lane.b32.xlu0 %v2080, 8
        %v2121 = vpop.permute.xlu0 %2120
        %2122 = vrot.lane.b32.xlu0 %v2081, 8
        %v2123 = vpop.permute.xlu0 %2122
        %2124 = vrot.lane.b32.xlu0 %v2082, 8
        %v2125 = vpop.permute.xlu0 %2124
        %2126 = vrot.lane.b32.xlu0 %v2083, 8
        %v2127 = vpop.permute.xlu0 %2126
        %2128 = vrot.lane.b32.xlu0 %v2084, 8
        %v2129 = vpop.permute.xlu0 %2128
        %2130 = vrot.lane.b32.xlu0 %v2085, 8
        %v2131 = vpop.permute.xlu0 %2130
        %2132 = vrot.lane.b32.xlu0 %v2086, 8
        %v2133 = vpop.permute.xlu0 %2132
        %2134 = vrot.lane.b32.xlu0 %v2087, 8
        %v2135 = vpop.permute.xlu0 %2134
        %vm2152 = vcmask 72768
        %2153 = vst.msk [vmem:[#allocation9] sm:$0xff] %vm2152, %v2105
        %2154 = vst.msk [vmem:[#allocation9 + $0x8] sm:$0xff] %vm2152, %v2107
        %2155 = vst.msk [vmem:[#allocation9 + $0x10] sm:$0xff] %vm2152, %v2109
        %2156 = vst.msk [vmem:[#allocation9 + $0x18] sm:$0xff] %vm2152, %v2111
        %2157 = vst.msk [vmem:[#allocation9 + $0x20] sm:$0xff] %vm2152, %v2113
        %2158 = vst.msk [vmem:[#allocation9 + $0x28] sm:$0xff] %vm2152, %v2115
        %2159 = vst.msk [vmem:[#allocation9 + $0x30] sm:$0xff] %vm2152, %v2117
        %2160 = vst.msk [vmem:[#allocation9 + $0x38] sm:$0xff] %vm2152, %v2119
        %2161 = vst.msk [vmem:[#allocation9 + $0x40] sm:$0xff] %vm2152, %v2121
        %2162 = vst.msk [vmem:[#allocation9 + $0x48] sm:$0xff] %vm2152, %v2123
        %2163 = vst.msk [vmem:[#allocation9 + $0x50] sm:$0xff] %vm2152, %v2125
        %2164 = vst.msk [vmem:[#allocation9 + $0x58] sm:$0xff] %vm2152, %v2127
        %2165 = vst.msk [vmem:[#allocation9 + $0x60] sm:$0xff] %vm2152, %v2129
        %2166 = vst.msk [vmem:[#allocation9 + $0x68] sm:$0xff] %vm2152, %v2131
        %2167 = vst.msk [vmem:[#allocation9 + $0x70] sm:$0xff] %vm2152, %v2133
        %2168 = vst.msk [vmem:[#allocation9 + $0x78] sm:$0xff] %vm2152, %v2135
        %v2169 = vld [vmem:[#allocation9] sm:$0xff]
        %v2170 = vld [vmem:[#allocation9 + $0x8] sm:$0xff]
        %v2171 = vld [vmem:[#allocation9 + $0x10] sm:$0xff]
        %v2172 = vld [vmem:[#allocation9 + $0x18] sm:$0xff]
        %v2173 = vld [vmem:[#allocation9 + $0x20] sm:$0xff]
        %v2174 = vld [vmem:[#allocation9 + $0x28] sm:$0xff]
        %v2175 = vld [vmem:[#allocation9 + $0x30] sm:$0xff]
        %v2176 = vld [vmem:[#allocation9 + $0x38] sm:$0xff]
        %v2177 = vld [vmem:[#allocation9 + $0x40] sm:$0xff]
        %v2178 = vld [vmem:[#allocation9 + $0x48] sm:$0xff]
        %v2179 = vld [vmem:[#allocation9 + $0x50] sm:$0xff]
        %v2180 = vld [vmem:[#allocation9 + $0x58] sm:$0xff]
        %v2181 = vld [vmem:[#allocation9 + $0x60] sm:$0xff]
        %v2182 = vld [vmem:[#allocation9 + $0x68] sm:$0xff]
        %v2183 = vld [vmem:[#allocation9 + $0x70] sm:$0xff]
        %v2184 = vld [vmem:[#allocation9 + $0x78] sm:$0xff]
        %v2185 = vld [vmem:[%s3] sm:$0xff]
        %v2186 = vld [vmem:[%s3 + $0x8] sm:$0x1]
        %v2187 = vld [vmem:[%s5] sm:$0x1]
        %v2189 = vlaneseq
        %v2190 = vshrl.u32 %v2189, 7
        %v2191 = vsub.s32 0, %v2190
        %v2192 = vrot.slane %v2187, %v2191
        %vm2194 = vcmask 72704
        %v2196 = vsel %vm2194, %v2169, 0
        %v2199 = vsel %vm2194, %v2170, 0
        %v2202 = vsel %vm2194, %v2171, 0
        %v2205 = vsel %vm2194, %v2172, 0
        %v2208 = vsel %vm2194, %v2173, 0
        %v2211 = vsel %vm2194, %v2174, 0
        %v2214 = vsel %vm2194, %v2175, 0
        %v2217 = vsel %vm2194, %v2176, 0
        %v2220 = vsel %vm2194, %v2177, 0
        %v2223 = vsel %vm2194, %v2178, 0
        %v2226 = vsel %vm2194, %v2179, 0
        %v2229 = vsel %vm2194, %v2180, 0
        %v2232 = vsel %vm2194, %v2181, 0
        %v2235 = vsel %vm2194, %v2182, 0
        %v2238 = vsel %vm2194, %v2183, 0
        %v2241 = vsel %vm2194, %v2184, 0
        %vm2243 = vcmask 1040384
        %v2245 = vsel %vm2243, %v2186, 0
        %2247 = vmatprep.subr.mxu0 0.0
        %2248 = vmatpush1.msra.mxu0 %v2185
        %2249 = vmatprep.subr.mxu0 0.0
        %2250 = vmatpush1.msra.mxu0 %v2245
        %2251 = vmatprep.subr.mxu0 0.0
        %2252 = vmatpush1.msra.mxu0 0.0
        %2253 = vmatprep.subr.mxu0 0.0
        %2254 = vmatpush1.msra.mxu0 0.0
        %2255 = vmatprep.subr.mxu0 0.0
        %2256 = vmatpush1.msra.mxu0 0.0
        %2257 = vmatprep.subr.mxu0 0.0
        %2258 = vmatpush1.msra.mxu0 0.0
        %2259 = vmatprep.subr.mxu0 0.0
        %2260 = vmatpush1.msra.mxu0 0.0
        %2261 = vmatprep.subr.mxu0 0.0
        %2262 = vmatpush1.msra.mxu0 0.0
        %2263 = vmatprep.subr.mxu0 0.0
        %2264 = vmatpush1.msra.mxu0 0.0
        %2265 = vmatprep.subr.mxu0 0.0
        %2266 = vmatpush1.msra.mxu0 0.0
        %2267 = vmatprep.subr.mxu0 0.0
        %2268 = vmatpush1.msra.mxu0 0.0
        %2269 = vmatprep.subr.mxu0 0.0
        %2270 = vmatpush1.msra.mxu0 0.0
        %2271 = vmatprep.subr.mxu0 0.0
        %2272 = vmatpush1.msra.mxu0 0.0
        %2273 = vmatprep.subr.mxu0 0.0
        %2274 = vmatpush1.msra.mxu0 0.0
        %2275 = vmatprep.subr.mxu0 0.0
        %2276 = vmatpush1.msra.mxu0 0.0
        %2277 = vmatprep.subr.mxu0 0.0
        %2278 = vmatpush1.msra.mxu0 0.0
        %2279 = vmatprep.subr.mxu0 0.0
        %2280 = vmatpush1.msra.mxu0 0.0
        %2281 = vmatprep.subr.mxu0 0.0
        %2282 = vmatpush1.msra.mxu0 0.0
        %2283 = vmatprep.subr.mxu0 0.0
        %2284 = vmatpush1.msra.mxu0 0.0
        %2285 = vmatprep.subr.mxu0 0.0
        %2286 = vmatpush1.msra.mxu0 0.0
        %2287 = vmatprep.subr.mxu0 0.0
        %2288 = vmatpush1.msra.mxu0 0.0
        %2289 = vmatprep.subr.mxu0 0.0
        %2290 = vmatpush1.msra.mxu0 0.0
        %2291 = vmatprep.subr.mxu0 0.0
        %2292 = vmatpush1.msra.mxu0 0.0
        %2293 = vmatprep.subr.mxu0 0.0
        %2294 = vmatpush1.msra.mxu0 0.0
        %2295 = vmatprep.subr.mxu0 0.0
        %2296 = vmatpush1.msra.mxu0 0.0
        %2297 = vmatprep.subr.mxu0 0.0
        %2298 = vmatpush1.msra.mxu0 0.0
        %2299 = vmatprep.subr.mxu0 0.0
        %2300 = vmatpush1.msra.mxu0 0.0
        %2301 = vmatprep.subr.mxu0 0.0
        %2302 = vmatpush1.msra.mxu0 0.0
        %2303 = vmatprep.subr.mxu0 0.0
        %2304 = vmatpush1.msra.mxu0 0.0
        %2305 = vmatprep.subr.mxu0 0.0
        %2306 = vmatpush1.msra.mxu0 0.0
        %2307 = vmatprep.subr.mxu0 0.0
        %2308 = vmatpush1.msra.mxu0 0.0
        %2309 = vmatprep.subr.mxu0 0.0
        %2310 = vmatpush1.msra.mxu0 0.0
        %2311 = vmatprep.mubr.f32.mxu0 0.0
        %2312 = vmatmul.mubr.f32.gmra.mrb[0].mxu0 %v2196
        %v2313 = vpop.f32.mrb[0].mxu0
        %v2314 = vadd.f32 %v2192, %v2313
        %v2315 = vpop.f32.mrb[0].mxu0
        %2316 = vmatprep.mubr.f32.mxu0 0.0
        %2317 = vmatmul.mubr.f32.gmra.mrb[0].mxu0 %v2199
        %v2318 = vpop.f32.mrb[0].mxu0
        %v2319 = vadd.f32 %v2192, %v2318
        %v2320 = vpop.f32.mrb[0].mxu0
        %2321 = vmatprep.mubr.f32.mxu0 0.0
        %2322 = vmatmul.mubr.f32.gmra.mrb[0].mxu0 %v2202
        %v2323 = vpop.f32.mrb[0].mxu0
        %v2324 = vadd.f32 %v2192, %v2323
        %v2325 = vpop.f32.mrb[0].mxu0
        %2326 = vmatprep.mubr.f32.mxu0 0.0
        %2327 = vmatmul.mubr.f32.gmra.mrb[0].mxu0 %v2205
        %v2328 = vpop.f32.mrb[0].mxu0
        %v2329 = vadd.f32 %v2192, %v2328
        %v2330 = vpop.f32.mrb[0].mxu0
        %2331 = vmatprep.mubr.f32.mxu0 0.0
        %2332 = vmatmul.mubr.f32.gmra.mrb[0].mxu0 %v2208
        %v2333 = vpop.f32.mrb[0].mxu0
        %v2334 = vadd.f32 %v2192, %v2333
        %v2335 = vpop.f32.mrb[0].mxu0
        %2336 = vmatprep.mubr.f32.mxu0 0.0
        %2337 = vmatmul.mubr.f32.gmra.mrb[0].mxu0 %v2211
        %v2338 = vpop.f32.mrb[0].mxu0
        %v2339 = vadd.f32 %v2192, %v2338
        %v2340 = vpop.f32.mrb[0].mxu0
        %2341 = vmatprep.mubr.f32.mxu0 0.0
        %2342 = vmatmul.mubr.f32.gmra.mrb[0].mxu0 %v2214
        %v2343 = vpop.f32.mrb[0].mxu0
        %v2344 = vadd.f32 %v2192, %v2343
        %v2345 = vpop.f32.mrb[0].mxu0
        %2346 = vmatprep.mubr.f32.mxu0 0.0
        %2347 = vmatmul.mubr.f32.gmra.mrb[0].mxu0 %v2217
        %v2348 = vpop.f32.mrb[0].mxu0
        %v2349 = vadd.f32 %v2192, %v2348
        %v2350 = vpop.f32.mrb[0].mxu0
        %2351 = vmatprep.mubr.f32.mxu0 0.0
        %2352 = vmatmul.mubr.f32.gmra.mrb[0].mxu0 %v2220
        %v2353 = vpop.f32.mrb[0].mxu0
        %v2354 = vadd.f32 %v2192, %v2353
        %v2355 = vpop.f32.mrb[0].mxu0
        %2356 = vmatprep.mubr.f32.mxu0 0.0
        %2357 = vmatmul.mubr.f32.gmra.mrb[0].mxu0 %v2223
        %v2358 = vpop.f32.mrb[0].mxu0
        %v2359 = vadd.f32 %v2192, %v2358
        %v2360 = vpop.f32.mrb[0].mxu0
        %2361 = vmatprep.mubr.f32.mxu0 0.0
        %2362 = vmatmul.mubr.f32.gmra.mrb[0].mxu0 %v2226
        %v2363 = vpop.f32.mrb[0].mxu0
        %v2364 = vadd.f32 %v2192, %v2363
        %v2365 = vpop.f32.mrb[0].mxu0
        %2366 = vmatprep.mubr.f32.mxu0 0.0
        %2367 = vmatmul.mubr.f32.gmra.mrb[0].mxu0 %v2229
        %v2368 = vpop.f32.mrb[0].mxu0
        %v2369 = vadd.f32 %v2192, %v2368
        %v2370 = vpop.f32.mrb[0].mxu0
        %2371 = vmatprep.mubr.f32.mxu0 0.0
        %2372 = vmatmul.mubr.f32.gmra.mrb[0].mxu0 %v2232
        %v2373 = vpop.f32.mrb[0].mxu0
        %v2374 = vadd.f32 %v2192, %v2373
        %v2375 = vpop.f32.mrb[0].mxu0
        %2376 = vmatprep.mubr.f32.mxu0 0.0
        %2377 = vmatmul.mubr.f32.gmra.mrb[0].mxu0 %v2235
        %v2378 = vpop.f32.mrb[0].mxu0
        %v2379 = vadd.f32 %v2192, %v2378
        %v2380 = vpop.f32.mrb[0].mxu0
        %2381 = vmatprep.mubr.f32.mxu0 0.0
        %2382 = vmatmul.mubr.f32.gmra.mrb[0].mxu0 %v2238
        %v2383 = vpop.f32.mrb[0].mxu0
        %v2384 = vadd.f32 %v2192, %v2383
        %v2385 = vpop.f32.mrb[0].mxu0
        %2386 = vmatprep.mubr.f32.mxu0 0.0
        %2387 = vmatmul.mubr.f32.gmra.mrb[0].mxu0 %v2241
        %v2388 = vpop.f32.mrb[0].mxu0
        %v2389 = vadd.f32 %v2192, %v2388
        %v2390 = vpop.f32.mrb[0].mxu0
        %2391 = vdwg.mxu0
        %v2392 = vmax.f32 %v2314, 0.0
        %v2393 = vmax.f32 %v2319, 0.0
        %v2394 = vmax.f32 %v2324, 0.0
        %v2395 = vmax.f32 %v2329, 0.0
        %v2396 = vmax.f32 %v2334, 0.0
        %v2397 = vmax.f32 %v2339, 0.0
        %v2398 = vmax.f32 %v2344, 0.0
        %v2399 = vmax.f32 %v2349, 0.0
        %v2400 = vmax.f32 %v2354, 0.0
        %v2401 = vmax.f32 %v2359, 0.0
        %v2402 = vmax.f32 %v2364, 0.0
        %v2403 = vmax.f32 %v2369, 0.0
        %v2404 = vmax.f32 %v2374, 0.0
        %v2405 = vmax.f32 %v2379, 0.0
        %v2406 = vmax.f32 %v2384, 0.0
        %v2407 = vmax.f32 %v2389, 0.0
        %v2408 = vld [vmem:[%s7] sm:$0x1]
        %v2410 = vlaneseq
        %v2411 = vshrl.u32 %v2410, 7
        %v2412 = vsub.s32 0, %v2411
        %v2413 = vrot.slane %v2408, %v2412
        %v2415 = vmul.f32 %v2392, %v2413
        %v2416 = vmul.f32 %v2393, %v2413
        %v2417 = vmul.f32 %v2394, %v2413
        %v2418 = vmul.f32 %v2395, %v2413
        %v2419 = vmul.f32 %v2396, %v2413
        %v2420 = vmul.f32 %v2397, %v2413
        %v2421 = vmul.f32 %v2398, %v2413
        %v2422 = vmul.f32 %v2399, %v2413
        %v2423 = vmul.f32 %v2400, %v2413
        %v2424 = vmul.f32 %v2401, %v2413
        %v2425 = vmul.f32 %v2402, %v2413
        %v2426 = vmul.f32 %v2403, %v2413
        %v2427 = vmul.f32 %v2404, %v2413
        %v2428 = vmul.f32 %v2405, %v2413
        %v2429 = vmul.f32 %v2406, %v2413
        %v2430 = vmul.f32 %v2407, %v2413
        %v2431 = vld [vmem:[%s9] sm:$0x1]
        %v2433 = vlaneseq
        %v2434 = vshrl.u32 %v2433, 7
        %v2435 = vsub.s32 0, %v2434
        %v2436 = vrot.slane %v2431, %v2435
        %v2438 = vadd.f32 %v2415, %v2436
        %v2439 = vadd.f32 %v2416, %v2436
        %v2440 = vadd.f32 %v2417, %v2436
        %v2441 = vadd.f32 %v2418, %v2436
        %v2442 = vadd.f32 %v2419, %v2436
        %v2443 = vadd.f32 %v2420, %v2436
        %v2444 = vadd.f32 %v2421, %v2436
        %v2445 = vadd.f32 %v2422, %v2436
        %v2446 = vadd.f32 %v2423, %v2436
        %v2447 = vadd.f32 %v2424, %v2436
        %v2448 = vadd.f32 %v2425, %v2436
        %v2449 = vadd.f32 %v2426, %v2436
        %v2450 = vadd.f32 %v2427, %v2436
        %v2451 = vadd.f32 %v2428, %v2436
        %v2452 = vadd.f32 %v2429, %v2436
        %v2453 = vadd.f32 %v2430, %v2436
        %2454 = vst.msk [vmem:[#allocation16] sm:$0xff] %vm1195, %v2438
        %2455 = vst.msk [vmem:[#allocation16 + $0x8] sm:$0xff] %vm1195, %v2439
        %2456 = vst.msk [vmem:[#allocation16 + $0x10] sm:$0xff] %vm1195, %v2440
        %2457 = vst.msk [vmem:[#allocation16 + $0x18] sm:$0xff] %vm1195, %v2441
        %2458 = vst.msk [vmem:[#allocation16 + $0x20] sm:$0xff] %vm1195, %v2442
        %2459 = vst.msk [vmem:[#allocation16 + $0x28] sm:$0xff] %vm1195, %v2443
        %2460 = vst.msk [vmem:[#allocation16 + $0x30] sm:$0xff] %vm1195, %v2444
        %2461 = vst.msk [vmem:[#allocation16 + $0x38] sm:$0xff] %vm1195, %v2445
        %2462 = vst.msk [vmem:[#allocation16 + $0x40] sm:$0xff] %vm1195, %v2446
        %2463 = vst.msk [vmem:[#allocation16 + $0x48] sm:$0xff] %vm1195, %v2447
        %2464 = vst.msk [vmem:[#allocation16 + $0x50] sm:$0xff] %vm1195, %v2448
        %2465 = vst.msk [vmem:[#allocation16 + $0x58] sm:$0xff] %vm1195, %v2449
        %2466 = vst.msk [vmem:[#allocation16 + $0x60] sm:$0xff] %vm1195, %v2450
        %2467 = vst.msk [vmem:[#allocation16 + $0x68] sm:$0xff] %vm1195, %v2451
        %2468 = vst.msk [vmem:[#allocation16 + $0x70] sm:$0xff] %vm1195, %v2452
        %2469 = vst.msk [vmem:[#allocation16 + $0x78] sm:$0xff] %vm1195, %v2453
        %v2470 = vadd.s32 %v1201, 128
        %v2471 = vadd.s32 %v1202, 128
        %v2472 = vadd.s32 %v1203, 128
        %v2473 = vadd.s32 %v1204, 128
        %v2474 = vadd.s32 %v1205, 128
        %v2475 = vadd.s32 %v1206, 128
        %v2476 = vadd.s32 %v1207, 128
        %v2477 = vadd.s32 %v1208, 128
        %v2478 = vadd.s32 %v1209, 128
        %v2479 = vadd.s32 %v1210, 128
        %v2480 = vadd.s32 %v1211, 128
        %v2481 = vadd.s32 %v1212, 128
        %v2482 = vadd.s32 %v1213, 128
        %v2483 = vadd.s32 %v1214, 128
        %v2484 = vadd.s32 %v1215, 128
        %v2485 = vadd.s32 %v1216, 128
        %v2486 = vand.u32 %v2470, 15
        %v2487 = vand.u32 %v2471, 15
        %v2488 = vand.u32 %v2472, 15
        %v2489 = vand.u32 %v2473, 15
        %v2490 = vand.u32 %v2474, 15
        %v2491 = vand.u32 %v2475, 15
        %v2492 = vand.u32 %v2476, 15
        %v2493 = vand.u32 %v2477, 15
        %v2494 = vand.u32 %v2478, 15
        %v2495 = vand.u32 %v2479, 15
        %v2496 = vand.u32 %v2480, 15
        %v2497 = vand.u32 %v2481, 15
        %v2498 = vand.u32 %v2482, 15
        %v2499 = vand.u32 %v2483, 15
        %v2500 = vand.u32 %v2484, 15
        %v2501 = vand.u32 %v2485, 15
        %vm2502 = vcmp.gt.s32.totalorder %v2486, 0
        %vm2503 = vcmp.gt.s32.totalorder %v2487, 0
        %vm2504 = vcmp.gt.s32.totalorder %v2488, 0
        %vm2505 = vcmp.gt.s32.totalorder %v2489, 0
        %vm2506 = vcmp.gt.s32.totalorder %v2490, 0
        %vm2507 = vcmp.gt.s32.totalorder %v2491, 0
        %vm2508 = vcmp.gt.s32.totalorder %v2492, 0
        %vm2509 = vcmp.gt.s32.totalorder %v2493, 0
        %vm2510 = vcmp.gt.s32.totalorder %v2494, 0
        %vm2511 = vcmp.gt.s32.totalorder %v2495, 0
        %vm2512 = vcmp.gt.s32.totalorder %v2496, 0
        %vm2513 = vcmp.gt.s32.totalorder %v2497, 0
        %vm2514 = vcmp.gt.s32.totalorder %v2498, 0
        %vm2515 = vcmp.gt.s32.totalorder %v2499, 0
        %vm2516 = vcmp.gt.s32.totalorder %v2500, 0
        %vm2517 = vcmp.gt.s32.totalorder %v2501, 0
        %vm2518 = vcmp.lt.s32.totalorder %v2486, 15
        %vm2519 = vcmp.lt.s32.totalorder %v2487, 15
        %vm2520 = vcmp.lt.s32.totalorder %v2488, 15
        %vm2521 = vcmp.lt.s32.totalorder %v2489, 15
        %vm2522 = vcmp.lt.s32.totalorder %v2490, 15
        %vm2523 = vcmp.lt.s32.totalorder %v2491, 15
        %vm2524 = vcmp.lt.s32.totalorder %v2492, 15
        %vm2525 = vcmp.lt.s32.totalorder %v2493, 15
        %vm2526 = vcmp.lt.s32.totalorder %v2494, 15
        %vm2527 = vcmp.lt.s32.totalorder %v2495, 15
        %vm2528 = vcmp.lt.s32.totalorder %v2496, 15
        %vm2529 = vcmp.lt.s32.totalorder %v2497, 15
        %vm2530 = vcmp.lt.s32.totalorder %v2498, 15
        %vm2531 = vcmp.lt.s32.totalorder %v2499, 15
        %vm2532 = vcmp.lt.s32.totalorder %v2500, 15
        %vm2533 = vcmp.lt.s32.totalorder %v2501, 15
        %v2534 = vld [vmem:[#allocation2 + $0x87] sm:$0xff]
        %v2535 = vld [vmem:[#allocation2 + $0x8f] sm:$0xff]
        %v2536 = vld [vmem:[#allocation2 + $0x97] sm:$0xff]
        %v2537 = vld [vmem:[#allocation2 + $0x9f] sm:$0xff]
        %v2538 = vld [vmem:[#allocation2 + $0xa7] sm:$0xff]
        %v2539 = vld [vmem:[#allocation2 + $0xaf] sm:$0xff]
        %v2540 = vld [vmem:[#allocation2 + $0xb7] sm:$0xff]
        %v2541 = vld [vmem:[#allocation2 + $0xbf] sm:$0xff]
        %v2542 = vld [vmem:[#allocation2 + $0xc7] sm:$0xff]
        %v2543 = vld [vmem:[#allocation2 + $0xcf] sm:$0xff]
        %v2544 = vld [vmem:[#allocation2 + $0xd7] sm:$0xff]
        %v2545 = vld [vmem:[#allocation2 + $0xdf] sm:$0xff]
        %v2546 = vld [vmem:[#allocation2 + $0xe7] sm:$0xff]
        %v2547 = vld [vmem:[#allocation2 + $0xef] sm:$0xff]
        %v2548 = vld [vmem:[#allocation2 + $0xf7] sm:$0xff]
        %v2549 = vld [vmem:[#allocation2 + $0xff] sm:$0xff]
        %v2550 = vsel %vm2502, %v2534, 0.0
        %v2551 = vsel %vm2503, %v2535, 0.0
        %v2552 = vsel %vm2504, %v2536, 0.0
        %v2553 = vsel %vm2505, %v2537, 0.0
        %v2554 = vsel %vm2506, %v2538, 0.0
        %v2555 = vsel %vm2507, %v2539, 0.0
        %v2556 = vsel %vm2508, %v2540, 0.0
        %v2557 = vsel %vm2509, %v2541, 0.0
        %v2558 = vsel %vm2510, %v2542, 0.0
        %v2559 = vsel %vm2511, %v2543, 0.0
        %v2560 = vsel %vm2512, %v2544, 0.0
        %v2561 = vsel %vm2513, %v2545, 0.0
        %v2562 = vsel %vm2514, %v2546, 0.0
        %v2563 = vsel %vm2515, %v2547, 0.0
        %v2564 = vsel %vm2516, %v2548, 0.0
        %v2565 = vsel %vm2517, %v2549, 0.0
        %2566 = vst.msk [vmem:[#allocation9] sm:$0xff] %vm1124, %v2550
        %2567 = vst.msk [vmem:[#allocation9 + $0x8] sm:$0xff] %vm1124, %v2551
        %2568 = vst.msk [vmem:[#allocation9 + $0x10] sm:$0xff] %vm1124, %v2552
        %2569 = vst.msk [vmem:[#allocation9 + $0x18] sm:$0xff] %vm1124, %v2553
        %2570 = vst.msk [vmem:[#allocation9 + $0x20] sm:$0xff] %vm1124, %v2554
        %2571 = vst.msk [vmem:[#allocation9 + $0x28] sm:$0xff] %vm1124, %v2555
        %2572 = vst.msk [vmem:[#allocation9 + $0x30] sm:$0xff] %vm1124, %v2556
        %2573 = vst.msk [vmem:[#allocation9 + $0x38] sm:$0xff] %vm1124, %v2557
        %2574 = vst.msk [vmem:[#allocation9 + $0x40] sm:$0xff] %vm1124, %v2558
        %2575 = vst.msk [vmem:[#allocation9 + $0x48] sm:$0xff] %vm1124, %v2559
        %2576 = vst.msk [vmem:[#allocation9 + $0x50] sm:$0xff] %vm1124, %v2560
        %2577 = vst.msk [vmem:[#allocation9 + $0x58] sm:$0xff] %vm1124, %v2561
        %2578 = vst.msk [vmem:[#allocation9 + $0x60] sm:$0xff] %vm1124, %v2562
        %2579 = vst.msk [vmem:[#allocation9 + $0x68] sm:$0xff] %vm1124, %v2563
        %2580 = vst.msk [vmem:[#allocation9 + $0x70] sm:$0xff] %vm1124, %v2564
        %2581 = vst.msk [vmem:[#allocation9 + $0x78] sm:$0xff] %vm1124, %v2565
        %v2582 = vld [vmem:[#allocation2 + $0x88] sm:$0xff]
        %v2583 = vld [vmem:[#allocation2 + $0x90] sm:$0xff]
        %v2584 = vld [vmem:[#allocation2 + $0x98] sm:$0xff]
        %v2585 = vld [vmem:[#allocation2 + $0xa0] sm:$0xff]
        %v2586 = vld [vmem:[#allocation2 + $0xa8] sm:$0xff]
        %v2587 = vld [vmem:[#allocation2 + $0xb0] sm:$0xff]
        %v2588 = vld [vmem:[#allocation2 + $0xb8] sm:$0xff]
        %v2589 = vld [vmem:[#allocation2 + $0xc0] sm:$0xff]
        %v2590 = vld [vmem:[#allocation2 + $0xc8] sm:$0xff]
        %v2591 = vld [vmem:[#allocation2 + $0xd0] sm:$0xff]
        %v2592 = vld [vmem:[#allocation2 + $0xd8] sm:$0xff]
        %v2593 = vld [vmem:[#allocation2 + $0xe0] sm:$0xff]
        %v2594 = vld [vmem:[#allocation2 + $0xe8] sm:$0xff]
        %v2595 = vld [vmem:[#allocation2 + $0xf0] sm:$0xff]
        %v2596 = vld [vmem:[#allocation2 + $0xf8] sm:$0xff]
        %v2597 = vld [vmem:[#allocation2 + $0x100] sm:$0xff]
        %2614 = vrot.lane.b32.xlu0 %v2582, 1
        %v2615 = vpop.permute.xlu0 %2614
        %2616 = vrot.lane.b32.xlu0 %v2583, 1
        %v2617 = vpop.permute.xlu0 %2616
        %2618 = vrot.lane.b32.xlu0 %v2584, 1
        %v2619 = vpop.permute.xlu0 %2618
        %2620 = vrot.lane.b32.xlu0 %v2585, 1
        %v2621 = vpop.permute.xlu0 %2620
        %2622 = vrot.lane.b32.xlu0 %v2586, 1
        %v2623 = vpop.permute.xlu0 %2622
        %2624 = vrot.lane.b32.xlu0 %v2587, 1
        %v2625 = vpop.permute.xlu0 %2624
        %2626 = vrot.lane.b32.xlu0 %v2588, 1
        %v2627 = vpop.permute.xlu0 %2626
        %2628 = vrot.lane.b32.xlu0 %v2589, 1
        %v2629 = vpop.permute.xlu0 %2628
        %2630 = vrot.lane.b32.xlu0 %v2590, 1
        %v2631 = vpop.permute.xlu0 %2630
        %2632 = vrot.lane.b32.xlu0 %v2591, 1
        %v2633 = vpop.permute.xlu0 %2632
        %2634 = vrot.lane.b32.xlu0 %v2592, 1
        %v2635 = vpop.permute.xlu0 %2634
        %2636 = vrot.lane.b32.xlu0 %v2593, 1
        %v2637 = vpop.permute.xlu0 %2636
        %2638 = vrot.lane.b32.xlu0 %v2594, 1
        %v2639 = vpop.permute.xlu0 %2638
        %2640 = vrot.lane.b32.xlu0 %v2595, 1
        %v2641 = vpop.permute.xlu0 %2640
        %2642 = vrot.lane.b32.xlu0 %v2596, 1
        %v2643 = vpop.permute.xlu0 %2642
        %2644 = vrot.lane.b32.xlu0 %v2597, 1
        %v2645 = vpop.permute.xlu0 %2644
        %2662 = vst.msk [vmem:[#allocation9] sm:$0xff] %vm1393, %v2615
        %2663 = vst.msk [vmem:[#allocation9 + $0x8] sm:$0xff] %vm1393, %v2617
        %2664 = vst.msk [vmem:[#allocation9 + $0x10] sm:$0xff] %vm1393, %v2619
        %2665 = vst.msk [vmem:[#allocation9 + $0x18] sm:$0xff] %vm1393, %v2621
        %2666 = vst.msk [vmem:[#allocation9 + $0x20] sm:$0xff] %vm1393, %v2623
        %2667 = vst.msk [vmem:[#allocation9 + $0x28] sm:$0xff] %vm1393, %v2625
        %2668 = vst.msk [vmem:[#allocation9 + $0x30] sm:$0xff] %vm1393, %v2627
        %2669 = vst.msk [vmem:[#allocation9 + $0x38] sm:$0xff] %vm1393, %v2629
        %2670 = vst.msk [vmem:[#allocation9 + $0x40] sm:$0xff] %vm1393, %v2631
        %2671 = vst.msk [vmem:[#allocation9 + $0x48] sm:$0xff] %vm1393, %v2633
        %2672 = vst.msk [vmem:[#allocation9 + $0x50] sm:$0xff] %vm1393, %v2635
        %2673 = vst.msk [vmem:[#allocation9 + $0x58] sm:$0xff] %vm1393, %v2637
        %2674 = vst.msk [vmem:[#allocation9 + $0x60] sm:$0xff] %vm1393, %v2639
        %2675 = vst.msk [vmem:[#allocation9 + $0x68] sm:$0xff] %vm1393, %v2641
        %2676 = vst.msk [vmem:[#allocation9 + $0x70] sm:$0xff] %vm1393, %v2643
        %2677 = vst.msk [vmem:[#allocation9 + $0x78] sm:$0xff] %vm1393, %v2645
        %v2678 = vld [vmem:[#allocation2 + $0x89] sm:$0xff]
        %v2679 = vld [vmem:[#allocation2 + $0x91] sm:$0xff]
        %v2680 = vld [vmem:[#allocation2 + $0x99] sm:$0xff]
        %v2681 = vld [vmem:[#allocation2 + $0xa1] sm:$0xff]
        %v2682 = vld [vmem:[#allocation2 + $0xa9] sm:$0xff]
        %v2683 = vld [vmem:[#allocation2 + $0xb1] sm:$0xff]
        %v2684 = vld [vmem:[#allocation2 + $0xb9] sm:$0xff]
        %v2685 = vld [vmem:[#allocation2 + $0xc1] sm:$0xff]
        %v2686 = vld [vmem:[#allocation2 + $0xc9] sm:$0xff]
        %v2687 = vld [vmem:[#allocation2 + $0xd1] sm:$0xff]
        %v2688 = vld [vmem:[#allocation2 + $0xd9] sm:$0xff]
        %v2689 = vld [vmem:[#allocation2 + $0xe1] sm:$0xff]
        %v2690 = vld [vmem:[#allocation2 + $0xe9] sm:$0xff]
        %v2691 = vld [vmem:[#allocation2 + $0xf1] sm:$0xff]
        %v2692 = vld [vmem:[#allocation2 + $0xf9] sm:$0xff]
        %v2693 = vld [vmem:[#allocation2 + $0x101] sm:$0xff]
        %v2694 = vsel %vm2518, %v2678, 0.0
        %v2695 = vsel %vm2519, %v2679, 0.0
        %v2696 = vsel %vm2520, %v2680, 0.0
        %v2697 = vsel %vm2521, %v2681, 0.0
        %v2698 = vsel %vm2522, %v2682, 0.0
        %v2699 = vsel %vm2523, %v2683, 0.0
        %v2700 = vsel %vm2524, %v2684, 0.0
        %v2701 = vsel %vm2525, %v2685, 0.0
        %v2702 = vsel %vm2526, %v2686, 0.0
        %v2703 = vsel %vm2527, %v2687, 0.0
        %v2704 = vsel %vm2528, %v2688, 0.0
        %v2705 = vsel %vm2529, %v2689, 0.0
        %v2706 = vsel %vm2530, %v2690, 0.0
        %v2707 = vsel %vm2531, %v2691, 0.0
        %v2708 = vsel %vm2532, %v2692, 0.0
        %v2709 = vsel %vm2533, %v2693, 0.0
        %2726 = vrot.lane.b32.xlu0 %v2694, 2
        %v2727 = vpop.permute.xlu0 %2726
        %2728 = vrot.lane.b32.xlu0 %v2695, 2
        %v2729 = vpop.permute.xlu0 %2728
        %2730 = vrot.lane.b32.xlu0 %v2696, 2
        %v2731 = vpop.permute.xlu0 %2730
        %2732 = vrot.lane.b32.xlu0 %v2697, 2
        %v2733 = vpop.permute.xlu0 %2732
        %2734 = vrot.lane.b32.xlu0 %v2698, 2
        %v2735 = vpop.permute.xlu0 %2734
        %2736 = vrot.lane.b32.xlu0 %v2699, 2
        %v2737 = vpop.permute.xlu0 %2736
        %2738 = vrot.lane.b32.xlu0 %v2700, 2
        %v2739 = vpop.permute.xlu0 %2738
        %2740 = vrot.lane.b32.xlu0 %v2701, 2
        %v2741 = vpop.permute.xlu0 %2740
        %2742 = vrot.lane.b32.xlu0 %v2702, 2
        %v2743 = vpop.permute.xlu0 %2742
        %2744 = vrot.lane.b32.xlu0 %v2703, 2
        %v2745 = vpop.permute.xlu0 %2744
        %2746 = vrot.lane.b32.xlu0 %v2704, 2
        %v2747 = vpop.permute.xlu0 %2746
        %2748 = vrot.lane.b32.xlu0 %v2705, 2
        %v2749 = vpop.permute.xlu0 %2748
        %2750 = vrot.lane.b32.xlu0 %v2706, 2
        %v2751 = vpop.permute.xlu0 %2750
        %2752 = vrot.lane.b32.xlu0 %v2707, 2
        %v2753 = vpop.permute.xlu0 %2752
        %2754 = vrot.lane.b32.xlu0 %v2708, 2
        %v2755 = vpop.permute.xlu0 %2754
        %2756 = vrot.lane.b32.xlu0 %v2709, 2
        %v2757 = vpop.permute.xlu0 %2756
        %2774 = vst.msk [vmem:[#allocation9] sm:$0xff] %vm1506, %v2727
        %2775 = vst.msk [vmem:[#allocation9 + $0x8] sm:$0xff] %vm1506, %v2729
        %2776 = vst.msk [vmem:[#allocation9 + $0x10] sm:$0xff] %vm1506, %v2731
        %2777 = vst.msk [vmem:[#allocation9 + $0x18] sm:$0xff] %vm1506, %v2733
        %2778 = vst.msk [vmem:[#allocation9 + $0x20] sm:$0xff] %vm1506, %v2735
        %2779 = vst.msk [vmem:[#allocation9 + $0x28] sm:$0xff] %vm1506, %v2737
        %2780 = vst.msk [vmem:[#allocation9 + $0x30] sm:$0xff] %vm1506, %v2739
        %2781 = vst.msk [vmem:[#allocation9 + $0x38] sm:$0xff] %vm1506, %v2741
        %2782 = vst.msk [vmem:[#allocation9 + $0x40] sm:$0xff] %vm1506, %v2743
        %2783 = vst.msk [vmem:[#allocation9 + $0x48] sm:$0xff] %vm1506, %v2745
        %2784 = vst.msk [vmem:[#allocation9 + $0x50] sm:$0xff] %vm1506, %v2747
        %2785 = vst.msk [vmem:[#allocation9 + $0x58] sm:$0xff] %vm1506, %v2749
        %2786 = vst.msk [vmem:[#allocation9 + $0x60] sm:$0xff] %vm1506, %v2751
        %2787 = vst.msk [vmem:[#allocation9 + $0x68] sm:$0xff] %vm1506, %v2753
        %2788 = vst.msk [vmem:[#allocation9 + $0x70] sm:$0xff] %vm1506, %v2755
        %2789 = vst.msk [vmem:[#allocation9 + $0x78] sm:$0xff] %vm1506, %v2757
        %v2790 = vld [vmem:[#allocation2 + $0x97] sm:$0xff]
        %v2791 = vld [vmem:[#allocation2 + $0x9f] sm:$0xff]
        %v2792 = vld [vmem:[#allocation2 + $0xa7] sm:$0xff]
        %v2793 = vld [vmem:[#allocation2 + $0xaf] sm:$0xff]
        %v2794 = vld [vmem:[#allocation2 + $0xb7] sm:$0xff]
        %v2795 = vld [vmem:[#allocation2 + $0xbf] sm:$0xff]
        %v2796 = vld [vmem:[#allocation2 + $0xc7] sm:$0xff]
        %v2797 = vld [vmem:[#allocation2 + $0xcf] sm:$0xff]
        %v2798 = vld [vmem:[#allocation2 + $0xd7] sm:$0xff]
        %v2799 = vld [vmem:[#allocation2 + $0xdf] sm:$0xff]
        %v2800 = vld [vmem:[#allocation2 + $0xe7] sm:$0xff]
        %v2801 = vld [vmem:[#allocation2 + $0xef] sm:$0xff]
        %v2802 = vld [vmem:[#allocation2 + $0xf7] sm:$0xff]
        %v2803 = vld [vmem:[#allocation2 + $0xff] sm:$0xff]
        %v2804 = vld [vmem:[#allocation2 + $0x107] sm:$0xff]
        %v2805 = vld [vmem:[#allocation2 + $0x10f] sm:$0xff]
        %v2806 = vsel %vm2502, %v2790, 0.0
        %v2807 = vsel %vm2503, %v2791, 0.0
        %v2808 = vsel %vm2504, %v2792, 0.0
        %v2809 = vsel %vm2505, %v2793, 0.0
        %v2810 = vsel %vm2506, %v2794, 0.0
        %v2811 = vsel %vm2507, %v2795, 0.0
        %v2812 = vsel %vm2508, %v2796, 0.0
        %v2813 = vsel %vm2509, %v2797, 0.0
        %v2814 = vsel %vm2510, %v2798, 0.0
        %v2815 = vsel %vm2511, %v2799, 0.0
        %v2816 = vsel %vm2512, %v2800, 0.0
        %v2817 = vsel %vm2513, %v2801, 0.0
        %v2818 = vsel %vm2514, %v2802, 0.0
        %v2819 = vsel %vm2515, %v2803, 0.0
        %v2820 = vsel %vm2516, %v2804, 0.0
        %v2821 = vsel %vm2517, %v2805, 0.0
        %2838 = vrot.lane.b32.xlu0 %v2806, 3
        %v2839 = vpop.permute.xlu0 %2838
        %2840 = vrot.lane.b32.xlu0 %v2807, 3
        %v2841 = vpop.permute.xlu0 %2840
        %2842 = vrot.lane.b32.xlu0 %v2808, 3
        %v2843 = vpop.permute.xlu0 %2842
        %2844 = vrot.lane.b32.xlu0 %v2809, 3
        %v2845 = vpop.permute.xlu0 %2844
        %2846 = vrot.lane.b32.xlu0 %v2810, 3
        %v2847 = vpop.permute.xlu0 %2846
        %2848 = vrot.lane.b32.xlu0 %v2811, 3
        %v2849 = vpop.permute.xlu0 %2848
        %2850 = vrot.lane.b32.xlu0 %v2812, 3
        %v2851 = vpop.permute.xlu0 %2850
        %2852 = vrot.lane.b32.xlu0 %v2813, 3
        %v2853 = vpop.permute.xlu0 %2852
        %2854 = vrot.lane.b32.xlu0 %v2814, 3
        %v2855 = vpop.permute.xlu0 %2854
        %2856 = vrot.lane.b32.xlu0 %v2815, 3
        %v2857 = vpop.permute.xlu0 %2856
        %2858 = vrot.lane.b32.xlu0 %v2816, 3
        %v2859 = vpop.permute.xlu0 %2858
        %2860 = vrot.lane.b32.xlu0 %v2817, 3
        %v2861 = vpop.permute.xlu0 %2860
        %2862 = vrot.lane.b32.xlu0 %v2818, 3
        %v2863 = vpop.permute.xlu0 %2862
        %2864 = vrot.lane.b32.xlu0 %v2819, 3
        %v2865 = vpop.permute.xlu0 %2864
        %2866 = vrot.lane.b32.xlu0 %v2820, 3
        %v2867 = vpop.permute.xlu0 %2866
        %2868 = vrot.lane.b32.xlu0 %v2821, 3
        %v2869 = vpop.permute.xlu0 %2868
        %2886 = vst.msk [vmem:[#allocation9] sm:$0xff] %vm1619, %v2839
        %2887 = vst.msk [vmem:[#allocation9 + $0x8] sm:$0xff] %vm1619, %v2841
        %2888 = vst.msk [vmem:[#allocation9 + $0x10] sm:$0xff] %vm1619, %v2843
        %2889 = vst.msk [vmem:[#allocation9 + $0x18] sm:$0xff] %vm1619, %v2845
        %2890 = vst.msk [vmem:[#allocation9 + $0x20] sm:$0xff] %vm1619, %v2847
        %2891 = vst.msk [vmem:[#allocation9 + $0x28] sm:$0xff] %vm1619, %v2849
        %2892 = vst.msk [vmem:[#allocation9 + $0x30] sm:$0xff] %vm1619, %v2851
        %2893 = vst.msk [vmem:[#allocation9 + $0x38] sm:$0xff] %vm1619, %v2853
        %2894 = vst.msk [vmem:[#allocation9 + $0x40] sm:$0xff] %vm1619, %v2855
        %2895 = vst.msk [vmem:[#allocation9 + $0x48] sm:$0xff] %vm1619, %v2857
        %2896 = vst.msk [vmem:[#allocation9 + $0x50] sm:$0xff] %vm1619, %v2859
        %2897 = vst.msk [vmem:[#allocation9 + $0x58] sm:$0xff] %vm1619, %v2861
        %2898 = vst.msk [vmem:[#allocation9 + $0x60] sm:$0xff] %vm1619, %v2863
        %2899 = vst.msk [vmem:[#allocation9 + $0x68] sm:$0xff] %vm1619, %v2865
        %2900 = vst.msk [vmem:[#allocation9 + $0x70] sm:$0xff] %vm1619, %v2867
        %2901 = vst.msk [vmem:[#allocation9 + $0x78] sm:$0xff] %vm1619, %v2869
        %v2902 = vld [vmem:[#allocation2 + $0x98] sm:$0xff]
        %v2903 = vld [vmem:[#allocation2 + $0xa0] sm:$0xff]
        %v2904 = vld [vmem:[#allocation2 + $0xa8] sm:$0xff]
        %v2905 = vld [vmem:[#allocation2 + $0xb0] sm:$0xff]
        %v2906 = vld [vmem:[#allocation2 + $0xb8] sm:$0xff]
        %v2907 = vld [vmem:[#allocation2 + $0xc0] sm:$0xff]
        %v2908 = vld [vmem:[#allocation2 + $0xc8] sm:$0xff]
        %v2909 = vld [vmem:[#allocation2 + $0xd0] sm:$0xff]
        %v2910 = vld [vmem:[#allocation2 + $0xd8] sm:$0xff]
        %v2911 = vld [vmem:[#allocation2 + $0xe0] sm:$0xff]
        %v2912 = vld [vmem:[#allocation2 + $0xe8] sm:$0xff]
        %v2913 = vld [vmem:[#allocation2 + $0xf0] sm:$0xff]
        %v2914 = vld [vmem:[#allocation2 + $0xf8] sm:$0xff]
        %v2915 = vld [vmem:[#allocation2 + $0x100] sm:$0xff]
        %v2916 = vld [vmem:[#allocation2 + $0x108] sm:$0xff]
        %v2917 = vld [vmem:[#allocation2 + $0x110] sm:$0xff]
        %2934 = vrot.lane.b32.xlu0 %v2902, 4
        %v2935 = vpop.permute.xlu0 %2934
        %2936 = vrot.lane.b32.xlu0 %v2903, 4
        %v2937 = vpop.permute.xlu0 %2936
        %2938 = vrot.lane.b32.xlu0 %v2904, 4
        %v2939 = vpop.permute.xlu0 %2938
        %2940 = vrot.lane.b32.xlu0 %v2905, 4
        %v2941 = vpop.permute.xlu0 %2940
        %2942 = vrot.lane.b32.xlu0 %v2906, 4
        %v2943 = vpop.permute.xlu0 %2942
        %2944 = vrot.lane.b32.xlu0 %v2907, 4
        %v2945 = vpop.permute.xlu0 %2944
        %2946 = vrot.lane.b32.xlu0 %v2908, 4
        %v2947 = vpop.permute.xlu0 %2946
        %2948 = vrot.lane.b32.xlu0 %v2909, 4
        %v2949 = vpop.permute.xlu0 %2948
        %2950 = vrot.lane.b32.xlu0 %v2910, 4
        %v2951 = vpop.permute.xlu0 %2950
        %2952 = vrot.lane.b32.xlu0 %v2911, 4
        %v2953 = vpop.permute.xlu0 %2952
        %2954 = vrot.lane.b32.xlu0 %v2912, 4
        %v2955 = vpop.permute.xlu0 %2954
        %2956 = vrot.lane.b32.xlu0 %v2913, 4
        %v2957 = vpop.permute.xlu0 %2956
        %2958 = vrot.lane.b32.xlu0 %v2914, 4
        %v2959 = vpop.permute.xlu0 %2958
        %2960 = vrot.lane.b32.xlu0 %v2915, 4
        %v2961 = vpop.permute.xlu0 %2960
        %2962 = vrot.lane.b32.xlu0 %v2916, 4
        %v2963 = vpop.permute.xlu0 %2962
        %2964 = vrot.lane.b32.xlu0 %v2917, 4
        %v2965 = vpop.permute.xlu0 %2964
        %2982 = vst.msk [vmem:[#allocation9] sm:$0xff] %vm1716, %v2935
        %2983 = vst.msk [vmem:[#allocation9 + $0x8] sm:$0xff] %vm1716, %v2937
        %2984 = vst.msk [vmem:[#allocation9 + $0x10] sm:$0xff] %vm1716, %v2939
        %2985 = vst.msk [vmem:[#allocation9 + $0x18] sm:$0xff] %vm1716, %v2941
        %2986 = vst.msk [vmem:[#allocation9 + $0x20] sm:$0xff] %vm1716, %v2943
        %2987 = vst.msk [vmem:[#allocation9 + $0x28] sm:$0xff] %vm1716, %v2945
        %2988 = vst.msk [vmem:[#allocation9 + $0x30] sm:$0xff] %vm1716, %v2947
        %2989 = vst.msk [vmem:[#allocation9 + $0x38] sm:$0xff] %vm1716, %v2949
        %2990 = vst.msk [vmem:[#allocation9 + $0x40] sm:$0xff] %vm1716, %v2951
        %2991 = vst.msk [vmem:[#allocation9 + $0x48] sm:$0xff] %vm1716, %v2953
        %2992 = vst.msk [vmem:[#allocation9 + $0x50] sm:$0xff] %vm1716, %v2955
        %2993 = vst.msk [vmem:[#allocation9 + $0x58] sm:$0xff] %vm1716, %v2957
        %2994 = vst.msk [vmem:[#allocation9 + $0x60] sm:$0xff] %vm1716, %v2959
        %2995 = vst.msk [vmem:[#allocation9 + $0x68] sm:$0xff] %vm1716, %v2961
        %2996 = vst.msk [vmem:[#allocation9 + $0x70] sm:$0xff] %vm1716, %v2963
        %2997 = vst.msk [vmem:[#allocation9 + $0x78] sm:$0xff] %vm1716, %v2965
        %v2998 = vld [vmem:[#allocation2 + $0x99] sm:$0xff]
        %v2999 = vld [vmem:[#allocation2 + $0xa1] sm:$0xff]
        %v3000 = vld [vmem:[#allocation2 + $0xa9] sm:$0xff]
        %v3001 = vld [vmem:[#allocation2 + $0xb1] sm:$0xff]
        %v3002 = vld [vmem:[#allocation2 + $0xb9] sm:$0xff]
        %v3003 = vld [vmem:[#allocation2 + $0xc1] sm:$0xff]
        %v3004 = vld [vmem:[#allocation2 + $0xc9] sm:$0xff]
        %v3005 = vld [vmem:[#allocation2 + $0xd1] sm:$0xff]
        %v3006 = vld [vmem:[#allocation2 + $0xd9] sm:$0xff]
        %v3007 = vld [vmem:[#allocation2 + $0xe1] sm:$0xff]
        %v3008 = vld [vmem:[#allocation2 + $0xe9] sm:$0xff]
        %v3009 = vld [vmem:[#allocation2 + $0xf1] sm:$0xff]
        %v3010 = vld [vmem:[#allocation2 + $0xf9] sm:$0xff]
        %v3011 = vld [vmem:[#allocation2 + $0x101] sm:$0xff]
        %v3012 = vld [vmem:[#allocation2 + $0x109] sm:$0xff]
        %v3013 = vld [vmem:[#allocation2 + $0x111] sm:$0xff]
        %v3014 = vsel %vm2518, %v2998, 0.0
        %v3015 = vsel %vm2519, %v2999, 0.0
        %v3016 = vsel %vm2520, %v3000, 0.0
        %v3017 = vsel %vm2521, %v3001, 0.0
        %v3018 = vsel %vm2522, %v3002, 0.0
        %v3019 = vsel %vm2523, %v3003, 0.0
        %v3020 = vsel %vm2524, %v3004, 0.0
        %v3021 = vsel %vm2525, %v3005, 0.0
        %v3022 = vsel %vm2526, %v3006, 0.0
        %v3023 = vsel %vm2527, %v3007, 0.0
        %v3024 = vsel %vm2528, %v3008, 0.0
        %v3025 = vsel %vm2529, %v3009, 0.0
        %v3026 = vsel %vm2530, %v3010, 0.0
        %v3027 = vsel %vm2531, %v3011, 0.0
        %v3028 = vsel %vm2532, %v3012, 0.0
        %v3029 = vsel %vm2533, %v3013, 0.0
        %3046 = vrot.lane.b32.xlu0 %v3014, 5
        %v3047 = vpop.permute.xlu0 %3046
        %3048 = vrot.lane.b32.xlu0 %v3015, 5
        %v3049 = vpop.permute.xlu0 %3048
        %3050 = vrot.lane.b32.xlu0 %v3016, 5
        %v3051 = vpop.permute.xlu0 %3050
        %3052 = vrot.lane.b32.xlu0 %v3017, 5
        %v3053 = vpop.permute.xlu0 %3052
        %3054 = vrot.lane.b32.xlu0 %v3018, 5
        %v3055 = vpop.permute.xlu0 %3054
        %3056 = vrot.lane.b32.xlu0 %v3019, 5
        %v3057 = vpop.permute.xlu0 %3056
        %3058 = vrot.lane.b32.xlu0 %v3020, 5
        %v3059 = vpop.permute.xlu0 %3058
        %3060 = vrot.lane.b32.xlu0 %v3021, 5
        %v3061 = vpop.permute.xlu0 %3060
        %3062 = vrot.lane.b32.xlu0 %v3022, 5
        %v3063 = vpop.permute.xlu0 %3062
        %3064 = vrot.lane.b32.xlu0 %v3023, 5
        %v3065 = vpop.permute.xlu0 %3064
        %3066 = vrot.lane.b32.xlu0 %v3024, 5
        %v3067 = vpop.permute.xlu0 %3066
        %3068 = vrot.lane.b32.xlu0 %v3025, 5
        %v3069 = vpop.permute.xlu0 %3068
        %3070 = vrot.lane.b32.xlu0 %v3026, 5
        %v3071 = vpop.permute.xlu0 %3070
        %3072 = vrot.lane.b32.xlu0 %v3027, 5
        %v3073 = vpop.permute.xlu0 %3072
        %3074 = vrot.lane.b32.xlu0 %v3028, 5
        %v3075 = vpop.permute.xlu0 %3074
        %3076 = vrot.lane.b32.xlu0 %v3029, 5
        %v3077 = vpop.permute.xlu0 %3076
        %3094 = vst.msk [vmem:[#allocation9] sm:$0xff] %vm1829, %v3047
        %3095 = vst.msk [vmem:[#allocation9 + $0x8] sm:$0xff] %vm1829, %v3049
        %3096 = vst.msk [vmem:[#allocation9 + $0x10] sm:$0xff] %vm1829, %v3051
        %3097 = vst.msk [vmem:[#allocation9 + $0x18] sm:$0xff] %vm1829, %v3053
        %3098 = vst.msk [vmem:[#allocation9 + $0x20] sm:$0xff] %vm1829, %v3055
        %3099 = vst.msk [vmem:[#allocation9 + $0x28] sm:$0xff] %vm1829, %v3057
        %3100 = vst.msk [vmem:[#allocation9 + $0x30] sm:$0xff] %vm1829, %v3059
        %3101 = vst.msk [vmem:[#allocation9 + $0x38] sm:$0xff] %vm1829, %v3061
        %3102 = vst.msk [vmem:[#allocation9 + $0x40] sm:$0xff] %vm1829, %v3063
        %3103 = vst.msk [vmem:[#allocation9 + $0x48] sm:$0xff] %vm1829, %v3065
        %3104 = vst.msk [vmem:[#allocation9 + $0x50] sm:$0xff] %vm1829, %v3067
        %3105 = vst.msk [vmem:[#allocation9 + $0x58] sm:$0xff] %vm1829, %v3069
        %3106 = vst.msk [vmem:[#allocation9 + $0x60] sm:$0xff] %vm1829, %v3071
        %3107 = vst.msk [vmem:[#allocation9 + $0x68] sm:$0xff] %vm1829, %v3073
        %3108 = vst.msk [vmem:[#allocation9 + $0x70] sm:$0xff] %vm1829, %v3075
        %3109 = vst.msk [vmem:[#allocation9 + $0x78] sm:$0xff] %vm1829, %v3077
        %v3110 = vld [vmem:[#allocation2 + $0xa7] sm:$0xff]
        %v3111 = vld [vmem:[#allocation2 + $0xaf] sm:$0xff]
        %v3112 = vld [vmem:[#allocation2 + $0xb7] sm:$0xff]
        %v3113 = vld [vmem:[#allocation2 + $0xbf] sm:$0xff]
        %v3114 = vld [vmem:[#allocation2 + $0xc7] sm:$0xff]
        %v3115 = vld [vmem:[#allocation2 + $0xcf] sm:$0xff]
        %v3116 = vld [vmem:[#allocation2 + $0xd7] sm:$0xff]
        %v3117 = vld [vmem:[#allocation2 + $0xdf] sm:$0xff]
        %v3118 = vld [vmem:[#allocation2 + $0xe7] sm:$0xff]
        %v3119 = vld [vmem:[#allocation2 + $0xef] sm:$0xff]
        %v3120 = vld [vmem:[#allocation2 + $0xf7] sm:$0xff]
        %v3121 = vld [vmem:[#allocation2 + $0xff] sm:$0xff]
        %v3122 = vld [vmem:[#allocation2 + $0x107] sm:$0xff]
        %v3123 = vld [vmem:[#allocation2 + $0x10f] sm:$0xff]
        %v3124 = vld [vmem:[#allocation2 + $0x117] sm:$0xff]
        %v3125 = vld [vmem:[#allocation2 + $0x11f] sm:$0xff]
        %v3126 = vsel %vm2502, %v3110, 0.0
        %v3127 = vsel %vm2503, %v3111, 0.0
        %v3128 = vsel %vm2504, %v3112, 0.0
        %v3129 = vsel %vm2505, %v3113, 0.0
        %v3130 = vsel %vm2506, %v3114, 0.0
        %v3131 = vsel %vm2507, %v3115, 0.0
        %v3132 = vsel %vm2508, %v3116, 0.0
        %v3133 = vsel %vm2509, %v3117, 0.0
        %v3134 = vsel %vm2510, %v3118, 0.0
        %v3135 = vsel %vm2511, %v3119, 0.0
        %v3136 = vsel %vm2512, %v3120, 0.0
        %v3137 = vsel %vm2513, %v3121, 0.0
        %v3138 = vsel %vm2514, %v3122, 0.0
        %v3139 = vsel %vm2515, %v3123, 0.0
        %v3140 = vsel %vm2516, %v3124, 0.0
        %v3141 = vsel %vm2517, %v3125, 0.0
        %3158 = vrot.lane.b32.xlu0 %v3126, 6
        %v3159 = vpop.permute.xlu0 %3158
        %3160 = vrot.lane.b32.xlu0 %v3127, 6
        %v3161 = vpop.permute.xlu0 %3160
        %3162 = vrot.lane.b32.xlu0 %v3128, 6
        %v3163 = vpop.permute.xlu0 %3162
        %3164 = vrot.lane.b32.xlu0 %v3129, 6
        %v3165 = vpop.permute.xlu0 %3164
        %3166 = vrot.lane.b32.xlu0 %v3130, 6
        %v3167 = vpop.permute.xlu0 %3166
        %3168 = vrot.lane.b32.xlu0 %v3131, 6
        %v3169 = vpop.permute.xlu0 %3168
        %3170 = vrot.lane.b32.xlu0 %v3132, 6
        %v3171 = vpop.permute.xlu0 %3170
        %3172 = vrot.lane.b32.xlu0 %v3133, 6
        %v3173 = vpop.permute.xlu0 %3172
        %3174 = vrot.lane.b32.xlu0 %v3134, 6
        %v3175 = vpop.permute.xlu0 %3174
        %3176 = vrot.lane.b32.xlu0 %v3135, 6
        %v3177 = vpop.permute.xlu0 %3176
        %3178 = vrot.lane.b32.xlu0 %v3136, 6
        %v3179 = vpop.permute.xlu0 %3178
        %3180 = vrot.lane.b32.xlu0 %v3137, 6
        %v3181 = vpop.permute.xlu0 %3180
        %3182 = vrot.lane.b32.xlu0 %v3138, 6
        %v3183 = vpop.permute.xlu0 %3182
        %3184 = vrot.lane.b32.xlu0 %v3139, 6
        %v3185 = vpop.permute.xlu0 %3184
        %3186 = vrot.lane.b32.xlu0 %v3140, 6
        %v3187 = vpop.permute.xlu0 %3186
        %3188 = vrot.lane.b32.xlu0 %v3141, 6
        %v3189 = vpop.permute.xlu0 %3188
        %3206 = vst.msk [vmem:[#allocation9] sm:$0xff] %vm1942, %v3159
        %3207 = vst.msk [vmem:[#allocation9 + $0x8] sm:$0xff] %vm1942, %v3161
        %3208 = vst.msk [vmem:[#allocation9 + $0x10] sm:$0xff] %vm1942, %v3163
        %3209 = vst.msk [vmem:[#allocation9 + $0x18] sm:$0xff] %vm1942, %v3165
        %3210 = vst.msk [vmem:[#allocation9 + $0x20] sm:$0xff] %vm1942, %v3167
        %3211 = vst.msk [vmem:[#allocation9 + $0x28] sm:$0xff] %vm1942, %v3169
        %3212 = vst.msk [vmem:[#allocation9 + $0x30] sm:$0xff] %vm1942, %v3171
        %3213 = vst.msk [vmem:[#allocation9 + $0x38] sm:$0xff] %vm1942, %v3173
        %3214 = vst.msk [vmem:[#allocation9 + $0x40] sm:$0xff] %vm1942, %v3175
        %3215 = vst.msk [vmem:[#allocation9 + $0x48] sm:$0xff] %vm1942, %v3177
        %3216 = vst.msk [vmem:[#allocation9 + $0x50] sm:$0xff] %vm1942, %v3179
        %3217 = vst.msk [vmem:[#allocation9 + $0x58] sm:$0xff] %vm1942, %v3181
        %3218 = vst.msk [vmem:[#allocation9 + $0x60] sm:$0xff] %vm1942, %v3183
        %3219 = vst.msk [vmem:[#allocation9 + $0x68] sm:$0xff] %vm1942, %v3185
        %3220 = vst.msk [vmem:[#allocation9 + $0x70] sm:$0xff] %vm1942, %v3187
        %3221 = vst.msk [vmem:[#allocation9 + $0x78] sm:$0xff] %vm1942, %v3189
        %v3222 = vld [vmem:[#allocation2 + $0xa8] sm:$0xff]
        %v3223 = vld [vmem:[#allocation2 + $0xb0] sm:$0xff]
        %v3224 = vld [vmem:[#allocation2 + $0xb8] sm:$0xff]
        %v3225 = vld [vmem:[#allocation2 + $0xc0] sm:$0xff]
        %v3226 = vld [vmem:[#allocation2 + $0xc8] sm:$0xff]
        %v3227 = vld [vmem:[#allocation2 + $0xd0] sm:$0xff]
        %v3228 = vld [vmem:[#allocation2 + $0xd8] sm:$0xff]
        %v3229 = vld [vmem:[#allocation2 + $0xe0] sm:$0xff]
        %v3230 = vld [vmem:[#allocation2 + $0xe8] sm:$0xff]
        %v3231 = vld [vmem:[#allocation2 + $0xf0] sm:$0xff]
        %v3232 = vld [vmem:[#allocation2 + $0xf8] sm:$0xff]
        %v3233 = vld [vmem:[#allocation2 + $0x100] sm:$0xff]
        %v3234 = vld [vmem:[#allocation2 + $0x108] sm:$0xff]
        %v3235 = vld [vmem:[#allocation2 + $0x110] sm:$0xff]
        %v3236 = vld [vmem:[#allocation2 + $0x118] sm:$0xff]
        %v3237 = vld [vmem:[#allocation2 + $0x120] sm:$0xff]
        %3254 = vrot.lane.b32.xlu0 %v3222, 7
        %v3255 = vpop.permute.xlu0 %3254
        %3256 = vrot.lane.b32.xlu0 %v3223, 7
        %v3257 = vpop.permute.xlu0 %3256
        %3258 = vrot.lane.b32.xlu0 %v3224, 7
        %v3259 = vpop.permute.xlu0 %3258
        %3260 = vrot.lane.b32.xlu0 %v3225, 7
        %v3261 = vpop.permute.xlu0 %3260
        %3262 = vrot.lane.b32.xlu0 %v3226, 7
        %v3263 = vpop.permute.xlu0 %3262
        %3264 = vrot.lane.b32.xlu0 %v3227, 7
        %v3265 = vpop.permute.xlu0 %3264
        %3266 = vrot.lane.b32.xlu0 %v3228, 7
        %v3267 = vpop.permute.xlu0 %3266
        %3268 = vrot.lane.b32.xlu0 %v3229, 7
        %v3269 = vpop.permute.xlu0 %3268
        %3270 = vrot.lane.b32.xlu0 %v3230, 7
        %v3271 = vpop.permute.xlu0 %3270
        %3272 = vrot.lane.b32.xlu0 %v3231, 7
        %v3273 = vpop.permute.xlu0 %3272
        %3274 = vrot.lane.b32.xlu0 %v3232, 7
        %v3275 = vpop.permute.xlu0 %3274
        %3276 = vrot.lane.b32.xlu0 %v3233, 7
        %v3277 = vpop.permute.xlu0 %3276
        %3278 = vrot.lane.b32.xlu0 %v3234, 7
        %v3279 = vpop.permute.xlu0 %3278
        %3280 = vrot.lane.b32.xlu0 %v3235, 7
        %v3281 = vpop.permute.xlu0 %3280
        %3282 = vrot.lane.b32.xlu0 %v3236, 7
        %v3283 = vpop.permute.xlu0 %3282
        %3284 = vrot.lane.b32.xlu0 %v3237, 7
        %v3285 = vpop.permute.xlu0 %3284
        %3302 = vst.msk [vmem:[#allocation9] sm:$0xff] %vm2039, %v3255
        %3303 = vst.msk [vmem:[#allocation9 + $0x8] sm:$0xff] %vm2039, %v3257
        %3304 = vst.msk [vmem:[#allocation9 + $0x10] sm:$0xff] %vm2039, %v3259
        %3305 = vst.msk [vmem:[#allocation9 + $0x18] sm:$0xff] %vm2039, %v3261
        %3306 = vst.msk [vmem:[#allocation9 + $0x20] sm:$0xff] %vm2039, %v3263
        %3307 = vst.msk [vmem:[#allocation9 + $0x28] sm:$0xff] %vm2039, %v3265
        %3308 = vst.msk [vmem:[#allocation9 + $0x30] sm:$0xff] %vm2039, %v3267
        %3309 = vst.msk [vmem:[#allocation9 + $0x38] sm:$0xff] %vm2039, %v3269
        %3310 = vst.msk [vmem:[#allocation9 + $0x40] sm:$0xff] %vm2039, %v3271
        %3311 = vst.msk [vmem:[#allocation9 + $0x48] sm:$0xff] %vm2039, %v3273
        %3312 = vst.msk [vmem:[#allocation9 + $0x50] sm:$0xff] %vm2039, %v3275
        %3313 = vst.msk [vmem:[#allocation9 + $0x58] sm:$0xff] %vm2039, %v3277
        %3314 = vst.msk [vmem:[#allocation9 + $0x60] sm:$0xff] %vm2039, %v3279
        %3315 = vst.msk [vmem:[#allocation9 + $0x68] sm:$0xff] %vm2039, %v3281
        %3316 = vst.msk [vmem:[#allocation9 + $0x70] sm:$0xff] %vm2039, %v3283
        %3317 = vst.msk [vmem:[#allocation9 + $0x78] sm:$0xff] %vm2039, %v3285
        %v3318 = vld [vmem:[#allocation2 + $0xa9] sm:$0xff]
        %v3319 = vld [vmem:[#allocation2 + $0xb1] sm:$0xff]
        %v3320 = vld [vmem:[#allocation2 + $0xb9] sm:$0xff]
        %v3321 = vld [vmem:[#allocation2 + $0xc1] sm:$0xff]
        %v3322 = vld [vmem:[#allocation2 + $0xc9] sm:$0xff]
        %v3323 = vld [vmem:[#allocation2 + $0xd1] sm:$0xff]
        %v3324 = vld [vmem:[#allocation2 + $0xd9] sm:$0xff]
        %v3325 = vld [vmem:[#allocation2 + $0xe1] sm:$0xff]
        %v3326 = vld [vmem:[#allocation2 + $0xe9] sm:$0xff]
        %v3327 = vld [vmem:[#allocation2 + $0xf1] sm:$0xff]
        %v3328 = vld [vmem:[#allocation2 + $0xf9] sm:$0xff]
        %v3329 = vld [vmem:[#allocation2 + $0x101] sm:$0xff]
        %v3330 = vld [vmem:[#allocation2 + $0x109] sm:$0xff]
        %v3331 = vld [vmem:[#allocation2 + $0x111] sm:$0xff]
        %v3332 = vld [vmem:[#allocation2 + $0x119] sm:$0xff]
        %v3333 = vld [vmem:[#allocation2 + $0x121] sm:$0xff]
        %v3334 = vsel %vm2518, %v3318, 0.0
        %v3335 = vsel %vm2519, %v3319, 0.0
        %v3336 = vsel %vm2520, %v3320, 0.0
        %v3337 = vsel %vm2521, %v3321, 0.0
        %v3338 = vsel %vm2522, %v3322, 0.0
        %v3339 = vsel %vm2523, %v3323, 0.0
        %v3340 = vsel %vm2524, %v3324, 0.0
        %v3341 = vsel %vm2525, %v3325, 0.0
        %v3342 = vsel %vm2526, %v3326, 0.0
        %v3343 = vsel %vm2527, %v3327, 0.0
        %v3344 = vsel %vm2528, %v3328, 0.0
        %v3345 = vsel %vm2529, %v3329, 0.0
        %v3346 = vsel %vm2530, %v3330, 0.0
        %v3347 = vsel %vm2531, %v3331, 0.0
        %v3348 = vsel %vm2532, %v3332, 0.0
        %v3349 = vsel %vm2533, %v3333, 0.0
        %3366 = vrot.lane.b32.xlu0 %v3334, 8
        %v3367 = vpop.permute.xlu0 %3366
        %3368 = vrot.lane.b32.xlu0 %v3335, 8
        %v3369 = vpop.permute.xlu0 %3368
        %3370 = vrot.lane.b32.xlu0 %v3336, 8
        %v3371 = vpop.permute.xlu0 %3370
        %3372 = vrot.lane.b32.xlu0 %v3337, 8
        %v3373 = vpop.permute.xlu0 %3372
        %3374 = vrot.lane.b32.xlu0 %v3338, 8
        %v3375 = vpop.permute.xlu0 %3374
        %3376 = vrot.lane.b32.xlu0 %v3339, 8
        %v3377 = vpop.permute.xlu0 %3376
        %3378 = vrot.lane.b32.xlu0 %v3340, 8
        %v3379 = vpop.permute.xlu0 %3378
        %3380 = vrot.lane.b32.xlu0 %v3341, 8
        %v3381 = vpop.permute.xlu0 %3380
        %3382 = vrot.lane.b32.xlu0 %v3342, 8
        %v3383 = vpop.permute.xlu0 %3382
        %3384 = vrot.lane.b32.xlu0 %v3343, 8
        %v3385 = vpop.permute.xlu0 %3384
        %3386 = vrot.lane.b32.xlu0 %v3344, 8
        %v3387 = vpop.permute.xlu0 %3386
        %3388 = vrot.lane.b32.xlu0 %v3345, 8
        %v3389 = vpop.permute.xlu0 %3388
        %3390 = vrot.lane.b32.xlu0 %v3346, 8
        %v3391 = vpop.permute.xlu0 %3390
        %3392 = vrot.lane.b32.xlu0 %v3347, 8
        %v3393 = vpop.permute.xlu0 %3392
        %3394 = vrot.lane.b32.xlu0 %v3348, 8
        %v3395 = vpop.permute.xlu0 %3394
        %3396 = vrot.lane.b32.xlu0 %v3349, 8
        %v3397 = vpop.permute.xlu0 %3396
        %3414 = vst.msk [vmem:[#allocation9] sm:$0xff] %vm2152, %v3367
        %3415 = vst.msk [vmem:[#allocation9 + $0x8] sm:$0xff] %vm2152, %v3369
        %3416 = vst.msk [vmem:[#allocation9 + $0x10] sm:$0xff] %vm2152, %v3371
        %3417 = vst.msk [vmem:[#allocation9 + $0x18] sm:$0xff] %vm2152, %v3373
        %3418 = vst.msk [vmem:[#allocation9 + $0x20] sm:$0xff] %vm2152, %v3375
        %3419 = vst.msk [vmem:[#allocation9 + $0x28] sm:$0xff] %vm2152, %v3377
        %3420 = vst.msk [vmem:[#allocation9 + $0x30] sm:$0xff] %vm2152, %v3379
        %3421 = vst.msk [vmem:[#allocation9 + $0x38] sm:$0xff] %vm2152, %v3381
        %3422 = vst.msk [vmem:[#allocation9 + $0x40] sm:$0xff] %vm2152, %v3383
        %3423 = vst.msk [vmem:[#allocation9 + $0x48] sm:$0xff] %vm2152, %v3385
        %3424 = vst.msk [vmem:[#allocation9 + $0x50] sm:$0xff] %vm2152, %v3387
        %3425 = vst.msk [vmem:[#allocation9 + $0x58] sm:$0xff] %vm2152, %v3389
        %3426 = vst.msk [vmem:[#allocation9 + $0x60] sm:$0xff] %vm2152, %v3391
        %3427 = vst.msk [vmem:[#allocation9 + $0x68] sm:$0xff] %vm2152, %v3393
        %3428 = vst.msk [vmem:[#allocation9 + $0x70] sm:$0xff] %vm2152, %v3395
        %3429 = vst.msk [vmem:[#allocation9 + $0x78] sm:$0xff] %vm2152, %v3397
        %v3430 = vld [vmem:[#allocation9] sm:$0xff]
        %v3431 = vld [vmem:[#allocation9 + $0x8] sm:$0xff]
        %v3432 = vld [vmem:[#allocation9 + $0x10] sm:$0xff]
        %v3433 = vld [vmem:[#allocation9 + $0x18] sm:$0xff]
        %v3434 = vld [vmem:[#allocation9 + $0x20] sm:$0xff]
        %v3435 = vld [vmem:[#allocation9 + $0x28] sm:$0xff]
        %v3436 = vld [vmem:[#allocation9 + $0x30] sm:$0xff]
        %v3437 = vld [vmem:[#allocation9 + $0x38] sm:$0xff]
        %v3438 = vld [vmem:[#allocation9 + $0x40] sm:$0xff]
        %v3439 = vld [vmem:[#allocation9 + $0x48] sm:$0xff]
        %v3440 = vld [vmem:[#allocation9 + $0x50] sm:$0xff]
        %v3441 = vld [vmem:[#allocation9 + $0x58] sm:$0xff]
        %v3442 = vld [vmem:[#allocation9 + $0x60] sm:$0xff]
        %v3443 = vld [vmem:[#allocation9 + $0x68] sm:$0xff]
        %v3444 = vld [vmem:[#allocation9 + $0x70] sm:$0xff]
        %v3445 = vld [vmem:[#allocation9 + $0x78] sm:$0xff]
        %v3446 = vld [vmem:[%s3] sm:$0xff]
        %v3447 = vld [vmem:[%s3 + $0x8] sm:$0x1]
        %v3448 = vld [vmem:[%s5] sm:$0x1]
        %v3450 = vlaneseq
        %v3451 = vshrl.u32 %v3450, 7
        %v3452 = vsub.s32 0, %v3451
        %v3453 = vrot.slane %v3448, %v3452
        %v3456 = vsel %vm2194, %v3430, 0
        %v3459 = vsel %vm2194, %v3431, 0
        %v3462 = vsel %vm2194, %v3432, 0
        %v3465 = vsel %vm2194, %v3433, 0
        %v3468 = vsel %vm2194, %v3434, 0
        %v3471 = vsel %vm2194, %v3435, 0
        %v3474 = vsel %vm2194, %v3436, 0
        %v3477 = vsel %vm2194, %v3437, 0
        %v3480 = vsel %vm2194, %v3438, 0
        %v3483 = vsel %vm2194, %v3439, 0
        %v3486 = vsel %vm2194, %v3440, 0
        %v3489 = vsel %vm2194, %v3441, 0
        %v3492 = vsel %vm2194, %v3442, 0
        %v3495 = vsel %vm2194, %v3443, 0
        %v3498 = vsel %vm2194, %v3444, 0
        %v3501 = vsel %vm2194, %v3445, 0
        %v3504 = vsel %vm2243, %v3447, 0
        %3506 = vmatprep.subr.mxu0 0.0
        %3507 = vmatpush1.msra.mxu0 %v3446
        %3508 = vmatprep.subr.mxu0 0.0
        %3509 = vmatpush1.msra.mxu0 %v3504
        %3510 = vmatprep.subr.mxu0 0.0
        %3511 = vmatpush1.msra.mxu0 0.0
        %3512 = vmatprep.subr.mxu0 0.0
        %3513 = vmatpush1.msra.mxu0 0.0
        %3514 = vmatprep.subr.mxu0 0.0
        %3515 = vmatpush1.msra.mxu0 0.0
        %3516 = vmatprep.subr.mxu0 0.0
        %3517 = vmatpush1.msra.mxu0 0.0
        %3518 = vmatprep.subr.mxu0 0.0
        %3519 = vmatpush1.msra.mxu0 0.0
        %3520 = vmatprep.subr.mxu0 0.0
        %3521 = vmatpush1.msra.mxu0 0.0
        %3522 = vmatprep.subr.mxu0 0.0
        %3523 = vmatpush1.msra.mxu0 0.0
        %3524 = vmatprep.subr.mxu0 0.0
        %3525 = vmatpush1.msra.mxu0 0.0
        %3526 = vmatprep.subr.mxu0 0.0
        %3527 = vmatpush1.msra.mxu0 0.0
        %3528 = vmatprep.subr.mxu0 0.0
        %3529 = vmatpush1.msra.mxu0 0.0
        %3530 = vmatprep.subr.mxu0 0.0
        %3531 = vmatpush1.msra.mxu0 0.0
        %3532 = vmatprep.subr.mxu0 0.0
        %3533 = vmatpush1.msra.mxu0 0.0
        %3534 = vmatprep.subr.mxu0 0.0
        %3535 = vmatpush1.msra.mxu0 0.0
        %3536 = vmatprep.subr.mxu0 0.0
        %3537 = vmatpush1.msra.mxu0 0.0
        %3538 = vmatprep.subr.mxu0 0.0
        %3539 = vmatpush1.msra.mxu0 0.0
        %3540 = vmatprep.subr.mxu0 0.0
        %3541 = vmatpush1.msra.mxu0 0.0
        %3542 = vmatprep.subr.mxu0 0.0
        %3543 = vmatpush1.msra.mxu0 0.0
        %3544 = vmatprep.subr.mxu0 0.0
        %3545 = vmatpush1.msra.mxu0 0.0
        %3546 = vmatprep.subr.mxu0 0.0
        %3547 = vmatpush1.msra.mxu0 0.0
        %3548 = vmatprep.subr.mxu0 0.0
        %3549 = vmatpush1.msra.mxu0 0.0
        %3550 = vmatprep.subr.mxu0 0.0
        %3551 = vmatpush1.msra.mxu0 0.0
        %3552 = vmatprep.subr.mxu0 0.0
        %3553 = vmatpush1.msra.mxu0 0.0
        %3554 = vmatprep.subr.mxu0 0.0
        %3555 = vmatpush1.msra.mxu0 0.0
        %3556 = vmatprep.subr.mxu0 0.0
        %3557 = vmatpush1.msra.mxu0 0.0
        %3558 = vmatprep.subr.mxu0 0.0
        %3559 = vmatpush1.msra.mxu0 0.0
        %3560 = vmatprep.subr.mxu0 0.0
        %3561 = vmatpush1.msra.mxu0 0.0
        %3562 = vmatprep.subr.mxu0 0.0
        %3563 = vmatpush1.msra.mxu0 0.0
        %3564 = vmatprep.subr.mxu0 0.0
        %3565 = vmatpush1.msra.mxu0 0.0
        %3566 = vmatprep.subr.mxu0 0.0
        %3567 = vmatpush1.msra.mxu0 0.0
        %3568 = vmatprep.subr.mxu0 0.0
        %3569 = vmatpush1.msra.mxu0 0.0
        %3570 = vmatprep.mubr.f32.mxu0 0.0
        %3571 = vmatmul.mubr.f32.gmra.mrb[0].mxu0 %v3456
        %v3572 = vpop.f32.mrb[0].mxu0
        %v3573 = vadd.f32 %v3453, %v3572
        %v3574 = vpop.f32.mrb[0].mxu0
        %3575 = vmatprep.mubr.f32.mxu0 0.0
        %3576 = vmatmul.mubr.f32.gmra.mrb[0].mxu0 %v3459
        %v3577 = vpop.f32.mrb[0].mxu0
        %v3578 = vadd.f32 %v3453, %v3577
        %v3579 = vpop.f32.mrb[0].mxu0
        %3580 = vmatprep.mubr.f32.mxu0 0.0
        %3581 = vmatmul.mubr.f32.gmra.mrb[0].mxu0 %v3462
        %v3582 = vpop.f32.mrb[0].mxu0
        %v3583 = vadd.f32 %v3453, %v3582
        %v3584 = vpop.f32.mrb[0].mxu0
        %3585 = vmatprep.mubr.f32.mxu0 0.0
        %3586 = vmatmul.mubr.f32.gmra.mrb[0].mxu0 %v3465
        %v3587 = vpop.f32.mrb[0].mxu0
        %v3588 = vadd.f32 %v3453, %v3587
        %v3589 = vpop.f32.mrb[0].mxu0
        %3590 = vmatprep.mubr.f32.mxu0 0.0
        %3591 = vmatmul.mubr.f32.gmra.mrb[0].mxu0 %v3468
        %v3592 = vpop.f32.mrb[0].mxu0
        %v3593 = vadd.f32 %v3453, %v3592
        %v3594 = vpop.f32.mrb[0].mxu0
        %3595 = vmatprep.mubr.f32.mxu0 0.0
        %3596 = vmatmul.mubr.f32.gmra.mrb[0].mxu0 %v3471
        %v3597 = vpop.f32.mrb[0].mxu0
        %v3598 = vadd.f32 %v3453, %v3597
        %v3599 = vpop.f32.mrb[0].mxu0
        %3600 = vmatprep.mubr.f32.mxu0 0.0
        %3601 = vmatmul.mubr.f32.gmra.mrb[0].mxu0 %v3474
        %v3602 = vpop.f32.mrb[0].mxu0
        %v3603 = vadd.f32 %v3453, %v3602
        %v3604 = vpop.f32.mrb[0].mxu0
        %3605 = vmatprep.mubr.f32.mxu0 0.0
        %3606 = vmatmul.mubr.f32.gmra.mrb[0].mxu0 %v3477
        %v3607 = vpop.f32.mrb[0].mxu0
        %v3608 = vadd.f32 %v3453, %v3607
        %v3609 = vpop.f32.mrb[0].mxu0
        %3610 = vmatprep.mubr.f32.mxu0 0.0
        %3611 = vmatmul.mubr.f32.gmra.mrb[0].mxu0 %v3480
        %v3612 = vpop.f32.mrb[0].mxu0
        %v3613 = vadd.f32 %v3453, %v3612
        %v3614 = vpop.f32.mrb[0].mxu0
        %3615 = vmatprep.mubr.f32.mxu0 0.0
        %3616 = vmatmul.mubr.f32.gmra.mrb[0].mxu0 %v3483
        %v3617 = vpop.f32.mrb[0].mxu0
        %v3618 = vadd.f32 %v3453, %v3617
        %v3619 = vpop.f32.mrb[0].mxu0
        %3620 = vmatprep.mubr.f32.mxu0 0.0
        %3621 = vmatmul.mubr.f32.gmra.mrb[0].mxu0 %v3486
        %v3622 = vpop.f32.mrb[0].mxu0
        %v3623 = vadd.f32 %v3453, %v3622
        %v3624 = vpop.f32.mrb[0].mxu0
        %3625 = vmatprep.mubr.f32.mxu0 0.0
        %3626 = vmatmul.mubr.f32.gmra.mrb[0].mxu0 %v3489
        %v3627 = vpop.f32.mrb[0].mxu0
        %v3628 = vadd.f32 %v3453, %v3627
        %v3629 = vpop.f32.mrb[0].mxu0
        %3630 = vmatprep.mubr.f32.mxu0 0.0
        %3631 = vmatmul.mubr.f32.gmra.mrb[0].mxu0 %v3492
        %v3632 = vpop.f32.mrb[0].mxu0
        %v3633 = vadd.f32 %v3453, %v3632
        %v3634 = vpop.f32.mrb[0].mxu0
        %3635 = vmatprep.mubr.f32.mxu0 0.0
        %3636 = vmatmul.mubr.f32.gmra.mrb[0].mxu0 %v3495
        %v3637 = vpop.f32.mrb[0].mxu0
        %v3638 = vadd.f32 %v3453, %v3637
        %v3639 = vpop.f32.mrb[0].mxu0
        %3640 = vmatprep.mubr.f32.mxu0 0.0
        %3641 = vmatmul.mubr.f32.gmra.mrb[0].mxu0 %v3498
        %v3642 = vpop.f32.mrb[0].mxu0
        %v3643 = vadd.f32 %v3453, %v3642
        %v3644 = vpop.f32.mrb[0].mxu0
        %3645 = vmatprep.mubr.f32.mxu0 0.0
        %3646 = vmatmul.mubr.f32.gmra.mrb[0].mxu0 %v3501
        %v3647 = vpop.f32.mrb[0].mxu0
        %v3648 = vadd.f32 %v3453, %v3647
        %v3649 = vpop.f32.mrb[0].mxu0
        %3650 = vdwg.mxu0
        %v3651 = vmax.f32 %v3573, 0.0
        %v3652 = vmax.f32 %v3578, 0.0
        %v3653 = vmax.f32 %v3583, 0.0
        %v3654 = vmax.f32 %v3588, 0.0
        %v3655 = vmax.f32 %v3593, 0.0
        %v3656 = vmax.f32 %v3598, 0.0
        %v3657 = vmax.f32 %v3603, 0.0
        %v3658 = vmax.f32 %v3608, 0.0
        %v3659 = vmax.f32 %v3613, 0.0
        %v3660 = vmax.f32 %v3618, 0.0
        %v3661 = vmax.f32 %v3623, 0.0
        %v3662 = vmax.f32 %v3628, 0.0
        %v3663 = vmax.f32 %v3633, 0.0
        %v3664 = vmax.f32 %v3638, 0.0
        %v3665 = vmax.f32 %v3643, 0.0
        %v3666 = vmax.f32 %v3648, 0.0
        %v3667 = vld [vmem:[%s7] sm:$0x1]
        %v3669 = vlaneseq
        %v3670 = vshrl.u32 %v3669, 7
        %v3671 = vsub.s32 0, %v3670
        %v3672 = vrot.slane %v3667, %v3671
        %v3674 = vmul.f32 %v3651, %v3672
        %v3675 = vmul.f32 %v3652, %v3672
        %v3676 = vmul.f32 %v3653, %v3672
        %v3677 = vmul.f32 %v3654, %v3672
        %v3678 = vmul.f32 %v3655, %v3672
        %v3679 = vmul.f32 %v3656, %v3672
        %v3680 = vmul.f32 %v3657, %v3672
        %v3681 = vmul.f32 %v3658, %v3672
        %v3682 = vmul.f32 %v3659, %v3672
        %v3683 = vmul.f32 %v3660, %v3672
        %v3684 = vmul.f32 %v3661, %v3672
        %v3685 = vmul.f32 %v3662, %v3672
        %v3686 = vmul.f32 %v3663, %v3672
        %v3687 = vmul.f32 %v3664, %v3672
        %v3688 = vmul.f32 %v3665, %v3672
        %v3689 = vmul.f32 %v3666, %v3672
        %v3690 = vld [vmem:[%s9] sm:$0x1]
        %v3692 = vlaneseq
        %v3693 = vshrl.u32 %v3692, 7
        %v3694 = vsub.s32 0, %v3693
        %v3695 = vrot.slane %v3690, %v3694
        %v3697 = vadd.f32 %v3674, %v3695
        %v3698 = vadd.f32 %v3675, %v3695
        %v3699 = vadd.f32 %v3676, %v3695
        %v3700 = vadd.f32 %v3677, %v3695
        %v3701 = vadd.f32 %v3678, %v3695
        %v3702 = vadd.f32 %v3679, %v3695
        %v3703 = vadd.f32 %v3680, %v3695
        %v3704 = vadd.f32 %v3681, %v3695
        %v3705 = vadd.f32 %v3682, %v3695
        %v3706 = vadd.f32 %v3683, %v3695
        %v3707 = vadd.f32 %v3684, %v3695
        %v3708 = vadd.f32 %v3685, %v3695
        %v3709 = vadd.f32 %v3686, %v3695
        %v3710 = vadd.f32 %v3687, %v3695
        %v3711 = vadd.f32 %v3688, %v3695
        %v3712 = vadd.f32 %v3689, %v3695
        %3713 = vst.msk [vmem:[#allocation16 + $0x80] sm:$0xff] %vm1195, %v3697
        %3714 = vst.msk [vmem:[#allocation16 + $0x88] sm:$0xff] %vm1195, %v3698
        %3715 = vst.msk [vmem:[#allocation16 + $0x90] sm:$0xff] %vm1195, %v3699
        %3716 = vst.msk [vmem:[#allocation16 + $0x98] sm:$0xff] %vm1195, %v3700
        %3717 = vst.msk [vmem:[#allocation16 + $0xa0] sm:$0xff] %vm1195, %v3701
        %3718 = vst.msk [vmem:[#allocation16 + $0xa8] sm:$0xff] %vm1195, %v3702
        %3719 = vst.msk [vmem:[#allocation16 + $0xb0] sm:$0xff] %vm1195, %v3703
        %3720 = vst.msk [vmem:[#allocation16 + $0xb8] sm:$0xff] %vm1195, %v3704
        %3721 = vst.msk [vmem:[#allocation16 + $0xc0] sm:$0xff] %vm1195, %v3705
        %3722 = vst.msk [vmem:[#allocation16 + $0xc8] sm:$0xff] %vm1195, %v3706
        %3723 = vst.msk [vmem:[#allocation16 + $0xd0] sm:$0xff] %vm1195, %v3707
        %3724 = vst.msk [vmem:[#allocation16 + $0xd8] sm:$0xff] %vm1195, %v3708
        %3725 = vst.msk [vmem:[#allocation16 + $0xe0] sm:$0xff] %vm1195, %v3709
        %3726 = vst.msk [vmem:[#allocation16 + $0xe8] sm:$0xff] %vm1195, %v3710
        %3727 = vst.msk [vmem:[#allocation16 + $0xf0] sm:$0xff] %vm1195, %v3711
        %3728 = vst.msk [vmem:[#allocation16 + $0xf8] sm:$0xff] %vm1195, %v3712
        %v3729 = vld [vmem:[#allocation16] ss:$2 sm:$0xff]
        %s3730 = scalar_lea.vmem [#allocation16], 16
        %v3731 = vld [vmem:[%s3730] ss:$2 sm:$0xff]
        %s3732 = scalar_lea.vmem [#allocation16], 32
        %v3733 = vld [vmem:[%s3732] ss:$2 sm:$0xff]
        %s3734 = scalar_lea.vmem [#allocation16], 48
        %v3735 = vld [vmem:[%s3734] ss:$2 sm:$0xff]
        %s3736 = scalar_lea.vmem [#allocation16], 64
        %v3737 = vld [vmem:[%s3736] ss:$2 sm:$0xff]
        %s3738 = scalar_lea.vmem [#allocation16], 80
        %v3739 = vld [vmem:[%s3738] ss:$2 sm:$0xff]
        %s3740 = scalar_lea.vmem [#allocation16], 96
        %v3741 = vld [vmem:[%s3740] ss:$2 sm:$0xff]
        %s3742 = scalar_lea.vmem [#allocation16], 112
        %v3743 = vld [vmem:[%s3742] ss:$2 sm:$0xff]
        %s3744 = scalar_lea.vmem [#allocation16], 128
        %v3745 = vld [vmem:[%s3744] ss:$2 sm:$0xff]
        %s3746 = scalar_lea.vmem [#allocation16], 144
        %v3747 = vld [vmem:[%s3746] ss:$2 sm:$0xff]
        %s3748 = scalar_lea.vmem [#allocation16], 160
        %v3749 = vld [vmem:[%s3748] ss:$2 sm:$0xff]
        %s3750 = scalar_lea.vmem [#allocation16], 176
        %v3751 = vld [vmem:[%s3750] ss:$2 sm:$0xff]
        %s3752 = scalar_lea.vmem [#allocation16], 192
        %v3753 = vld [vmem:[%s3752] ss:$2 sm:$0xff]
        %s3754 = scalar_lea.vmem [#allocation16], 208
        %v3755 = vld [vmem:[%s3754] ss:$2 sm:$0xff]
        %s3756 = scalar_lea.vmem [#allocation16], 224
        %v3757 = vld [vmem:[%s3756] ss:$2 sm:$0xff]
        %s3758 = scalar_lea.vmem [#allocation16], 240
        %v3759 = vld [vmem:[%s3758] ss:$2 sm:$0xff]
        %s3760 = scalar_lea.vmem [#allocation16], 1
        %v3761 = vld [vmem:[%s3760] ss:$2 sm:$0xff]
        %s3762 = scalar_lea.vmem [#allocation16], 17
        %v3763 = vld [vmem:[%s3762] ss:$2 sm:$0xff]
        %s3764 = scalar_lea.vmem [#allocation16], 33
        %v3765 = vld [vmem:[%s3764] ss:$2 sm:$0xff]
        %s3766 = scalar_lea.vmem [#allocation16], 49
        %v3767 = vld [vmem:[%s3766] ss:$2 sm:$0xff]
        %s3768 = scalar_lea.vmem [#allocation16], 65
        %v3769 = vld [vmem:[%s3768] ss:$2 sm:$0xff]
        %s3770 = scalar_lea.vmem [#allocation16], 81
        %v3771 = vld [vmem:[%s3770] ss:$2 sm:$0xff]
        %s3772 = scalar_lea.vmem [#allocation16], 97
        %v3773 = vld [vmem:[%s3772] ss:$2 sm:$0xff]
        %s3774 = scalar_lea.vmem [#allocation16], 113
        %v3775 = vld [vmem:[%s3774] ss:$2 sm:$0xff]
        %s3776 = scalar_lea.vmem [#allocation16], 129
        %v3777 = vld [vmem:[%s3776] ss:$2 sm:$0xff]
        %s3778 = scalar_lea.vmem [#allocation16], 145
        %v3779 = vld [vmem:[%s3778] ss:$2 sm:$0xff]
        %s3780 = scalar_lea.vmem [#allocation16], 161
        %v3781 = vld [vmem:[%s3780] ss:$2 sm:$0xff]
        %s3782 = scalar_lea.vmem [#allocation16], 177
        %v3783 = vld [vmem:[%s3782] ss:$2 sm:$0xff]
        %s3784 = scalar_lea.vmem [#allocation16], 193
        %v3785 = vld [vmem:[%s3784] ss:$2 sm:$0xff]
        %s3786 = scalar_lea.vmem [#allocation16], 209
        %v3787 = vld [vmem:[%s3786] ss:$2 sm:$0xff]
        %s3788 = scalar_lea.vmem [#allocation16], 225
        %v3789 = vld [vmem:[%s3788] ss:$2 sm:$0xff]
        %s3790 = scalar_lea.vmem [#allocation16], 241
        %v3791 = vld [vmem:[%s3790] ss:$2 sm:$0xff]
        %v3792 = vmax.f32 %v3729, %v3761
        %v3793 = vmax.f32 %v3731, %v3763
        %v3794 = vmax.f32 %v3733, %v3765
        %v3795 = vmax.f32 %v3735, %v3767
        %v3796 = vmax.f32 %v3737, %v3769
        %v3797 = vmax.f32 %v3739, %v3771
        %v3798 = vmax.f32 %v3741, %v3773
        %v3799 = vmax.f32 %v3743, %v3775
        %v3800 = vmax.f32 %v3745, %v3777
        %v3801 = vmax.f32 %v3747, %v3779
        %v3802 = vmax.f32 %v3749, %v3781
        %v3803 = vmax.f32 %v3751, %v3783
        %v3804 = vmax.f32 %v3753, %v3785
        %v3805 = vmax.f32 %v3755, %v3787
        %v3806 = vmax.f32 %v3757, %v3789
        %v3807 = vmax.f32 %v3759, %v3791
        %3808 = vst.msk [vmem:[#allocation17] sm:$0xff] %vm1195, %v3792
        %3809 = vst.msk [vmem:[#allocation17 + $0x8] sm:$0xff] %vm1195, %v3793
        %3810 = vst.msk [vmem:[#allocation17 + $0x10] sm:$0xff] %vm1195, %v3794
        %3811 = vst.msk [vmem:[#allocation17 + $0x18] sm:$0xff] %vm1195, %v3795
        %3812 = vst.msk [vmem:[#allocation17 + $0x20] sm:$0xff] %vm1195, %v3796
        %3813 = vst.msk [vmem:[#allocation17 + $0x28] sm:$0xff] %vm1195, %v3797
        %3814 = vst.msk [vmem:[#allocation17 + $0x30] sm:$0xff] %vm1195, %v3798
        %3815 = vst.msk [vmem:[#allocation17 + $0x38] sm:$0xff] %vm1195, %v3799
        %3816 = vst.msk [vmem:[#allocation17 + $0x40] sm:$0xff] %vm1195, %v3800
        %3817 = vst.msk [vmem:[#allocation17 + $0x48] sm:$0xff] %vm1195, %v3801
        %3818 = vst.msk [vmem:[#allocation17 + $0x50] sm:$0xff] %vm1195, %v3802
        %3819 = vst.msk [vmem:[#allocation17 + $0x58] sm:$0xff] %vm1195, %v3803
        %3820 = vst.msk [vmem:[#allocation17 + $0x60] sm:$0xff] %vm1195, %v3804
        %3821 = vst.msk [vmem:[#allocation17 + $0x68] sm:$0xff] %vm1195, %v3805
        %3822 = vst.msk [vmem:[#allocation17 + $0x70] sm:$0xff] %vm1195, %v3806
        %3823 = vst.msk [vmem:[#allocation17 + $0x78] sm:$0xff] %vm1195, %v3807
        %v3824 = vld [vmem:[#allocation17] sm:$0xff]
        %v3825 = vld [vmem:[#allocation17 + $0x8] sm:$0xff]
        %v3826 = vmax.f32 %v3824, %v3825
        %3827 = vst.msk [vmem:[#allocation3 + $0x10] sm:$0xff] %vm1195, %v3826
        %v3828 = vld [vmem:[#allocation17 + $0x10] sm:$0xff]
        %v3829 = vld [vmem:[#allocation17 + $0x18] sm:$0xff]
        %v3830 = vmax.f32 %v3828, %v3829
        %3831 = vst.msk [vmem:[#allocation3 + $0x18] sm:$0xff] %vm1195, %v3830
        %v3832 = vld [vmem:[#allocation17 + $0x20] sm:$0xff]
        %v3833 = vld [vmem:[#allocation17 + $0x28] sm:$0xff]
        %v3834 = vmax.f32 %v3832, %v3833
        %3835 = vst.msk [vmem:[#allocation3 + $0x20] sm:$0xff] %vm1195, %v3834
        %v3836 = vld [vmem:[#allocation17 + $0x30] sm:$0xff]
        %v3837 = vld [vmem:[#allocation17 + $0x38] sm:$0xff]
        %v3838 = vmax.f32 %v3836, %v3837
        %3839 = vst.msk [vmem:[#allocation3 + $0x28] sm:$0xff] %vm1195, %v3838
        %v3840 = vld [vmem:[#allocation17 + $0x40] sm:$0xff]
        %v3841 = vld [vmem:[#allocation17 + $0x48] sm:$0xff]
        %v3842 = vmax.f32 %v3840, %v3841
        %3843 = vst.msk [vmem:[#allocation3 + $0x30] sm:$0xff] %vm1195, %v3842
        %v3844 = vld [vmem:[#allocation17 + $0x50] sm:$0xff]
        %v3845 = vld [vmem:[#allocation17 + $0x58] sm:$0xff]
        %v3846 = vmax.f32 %v3844, %v3845
        %3847 = vst.msk [vmem:[#allocation3 + $0x38] sm:$0xff] %vm1195, %v3846
        %v3848 = vld [vmem:[#allocation17 + $0x60] sm:$0xff]
        %v3849 = vld [vmem:[#allocation17 + $0x68] sm:$0xff]
        %v3850 = vmax.f32 %v3848, %v3849
        %3851 = vst.msk [vmem:[#allocation3 + $0x40] sm:$0xff] %vm1195, %v3850
        %v3852 = vld [vmem:[#allocation17 + $0x70] sm:$0xff]
        %v3853 = vld [vmem:[#allocation17 + $0x78] sm:$0xff]
        %v3854 = vmax.f32 %v3852, %v3853
        %3855 = vst.msk [vmem:[#allocation3 + $0x48] sm:$0xff] %vm1195, %v3854
        %vm3856 = vcmask 130048
        %3857 = vst.msk [vmem:[#allocation4] sm:$0xff] %vm3856, 0.0
        %3858 = vst.msk [vmem:[#allocation4 + $0x8] sm:$0xff] %vm3856, 0.0
        %3859 = vst.msk [vmem:[#allocation4 + $0x50] sm:$0xff] %vm3856, 0.0
        %3860 = vst.msk [vmem:[#allocation4 + $0x58] sm:$0xff] %vm3856, 0.0
        %v3861 = vand.u32 %v1201, 7
        %v3862 = vand.u32 %v1202, 7
        %v3863 = vand.u32 %v1203, 7
        %v3864 = vand.u32 %v1204, 7
        %v3865 = vand.u32 %v1205, 7
        %v3866 = vand.u32 %v1206, 7
        %v3867 = vand.u32 %v1207, 7
        %v3868 = vand.u32 %v1208, 7
        %vm3869 = vcmp.gt.s32.totalorder %v3861, 0
        %vm3870 = vcmp.gt.s32.totalorder %v3862, 0
        %vm3871 = vcmp.gt.s32.totalorder %v3863, 0
        %vm3872 = vcmp.gt.s32.totalorder %v3864, 0
        %vm3873 = vcmp.gt.s32.totalorder %v3865, 0
        %vm3874 = vcmp.gt.s32.totalorder %v3866, 0
        %vm3875 = vcmp.gt.s32.totalorder %v3867, 0
        %vm3876 = vcmp.gt.s32.totalorder %v3868, 0
        %vm3877 = vcmp.lt.s32.totalorder %v3861, 7
        %vm3878 = vcmp.lt.s32.totalorder %v3862, 7
        %vm3879 = vcmp.lt.s32.totalorder %v3863, 7
        %vm3880 = vcmp.lt.s32.totalorder %v3864, 7
        %vm3881 = vcmp.lt.s32.totalorder %v3865, 7
        %vm3882 = vcmp.lt.s32.totalorder %v3866, 7
        %vm3883 = vcmp.lt.s32.totalorder %v3867, 7
        %vm3884 = vcmp.lt.s32.totalorder %v3868, 7
        %v3885 = vld [vmem:[#allocation3 + $0x7] sm:$0xff]
        %v3886 = vld [vmem:[#allocation3 + $0xf] sm:$0xff]
        %v3887 = vld [vmem:[#allocation3 + $0x17] sm:$0xff]
        %v3888 = vld [vmem:[#allocation3 + $0x1f] sm:$0xff]
        %v3889 = vld [vmem:[#allocation3 + $0x27] sm:$0xff]
        %v3890 = vld [vmem:[#allocation3 + $0x2f] sm:$0xff]
        %v3891 = vld [vmem:[#allocation3 + $0x37] sm:$0xff]
        %v3892 = vld [vmem:[#allocation3 + $0x3f] sm:$0xff]
        %v3893 = vsel %vm3869, 1, 0
        %v3894 = vsel %vm3870, 1, 0
        %v3895 = vsel %vm3871, 1, 0
        %v3896 = vsel %vm3872, 1, 0
        %v3897 = vsel %vm3873, 1, 0
        %v3898 = vsel %vm3874, 1, 0
        %v3899 = vsel %vm3875, 1, 0
        %v3900 = vsel %vm3876, 1, 0
        %vm3901 = vcmp.eq.s32.totalorder %v3893, 1
        %vm3902 = vcmp.eq.s32.totalorder %v3894, 1
        %vm3903 = vcmp.eq.s32.totalorder %v3895, 1
        %vm3904 = vcmp.eq.s32.totalorder %v3896, 1
        %vm3905 = vcmp.eq.s32.totalorder %v3897, 1
        %vm3906 = vcmp.eq.s32.totalorder %v3898, 1
        %vm3907 = vcmp.eq.s32.totalorder %v3899, 1
        %vm3908 = vcmp.eq.s32.totalorder %v3900, 1
        %v3909 = vsel %vm3901, %v3885, 0.0
        %v3910 = vsel %vm3902, %v3886, 0.0
        %v3911 = vsel %vm3903, %v3887, 0.0
        %v3912 = vsel %vm3904, %v3888, 0.0
        %v3913 = vsel %vm3905, %v3889, 0.0
        %v3914 = vsel %vm3906, %v3890, 0.0
        %v3915 = vsel %vm3907, %v3891, 0.0
        %v3916 = vsel %vm3908, %v3892, 0.0
        %3917 = vst.msk [vmem:[#allocation10] sm:$0xff] %vm1195, %v3909
        %3918 = vst.msk [vmem:[#allocation10 + $0x8] sm:$0xff] %vm1195, %v3910
        %3919 = vst.msk [vmem:[#allocation10 + $0x10] sm:$0xff] %vm1195, %v3911
        %3920 = vst.msk [vmem:[#allocation10 + $0x18] sm:$0xff] %vm1195, %v3912
        %3921 = vst.msk [vmem:[#allocation10 + $0x20] sm:$0xff] %vm1195, %v3913
        %3922 = vst.msk [vmem:[#allocation10 + $0x28] sm:$0xff] %vm1195, %v3914
        %3923 = vst.msk [vmem:[#allocation10 + $0x30] sm:$0xff] %vm1195, %v3915
        %3924 = vst.msk [vmem:[#allocation10 + $0x38] sm:$0xff] %vm1195, %v3916
        %v3925 = vld [vmem:[#allocation3 + $0x8] sm:$0xff]
        %v3926 = vld [vmem:[#allocation3 + $0x10] sm:$0xff]
        %v3927 = vld [vmem:[#allocation3 + $0x18] sm:$0xff]
        %v3928 = vld [vmem:[#allocation3 + $0x20] sm:$0xff]
        %v3929 = vld [vmem:[#allocation3 + $0x28] sm:$0xff]
        %v3930 = vld [vmem:[#allocation3 + $0x30] sm:$0xff]
        %v3931 = vld [vmem:[#allocation3 + $0x38] sm:$0xff]
        %v3932 = vld [vmem:[#allocation3 + $0x40] sm:$0xff]
        %3941 = vrot.lane.b32.xlu0 %v3925, 8
        %v3942 = vpop.permute.xlu0 %3941
        %3943 = vrot.lane.b32.xlu0 %v3926, 8
        %v3944 = vpop.permute.xlu0 %3943
        %3945 = vrot.lane.b32.xlu0 %v3927, 8
        %v3946 = vpop.permute.xlu0 %3945
        %3947 = vrot.lane.b32.xlu0 %v3928, 8
        %v3948 = vpop.permute.xlu0 %3947
        %3949 = vrot.lane.b32.xlu0 %v3929, 8
        %v3950 = vpop.permute.xlu0 %3949
        %3951 = vrot.lane.b32.xlu0 %v3930, 8
        %v3952 = vpop.permute.xlu0 %3951
        %3953 = vrot.lane.b32.xlu0 %v3931, 8
        %v3954 = vpop.permute.xlu0 %3953
        %3955 = vrot.lane.b32.xlu0 %v3932, 8
        %v3956 = vpop.permute.xlu0 %3955
        %vm3965 = vcmask 130112
        %3966 = vst.msk [vmem:[#allocation10] sm:$0xff] %vm3965, %v3942
        %3967 = vst.msk [vmem:[#allocation10 + $0x8] sm:$0xff] %vm3965, %v3944
        %3968 = vst.msk [vmem:[#allocation10 + $0x10] sm:$0xff] %vm3965, %v3946
        %3969 = vst.msk [vmem:[#allocation10 + $0x18] sm:$0xff] %vm3965, %v3948
        %3970 = vst.msk [vmem:[#allocation10 + $0x20] sm:$0xff] %vm3965, %v3950
        %3971 = vst.msk [vmem:[#allocation10 + $0x28] sm:$0xff] %vm3965, %v3952
        %3972 = vst.msk [vmem:[#allocation10 + $0x30] sm:$0xff] %vm3965, %v3954
        %3973 = vst.msk [vmem:[#allocation10 + $0x38] sm:$0xff] %vm3965, %v3956
        %v3974 = vld [vmem:[#allocation3 + $0x9] sm:$0xff]
        %v3975 = vld [vmem:[#allocation3 + $0x11] sm:$0xff]
        %v3976 = vld [vmem:[#allocation3 + $0x19] sm:$0xff]
        %v3977 = vld [vmem:[#allocation3 + $0x21] sm:$0xff]
        %v3978 = vld [vmem:[#allocation3 + $0x29] sm:$0xff]
        %v3979 = vld [vmem:[#allocation3 + $0x31] sm:$0xff]
        %v3980 = vld [vmem:[#allocation3 + $0x39] sm:$0xff]
        %v3981 = vld [vmem:[#allocation3 + $0x41] sm:$0xff]
        %v3982 = vsel %vm3877, 1, 0
        %v3983 = vsel %vm3878, 1, 0
        %v3984 = vsel %vm3879, 1, 0
        %v3985 = vsel %vm3880, 1, 0
        %v3986 = vsel %vm3881, 1, 0
        %v3987 = vsel %vm3882, 1, 0
        %v3988 = vsel %vm3883, 1, 0
        %v3989 = vsel %vm3884, 1, 0
        %vm3990 = vcmp.eq.s32.totalorder %v3982, 1
        %vm3991 = vcmp.eq.s32.totalorder %v3983, 1
        %vm3992 = vcmp.eq.s32.totalorder %v3984, 1
        %vm3993 = vcmp.eq.s32.totalorder %v3985, 1
        %vm3994 = vcmp.eq.s32.totalorder %v3986, 1
        %vm3995 = vcmp.eq.s32.totalorder %v3987, 1
        %vm3996 = vcmp.eq.s32.totalorder %v3988, 1
        %vm3997 = vcmp.eq.s32.totalorder %v3989, 1
        %v3998 = vsel %vm3990, %v3974, 0.0
        %v3999 = vsel %vm3991, %v3975, 0.0
        %v4000 = vsel %vm3992, %v3976, 0.0
        %v4001 = vsel %vm3993, %v3977, 0.0
        %v4002 = vsel %vm3994, %v3978, 0.0
        %v4003 = vsel %vm3995, %v3979, 0.0
        %v4004 = vsel %vm3996, %v3980, 0.0
        %v4005 = vsel %vm3997, %v3981, 0.0
        %4014 = vrot.lane.b32.xlu0 %v3998, 16
        %v4015 = vpop.permute.xlu0 %4014
        %4016 = vrot.lane.b32.xlu0 %v3999, 16
        %v4017 = vpop.permute.xlu0 %4016
        %4018 = vrot.lane.b32.xlu0 %v4000, 16
        %v4019 = vpop.permute.xlu0 %4018
        %4020 = vrot.lane.b32.xlu0 %v4001, 16
        %v4021 = vpop.permute.xlu0 %4020
        %4022 = vrot.lane.b32.xlu0 %v4002, 16
        %v4023 = vpop.permute.xlu0 %4022
        %4024 = vrot.lane.b32.xlu0 %v4003, 16
        %v4025 = vpop.permute.xlu0 %4024
        %4026 = vrot.lane.b32.xlu0 %v4004, 16
        %v4027 = vpop.permute.xlu0 %4026
        %4028 = vrot.lane.b32.xlu0 %v4005, 16
        %v4029 = vpop.permute.xlu0 %4028
        %vm4038 = vcmask 195712
        %4039 = vst.msk [vmem:[#allocation10] sm:$0xff] %vm4038, %v4015
        %4040 = vst.msk [vmem:[#allocation10 + $0x8] sm:$0xff] %vm4038, %v4017
        %4041 = vst.msk [vmem:[#allocation10 + $0x10] sm:$0xff] %vm4038, %v4019
        %4042 = vst.msk [vmem:[#allocation10 + $0x18] sm:$0xff] %vm4038, %v4021
        %4043 = vst.msk [vmem:[#allocation10 + $0x20] sm:$0xff] %vm4038, %v4023
        %4044 = vst.msk [vmem:[#allocation10 + $0x28] sm:$0xff] %vm4038, %v4025
        %4045 = vst.msk [vmem:[#allocation10 + $0x30] sm:$0xff] %vm4038, %v4027
        %4046 = vst.msk [vmem:[#allocation10 + $0x38] sm:$0xff] %vm4038, %v4029
        %v4047 = vld [vmem:[#allocation3 + $0xf] sm:$0xff]
        %v4048 = vld [vmem:[#allocation3 + $0x17] sm:$0xff]
        %v4049 = vld [vmem:[#allocation3 + $0x1f] sm:$0xff]
        %v4050 = vld [vmem:[#allocation3 + $0x27] sm:$0xff]
        %v4051 = vld [vmem:[#allocation3 + $0x2f] sm:$0xff]
        %v4052 = vld [vmem:[#allocation3 + $0x37] sm:$0xff]
        %v4053 = vld [vmem:[#allocation3 + $0x3f] sm:$0xff]
        %v4054 = vld [vmem:[#allocation3 + $0x47] sm:$0xff]
        %v4055 = vsel %vm3901, %v4047, 0.0
        %v4056 = vsel %vm3902, %v4048, 0.0
        %v4057 = vsel %vm3903, %v4049, 0.0
        %v4058 = vsel %vm3904, %v4050, 0.0
        %v4059 = vsel %vm3905, %v4051, 0.0
        %v4060 = vsel %vm3906, %v4052, 0.0
        %v4061 = vsel %vm3907, %v4053, 0.0
        %v4062 = vsel %vm3908, %v4054, 0.0
        %4071 = vrot.lane.b32.xlu0 %v4055, 24
        %v4072 = vpop.permute.xlu0 %4071
        %4073 = vrot.lane.b32.xlu0 %v4056, 24
        %v4074 = vpop.permute.xlu0 %4073
        %4075 = vrot.lane.b32.xlu0 %v4057, 24
        %v4076 = vpop.permute.xlu0 %4075
        %4077 = vrot.lane.b32.xlu0 %v4058, 24
        %v4078 = vpop.permute.xlu0 %4077
        %4079 = vrot.lane.b32.xlu0 %v4059, 24
        %v4080 = vpop.permute.xlu0 %4079
        %4081 = vrot.lane.b32.xlu0 %v4060, 24
        %v4082 = vpop.permute.xlu0 %4081
        %4083 = vrot.lane.b32.xlu0 %v4061, 24
        %v4084 = vpop.permute.xlu0 %4083
        %4085 = vrot.lane.b32.xlu0 %v4062, 24
        %v4086 = vpop.permute.xlu0 %4085
        %vm4095 = vcmask 261312
        %4096 = vst.msk [vmem:[#allocation10] sm:$0xff] %vm4095, %v4072
        %4097 = vst.msk [vmem:[#allocation10 + $0x8] sm:$0xff] %vm4095, %v4074
        %4098 = vst.msk [vmem:[#allocation10 + $0x10] sm:$0xff] %vm4095, %v4076
        %4099 = vst.msk [vmem:[#allocation10 + $0x18] sm:$0xff] %vm4095, %v4078
        %4100 = vst.msk [vmem:[#allocation10 + $0x20] sm:$0xff] %vm4095, %v4080
        %4101 = vst.msk [vmem:[#allocation10 + $0x28] sm:$0xff] %vm4095, %v4082
        %4102 = vst.msk [vmem:[#allocation10 + $0x30] sm:$0xff] %vm4095, %v4084
        %4103 = vst.msk [vmem:[#allocation10 + $0x38] sm:$0xff] %vm4095, %v4086
        %v4104 = vld [vmem:[#allocation3 + $0x10] sm:$0xff]
        %v4105 = vld [vmem:[#allocation3 + $0x18] sm:$0xff]
        %v4106 = vld [vmem:[#allocation3 + $0x20] sm:$0xff]
        %v4107 = vld [vmem:[#allocation3 + $0x28] sm:$0xff]
        %v4108 = vld [vmem:[#allocation3 + $0x30] sm:$0xff]
        %v4109 = vld [vmem:[#allocation3 + $0x38] sm:$0xff]
        %v4110 = vld [vmem:[#allocation3 + $0x40] sm:$0xff]
        %v4111 = vld [vmem:[#allocation3 + $0x48] sm:$0xff]
        %4120 = vrot.lane.b32.xlu0 %v4104, 32
        %v4121 = vpop.permute.xlu0 %4120
        %4122 = vrot.lane.b32.xlu0 %v4105, 32
        %v4123 = vpop.permute.xlu0 %4122
        %4124 = vrot.lane.b32.xlu0 %v4106, 32
        %v4125 = vpop.permute.xlu0 %4124
        %4126 = vrot.lane.b32.xlu0 %v4107, 32
        %v4127 = vpop.permute.xlu0 %4126
        %4128 = vrot.lane.b32.xlu0 %v4108, 32
        %v4129 = vpop.permute.xlu0 %4128
        %4130 = vrot.lane.b32.xlu0 %v4109, 32
        %v4131 = vpop.permute.xlu0 %4130
        %4132 = vrot.lane.b32.xlu0 %v4110, 32
        %v4133 = vpop.permute.xlu0 %4132
        %4134 = vrot.lane.b32.xlu0 %v4111, 32
        %v4135 = vpop.permute.xlu0 %4134
        %vm4144 = vcmask 326912
        %4145 = vst.msk [vmem:[#allocation10] sm:$0xff] %vm4144, %v4121
        %4146 = vst.msk [vmem:[#allocation10 + $0x8] sm:$0xff] %vm4144, %v4123
        %4147 = vst.msk [vmem:[#allocation10 + $0x10] sm:$0xff] %vm4144, %v4125
        %4148 = vst.msk [vmem:[#allocation10 + $0x18] sm:$0xff] %vm4144, %v4127
        %4149 = vst.msk [vmem:[#allocation10 + $0x20] sm:$0xff] %vm4144, %v4129
        %4150 = vst.msk [vmem:[#allocation10 + $0x28] sm:$0xff] %vm4144, %v4131
        %4151 = vst.msk [vmem:[#allocation10 + $0x30] sm:$0xff] %vm4144, %v4133
        %4152 = vst.msk [vmem:[#allocation10 + $0x38] sm:$0xff] %vm4144, %v4135
        %v4153 = vld [vmem:[#allocation3 + $0x11] sm:$0xff]
        %v4154 = vld [vmem:[#allocation3 + $0x19] sm:$0xff]
        %v4155 = vld [vmem:[#allocation3 + $0x21] sm:$0xff]
        %v4156 = vld [vmem:[#allocation3 + $0x29] sm:$0xff]
        %v4157 = vld [vmem:[#allocation3 + $0x31] sm:$0xff]
        %v4158 = vld [vmem:[#allocation3 + $0x39] sm:$0xff]
        %v4159 = vld [vmem:[#allocation3 + $0x41] sm:$0xff]
        %v4160 = vld [vmem:[#allocation3 + $0x49] sm:$0xff]
        %v4161 = vsel %vm3990, %v4153, 0.0
        %v4162 = vsel %vm3991, %v4154, 0.0
        %v4163 = vsel %vm3992, %v4155, 0.0
        %v4164 = vsel %vm3993, %v4156, 0.0
        %v4165 = vsel %vm3994, %v4157, 0.0
        %v4166 = vsel %vm3995, %v4158, 0.0
        %v4167 = vsel %vm3996, %v4159, 0.0
        %v4168 = vsel %vm3997, %v4160, 0.0
        %4177 = vrot.lane.b32.xlu0 %v4161, 40
        %v4178 = vpop.permute.xlu0 %4177
        %4179 = vrot.lane.b32.xlu0 %v4162, 40
        %v4180 = vpop.permute.xlu0 %4179
        %4181 = vrot.lane.b32.xlu0 %v4163, 40
        %v4182 = vpop.permute.xlu0 %4181
        %4183 = vrot.lane.b32.xlu0 %v4164, 40
        %v4184 = vpop.permute.xlu0 %4183
        %4185 = vrot.lane.b32.xlu0 %v4165, 40
        %v4186 = vpop.permute.xlu0 %4185
        %4187 = vrot.lane.b32.xlu0 %v4166, 40
        %v4188 = vpop.permute.xlu0 %4187
        %4189 = vrot.lane.b32.xlu0 %v4167, 40
        %v4190 = vpop.permute.xlu0 %4189
        %4191 = vrot.lane.b32.xlu0 %v4168, 40
        %v4192 = vpop.permute.xlu0 %4191
        %vm4201 = vcmask 392512
        %4202 = vst.msk [vmem:[#allocation10] sm:$0xff] %vm4201, %v4178
        %4203 = vst.msk [vmem:[#allocation10 + $0x8] sm:$0xff] %vm4201, %v4180
        %4204 = vst.msk [vmem:[#allocation10 + $0x10] sm:$0xff] %vm4201, %v4182
        %4205 = vst.msk [vmem:[#allocation10 + $0x18] sm:$0xff] %vm4201, %v4184
        %4206 = vst.msk [vmem:[#allocation10 + $0x20] sm:$0xff] %vm4201, %v4186
        %4207 = vst.msk [vmem:[#allocation10 + $0x28] sm:$0xff] %vm4201, %v4188
        %4208 = vst.msk [vmem:[#allocation10 + $0x30] sm:$0xff] %vm4201, %v4190
        %4209 = vst.msk [vmem:[#allocation10 + $0x38] sm:$0xff] %vm4201, %v4192
        %v4210 = vld [vmem:[#allocation3 + $0x17] sm:$0xff]
        %v4211 = vld [vmem:[#allocation3 + $0x1f] sm:$0xff]
        %v4212 = vld [vmem:[#allocation3 + $0x27] sm:$0xff]
        %v4213 = vld [vmem:[#allocation3 + $0x2f] sm:$0xff]
        %v4214 = vld [vmem:[#allocation3 + $0x37] sm:$0xff]
        %v4215 = vld [vmem:[#allocation3 + $0x3f] sm:$0xff]
        %v4216 = vld [vmem:[#allocation3 + $0x47] sm:$0xff]
        %v4217 = vld [vmem:[#allocation3 + $0x4f] sm:$0xff]
        %v4218 = vsel %vm3901, %v4210, 0.0
        %v4219 = vsel %vm3902, %v4211, 0.0
        %v4220 = vsel %vm3903, %v4212, 0.0
        %v4221 = vsel %vm3904, %v4213, 0.0
        %v4222 = vsel %vm3905, %v4214, 0.0
        %v4223 = vsel %vm3906, %v4215, 0.0
        %v4224 = vsel %vm3907, %v4216, 0.0
        %v4225 = vsel %vm3908, %v4217, 0.0
        %4234 = vrot.lane.b32.xlu0 %v4218, 48
        %v4235 = vpop.permute.xlu0 %4234
        %4236 = vrot.lane.b32.xlu0 %v4219, 48
        %v4237 = vpop.permute.xlu0 %4236
        %4238 = vrot.lane.b32.xlu0 %v4220, 48
        %v4239 = vpop.permute.xlu0 %4238
        %4240 = vrot.lane.b32.xlu0 %v4221, 48
        %v4241 = vpop.permute.xlu0 %4240
        %4242 = vrot.lane.b32.xlu0 %v4222, 48
        %v4243 = vpop.permute.xlu0 %4242
        %4244 = vrot.lane.b32.xlu0 %v4223, 48
        %v4245 = vpop.permute.xlu0 %4244
        %4246 = vrot.lane.b32.xlu0 %v4224, 48
        %v4247 = vpop.permute.xlu0 %4246
        %4248 = vrot.lane.b32.xlu0 %v4225, 48
        %v4249 = vpop.permute.xlu0 %4248
        %vm4258 = vcmask 458112
        %4259 = vst.msk [vmem:[#allocation10] sm:$0xff] %vm4258, %v4235
        %4260 = vst.msk [vmem:[#allocation10 + $0x8] sm:$0xff] %vm4258, %v4237
        %4261 = vst.msk [vmem:[#allocation10 + $0x10] sm:$0xff] %vm4258, %v4239
        %4262 = vst.msk [vmem:[#allocation10 + $0x18] sm:$0xff] %vm4258, %v4241
        %4263 = vst.msk [vmem:[#allocation10 + $0x20] sm:$0xff] %vm4258, %v4243
        %4264 = vst.msk [vmem:[#allocation10 + $0x28] sm:$0xff] %vm4258, %v4245
        %4265 = vst.msk [vmem:[#allocation10 + $0x30] sm:$0xff] %vm4258, %v4247
        %4266 = vst.msk [vmem:[#allocation10 + $0x38] sm:$0xff] %vm4258, %v4249
        %v4267 = vld [vmem:[#allocation3 + $0x18] sm:$0xff]
        %v4268 = vld [vmem:[#allocation3 + $0x20] sm:$0xff]
        %v4269 = vld [vmem:[#allocation3 + $0x28] sm:$0xff]
        %v4270 = vld [vmem:[#allocation3 + $0x30] sm:$0xff]
        %v4271 = vld [vmem:[#allocation3 + $0x38] sm:$0xff]
        %v4272 = vld [vmem:[#allocation3 + $0x40] sm:$0xff]
        %v4273 = vld [vmem:[#allocation3 + $0x48] sm:$0xff]
        %v4274 = vld [vmem:[#allocation3 + $0x50] sm:$0xff]
        %4283 = vrot.lane.b32.xlu0 %v4267, 56
        %v4284 = vpop.permute.xlu0 %4283
        %4285 = vrot.lane.b32.xlu0 %v4268, 56
        %v4286 = vpop.permute.xlu0 %4285
        %4287 = vrot.lane.b32.xlu0 %v4269, 56
        %v4288 = vpop.permute.xlu0 %4287
        %4289 = vrot.lane.b32.xlu0 %v4270, 56
        %v4290 = vpop.permute.xlu0 %4289
        %4291 = vrot.lane.b32.xlu0 %v4271, 56
        %v4292 = vpop.permute.xlu0 %4291
        %4293 = vrot.lane.b32.xlu0 %v4272, 56
        %v4294 = vpop.permute.xlu0 %4293
        %4295 = vrot.lane.b32.xlu0 %v4273, 56
        %v4296 = vpop.permute.xlu0 %4295
        %4297 = vrot.lane.b32.xlu0 %v4274, 56
        %v4298 = vpop.permute.xlu0 %4297
        %vm4307 = vcmask 523712
        %4308 = vst.msk [vmem:[#allocation10] sm:$0xff] %vm4307, %v4284
        %4309 = vst.msk [vmem:[#allocation10 + $0x8] sm:$0xff] %vm4307, %v4286
        %4310 = vst.msk [vmem:[#allocation10 + $0x10] sm:$0xff] %vm4307, %v4288
        %4311 = vst.msk [vmem:[#allocation10 + $0x18] sm:$0xff] %vm4307, %v4290
        %4312 = vst.msk [vmem:[#allocation10 + $0x20] sm:$0xff] %vm4307, %v4292
        %4313 = vst.msk [vmem:[#allocation10 + $0x28] sm:$0xff] %vm4307, %v4294
        %4314 = vst.msk [vmem:[#allocation10 + $0x30] sm:$0xff] %vm4307, %v4296
        %4315 = vst.msk [vmem:[#allocation10 + $0x38] sm:$0xff] %vm4307, %v4298
        %v4316 = vld [vmem:[#allocation3 + $0x19] sm:$0xff]
        %v4317 = vld [vmem:[#allocation3 + $0x21] sm:$0xff]
        %v4318 = vld [vmem:[#allocation3 + $0x29] sm:$0xff]
        %v4319 = vld [vmem:[#allocation3 + $0x31] sm:$0xff]
        %v4320 = vld [vmem:[#allocation3 + $0x39] sm:$0xff]
        %v4321 = vld [vmem:[#allocation3 + $0x41] sm:$0xff]
        %v4322 = vld [vmem:[#allocation3 + $0x49] sm:$0xff]
        %v4323 = vld [vmem:[#allocation3 + $0x51] sm:$0xff]
        %v4324 = vsel %vm3990, %v4316, 0.0
        %v4325 = vsel %vm3991, %v4317, 0.0
        %v4326 = vsel %vm3992, %v4318, 0.0
        %v4327 = vsel %vm3993, %v4319, 0.0
        %v4328 = vsel %vm3994, %v4320, 0.0
        %v4329 = vsel %vm3995, %v4321, 0.0
        %v4330 = vsel %vm3996, %v4322, 0.0
        %v4331 = vsel %vm3997, %v4323, 0.0
        %4340 = vrot.lane.b32.xlu0 %v4324, 64
        %v4341 = vpop.permute.xlu0 %4340
        %4342 = vrot.lane.b32.xlu0 %v4325, 64
        %v4343 = vpop.permute.xlu0 %4342
        %4344 = vrot.lane.b32.xlu0 %v4326, 64
        %v4345 = vpop.permute.xlu0 %4344
        %4346 = vrot.lane.b32.xlu0 %v4327, 64
        %v4347 = vpop.permute.xlu0 %4346
        %4348 = vrot.lane.b32.xlu0 %v4328, 64
        %v4349 = vpop.permute.xlu0 %4348
        %4350 = vrot.lane.b32.xlu0 %v4329, 64
        %v4351 = vpop.permute.xlu0 %4350
        %4352 = vrot.lane.b32.xlu0 %v4330, 64
        %v4353 = vpop.permute.xlu0 %4352
        %4354 = vrot.lane.b32.xlu0 %v4331, 64
        %v4355 = vpop.permute.xlu0 %4354
        %vm4364 = vcmask 589312
        %4365 = vst.msk [vmem:[#allocation10] sm:$0xff] %vm4364, %v4341
        %4366 = vst.msk [vmem:[#allocation10 + $0x8] sm:$0xff] %vm4364, %v4343
        %4367 = vst.msk [vmem:[#allocation10 + $0x10] sm:$0xff] %vm4364, %v4345
        %4368 = vst.msk [vmem:[#allocation10 + $0x18] sm:$0xff] %vm4364, %v4347
        %4369 = vst.msk [vmem:[#allocation10 + $0x20] sm:$0xff] %vm4364, %v4349
        %4370 = vst.msk [vmem:[#allocation10 + $0x28] sm:$0xff] %vm4364, %v4351
        %4371 = vst.msk [vmem:[#allocation10 + $0x30] sm:$0xff] %vm4364, %v4353
        %4372 = vst.msk [vmem:[#allocation10 + $0x38] sm:$0xff] %vm4364, %v4355
        %v4373 = vld [vmem:[#allocation10] sm:$0xff]
        %v4374 = vld [vmem:[#allocation10 + $0x8] sm:$0xff]
        %v4375 = vld [vmem:[#allocation10 + $0x10] sm:$0xff]
        %v4376 = vld [vmem:[#allocation10 + $0x18] sm:$0xff]
        %v4377 = vld [vmem:[#allocation10 + $0x20] sm:$0xff]
        %v4378 = vld [vmem:[#allocation10 + $0x28] sm:$0xff]
        %v4379 = vld [vmem:[#allocation10 + $0x30] sm:$0xff]
        %v4380 = vld [vmem:[#allocation10 + $0x38] sm:$0xff]
        %v4381 = vld [vmem:[%s11] sm:$0xff]
        %v4382 = vld [vmem:[%s11 + $0x8] sm:$0xff]
        %v4383 = vld [vmem:[%s11 + $0x10] sm:$0xff]
        %v4384 = vld [vmem:[%s11 + $0x18] sm:$0xff]
        %v4385 = vld [vmem:[%s11 + $0x20] sm:$0xff]
        %v4386 = vld [vmem:[%s11 + $0x28] sm:$0xff]
        %v4387 = vld [vmem:[%s11 + $0x30] sm:$0xff]
        %v4388 = vld [vmem:[%s11 + $0x38] sm:$0xff]
        %v4389 = vld [vmem:[%s11 + $0x40] sm:$0xff]
        %v4390 = vld [vmem:[%s13] sm:$0x1]
        %v4392 = vlaneseq
        %v4393 = vshrl.u32 %v4392, 7
        %v4394 = vsub.s32 0, %v4393
        %v4395 = vrot.slane %v4390, %v4394
        %vm4397 = vcmask 588800
        %v4399 = vsel %vm4397, %v4373, 0
        %v4402 = vsel %vm4397, %v4374, 0
        %v4405 = vsel %vm4397, %v4375, 0
        %v4408 = vsel %vm4397, %v4376, 0
        %v4411 = vsel %vm4397, %v4377, 0
        %v4414 = vsel %vm4397, %v4378, 0
        %v4417 = vsel %vm4397, %v4379, 0
        %v4420 = vsel %vm4397, %v4380, 0
        %4422 = vmatprep.subr.mxu0 0.0
        %4423 = vmatpush1.msra.mxu0 %v4381
        %4424 = vmatprep.subr.mxu0 0.0
        %4425 = vmatpush1.msra.mxu0 %v4382
        %4426 = vmatprep.subr.mxu0 0.0
        %4427 = vmatpush1.msra.mxu0 %v4383
        %4428 = vmatprep.subr.mxu0 0.0
        %4429 = vmatpush1.msra.mxu0 %v4384
        %4430 = vmatprep.subr.mxu0 0.0
        %4431 = vmatpush1.msra.mxu0 %v4385
        %4432 = vmatprep.subr.mxu0 0.0
        %4433 = vmatpush1.msra.mxu0 %v4386
        %4434 = vmatprep.subr.mxu0 0.0
        %4435 = vmatpush1.msra.mxu0 %v4387
        %4436 = vmatprep.subr.mxu0 0.0
        %4437 = vmatpush1.msra.mxu0 %v4388
        %4438 = vmatprep.subr.mxu0 0.0
        %4439 = vmatpush1.msra.mxu0 %v4389
        %4440 = vmatprep.subr.mxu0 0.0
        %4441 = vmatpush1.msra.mxu0 0.0
        %4442 = vmatprep.subr.mxu0 0.0
        %4443 = vmatpush1.msra.mxu0 0.0
        %4444 = vmatprep.subr.mxu0 0.0
        %4445 = vmatpush1.msra.mxu0 0.0
        %4446 = vmatprep.subr.mxu0 0.0
        %4447 = vmatpush1.msra.mxu0 0.0
        %4448 = vmatprep.subr.mxu0 0.0
        %4449 = vmatpush1.msra.mxu0 0.0
        %4450 = vmatprep.subr.mxu0 0.0
        %4451 = vmatpush1.msra.mxu0 0.0
        %4452 = vmatprep.subr.mxu0 0.0
        %4453 = vmatpush1.msra.mxu0 0.0
        %4454 = vmatprep.subr.mxu0 0.0
        %4455 = vmatpush1.msra.mxu0 0.0
        %4456 = vmatprep.subr.mxu0 0.0
        %4457 = vmatpush1.msra.mxu0 0.0
        %4458 = vmatprep.subr.mxu0 0.0
        %4459 = vmatpush1.msra.mxu0 0.0
        %4460 = vmatprep.subr.mxu0 0.0
        %4461 = vmatpush1.msra.mxu0 0.0
        %4462 = vmatprep.subr.mxu0 0.0
        %4463 = vmatpush1.msra.mxu0 0.0
        %4464 = vmatprep.subr.mxu0 0.0
        %4465 = vmatpush1.msra.mxu0 0.0
        %4466 = vmatprep.subr.mxu0 0.0
        %4467 = vmatpush1.msra.mxu0 0.0
        %4468 = vmatprep.subr.mxu0 0.0
        %4469 = vmatpush1.msra.mxu0 0.0
        %4470 = vmatprep.subr.mxu0 0.0
        %4471 = vmatpush1.msra.mxu0 0.0
        %4472 = vmatprep.subr.mxu0 0.0
        %4473 = vmatpush1.msra.mxu0 0.0
        %4474 = vmatprep.subr.mxu0 0.0
        %4475 = vmatpush1.msra.mxu0 0.0
        %4476 = vmatprep.subr.mxu0 0.0
        %4477 = vmatpush1.msra.mxu0 0.0
        %4478 = vmatprep.subr.mxu0 0.0
        %4479 = vmatpush1.msra.mxu0 0.0
        %4480 = vmatprep.subr.mxu0 0.0
        %4481 = vmatpush1.msra.mxu0 0.0
        %4482 = vmatprep.subr.mxu0 0.0
        %4483 = vmatpush1.msra.mxu0 0.0
        %4484 = vmatprep.subr.mxu0 0.0
        %4485 = vmatpush1.msra.mxu0 0.0
        %4486 = vmatprep.mubr.f32.mxu0 0.0
        %4487 = vmatmul.mubr.f32.gmra.mrb[0].mxu0 %v4399
        %v4488 = vpop.f32.mrb[0].mxu0
        %v4489 = vadd.f32 %v4395, %v4488
        %v4490 = vpop.f32.mrb[0].mxu0
        %4491 = vmatprep.mubr.f32.mxu0 0.0
        %4492 = vmatmul.mubr.f32.gmra.mrb[0].mxu0 %v4402
        %v4493 = vpop.f32.mrb[0].mxu0
        %v4494 = vadd.f32 %v4395, %v4493
        %v4495 = vpop.f32.mrb[0].mxu0
        %4496 = vmatprep.mubr.f32.mxu0 0.0
        %4497 = vmatmul.mubr.f32.gmra.mrb[0].mxu0 %v4405
        %v4498 = vpop.f32.mrb[0].mxu0
        %v4499 = vadd.f32 %v4395, %v4498
        %v4500 = vpop.f32.mrb[0].mxu0
        %4501 = vmatprep.mubr.f32.mxu0 0.0
        %4502 = vmatmul.mubr.f32.gmra.mrb[0].mxu0 %v4408
        %v4503 = vpop.f32.mrb[0].mxu0
        %v4504 = vadd.f32 %v4395, %v4503
        %v4505 = vpop.f32.mrb[0].mxu0
        %4506 = vmatprep.mubr.f32.mxu0 0.0
        %4507 = vmatmul.mubr.f32.gmra.mrb[0].mxu0 %v4411
        %v4508 = vpop.f32.mrb[0].mxu0
        %v4509 = vadd.f32 %v4395, %v4508
        %v4510 = vpop.f32.mrb[0].mxu0
        %4511 = vmatprep.mubr.f32.mxu0 0.0
        %4512 = vmatmul.mubr.f32.gmra.mrb[0].mxu0 %v4414
        %v4513 = vpop.f32.mrb[0].mxu0
        %v4514 = vadd.f32 %v4395, %v4513
        %v4515 = vpop.f32.mrb[0].mxu0
        %4516 = vmatprep.mubr.f32.mxu0 0.0
        %4517 = vmatmul.mubr.f32.gmra.mrb[0].mxu0 %v4417
        %v4518 = vpop.f32.mrb[0].mxu0
        %v4519 = vadd.f32 %v4395, %v4518
        %v4520 = vpop.f32.mrb[0].mxu0
        %4521 = vmatprep.mubr.f32.mxu0 0.0
        %4522 = vmatmul.mubr.f32.gmra.mrb[0].mxu0 %v4420
        %v4523 = vpop.f32.mrb[0].mxu0
        %v4524 = vadd.f32 %v4395, %v4523
        %v4525 = vpop.f32.mrb[0].mxu0
        %4526 = vdwg.mxu0
        %v4527 = vmax.f32 %v4489, 0.0
        %v4528 = vmax.f32 %v4494, 0.0
        %v4529 = vmax.f32 %v4499, 0.0
        %v4530 = vmax.f32 %v4504, 0.0
        %v4531 = vmax.f32 %v4509, 0.0
        %v4532 = vmax.f32 %v4514, 0.0
        %v4533 = vmax.f32 %v4519, 0.0
        %v4534 = vmax.f32 %v4524, 0.0
        %v4535 = vld [vmem:[%s15] sm:$0x1]
        %v4537 = vlaneseq
        %v4538 = vshrl.u32 %v4537, 7
        %v4539 = vsub.s32 0, %v4538
        %v4540 = vrot.slane %v4535, %v4539
        %v4542 = vmul.f32 %v4527, %v4540
        %v4543 = vmul.f32 %v4528, %v4540
        %v4544 = vmul.f32 %v4529, %v4540
        %v4545 = vmul.f32 %v4530, %v4540
        %v4546 = vmul.f32 %v4531, %v4540
        %v4547 = vmul.f32 %v4532, %v4540
        %v4548 = vmul.f32 %v4533, %v4540
        %v4549 = vmul.f32 %v4534, %v4540
        %v4550 = vld [vmem:[%s17] sm:$0x1]
        %v4552 = vlaneseq
        %v4553 = vshrl.u32 %v4552, 7
        %v4554 = vsub.s32 0, %v4553
        %v4555 = vrot.slane %v4550, %v4554
        %v4557 = vadd.f32 %v4542, %v4555
        %v4558 = vadd.f32 %v4543, %v4555
        %v4559 = vadd.f32 %v4544, %v4555
        %v4560 = vadd.f32 %v4545, %v4555
        %v4561 = vadd.f32 %v4546, %v4555
        %v4562 = vadd.f32 %v4547, %v4555
        %v4563 = vadd.f32 %v4548, %v4555
        %v4564 = vadd.f32 %v4549, %v4555
        %4565 = vst.msk [vmem:[#allocation4 + $0x10] sm:$0xff] %vm3856, %v4557
        %4566 = vst.msk [vmem:[#allocation4 + $0x18] sm:$0xff] %vm3856, %v4558
        %4567 = vst.msk [vmem:[#allocation4 + $0x20] sm:$0xff] %vm3856, %v4559
        %4568 = vst.msk [vmem:[#allocation4 + $0x28] sm:$0xff] %vm3856, %v4560
        %4569 = vst.msk [vmem:[#allocation4 + $0x30] sm:$0xff] %vm3856, %v4561
        %4570 = vst.msk [vmem:[#allocation4 + $0x38] sm:$0xff] %vm3856, %v4562
        %4571 = vst.msk [vmem:[#allocation4 + $0x40] sm:$0xff] %vm3856, %v4563
        %4572 = vst.msk [vmem:[#allocation4 + $0x48] sm:$0xff] %vm3856, %v4564
        %4573 = vst.msk [vmem:[#allocation5] sm:$0xff] %vm3856, 0.0
        %4574 = vst.msk [vmem:[#allocation5 + $0x18] sm:$0xff] %vm3856, 0.0
        %v4575 = vld [vmem:[#allocation4 + $0x7] sm:$0xff]
        %v4576 = vld [vmem:[#allocation4 + $0xf] sm:$0xff]
        %v4577 = vld [vmem:[#allocation4 + $0x17] sm:$0xff]
        %v4578 = vld [vmem:[#allocation4 + $0x1f] sm:$0xff]
        %v4579 = vld [vmem:[#allocation4 + $0x27] sm:$0xff]
        %v4580 = vld [vmem:[#allocation4 + $0x2f] sm:$0xff]
        %v4581 = vld [vmem:[#allocation4 + $0x37] sm:$0xff]
        %v4582 = vld [vmem:[#allocation4 + $0x3f] sm:$0xff]
        %v4583 = vsel %vm3901, %v4575, 0.0
        %v4584 = vsel %vm3902, %v4576, 0.0
        %v4585 = vsel %vm3903, %v4577, 0.0
        %v4586 = vsel %vm3904, %v4578, 0.0
        %v4587 = vsel %vm3905, %v4579, 0.0
        %v4588 = vsel %vm3906, %v4580, 0.0
        %v4589 = vsel %vm3907, %v4581, 0.0
        %v4590 = vsel %vm3908, %v4582, 0.0
        %4591 = vst.msk [vmem:[#allocation11] sm:$0xff] %vm3856, %v4583
        %4592 = vst.msk [vmem:[#allocation11 + $0x10] sm:$0xff] %vm3856, %v4584
        %4593 = vst.msk [vmem:[#allocation11 + $0x20] sm:$0xff] %vm3856, %v4585
        %4594 = vst.msk [vmem:[#allocation11 + $0x30] sm:$0xff] %vm3856, %v4586
        %4595 = vst.msk [vmem:[#allocation11 + $0x40] sm:$0xff] %vm3856, %v4587
        %4596 = vst.msk [vmem:[#allocation11 + $0x50] sm:$0xff] %vm3856, %v4588
        %4597 = vst.msk [vmem:[#allocation11 + $0x60] sm:$0xff] %vm3856, %v4589
        %4598 = vst.msk [vmem:[#allocation11 + $0x70] sm:$0xff] %vm3856, %v4590
        %v4599 = vld [vmem:[#allocation4 + $0x8] sm:$0xff]
        %v4600 = vld [vmem:[#allocation4 + $0x10] sm:$0xff]
        %v4601 = vld [vmem:[#allocation4 + $0x18] sm:$0xff]
        %v4602 = vld [vmem:[#allocation4 + $0x20] sm:$0xff]
        %v4603 = vld [vmem:[#allocation4 + $0x28] sm:$0xff]
        %v4604 = vld [vmem:[#allocation4 + $0x30] sm:$0xff]
        %v4605 = vld [vmem:[#allocation4 + $0x38] sm:$0xff]
        %v4606 = vld [vmem:[#allocation4 + $0x40] sm:$0xff]
        %4615 = vrot.lane.b32.xlu0 %v4599, 16
        %v4616 = vpop.permute.xlu0 %4615
        %4617 = vrot.lane.b32.xlu0 %v4600, 16
        %v4618 = vpop.permute.xlu0 %4617
        %4619 = vrot.lane.b32.xlu0 %v4601, 16
        %v4620 = vpop.permute.xlu0 %4619
        %4621 = vrot.lane.b32.xlu0 %v4602, 16
        %v4622 = vpop.permute.xlu0 %4621
        %4623 = vrot.lane.b32.xlu0 %v4603, 16
        %v4624 = vpop.permute.xlu0 %4623
        %4625 = vrot.lane.b32.xlu0 %v4604, 16
        %v4626 = vpop.permute.xlu0 %4625
        %4627 = vrot.lane.b32.xlu0 %v4605, 16
        %v4628 = vpop.permute.xlu0 %4627
        %4629 = vrot.lane.b32.xlu0 %v4606, 16
        %v4630 = vpop.permute.xlu0 %4629
        %vm4639 = vcmask 261248
        %4640 = vst.msk [vmem:[#allocation11] sm:$0xff] %vm4639, %v4616
        %4641 = vst.msk [vmem:[#allocation11 + $0x10] sm:$0xff] %vm4639, %v4618
        %4642 = vst.msk [vmem:[#allocation11 + $0x20] sm:$0xff] %vm4639, %v4620
        %4643 = vst.msk [vmem:[#allocation11 + $0x30] sm:$0xff] %vm4639, %v4622
        %4644 = vst.msk [vmem:[#allocation11 + $0x40] sm:$0xff] %vm4639, %v4624
        %4645 = vst.msk [vmem:[#allocation11 + $0x50] sm:$0xff] %vm4639, %v4626
        %4646 = vst.msk [vmem:[#allocation11 + $0x60] sm:$0xff] %vm4639, %v4628
        %4647 = vst.msk [vmem:[#allocation11 + $0x70] sm:$0xff] %vm4639, %v4630
        %v4648 = vld [vmem:[#allocation4 + $0x9] sm:$0xff]
        %v4649 = vld [vmem:[#allocation4 + $0x11] sm:$0xff]
        %v4650 = vld [vmem:[#allocation4 + $0x19] sm:$0xff]
        %v4651 = vld [vmem:[#allocation4 + $0x21] sm:$0xff]
        %v4652 = vld [vmem:[#allocation4 + $0x29] sm:$0xff]
        %v4653 = vld [vmem:[#allocation4 + $0x31] sm:$0xff]
        %v4654 = vld [vmem:[#allocation4 + $0x39] sm:$0xff]
        %v4655 = vld [vmem:[#allocation4 + $0x41] sm:$0xff]
        %v4656 = vsel %vm3990, %v4648, 0.0
        %v4657 = vsel %vm3991, %v4649, 0.0
        %v4658 = vsel %vm3992, %v4650, 0.0
        %v4659 = vsel %vm3993, %v4651, 0.0
        %v4660 = vsel %vm3994, %v4652, 0.0
        %v4661 = vsel %vm3995, %v4653, 0.0
        %v4662 = vsel %vm3996, %v4654, 0.0
        %v4663 = vsel %vm3997, %v4655, 0.0
        %4672 = vrot.lane.b32.xlu0 %v4656, 32
        %v4673 = vpop.permute.xlu0 %4672
        %4674 = vrot.lane.b32.xlu0 %v4657, 32
        %v4675 = vpop.permute.xlu0 %4674
        %4676 = vrot.lane.b32.xlu0 %v4658, 32
        %v4677 = vpop.permute.xlu0 %4676
        %4678 = vrot.lane.b32.xlu0 %v4659, 32
        %v4679 = vpop.permute.xlu0 %4678
        %4680 = vrot.lane.b32.xlu0 %v4660, 32
        %v4681 = vpop.permute.xlu0 %4680
        %4682 = vrot.lane.b32.xlu0 %v4661, 32
        %v4683 = vpop.permute.xlu0 %4682
        %4684 = vrot.lane.b32.xlu0 %v4662, 32
        %v4685 = vpop.permute.xlu0 %4684
        %4686 = vrot.lane.b32.xlu0 %v4663, 32
        %v4687 = vpop.permute.xlu0 %4686
        %vm4696 = vcmask 392448
        %4697 = vst.msk [vmem:[#allocation11] sm:$0xff] %vm4696, %v4673
        %4698 = vst.msk [vmem:[#allocation11 + $0x10] sm:$0xff] %vm4696, %v4675
        %4699 = vst.msk [vmem:[#allocation11 + $0x20] sm:$0xff] %vm4696, %v4677
        %4700 = vst.msk [vmem:[#allocation11 + $0x30] sm:$0xff] %vm4696, %v4679
        %4701 = vst.msk [vmem:[#allocation11 + $0x40] sm:$0xff] %vm4696, %v4681
        %4702 = vst.msk [vmem:[#allocation11 + $0x50] sm:$0xff] %vm4696, %v4683
        %4703 = vst.msk [vmem:[#allocation11 + $0x60] sm:$0xff] %vm4696, %v4685
        %4704 = vst.msk [vmem:[#allocation11 + $0x70] sm:$0xff] %vm4696, %v4687
        %v4705 = vld [vmem:[#allocation4 + $0xf] sm:$0xff]
        %v4706 = vld [vmem:[#allocation4 + $0x17] sm:$0xff]
        %v4707 = vld [vmem:[#allocation4 + $0x1f] sm:$0xff]
        %v4708 = vld [vmem:[#allocation4 + $0x27] sm:$0xff]
        %v4709 = vld [vmem:[#allocation4 + $0x2f] sm:$0xff]
        %v4710 = vld [vmem:[#allocation4 + $0x37] sm:$0xff]
        %v4711 = vld [vmem:[#allocation4 + $0x3f] sm:$0xff]
        %v4712 = vld [vmem:[#allocation4 + $0x47] sm:$0xff]
        %v4713 = vsel %vm3901, %v4705, 0.0
        %v4714 = vsel %vm3902, %v4706, 0.0
        %v4715 = vsel %vm3903, %v4707, 0.0
        %v4716 = vsel %vm3904, %v4708, 0.0
        %v4717 = vsel %vm3905, %v4709, 0.0
        %v4718 = vsel %vm3906, %v4710, 0.0
        %v4719 = vsel %vm3907, %v4711, 0.0
        %v4720 = vsel %vm3908, %v4712, 0.0
        %4729 = vrot.lane.b32.xlu0 %v4713, 48
        %v4730 = vpop.permute.xlu0 %4729
        %4731 = vrot.lane.b32.xlu0 %v4714, 48
        %v4732 = vpop.permute.xlu0 %4731
        %4733 = vrot.lane.b32.xlu0 %v4715, 48
        %v4734 = vpop.permute.xlu0 %4733
        %4735 = vrot.lane.b32.xlu0 %v4716, 48
        %v4736 = vpop.permute.xlu0 %4735
        %4737 = vrot.lane.b32.xlu0 %v4717, 48
        %v4738 = vpop.permute.xlu0 %4737
        %4739 = vrot.lane.b32.xlu0 %v4718, 48
        %v4740 = vpop.permute.xlu0 %4739
        %4741 = vrot.lane.b32.xlu0 %v4719, 48
        %v4742 = vpop.permute.xlu0 %4741
        %4743 = vrot.lane.b32.xlu0 %v4720, 48
        %v4744 = vpop.permute.xlu0 %4743
        %vm4753 = vcmask 523648
        %4754 = vst.msk [vmem:[#allocation11] sm:$0xff] %vm4753, %v4730
        %4755 = vst.msk [vmem:[#allocation11 + $0x10] sm:$0xff] %vm4753, %v4732
        %4756 = vst.msk [vmem:[#allocation11 + $0x20] sm:$0xff] %vm4753, %v4734
        %4757 = vst.msk [vmem:[#allocation11 + $0x30] sm:$0xff] %vm4753, %v4736
        %4758 = vst.msk [vmem:[#allocation11 + $0x40] sm:$0xff] %vm4753, %v4738
        %4759 = vst.msk [vmem:[#allocation11 + $0x50] sm:$0xff] %vm4753, %v4740
        %4760 = vst.msk [vmem:[#allocation11 + $0x60] sm:$0xff] %vm4753, %v4742
        %4761 = vst.msk [vmem:[#allocation11 + $0x70] sm:$0xff] %vm4753, %v4744
        %v4762 = vld [vmem:[#allocation4 + $0x10] sm:$0xff]
        %v4763 = vld [vmem:[#allocation4 + $0x18] sm:$0xff]
        %v4764 = vld [vmem:[#allocation4 + $0x20] sm:$0xff]
        %v4765 = vld [vmem:[#allocation4 + $0x28] sm:$0xff]
        %v4766 = vld [vmem:[#allocation4 + $0x30] sm:$0xff]
        %v4767 = vld [vmem:[#allocation4 + $0x38] sm:$0xff]
        %v4768 = vld [vmem:[#allocation4 + $0x40] sm:$0xff]
        %v4769 = vld [vmem:[#allocation4 + $0x48] sm:$0xff]
        %4778 = vrot.lane.b32.xlu0 %v4762, 64
        %v4779 = vpop.permute.xlu0 %4778
        %4780 = vrot.lane.b32.xlu0 %v4763, 64
        %v4781 = vpop.permute.xlu0 %4780
        %4782 = vrot.lane.b32.xlu0 %v4764, 64
        %v4783 = vpop.permute.xlu0 %4782
        %4784 = vrot.lane.b32.xlu0 %v4765, 64
        %v4785 = vpop.permute.xlu0 %4784
        %4786 = vrot.lane.b32.xlu0 %v4766, 64
        %v4787 = vpop.permute.xlu0 %4786
        %4788 = vrot.lane.b32.xlu0 %v4767, 64
        %v4789 = vpop.permute.xlu0 %4788
        %4790 = vrot.lane.b32.xlu0 %v4768, 64
        %v4791 = vpop.permute.xlu0 %4790
        %4792 = vrot.lane.b32.xlu0 %v4769, 64
        %v4793 = vpop.permute.xlu0 %4792
        %vm4802 = vcmask 654848
        %4803 = vst.msk [vmem:[#allocation11] sm:$0xff] %vm4802, %v4779
        %4804 = vst.msk [vmem:[#allocation11 + $0x10] sm:$0xff] %vm4802, %v4781
        %4805 = vst.msk [vmem:[#allocation11 + $0x20] sm:$0xff] %vm4802, %v4783
        %4806 = vst.msk [vmem:[#allocation11 + $0x30] sm:$0xff] %vm4802, %v4785
        %4807 = vst.msk [vmem:[#allocation11 + $0x40] sm:$0xff] %vm4802, %v4787
        %4808 = vst.msk [vmem:[#allocation11 + $0x50] sm:$0xff] %vm4802, %v4789
        %4809 = vst.msk [vmem:[#allocation11 + $0x60] sm:$0xff] %vm4802, %v4791
        %4810 = vst.msk [vmem:[#allocation11 + $0x70] sm:$0xff] %vm4802, %v4793
        %v4811 = vld [vmem:[#allocation4 + $0x11] sm:$0xff]
        %v4812 = vld [vmem:[#allocation4 + $0x19] sm:$0xff]
        %v4813 = vld [vmem:[#allocation4 + $0x21] sm:$0xff]
        %v4814 = vld [vmem:[#allocation4 + $0x29] sm:$0xff]
        %v4815 = vld [vmem:[#allocation4 + $0x31] sm:$0xff]
        %v4816 = vld [vmem:[#allocation4 + $0x39] sm:$0xff]
        %v4817 = vld [vmem:[#allocation4 + $0x41] sm:$0xff]
        %v4818 = vld [vmem:[#allocation4 + $0x49] sm:$0xff]
        %v4819 = vsel %vm3990, %v4811, 0.0
        %v4820 = vsel %vm3991, %v4812, 0.0
        %v4821 = vsel %vm3992, %v4813, 0.0
        %v4822 = vsel %vm3993, %v4814, 0.0
        %v4823 = vsel %vm3994, %v4815, 0.0
        %v4824 = vsel %vm3995, %v4816, 0.0
        %v4825 = vsel %vm3996, %v4817, 0.0
        %v4826 = vsel %vm3997, %v4818, 0.0
        %4835 = vrot.lane.b32.xlu0 %v4819, 80
        %v4836 = vpop.permute.xlu0 %4835
        %4837 = vrot.lane.b32.xlu0 %v4820, 80
        %v4838 = vpop.permute.xlu0 %4837
        %4839 = vrot.lane.b32.xlu0 %v4821, 80
        %v4840 = vpop.permute.xlu0 %4839
        %4841 = vrot.lane.b32.xlu0 %v4822, 80
        %v4842 = vpop.permute.xlu0 %4841
        %4843 = vrot.lane.b32.xlu0 %v4823, 80
        %v4844 = vpop.permute.xlu0 %4843
        %4845 = vrot.lane.b32.xlu0 %v4824, 80
        %v4846 = vpop.permute.xlu0 %4845
        %4847 = vrot.lane.b32.xlu0 %v4825, 80
        %v4848 = vpop.permute.xlu0 %4847
        %4849 = vrot.lane.b32.xlu0 %v4826, 80
        %v4850 = vpop.permute.xlu0 %4849
        %vm4859 = vcmask 786048
        %4860 = vst.msk [vmem:[#allocation11] sm:$0xff] %vm4859, %v4836
        %4861 = vst.msk [vmem:[#allocation11 + $0x10] sm:$0xff] %vm4859, %v4838
        %4862 = vst.msk [vmem:[#allocation11 + $0x20] sm:$0xff] %vm4859, %v4840
        %4863 = vst.msk [vmem:[#allocation11 + $0x30] sm:$0xff] %vm4859, %v4842
        %4864 = vst.msk [vmem:[#allocation11 + $0x40] sm:$0xff] %vm4859, %v4844
        %4865 = vst.msk [vmem:[#allocation11 + $0x50] sm:$0xff] %vm4859, %v4846
        %4866 = vst.msk [vmem:[#allocation11 + $0x60] sm:$0xff] %vm4859, %v4848
        %4867 = vst.msk [vmem:[#allocation11 + $0x70] sm:$0xff] %vm4859, %v4850
        %v4868 = vld [vmem:[#allocation4 + $0x17] sm:$0xff]
        %v4869 = vld [vmem:[#allocation4 + $0x1f] sm:$0xff]
        %v4870 = vld [vmem:[#allocation4 + $0x27] sm:$0xff]
        %v4871 = vld [vmem:[#allocation4 + $0x2f] sm:$0xff]
        %v4872 = vld [vmem:[#allocation4 + $0x37] sm:$0xff]
        %v4873 = vld [vmem:[#allocation4 + $0x3f] sm:$0xff]
        %v4874 = vld [vmem:[#allocation4 + $0x47] sm:$0xff]
        %v4875 = vld [vmem:[#allocation4 + $0x4f] sm:$0xff]
        %v4876 = vsel %vm3901, %v4868, 0.0
        %v4877 = vsel %vm3902, %v4869, 0.0
        %v4878 = vsel %vm3903, %v4870, 0.0
        %v4879 = vsel %vm3904, %v4871, 0.0
        %v4880 = vsel %vm3905, %v4872, 0.0
        %v4881 = vsel %vm3906, %v4873, 0.0
        %v4882 = vsel %vm3907, %v4874, 0.0
        %v4883 = vsel %vm3908, %v4875, 0.0
        %4892 = vrot.lane.b32.xlu0 %v4876, 96
        %v4893 = vpop.permute.xlu0 %4892
        %4894 = vrot.lane.b32.xlu0 %v4877, 96
        %v4895 = vpop.permute.xlu0 %4894
        %4896 = vrot.lane.b32.xlu0 %v4878, 96
        %v4897 = vpop.permute.xlu0 %4896
        %4898 = vrot.lane.b32.xlu0 %v4879, 96
        %v4899 = vpop.permute.xlu0 %4898
        %4900 = vrot.lane.b32.xlu0 %v4880, 96
        %v4901 = vpop.permute.xlu0 %4900
        %4902 = vrot.lane.b32.xlu0 %v4881, 96
        %v4903 = vpop.permute.xlu0 %4902
        %4904 = vrot.lane.b32.xlu0 %v4882, 96
        %v4905 = vpop.permute.xlu0 %4904
        %4906 = vrot.lane.b32.xlu0 %v4883, 96
        %v4907 = vpop.permute.xlu0 %4906
        %vm4916 = vcmask 917248
        %4917 = vst.msk [vmem:[#allocation11] sm:$0xff] %vm4916, %v4893
        %4918 = vst.msk [vmem:[#allocation11 + $0x10] sm:$0xff] %vm4916, %v4895
        %4919 = vst.msk [vmem:[#allocation11 + $0x20] sm:$0xff] %vm4916, %v4897
        %4920 = vst.msk [vmem:[#allocation11 + $0x30] sm:$0xff] %vm4916, %v4899
        %4921 = vst.msk [vmem:[#allocation11 + $0x40] sm:$0xff] %vm4916, %v4901
        %4922 = vst.msk [vmem:[#allocation11 + $0x50] sm:$0xff] %vm4916, %v4903
        %4923 = vst.msk [vmem:[#allocation11 + $0x60] sm:$0xff] %vm4916, %v4905
        %4924 = vst.msk [vmem:[#allocation11 + $0x70] sm:$0xff] %vm4916, %v4907
        %v4925 = vld [vmem:[#allocation4 + $0x18] sm:$0xff]
        %v4926 = vld [vmem:[#allocation4 + $0x20] sm:$0xff]
        %v4927 = vld [vmem:[#allocation4 + $0x28] sm:$0xff]
        %v4928 = vld [vmem:[#allocation4 + $0x30] sm:$0xff]
        %v4929 = vld [vmem:[#allocation4 + $0x38] sm:$0xff]
        %v4930 = vld [vmem:[#allocation4 + $0x40] sm:$0xff]
        %v4931 = vld [vmem:[#allocation4 + $0x48] sm:$0xff]
        %v4932 = vld [vmem:[#allocation4 + $0x50] sm:$0xff]
        %4941 = vrot.lane.b32.xlu0 %v4925, 112
        %v4942 = vpop.permute.xlu0 %4941
        %4943 = vrot.lane.b32.xlu0 %v4926, 112
        %v4944 = vpop.permute.xlu0 %4943
        %4945 = vrot.lane.b32.xlu0 %v4927, 112
        %v4946 = vpop.permute.xlu0 %4945
        %4947 = vrot.lane.b32.xlu0 %v4928, 112
        %v4948 = vpop.permute.xlu0 %4947
        %4949 = vrot.lane.b32.xlu0 %v4929, 112
        %v4950 = vpop.permute.xlu0 %4949
        %4951 = vrot.lane.b32.xlu0 %v4930, 112
        %v4952 = vpop.permute.xlu0 %4951
        %4953 = vrot.lane.b32.xlu0 %v4931, 112
        %v4954 = vpop.permute.xlu0 %4953
        %4955 = vrot.lane.b32.xlu0 %v4932, 112
        %v4956 = vpop.permute.xlu0 %4955
        %vm4965 = vcmask 1048448
        %4966 = vst.msk [vmem:[#allocation11] sm:$0xff] %vm4965, %v4942
        %4967 = vst.msk [vmem:[#allocation11 + $0x10] sm:$0xff] %vm4965, %v4944
        %4968 = vst.msk [vmem:[#allocation11 + $0x20] sm:$0xff] %vm4965, %v4946
        %4969 = vst.msk [vmem:[#allocation11 + $0x30] sm:$0xff] %vm4965, %v4948
        %4970 = vst.msk [vmem:[#allocation11 + $0x40] sm:$0xff] %vm4965, %v4950
        %4971 = vst.msk [vmem:[#allocation11 + $0x50] sm:$0xff] %vm4965, %v4952
        %4972 = vst.msk [vmem:[#allocation11 + $0x60] sm:$0xff] %vm4965, %v4954
        %4973 = vst.msk [vmem:[#allocation11 + $0x70] sm:$0xff] %vm4965, %v4956
        %v4974 = vld [vmem:[#allocation4 + $0x19] sm:$0xff]
        %v4975 = vld [vmem:[#allocation4 + $0x21] sm:$0xff]
        %v4976 = vld [vmem:[#allocation4 + $0x29] sm:$0xff]
        %v4977 = vld [vmem:[#allocation4 + $0x31] sm:$0xff]
        %v4978 = vld [vmem:[#allocation4 + $0x39] sm:$0xff]
        %v4979 = vld [vmem:[#allocation4 + $0x41] sm:$0xff]
        %v4980 = vld [vmem:[#allocation4 + $0x49] sm:$0xff]
        %v4981 = vld [vmem:[#allocation4 + $0x51] sm:$0xff]
        %v4982 = vsel %vm3990, %v4974, 0.0
        %v4983 = vsel %vm3991, %v4975, 0.0
        %v4984 = vsel %vm3992, %v4976, 0.0
        %v4985 = vsel %vm3993, %v4977, 0.0
        %v4986 = vsel %vm3994, %v4978, 0.0
        %v4987 = vsel %vm3995, %v4979, 0.0
        %v4988 = vsel %vm3996, %v4980, 0.0
        %v4989 = vsel %vm3997, %v4981, 0.0
        %4990 = vst.msk [vmem:[#allocation11 + $0x8] sm:$0xff] %vm3856, %v4982
        %4991 = vst.msk [vmem:[#allocation11 + $0x18] sm:$0xff] %vm3856, %v4983
        %4992 = vst.msk [vmem:[#allocation11 + $0x28] sm:$0xff] %vm3856, %v4984
        %4993 = vst.msk [vmem:[#allocation11 + $0x38] sm:$0xff] %vm3856, %v4985
        %4994 = vst.msk [vmem:[#allocation11 + $0x48] sm:$0xff] %vm3856, %v4986
        %4995 = vst.msk [vmem:[#allocation11 + $0x58] sm:$0xff] %vm3856, %v4987
        %4996 = vst.msk [vmem:[#allocation11 + $0x68] sm:$0xff] %vm3856, %v4988
        %4997 = vst.msk [vmem:[#allocation11 + $0x78] sm:$0xff] %vm3856, %v4989
        %v4998 = vld [vmem:[#allocation11] sm:$0xff]
        %v4999 = vld [vmem:[#allocation11 + $0x8] sm:$0xff]
        %v5000 = vld [vmem:[#allocation11 + $0x10] sm:$0xff]
        %v5001 = vld [vmem:[#allocation11 + $0x18] sm:$0xff]
        %v5002 = vld [vmem:[#allocation11 + $0x20] sm:$0xff]
        %v5003 = vld [vmem:[#allocation11 + $0x28] sm:$0xff]
        %v5004 = vld [vmem:[#allocation11 + $0x30] sm:$0xff]
        %v5005 = vld [vmem:[#allocation11 + $0x38] sm:$0xff]
        %v5006 = vld [vmem:[#allocation11 + $0x40] sm:$0xff]
        %v5007 = vld [vmem:[#allocation11 + $0x48] sm:$0xff]
        %v5008 = vld [vmem:[#allocation11 + $0x50] sm:$0xff]
        %v5009 = vld [vmem:[#allocation11 + $0x58] sm:$0xff]
        %v5010 = vld [vmem:[#allocation11 + $0x60] sm:$0xff]
        %v5011 = vld [vmem:[#allocation11 + $0x68] sm:$0xff]
        %v5012 = vld [vmem:[#allocation11 + $0x70] sm:$0xff]
        %v5013 = vld [vmem:[#allocation11 + $0x78] sm:$0xff]
        %v5014 = vld [vmem:[%s19] sm:$0xff]
        %v5015 = vld [vmem:[%s19 + $0x8] sm:$0xff]
        %v5016 = vld [vmem:[%s19 + $0x10] sm:$0xff]
        %v5017 = vld [vmem:[%s19 + $0x18] sm:$0xff]
        %v5018 = vld [vmem:[%s19 + $0x20] sm:$0xff]
        %v5019 = vld [vmem:[%s19 + $0x28] sm:$0xff]
        %v5020 = vld [vmem:[%s19 + $0x30] sm:$0xff]
        %v5021 = vld [vmem:[%s19 + $0x38] sm:$0xff]
        %v5022 = vld [vmem:[%s19 + $0x40] sm:$0xff]
        %v5023 = vld [vmem:[%s19 + $0x48] sm:$0xff]
        %v5024 = vld [vmem:[%s19 + $0x50] sm:$0xff]
        %v5025 = vld [vmem:[%s19 + $0x58] sm:$0xff]
        %v5026 = vld [vmem:[%s19 + $0x60] sm:$0xff]
        %v5027 = vld [vmem:[%s19 + $0x68] sm:$0xff]
        %v5028 = vld [vmem:[%s19 + $0x70] sm:$0xff]
        %v5029 = vld [vmem:[%s19 + $0x78] sm:$0xff]
        %v5030 = vld [vmem:[%s19 + $0x80] sm:$0xff]
        %v5031 = vld [vmem:[%s19 + $0x88] sm:$0xff]
        %v5032 = vld [vmem:[%s21] sm:$0x1]
        %v5034 = vlaneseq
        %v5035 = vshrl.u32 %v5034, 7
        %v5036 = vsub.s32 0, %v5035
        %v5037 = vrot.slane %v5032, %v5036
        %v5040 = vsel %vm3856, %v4999, 0
        %v5043 = vsel %vm3856, %v5001, 0
        %v5046 = vsel %vm3856, %v5003, 0
        %v5049 = vsel %vm3856, %v5005, 0
        %v5052 = vsel %vm3856, %v5007, 0
        %v5055 = vsel %vm3856, %v5009, 0
        %v5058 = vsel %vm3856, %v5011, 0
        %v5061 = vsel %vm3856, %v5013, 0
        %5063 = vmatprep.subr.mxu0 0.0
        %5064 = vmatpush1.msra.mxu0 %v5014
        %5065 = vmatprep.subr.mxu0 0.0
        %5066 = vmatpush1.msra.mxu0 %v5015
        %5067 = vmatprep.subr.mxu0 0.0
        %5068 = vmatpush1.msra.mxu0 %v5016
        %5069 = vmatprep.subr.mxu0 0.0
        %5070 = vmatpush1.msra.mxu0 %v5017
        %5071 = vmatprep.subr.mxu0 0.0
        %5072 = vmatpush1.msra.mxu0 %v5018
        %5073 = vmatprep.subr.mxu0 0.0
        %5074 = vmatpush1.msra.mxu0 %v5019
        %5075 = vmatprep.subr.mxu0 0.0
        %5076 = vmatpush1.msra.mxu0 %v5020
        %5077 = vmatprep.subr.mxu0 0.0
        %5078 = vmatpush1.msra.mxu0 %v5021
        %5079 = vmatprep.subr.mxu0 0.0
        %5080 = vmatpush1.msra.mxu0 %v5022
        %5081 = vmatprep.subr.mxu0 0.0
        %5082 = vmatpush1.msra.mxu0 %v5023
        %5083 = vmatprep.subr.mxu0 0.0
        %5084 = vmatpush1.msra.mxu0 %v5024
        %5085 = vmatprep.subr.mxu0 0.0
        %5086 = vmatpush1.msra.mxu0 %v5025
        %5087 = vmatprep.subr.mxu0 0.0
        %5088 = vmatpush1.msra.mxu0 %v5026
        %5089 = vmatprep.subr.mxu0 0.0
        %5090 = vmatpush1.msra.mxu0 %v5027
        %5091 = vmatprep.subr.mxu0 0.0
        %5092 = vmatpush1.msra.mxu0 %v5028
        %5093 = vmatprep.subr.mxu0 0.0
        %5094 = vmatpush1.msra.mxu0 %v5029
        %5095 = vmatprep.subr.mxu0 0.0
        %5096 = vmatpush1.msra.mxu0 %v5030
        %5097 = vmatprep.subr.mxu0 0.0
        %5098 = vmatpush1.msra.mxu0 %v5031
        %5099 = vmatprep.subr.mxu0 0.0
        %5100 = vmatpush1.msra.mxu0 0.0
        %5101 = vmatprep.subr.mxu0 0.0
        %5102 = vmatpush1.msra.mxu0 0.0
        %5103 = vmatprep.subr.mxu0 0.0
        %5104 = vmatpush1.msra.mxu0 0.0
        %5105 = vmatprep.subr.mxu0 0.0
        %5106 = vmatpush1.msra.mxu0 0.0
        %5107 = vmatprep.subr.mxu0 0.0
        %5108 = vmatpush1.msra.mxu0 0.0
        %5109 = vmatprep.subr.mxu0 0.0
        %5110 = vmatpush1.msra.mxu0 0.0
        %5111 = vmatprep.subr.mxu0 0.0
        %5112 = vmatpush1.msra.mxu0 0.0
        %5113 = vmatprep.subr.mxu0 0.0
        %5114 = vmatpush1.msra.mxu0 0.0
        %5115 = vmatprep.subr.mxu0 0.0
        %5116 = vmatpush1.msra.mxu0 0.0
        %5117 = vmatprep.subr.mxu0 0.0
        %5118 = vmatpush1.msra.mxu0 0.0
        %5119 = vmatprep.subr.mxu0 0.0
        %5120 = vmatpush1.msra.mxu0 0.0
        %5121 = vmatprep.subr.mxu0 0.0
        %5122 = vmatpush1.msra.mxu0 0.0
        %5123 = vmatprep.subr.mxu0 0.0
        %5124 = vmatpush1.msra.mxu0 0.0
        %5125 = vmatprep.subr.mxu0 0.0
        %5126 = vmatpush1.msra.mxu0 0.0
        %5127 = vmatprep.mubr.f32.mxu0 %v5040
        %5128 = vmatmul.mubr.f32.gmra.mrb[0].mxu0 %v4998
        %v5129 = vpop.f32.mrb[0].mxu0
        %v5130 = vadd.f32 %v5037, %v5129
        %v5131 = vpop.f32.mrb[0].mxu0
        %5132 = vmatprep.mubr.f32.mxu0 %v5043
        %5133 = vmatmul.mubr.f32.gmra.mrb[0].mxu0 %v5000
        %v5134 = vpop.f32.mrb[0].mxu0
        %v5135 = vadd.f32 %v5037, %v5134
        %v5136 = vpop.f32.mrb[0].mxu0
        %5137 = vmatprep.mubr.f32.mxu0 %v5046
        %5138 = vmatmul.mubr.f32.gmra.mrb[0].mxu0 %v5002
        %v5139 = vpop.f32.mrb[0].mxu0
        %v5140 = vadd.f32 %v5037, %v5139
        %v5141 = vpop.f32.mrb[0].mxu0
        %5142 = vmatprep.mubr.f32.mxu0 %v5049
        %5143 = vmatmul.mubr.f32.gmra.mrb[0].mxu0 %v5004
        %v5144 = vpop.f32.mrb[0].mxu0
        %v5145 = vadd.f32 %v5037, %v5144
        %v5146 = vpop.f32.mrb[0].mxu0
        %5147 = vmatprep.mubr.f32.mxu0 %v5052
        %5148 = vmatmul.mubr.f32.gmra.mrb[0].mxu0 %v5006
        %v5149 = vpop.f32.mrb[0].mxu0
        %v5150 = vadd.f32 %v5037, %v5149
        %v5151 = vpop.f32.mrb[0].mxu0
        %5152 = vmatprep.mubr.f32.mxu0 %v5055
        %5153 = vmatmul.mubr.f32.gmra.mrb[0].mxu0 %v5008
        %v5154 = vpop.f32.mrb[0].mxu0
        %v5155 = vadd.f32 %v5037, %v5154
        %v5156 = vpop.f32.mrb[0].mxu0
        %5157 = vmatprep.mubr.f32.mxu0 %v5058
        %5158 = vmatmul.mubr.f32.gmra.mrb[0].mxu0 %v5010
        %v5159 = vpop.f32.mrb[0].mxu0
        %v5160 = vadd.f32 %v5037, %v5159
        %v5161 = vpop.f32.mrb[0].mxu0
        %5162 = vmatprep.mubr.f32.mxu0 %v5061
        %5163 = vmatmul.mubr.f32.gmra.mrb[0].mxu0 %v5012
        %v5164 = vpop.f32.mrb[0].mxu0
        %v5165 = vadd.f32 %v5037, %v5164
        %v5166 = vpop.f32.mrb[0].mxu0
        %5167 = vdwg.mxu0
        %v5168 = vmax.f32 %v5130, 0.0
        %v5169 = vmax.f32 %v5135, 0.0
        %v5170 = vmax.f32 %v5140, 0.0
        %v5171 = vmax.f32 %v5145, 0.0
        %v5172 = vmax.f32 %v5150, 0.0
        %v5173 = vmax.f32 %v5155, 0.0
        %v5174 = vmax.f32 %v5160, 0.0
        %v5175 = vmax.f32 %v5165, 0.0
        %v5176 = vld [vmem:[%s23] sm:$0x1]
        %v5178 = vlaneseq
        %v5179 = vshrl.u32 %v5178, 7
        %v5180 = vsub.s32 0, %v5179
        %v5181 = vrot.slane %v5176, %v5180
        %v5183 = vmul.f32 %v5168, %v5181
        %v5184 = vmul.f32 %v5169, %v5181
        %v5185 = vmul.f32 %v5170, %v5181
        %v5186 = vmul.f32 %v5171, %v5181
        %v5187 = vmul.f32 %v5172, %v5181
        %v5188 = vmul.f32 %v5173, %v5181
        %v5189 = vmul.f32 %v5174, %v5181
        %v5190 = vmul.f32 %v5175, %v5181
        %v5191 = vld [vmem:[%s25] sm:$0x1]
        %v5193 = vlaneseq
        %v5194 = vshrl.u32 %v5193, 7
        %v5195 = vsub.s32 0, %v5194
        %v5196 = vrot.slane %v5191, %v5195
        %v5198 = vadd.f32 %v5183, %v5196
        %v5199 = vadd.f32 %v5184, %v5196
        %v5200 = vadd.f32 %v5185, %v5196
        %v5201 = vadd.f32 %v5186, %v5196
        %v5202 = vadd.f32 %v5187, %v5196
        %v5203 = vadd.f32 %v5188, %v5196
        %v5204 = vadd.f32 %v5189, %v5196
        %v5205 = vadd.f32 %v5190, %v5196
        %5206 = vst.msk [vmem:[#allocation18] sm:$0xff] %vm3856, %v5198
        %5207 = vst.msk [vmem:[#allocation18 + $0x8] sm:$0xff] %vm3856, %v5199
        %5208 = vst.msk [vmem:[#allocation18 + $0x10] sm:$0xff] %vm3856, %v5200
        %5209 = vst.msk [vmem:[#allocation18 + $0x18] sm:$0xff] %vm3856, %v5201
        %5210 = vst.msk [vmem:[#allocation18 + $0x20] sm:$0xff] %vm3856, %v5202
        %5211 = vst.msk [vmem:[#allocation18 + $0x28] sm:$0xff] %vm3856, %v5203
        %5212 = vst.msk [vmem:[#allocation18 + $0x30] sm:$0xff] %vm3856, %v5204
        %5213 = vst.msk [vmem:[#allocation18 + $0x38] sm:$0xff] %vm3856, %v5205
        %v5214 = vld [vmem:[#allocation18] ss:$2 sm:$0xff]
        %s5215 = scalar_lea.vmem [#allocation18], 16
        %v5216 = vld [vmem:[%s5215] ss:$2 sm:$0xff]
        %s5217 = scalar_lea.vmem [#allocation18], 32
        %v5218 = vld [vmem:[%s5217] ss:$2 sm:$0xff]
        %s5219 = scalar_lea.vmem [#allocation18], 48
        %v5220 = vld [vmem:[%s5219] ss:$2 sm:$0xff]
        %s5221 = scalar_lea.vmem [#allocation18], 1
        %v5222 = vld [vmem:[%s5221] ss:$2 sm:$0xff]
        %s5223 = scalar_lea.vmem [#allocation18], 17
        %v5224 = vld [vmem:[%s5223] ss:$2 sm:$0xff]
        %s5225 = scalar_lea.vmem [#allocation18], 33
        %v5226 = vld [vmem:[%s5225] ss:$2 sm:$0xff]
        %s5227 = scalar_lea.vmem [#allocation18], 49
        %v5228 = vld [vmem:[%s5227] ss:$2 sm:$0xff]
        %v5229 = vmax.f32 %v5214, %v5222
        %v5230 = vmax.f32 %v5216, %v5224
        %v5231 = vmax.f32 %v5218, %v5226
        %v5232 = vmax.f32 %v5220, %v5228
        %5233 = vst.msk [vmem:[#allocation19] sm:$0xff] %vm3856, %v5229
        %5234 = vst.msk [vmem:[#allocation19 + $0x8] sm:$0xff] %vm3856, %v5230
        %5235 = vst.msk [vmem:[#allocation19 + $0x10] sm:$0xff] %vm3856, %v5231
        %5236 = vst.msk [vmem:[#allocation19 + $0x18] sm:$0xff] %vm3856, %v5232
        %v5237 = vld [vmem:[#allocation19] sm:$0xf]
        %v5238 = vld [vmem:[#allocation19 + $0x4] sm:$0xf]
        %v5239 = vmax.f32 %v5237, %v5238
        %vm5240 = vcmask 125952
        %5241 = vst.msk [vmem:[#allocation5 + $0x8] sm:$0xf] %vm5240, %v5239
        %v5242 = vld [vmem:[#allocation19 + $0x8] sm:$0xf]
        %v5243 = vld [vmem:[#allocation19 + $0xc] sm:$0xf]
        %v5244 = vmax.f32 %v5242, %v5243
        %5245 = vst.msk [vmem:[#allocation5 + $0xc] sm:$0xf] %vm5240, %v5244
        %v5246 = vld [vmem:[#allocation19 + $0x10] sm:$0xf]
        %v5247 = vld [vmem:[#allocation19 + $0x14] sm:$0xf]
        %v5248 = vmax.f32 %v5246, %v5247
        %5249 = vst.msk [vmem:[#allocation5 + $0x10] sm:$0xf] %vm5240, %v5248
        %v5250 = vld [vmem:[#allocation19 + $0x18] sm:$0xf]
        %v5251 = vld [vmem:[#allocation19 + $0x1c] sm:$0xf]
        %v5252 = vmax.f32 %v5250, %v5251
        %5253 = vst.msk [vmem:[#allocation5 + $0x14] sm:$0xf] %vm5240, %v5252
        %vm5254 = vcmask 261120
        %5255 = vst.msk [vmem:[#allocation6] sm:$0xff] %vm5254, 0.0
        %5256 = vst.msk [vmem:[#allocation6 + $0x18] sm:$0xff] %vm5254, 0.0
        %v5257 = vand.u32 %v1201, 3
        %v5258 = vand.u32 %v1202, 3
        %vm5259 = vcmp.gt.s32.totalorder %v5257, 0
        %vm5260 = vcmp.gt.s32.totalorder %v5258, 0
        %vm5261 = vcmp.lt.s32.totalorder %v5257, 3
        %vm5262 = vcmp.lt.s32.totalorder %v5258, 3
        %v5263 = vld [vmem:[#allocation5 + $0x3] sm:$0xff]
        %v5264 = vld [vmem:[#allocation5 + $0xb] sm:$0xff]
        %v5265 = vsel %vm5259, 1, 0
        %v5266 = vsel %vm5260, 1, 0
        %vm5267 = vcmp.eq.s32.totalorder %v5265, 1
        %vm5268 = vcmp.eq.s32.totalorder %v5266, 1
        %v5269 = vsel %vm5267, %v5263, 0.0
        %v5270 = vsel %vm5268, %v5264, 0.0
        %5271 = vst.msk [vmem:[#allocation12] sm:$0xff] %vm3856, %v5269
        %5272 = vst.msk [vmem:[#allocation12 + $0x10] sm:$0xff] %vm3856, %v5270
        %v5273 = vld [vmem:[#allocation5 + $0x4] sm:$0xff]
        %v5274 = vld [vmem:[#allocation5 + $0xc] sm:$0xff]
        %5277 = vrot.lane.b32.xlu0 %v5273, 16
        %v5278 = vpop.permute.xlu0 %5277
        %5279 = vrot.lane.b32.xlu0 %v5274, 16
        %v5280 = vpop.permute.xlu0 %5279
        %5283 = vst.msk [vmem:[#allocation12] sm:$0xff] %vm4639, %v5278
        %5284 = vst.msk [vmem:[#allocation12 + $0x10] sm:$0xff] %vm4639, %v5280
        %v5285 = vld [vmem:[#allocation5 + $0x5] sm:$0xff]
        %v5286 = vld [vmem:[#allocation5 + $0xd] sm:$0xff]
        %v5287 = vsel %vm5261, 1, 0
        %v5288 = vsel %vm5262, 1, 0
        %vm5289 = vcmp.eq.s32.totalorder %v5287, 1
        %vm5290 = vcmp.eq.s32.totalorder %v5288, 1
        %v5291 = vsel %vm5289, %v5285, 0.0
        %v5292 = vsel %vm5290, %v5286, 0.0
        %5295 = vrot.lane.b32.xlu0 %v5291, 32
        %v5296 = vpop.permute.xlu0 %5295
        %5297 = vrot.lane.b32.xlu0 %v5292, 32
        %v5298 = vpop.permute.xlu0 %5297
        %5301 = vst.msk [vmem:[#allocation12] sm:$0xff] %vm4696, %v5296
        %5302 = vst.msk [vmem:[#allocation12 + $0x10] sm:$0xff] %vm4696, %v5298
        %v5303 = vld [vmem:[#allocation5 + $0x7] sm:$0xff]
        %v5304 = vld [vmem:[#allocation5 + $0xf] sm:$0xff]
        %v5305 = vsel %vm5267, %v5303, 0.0
        %v5306 = vsel %vm5268, %v5304, 0.0
        %5309 = vrot.lane.b32.xlu0 %v5305, 48
        %v5310 = vpop.permute.xlu0 %5309
        %5311 = vrot.lane.b32.xlu0 %v5306, 48
        %v5312 = vpop.permute.xlu0 %5311
        %5315 = vst.msk [vmem:[#allocation12] sm:$0xff] %vm4753, %v5310
        %5316 = vst.msk [vmem:[#allocation12 + $0x10] sm:$0xff] %vm4753, %v5312
        %v5317 = vld [vmem:[#allocation5 + $0x8] sm:$0xff]
        %v5318 = vld [vmem:[#allocation5 + $0x10] sm:$0xff]
        %5321 = vrot.lane.b32.xlu0 %v5317, 64
        %v5322 = vpop.permute.xlu0 %5321
        %5323 = vrot.lane.b32.xlu0 %v5318, 64
        %v5324 = vpop.permute.xlu0 %5323
        %5327 = vst.msk [vmem:[#allocation12] sm:$0xff] %vm4802, %v5322
        %5328 = vst.msk [vmem:[#allocation12 + $0x10] sm:$0xff] %vm4802, %v5324
        %v5329 = vld [vmem:[#allocation5 + $0x9] sm:$0xff]
        %v5330 = vld [vmem:[#allocation5 + $0x11] sm:$0xff]
        %v5331 = vsel %vm5289, %v5329, 0.0
        %v5332 = vsel %vm5290, %v5330, 0.0
        %5335 = vrot.lane.b32.xlu0 %v5331, 80
        %v5336 = vpop.permute.xlu0 %5335
        %5337 = vrot.lane.b32.xlu0 %v5332, 80
        %v5338 = vpop.permute.xlu0 %5337
        %5341 = vst.msk [vmem:[#allocation12] sm:$0xff] %vm4859, %v5336
        %5342 = vst.msk [vmem:[#allocation12 + $0x10] sm:$0xff] %vm4859, %v5338
        %v5343 = vld [vmem:[#allocation5 + $0xb] sm:$0xff]
        %v5344 = vld [vmem:[#allocation5 + $0x13] sm:$0xff]
        %v5345 = vsel %vm5267, %v5343, 0.0
        %v5346 = vsel %vm5268, %v5344, 0.0
        %5349 = vrot.lane.b32.xlu0 %v5345, 96
        %v5350 = vpop.permute.xlu0 %5349
        %5351 = vrot.lane.b32.xlu0 %v5346, 96
        %v5352 = vpop.permute.xlu0 %5351
        %5355 = vst.msk [vmem:[#allocation12] sm:$0xff] %vm4916, %v5350
        %5356 = vst.msk [vmem:[#allocation12 + $0x10] sm:$0xff] %vm4916, %v5352
        %v5357 = vld [vmem:[#allocation5 + $0xc] sm:$0xff]
        %v5358 = vld [vmem:[#allocation5 + $0x14] sm:$0xff]
        %5361 = vrot.lane.b32.xlu0 %v5357, 112
        %v5362 = vpop.permute.xlu0 %5361
        %5363 = vrot.lane.b32.xlu0 %v5358, 112
        %v5364 = vpop.permute.xlu0 %5363
        %5367 = vst.msk [vmem:[#allocation12] sm:$0xff] %vm4965, %v5362
        %5368 = vst.msk [vmem:[#allocation12 + $0x10] sm:$0xff] %vm4965, %v5364
        %v5369 = vld [vmem:[#allocation5 + $0xd] sm:$0xff]
        %v5370 = vld [vmem:[#allocation5 + $0x15] sm:$0xff]
        %v5371 = vsel %vm5289, %v5369, 0.0
        %v5372 = vsel %vm5290, %v5370, 0.0
        %5373 = vst.msk [vmem:[#allocation12 + $0x8] sm:$0xff] %vm3856, %v5371
        %5374 = vst.msk [vmem:[#allocation12 + $0x18] sm:$0xff] %vm3856, %v5372
        %v5375 = vld [vmem:[#allocation12] sm:$0xff]
        %v5376 = vld [vmem:[#allocation12 + $0x8] sm:$0xff]
        %v5377 = vld [vmem:[#allocation12 + $0x10] sm:$0xff]
        %v5378 = vld [vmem:[#allocation12 + $0x18] sm:$0xff]
        %v5379 = vld [vmem:[%s27] sm:$0xff]
        %v5380 = vld [vmem:[%s27 + $0x8] sm:$0xff]
        %v5381 = vld [vmem:[%s27 + $0x10] sm:$0xff]
        %v5382 = vld [vmem:[%s27 + $0x18] sm:$0xff]
        %v5383 = vld [vmem:[%s27 + $0x20] sm:$0xff]
        %v5384 = vld [vmem:[%s27 + $0x28] sm:$0xff]
        %v5385 = vld [vmem:[%s27 + $0x30] sm:$0xff]
        %v5386 = vld [vmem:[%s27 + $0x38] sm:$0xff]
        %v5387 = vld [vmem:[%s27 + $0x40] sm:$0xff]
        %v5388 = vld [vmem:[%s27 + $0x48] sm:$0xff]
        %v5389 = vld [vmem:[%s27 + $0x50] sm:$0xff]
        %v5390 = vld [vmem:[%s27 + $0x58] sm:$0xff]
        %v5391 = vld [vmem:[%s27 + $0x60] sm:$0xff]
        %v5392 = vld [vmem:[%s27 + $0x68] sm:$0xff]
        %v5393 = vld [vmem:[%s27 + $0x70] sm:$0xff]
        %v5394 = vld [vmem:[%s27 + $0x78] sm:$0xff]
        %v5395 = vld [vmem:[%s27 + $0x80] sm:$0xff]
        %v5396 = vld [vmem:[%s27 + $0x88] sm:$0xff]
        %v5397 = vld [vmem:[%s29] sm:$0x1]
        %v5399 = vlaneseq
        %v5400 = vshrl.u32 %v5399, 7
        %v5401 = vsub.s32 0, %v5400
        %v5402 = vrot.slane %v5397, %v5401
        %v5405 = vsel %vm3856, %v5376, 0
        %v5408 = vsel %vm3856, %v5378, 0
        %5410 = vmatprep.subr.mxu0 0.0
        %5411 = vmatpush1.msra.mxu0 %v5379
        %5412 = vmatprep.subr.mxu0 0.0
        %5413 = vmatpush1.msra.mxu0 %v5380
        %5414 = vmatprep.subr.mxu0 0.0
        %5415 = vmatpush1.msra.mxu0 %v5381
        %5416 = vmatprep.subr.mxu0 0.0
        %5417 = vmatpush1.msra.mxu0 %v5382
        %5418 = vmatprep.subr.mxu0 0.0
        %5419 = vmatpush1.msra.mxu0 %v5383
        %5420 = vmatprep.subr.mxu0 0.0
        %5421 = vmatpush1.msra.mxu0 %v5384
        %5422 = vmatprep.subr.mxu0 0.0
        %5423 = vmatpush1.msra.mxu0 %v5385
        %5424 = vmatprep.subr.mxu0 0.0
        %5425 = vmatpush1.msra.mxu0 %v5386
        %5426 = vmatprep.subr.mxu0 0.0
        %5427 = vmatpush1.msra.mxu0 %v5387
        %5428 = vmatprep.subr.mxu0 0.0
        %5429 = vmatpush1.msra.mxu0 %v5388
        %5430 = vmatprep.subr.mxu0 0.0
        %5431 = vmatpush1.msra.mxu0 %v5389
        %5432 = vmatprep.subr.mxu0 0.0
        %5433 = vmatpush1.msra.mxu0 %v5390
        %5434 = vmatprep.subr.mxu0 0.0
        %5435 = vmatpush1.msra.mxu0 %v5391
        %5436 = vmatprep.subr.mxu0 0.0
        %5437 = vmatpush1.msra.mxu0 %v5392
        %5438 = vmatprep.subr.mxu0 0.0
        %5439 = vmatpush1.msra.mxu0 %v5393
        %5440 = vmatprep.subr.mxu0 0.0
        %5441 = vmatpush1.msra.mxu0 %v5394
        %5442 = vmatprep.subr.mxu0 0.0
        %5443 = vmatpush1.msra.mxu0 %v5395
        %5444 = vmatprep.subr.mxu0 0.0
        %5445 = vmatpush1.msra.mxu0 %v5396
        %5446 = vmatprep.subr.mxu0 0.0
        %5447 = vmatpush1.msra.mxu0 0.0
        %5448 = vmatprep.subr.mxu0 0.0
        %5449 = vmatpush1.msra.mxu0 0.0
        %5450 = vmatprep.subr.mxu0 0.0
        %5451 = vmatpush1.msra.mxu0 0.0
        %5452 = vmatprep.subr.mxu0 0.0
        %5453 = vmatpush1.msra.mxu0 0.0
        %5454 = vmatprep.subr.mxu0 0.0
        %5455 = vmatpush1.msra.mxu0 0.0
        %5456 = vmatprep.subr.mxu0 0.0
        %5457 = vmatpush1.msra.mxu0 0.0
        %5458 = vmatprep.subr.mxu0 0.0
        %5459 = vmatpush1.msra.mxu0 0.0
        %5460 = vmatprep.subr.mxu0 0.0
        %5461 = vmatpush1.msra.mxu0 0.0
        %5462 = vmatprep.subr.mxu0 0.0
        %5463 = vmatpush1.msra.mxu0 0.0
        %5464 = vmatprep.subr.mxu0 0.0
        %5465 = vmatpush1.msra.mxu0 0.0
        %5466 = vmatprep.subr.mxu0 0.0
        %5467 = vmatpush1.msra.mxu0 0.0
        %5468 = vmatprep.subr.mxu0 0.0
        %5469 = vmatpush1.msra.mxu0 0.0
        %5470 = vmatprep.subr.mxu0 0.0
        %5471 = vmatpush1.msra.mxu0 0.0
        %5472 = vmatprep.subr.mxu0 0.0
        %5473 = vmatpush1.msra.mxu0 0.0
        %5474 = vmatprep.mubr.f32.mxu0 %v5405
        %5475 = vmatmul.mubr.f32.gmra.mrb[0].mxu0 %v5375
        %v5476 = vpop.f32.mrb[0].mxu0
        %v5477 = vadd.f32 %v5402, %v5476
        %v5478 = vpop.f32.mrb[0].mxu0
        %5479 = vmatprep.mubr.f32.mxu0 %v5408
        %5480 = vmatmul.mubr.f32.gmra.mrb[0].mxu0 %v5377
        %v5481 = vpop.f32.mrb[0].mxu0
        %v5482 = vadd.f32 %v5402, %v5481
        %v5483 = vpop.f32.mrb[0].mxu0
        %5484 = vdwg.mxu0
        %v5485 = vmax.f32 %v5477, 0.0
        %v5486 = vmax.f32 %v5482, 0.0
        %v5487 = vld [vmem:[%s31] sm:$0x1]
        %v5489 = vlaneseq
        %v5490 = vshrl.u32 %v5489, 7
        %v5491 = vsub.s32 0, %v5490
        %v5492 = vrot.slane %v5487, %v5491
        %v5494 = vmul.f32 %v5485, %v5492
        %v5495 = vmul.f32 %v5486, %v5492
        %v5496 = vld [vmem:[%s33] sm:$0x1]
        %v5498 = vlaneseq
        %v5499 = vshrl.u32 %v5498, 7
        %v5500 = vsub.s32 0, %v5499
        %v5501 = vrot.slane %v5496, %v5500
        %v5503 = vadd.f32 %v5494, %v5501
        %v5504 = vadd.f32 %v5495, %v5501
        %5505 = vst.msk [vmem:[#allocation6 + $0x8] sm:$0xff] %vm5254, %v5503
        %5506 = vst.msk [vmem:[#allocation6 + $0x10] sm:$0xff] %vm5254, %v5504
        %5507 = vst.msk [vmem:[#allocation7] sm:$0xff] %vm5254, 0.0
        %5508 = vst.msk [vmem:[#allocation7 + $0xc] sm:$0xff] %vm5254, 0.0
        %v5509 = vld [vmem:[#allocation6 + $0x3] sm:$0xff]
        %v5510 = vld [vmem:[#allocation6 + $0xb] sm:$0xff]
        %v5511 = vsel %vm5267, %v5509, 0.0
        %v5512 = vsel %vm5268, %v5510, 0.0
        %5513 = vst.msk [vmem:[#allocation13] sm:$0xff] %vm5254, %v5511
        %5514 = vst.msk [vmem:[#allocation13 + $0x18] sm:$0xff] %vm5254, %v5512
        %v5515 = vld [vmem:[#allocation6 + $0x4] sm:$0xff]
        %v5516 = vld [vmem:[#allocation6 + $0xc] sm:$0xff]
        %5519 = vrot.lane.b32.xlu0 %v5515, 32
        %v5520 = vpop.permute.xlu0 %5519
        %5521 = vrot.lane.b32.xlu0 %v5516, 32
        %v5522 = vpop.permute.xlu0 %5521
        %vm5525 = vcmask 523520
        %5526 = vst.msk [vmem:[#allocation13] sm:$0xff] %vm5525, %v5520
        %5527 = vst.msk [vmem:[#allocation13 + $0x18] sm:$0xff] %vm5525, %v5522
        %v5528 = vld [vmem:[#allocation6 + $0x5] sm:$0xff]
        %v5529 = vld [vmem:[#allocation6 + $0xd] sm:$0xff]
        %v5530 = vsel %vm5289, %v5528, 0.0
        %v5531 = vsel %vm5290, %v5529, 0.0
        %5534 = vrot.lane.b32.xlu0 %v5530, 64
        %v5535 = vpop.permute.xlu0 %5534
        %5536 = vrot.lane.b32.xlu0 %v5531, 64
        %v5537 = vpop.permute.xlu0 %5536
        %vm5540 = vcmask 785920
        %5541 = vst.msk [vmem:[#allocation13] sm:$0xff] %vm5540, %v5535
        %5542 = vst.msk [vmem:[#allocation13 + $0x18] sm:$0xff] %vm5540, %v5537
        %v5543 = vld [vmem:[#allocation6 + $0x7] sm:$0xff]
        %v5544 = vld [vmem:[#allocation6 + $0xf] sm:$0xff]
        %v5545 = vsel %vm5267, %v5543, 0.0
        %v5546 = vsel %vm5268, %v5544, 0.0
        %5549 = vrot.lane.b32.xlu0 %v5545, 96
        %v5550 = vpop.permute.xlu0 %5549
        %5551 = vrot.lane.b32.xlu0 %v5546, 96
        %v5552 = vpop.permute.xlu0 %5551
        %vm5555 = vcmask 1048320
        %5556 = vst.msk [vmem:[#allocation13] sm:$0xff] %vm5555, %v5550
        %5557 = vst.msk [vmem:[#allocation13 + $0x18] sm:$0xff] %vm5555, %v5552
        %v5558 = vld [vmem:[#allocation6 + $0x8] sm:$0xff]
        %v5559 = vld [vmem:[#allocation6 + $0x10] sm:$0xff]
        %5560 = vst.msk [vmem:[#allocation13 + $0x8] sm:$0xff] %vm5254, %v5558
        %5561 = vst.msk [vmem:[#allocation13 + $0x20] sm:$0xff] %vm5254, %v5559
        %v5562 = vld [vmem:[#allocation6 + $0x9] sm:$0xff]
        %v5563 = vld [vmem:[#allocation6 + $0x11] sm:$0xff]
        %v5564 = vsel %vm5289, %v5562, 0.0
        %v5565 = vsel %vm5290, %v5563, 0.0
        %5568 = vrot.lane.b32.xlu0 %v5564, 32
        %v5569 = vpop.permute.xlu0 %5568
        %5570 = vrot.lane.b32.xlu0 %v5565, 32
        %v5571 = vpop.permute.xlu0 %5570
        %5574 = vst.msk [vmem:[#allocation13 + $0x8] sm:$0xff] %vm5525, %v5569
        %5575 = vst.msk [vmem:[#allocation13 + $0x20] sm:$0xff] %vm5525, %v5571
        %v5576 = vld [vmem:[#allocation6 + $0xb] sm:$0xff]
        %v5577 = vld [vmem:[#allocation6 + $0x13] sm:$0xff]
        %v5578 = vsel %vm5267, %v5576, 0.0
        %v5579 = vsel %vm5268, %v5577, 0.0
        %5582 = vrot.lane.b32.xlu0 %v5578, 64
        %v5583 = vpop.permute.xlu0 %5582
        %5584 = vrot.lane.b32.xlu0 %v5579, 64
        %v5585 = vpop.permute.xlu0 %5584
        %5588 = vst.msk [vmem:[#allocation13 + $0x8] sm:$0xff] %vm5540, %v5583
        %5589 = vst.msk [vmem:[#allocation13 + $0x20] sm:$0xff] %vm5540, %v5585
        %v5590 = vld [vmem:[#allocation6 + $0xc] sm:$0xff]
        %v5591 = vld [vmem:[#allocation6 + $0x14] sm:$0xff]
        %5594 = vrot.lane.b32.xlu0 %v5590, 96
        %v5595 = vpop.permute.xlu0 %5594
        %5596 = vrot.lane.b32.xlu0 %v5591, 96
        %v5597 = vpop.permute.xlu0 %5596
        %5600 = vst.msk [vmem:[#allocation13 + $0x8] sm:$0xff] %vm5555, %v5595
        %5601 = vst.msk [vmem:[#allocation13 + $0x20] sm:$0xff] %vm5555, %v5597
        %v5602 = vld [vmem:[#allocation6 + $0xd] sm:$0xff]
        %v5603 = vld [vmem:[#allocation6 + $0x15] sm:$0xff]
        %v5604 = vsel %vm5289, %v5602, 0.0
        %v5605 = vsel %vm5290, %v5603, 0.0
        %5606 = vst.msk [vmem:[#allocation13 + $0x10] sm:$0xff] %vm5254, %v5604
        %5607 = vst.msk [vmem:[#allocation13 + $0x28] sm:$0xff] %vm5254, %v5605
        %v5608 = vld [vmem:[#allocation13] sm:$0xff]
        %v5609 = vld [vmem:[#allocation13 + $0x8] sm:$0xff]
        %v5610 = vld [vmem:[#allocation13 + $0x10] sm:$0xff]
        %v5611 = vld [vmem:[#allocation13 + $0x18] sm:$0xff]
        %v5612 = vld [vmem:[#allocation13 + $0x20] sm:$0xff]
        %v5613 = vld [vmem:[#allocation13 + $0x28] sm:$0xff]
        %v5614 = vld [vmem:[%s35] sm:$0xff]
        %v5615 = vld [vmem:[%s35 + $0x8] sm:$0xff]
        %v5616 = vld [vmem:[%s35 + $0x10] sm:$0xff]
        %v5617 = vld [vmem:[%s35 + $0x18] sm:$0xff]
        %v5618 = vld [vmem:[%s35 + $0x20] sm:$0xff]
        %v5619 = vld [vmem:[%s35 + $0x28] sm:$0xff]
        %v5620 = vld [vmem:[%s35 + $0x30] sm:$0xff]
        %v5621 = vld [vmem:[%s35 + $0x38] sm:$0xff]
        %v5622 = vld [vmem:[%s35 + $0x40] sm:$0xff]
        %v5623 = vld [vmem:[%s35 + $0x48] sm:$0xff]
        %v5624 = vld [vmem:[%s35 + $0x50] sm:$0xff]
        %v5625 = vld [vmem:[%s35 + $0x58] sm:$0xff]
        %v5626 = vld [vmem:[%s35 + $0x60] sm:$0xff]
        %v5627 = vld [vmem:[%s35 + $0x68] sm:$0xff]
        %v5628 = vld [vmem:[%s35 + $0x70] sm:$0xff]
        %v5629 = vld [vmem:[%s35 + $0x78] sm:$0xff]
        %v5630 = vld [vmem:[%s35 + $0x80] sm:$0xff]
        %v5631 = vld [vmem:[%s35 + $0x88] sm:$0xff]
        %v5632 = vld [vmem:[%s35 + $0x90] sm:$0xff]
        %v5633 = vld [vmem:[%s35 + $0x98] sm:$0xff]
        %v5634 = vld [vmem:[%s35 + $0xa0] sm:$0xff]
        %v5635 = vld [vmem:[%s35 + $0xa8] sm:$0xff]
        %v5636 = vld [vmem:[%s35 + $0xb0] sm:$0xff]
        %v5637 = vld [vmem:[%s35 + $0xb8] sm:$0xff]
        %v5638 = vld [vmem:[%s35 + $0xc0] sm:$0xff]
        %v5639 = vld [vmem:[%s35 + $0xc8] sm:$0xff]
        %v5640 = vld [vmem:[%s35 + $0xd0] sm:$0xff]
        %v5641 = vld [vmem:[%s35 + $0xd8] sm:$0xff]
        %v5642 = vld [vmem:[%s35 + $0xe0] sm:$0xff]
        %v5643 = vld [vmem:[%s35 + $0xe8] sm:$0xff]
        %v5644 = vld [vmem:[%s35 + $0xf0] sm:$0xff]
        %v5645 = vld [vmem:[%s35 + $0xf8] sm:$0xff]
        %v5646 = vld [vmem:[%s35 + $0x100] sm:$0xff]
        %v5647 = vld [vmem:[%s35 + $0x108] sm:$0xff]
        %v5648 = vld [vmem:[%s35 + $0x110] sm:$0xff]
        %v5649 = vld [vmem:[%s35 + $0x118] sm:$0xff]
        %v5650 = vld [vmem:[%s37] sm:$0x1]
        %v5652 = vlaneseq
        %v5653 = vshrl.u32 %v5652, 7
        %v5654 = vsub.s32 0, %v5653
        %v5655 = vrot.slane %v5650, %v5654
        %v5658 = vsel %vm5254, %v5610, 0
        %v5661 = vsel %vm5254, %v5613, 0
        %5663 = vmatprep.subr.mxu0 0.0
        %5664 = vmatpush1.msra.mxu0 %v5614
        %5665 = vmatprep.subr.mxu0 0.0
        %5666 = vmatpush1.msra.mxu0 %v5615
        %5667 = vmatprep.subr.mxu0 0.0
        %5668 = vmatpush1.msra.mxu0 %v5616
        %5669 = vmatprep.subr.mxu0 0.0
        %5670 = vmatpush1.msra.mxu0 %v5617
        %5671 = vmatprep.subr.mxu0 0.0
        %5672 = vmatpush1.msra.mxu0 %v5618
        %5673 = vmatprep.subr.mxu0 0.0
        %5674 = vmatpush1.msra.mxu0 %v5619
        %5675 = vmatprep.subr.mxu0 0.0
        %5676 = vmatpush1.msra.mxu0 %v5620
        %5677 = vmatprep.subr.mxu0 0.0
        %5678 = vmatpush1.msra.mxu0 %v5621
        %5679 = vmatprep.subr.mxu0 0.0
        %5680 = vmatpush1.msra.mxu0 %v5622
        %5681 = vmatprep.subr.mxu0 0.0
        %5682 = vmatpush1.msra.mxu0 %v5623
        %5683 = vmatprep.subr.mxu0 0.0
        %5684 = vmatpush1.msra.mxu0 %v5624
        %5685 = vmatprep.subr.mxu0 0.0
        %5686 = vmatpush1.msra.mxu0 %v5625
        %5687 = vmatprep.subr.mxu0 0.0
        %5688 = vmatpush1.msra.mxu0 %v5626
        %5689 = vmatprep.subr.mxu0 0.0
        %5690 = vmatpush1.msra.mxu0 %v5627
        %5691 = vmatprep.subr.mxu0 0.0
        %5692 = vmatpush1.msra.mxu0 %v5628
        %5693 = vmatprep.subr.mxu0 0.0
        %5694 = vmatpush1.msra.mxu0 %v5629
        %5695 = vmatprep.subr.mxu0 0.0
        %5696 = vmatpush1.msra.mxu0 %v5630
        %5697 = vmatprep.subr.mxu0 0.0
        %5698 = vmatpush1.msra.mxu0 %v5631
        %5699 = vmatprep.subr.mxu0 0.0
        %5700 = vmatpush1.msra.mxu0 %v5632
        %5701 = vmatprep.subr.mxu0 0.0
        %5702 = vmatpush1.msra.mxu0 %v5633
        %5703 = vmatprep.subr.mxu0 0.0
        %5704 = vmatpush1.msra.mxu0 %v5634
        %5705 = vmatprep.subr.mxu0 0.0
        %5706 = vmatpush1.msra.mxu0 %v5635
        %5707 = vmatprep.subr.mxu0 0.0
        %5708 = vmatpush1.msra.mxu0 %v5636
        %5709 = vmatprep.subr.mxu0 0.0
        %5710 = vmatpush1.msra.mxu0 %v5637
        %5711 = vmatprep.subr.mxu0 0.0
        %5712 = vmatpush1.msra.mxu0 %v5638
        %5713 = vmatprep.subr.mxu0 0.0
        %5714 = vmatpush1.msra.mxu0 %v5639
        %5715 = vmatprep.subr.mxu0 0.0
        %5716 = vmatpush1.msra.mxu0 %v5640
        %5717 = vmatprep.subr.mxu0 0.0
        %5718 = vmatpush1.msra.mxu0 %v5641
        %5719 = vmatprep.subr.mxu0 0.0
        %5720 = vmatpush1.msra.mxu0 %v5642
        %5721 = vmatprep.subr.mxu0 0.0
        %5722 = vmatpush1.msra.mxu0 %v5643
        %5723 = vmatprep.subr.mxu0 0.0
        %5724 = vmatpush1.msra.mxu0 %v5644
        %5725 = vmatprep.subr.mxu0 0.0
        %5726 = vmatpush1.msra.mxu0 %v5645
        %5727 = vmatprep.mubr.f32.mxu0 %v5609
        %5728 = vmatmul.mubr.f32.gmra.mrb[0].mxu0 %v5608
        %v5729 = vpop.f32.mrb[0].mxu0
        %v5730 = vadd.f32 %v5655, %v5729
        %v5731 = vpop.f32.mrb[0].mxu0
        %5732 = vmatprep.mubr.f32.mxu0 %v5612
        %5733 = vmatmul.mubr.f32.gmra.mrb[0].mxu0 %v5611
        %v5734 = vpop.f32.mrb[0].mxu0
        %v5735 = vadd.f32 %v5655, %v5734
        %v5736 = vpop.f32.mrb[0].mxu0
        %5737 = vdwg.mxu0
        %5738 = vmatprep.subr.mxu0 0.0
        %5739 = vmatpush1.msra.mxu0 %v5646
        %5740 = vmatprep.subr.mxu0 0.0
        %5741 = vmatpush1.msra.mxu0 %v5647
        %5742 = vmatprep.subr.mxu0 0.0
        %5743 = vmatpush1.msra.mxu0 %v5648
        %5744 = vmatprep.subr.mxu0 0.0
        %5745 = vmatpush1.msra.mxu0 %v5649
        %5746 = vmatprep.subr.mxu0 0.0
        %5747 = vmatpush1.msra.mxu0 0.0
        %5748 = vmatprep.subr.mxu0 0.0
        %5749 = vmatpush1.msra.mxu0 0.0
        %5750 = vmatprep.subr.mxu0 0.0
        %5751 = vmatpush1.msra.mxu0 0.0
        %5752 = vmatprep.subr.mxu0 0.0
        %5753 = vmatpush1.msra.mxu0 0.0
        %5754 = vmatprep.subr.mxu0 0.0
        %5755 = vmatpush1.msra.mxu0 0.0
        %5756 = vmatprep.subr.mxu0 0.0
        %5757 = vmatpush1.msra.mxu0 0.0
        %5758 = vmatprep.subr.mxu0 0.0
        %5759 = vmatpush1.msra.mxu0 0.0
        %5760 = vmatprep.subr.mxu0 0.0
        %5761 = vmatpush1.msra.mxu0 0.0
        %5762 = vmatprep.subr.mxu0 0.0
        %5763 = vmatpush1.msra.mxu0 0.0
        %5764 = vmatprep.subr.mxu0 0.0
        %5765 = vmatpush1.msra.mxu0 0.0
        %5766 = vmatprep.subr.mxu0 0.0
        %5767 = vmatpush1.msra.mxu0 0.0
        %5768 = vmatprep.subr.mxu0 0.0
        %5769 = vmatpush1.msra.mxu0 0.0
        %5770 = vmatprep.subr.mxu0 0.0
        %5771 = vmatpush1.msra.mxu0 0.0
        %5772 = vmatprep.subr.mxu0 0.0
        %5773 = vmatpush1.msra.mxu0 0.0
        %5774 = vmatprep.subr.mxu0 0.0
        %5775 = vmatpush1.msra.mxu0 0.0
        %5776 = vmatprep.subr.mxu0 0.0
        %5777 = vmatpush1.msra.mxu0 0.0
        %5778 = vmatprep.subr.mxu0 0.0
        %5779 = vmatpush1.msra.mxu0 0.0
        %5780 = vmatprep.subr.mxu0 0.0
        %5781 = vmatpush1.msra.mxu0 0.0
        %5782 = vmatprep.subr.mxu0 0.0
        %5783 = vmatpush1.msra.mxu0 0.0
        %5784 = vmatprep.subr.mxu0 0.0
        %5785 = vmatpush1.msra.mxu0 0.0
        %5786 = vmatprep.subr.mxu0 0.0
        %5787 = vmatpush1.msra.mxu0 0.0
        %5788 = vmatprep.subr.mxu0 0.0
        %5789 = vmatpush1.msra.mxu0 0.0
        %5790 = vmatprep.subr.mxu0 0.0
        %5791 = vmatpush1.msra.mxu0 0.0
        %5792 = vmatprep.subr.mxu0 0.0
        %5793 = vmatpush1.msra.mxu0 0.0
        %5794 = vmatprep.subr.mxu0 0.0
        %5795 = vmatpush1.msra.mxu0 0.0
        %5796 = vmatprep.subr.mxu0 0.0
        %5797 = vmatpush1.msra.mxu0 0.0
        %5798 = vmatprep.subr.mxu0 0.0
        %5799 = vmatpush1.msra.mxu0 0.0
        %5800 = vmatprep.subr.mxu0 0.0
        %5801 = vmatpush1.msra.mxu0 0.0
        %5802 = vmatprep.mubr.f32.mxu0 0.0
        %5803 = vmatmul.mubr.f32.gmra.mrb[0].mxu0 %v5658
        %v5804 = vpop.f32.mrb[0].mxu0
        %v5805 = vadd.f32 %v5730, %v5804
        %v5806 = vpop.f32.mrb[0].mxu0
        %5807 = vmatprep.mubr.f32.mxu0 0.0
        %5808 = vmatmul.mubr.f32.gmra.mrb[0].mxu0 %v5661
        %v5809 = vpop.f32.mrb[0].mxu0
        %v5810 = vadd.f32 %v5735, %v5809
        %v5811 = vpop.f32.mrb[0].mxu0
        %5812 = vdwg.mxu0
        %v5813 = vmax.f32 %v5805, 0.0
        %v5814 = vmax.f32 %v5810, 0.0
        %v5815 = vld [vmem:[%s39] sm:$0x1]
        %v5817 = vlaneseq
        %v5818 = vshrl.u32 %v5817, 7
        %v5819 = vsub.s32 0, %v5818
        %v5820 = vrot.slane %v5815, %v5819
        %v5822 = vmul.f32 %v5813, %v5820
        %v5823 = vmul.f32 %v5814, %v5820
        %v5824 = vld [vmem:[%s41] sm:$0x1]
        %v5826 = vlaneseq
        %v5827 = vshrl.u32 %v5826, 7
        %v5828 = vsub.s32 0, %v5827
        %v5829 = vrot.slane %v5824, %v5828
        %v5831 = vadd.f32 %v5822, %v5829
        %v5832 = vadd.f32 %v5823, %v5829
        %5833 = vst.msk [vmem:[#allocation20] sm:$0xff] %vm5254, %v5831
        %5834 = vst.msk [vmem:[#allocation20 + $0x8] sm:$0xff] %vm5254, %v5832
        %v5835 = vld [vmem:[#allocation20] ss:$2 sm:$0xff]
        %s5836 = scalar_lea.vmem [#allocation20], 1
        %v5837 = vld [vmem:[%s5836] ss:$2 sm:$0xff]
        %v5838 = vmax.f32 %v5835, %v5837
        %5839 = vst.msk [vmem:[#allocation21] sm:$0xff] %vm5254, %v5838
        %v5840 = vld [vmem:[#allocation21] sm:$0x3]
        %v5841 = vld [vmem:[#allocation21 + $0x2] sm:$0x3]
        %v5842 = vmax.f32 %v5840, %v5841
        %vm5843 = vcmask 254976
        %5844 = vst.msk [vmem:[#allocation7 + $0x8] sm:$0x3] %vm5843, %v5842
        %v5845 = vld [vmem:[#allocation21 + $0x4] sm:$0x3]
        %v5846 = vld [vmem:[#allocation21 + $0x6] sm:$0x3]
        %v5847 = vmax.f32 %v5845, %v5846
        %5848 = vst.msk [vmem:[#allocation7 + $0xa] sm:$0x3] %vm5843, %v5847
        %vm5849 = vcmask 523264
        %5850 = vst.msk [vmem:[#allocation8] sm:$0xff] %vm5849, 0.0
        %5851 = vst.msk [vmem:[#allocation8 + $0xc] sm:$0xff] %vm5849, 0.0
        %v5852 = vand.u32 %v1201, 1
        %vm5853 = vcmp.gt.s32.totalorder %v5852, 0
        %vm5854 = vcmp.lt.s32.totalorder %v5852, 1
        %v5855 = vld [vmem:[#allocation7 + $0x5] sm:$0xf]
        %v5856 = vsel %vm5853, 1, 0
        %vm5857 = vcmp.eq.s32.totalorder %v5856, 1
        %v5858 = vsel %vm5857, %v5855, 0.0
        %vm5859 = vcmask 257024
        %5860 = vst.msk [vmem:[#allocation14] sm:$0xf] %vm5859, %v5858
        %v5861 = vld [vmem:[#allocation7 + $0x6] sm:$0xf]
        %5863 = vrot.lane.b32.xlu0 %v5861, 32
        %v5864 = vpop.permute.xlu0 %5863
        %vm5866 = vcmask 519424
        %5867 = vst.msk [vmem:[#allocation14] sm:$0xf] %vm5866, %v5864
        %v5868 = vld [vmem:[#allocation7 + $0x7] sm:$0xf]
        %v5869 = vsel %vm5854, 1, 0
        %vm5870 = vcmp.eq.s32.totalorder %v5869, 1
        %v5871 = vsel %vm5870, %v5868, 0.0
        %5873 = vrot.lane.b32.xlu0 %v5871, 64
        %v5874 = vpop.permute.xlu0 %5873
        %vm5876 = vcmask 781824
        %5877 = vst.msk [vmem:[#allocation14] sm:$0xf] %vm5876, %v5874
        %v5878 = vld [vmem:[#allocation7 + $0x7] sm:$0xf]
        %v5879 = vsel %vm5857, %v5878, 0.0
        %5881 = vrot.lane.b32.xlu0 %v5879, 96
        %v5882 = vpop.permute.xlu0 %5881
        %vm5884 = vcmask 1044224
        %5885 = vst.msk [vmem:[#allocation14] sm:$0xf] %vm5884, %v5882
        %v5886 = vld [vmem:[#allocation7 + $0x8] sm:$0xf]
        %5887 = vst.msk [vmem:[#allocation14 + $0x4] sm:$0xf] %vm5859, %v5886
        %v5888 = vld [vmem:[#allocation7 + $0x9] sm:$0xf]
        %v5889 = vsel %vm5870, %v5888, 0.0
        %5891 = vrot.lane.b32.xlu0 %v5889, 32
        %v5892 = vpop.permute.xlu0 %5891
        %5894 = vst.msk [vmem:[#allocation14 + $0x4] sm:$0xf] %vm5866, %v5892
        %v5895 = vld [vmem:[#allocation7 + $0x9] sm:$0xf]
        %v5896 = vsel %vm5857, %v5895, 0.0
        %5898 = vrot.lane.b32.xlu0 %v5896, 64
        %v5899 = vpop.permute.xlu0 %5898
        %5901 = vst.msk [vmem:[#allocation14 + $0x4] sm:$0xf] %vm5876, %v5899
        %v5902 = vld [vmem:[#allocation7 + $0xa] sm:$0xf]
        %5904 = vrot.lane.b32.xlu0 %v5902, 96
        %v5905 = vpop.permute.xlu0 %5904
        %5907 = vst.msk [vmem:[#allocation14 + $0x4] sm:$0xf] %vm5884, %v5905
        %v5908 = vld [vmem:[#allocation7 + $0xb] sm:$0xf]
        %v5909 = vsel %vm5870, %v5908, 0.0
        %5910 = vst.msk [vmem:[#allocation14 + $0x8] sm:$0xf] %vm5859, %v5909
        %v5911 = vld [vmem:[#allocation14] sm:$0xff]
        %v5912 = vld [vmem:[#allocation14 + $0x8] sm:$0xf]
        %v5913 = vld [vmem:[%s43] sm:$0xff]
        %v5914 = vld [vmem:[%s43 + $0x8] sm:$0xff]
        %v5915 = vld [vmem:[%s43 + $0x10] sm:$0xff]
        %v5916 = vld [vmem:[%s43 + $0x18] sm:$0xff]
        %v5917 = vld [vmem:[%s43 + $0x20] sm:$0xff]
        %v5918 = vld [vmem:[%s43 + $0x28] sm:$0xff]
        %v5919 = vld [vmem:[%s43 + $0x30] sm:$0xff]
        %v5920 = vld [vmem:[%s43 + $0x38] sm:$0xff]
        %v5921 = vld [vmem:[%s43 + $0x40] sm:$0xff]
        %v5922 = vld [vmem:[%s43 + $0x48] sm:$0xff]
        %v5923 = vld [vmem:[%s43 + $0x50] sm:$0xff]
        %v5924 = vld [vmem:[%s43 + $0x58] sm:$0xff]
        %v5925 = vld [vmem:[%s43 + $0x60] sm:$0xff]
        %v5926 = vld [vmem:[%s43 + $0x68] sm:$0xff]
        %v5927 = vld [vmem:[%s43 + $0x70] sm:$0xff]
        %v5928 = vld [vmem:[%s43 + $0x78] sm:$0xff]
        %v5929 = vld [vmem:[%s43 + $0x80] sm:$0xff]
        %v5930 = vld [vmem:[%s43 + $0x88] sm:$0xff]
        %v5931 = vld [vmem:[%s43 + $0x90] sm:$0xff]
        %v5932 = vld [vmem:[%s43 + $0x98] sm:$0xff]
        %v5933 = vld [vmem:[%s43 + $0xa0] sm:$0xff]
        %v5934 = vld [vmem:[%s43 + $0xa8] sm:$0xff]
        %v5935 = vld [vmem:[%s43 + $0xb0] sm:$0xff]
        %v5936 = vld [vmem:[%s43 + $0xb8] sm:$0xff]
        %v5937 = vld [vmem:[%s43 + $0xc0] sm:$0xff]
        %v5938 = vld [vmem:[%s43 + $0xc8] sm:$0xff]
        %v5939 = vld [vmem:[%s43 + $0xd0] sm:$0xff]
        %v5940 = vld [vmem:[%s43 + $0xd8] sm:$0xff]
        %v5941 = vld [vmem:[%s43 + $0xe0] sm:$0xff]
        %v5942 = vld [vmem:[%s43 + $0xe8] sm:$0xff]
        %v5943 = vld [vmem:[%s43 + $0xf0] sm:$0xff]
        %v5944 = vld [vmem:[%s43 + $0xf8] sm:$0xff]
        %v5945 = vld [vmem:[%s43 + $0x100] sm:$0xff]
        %v5946 = vld [vmem:[%s43 + $0x108] sm:$0xff]
        %v5947 = vld [vmem:[%s43 + $0x110] sm:$0xff]
        %v5948 = vld [vmem:[%s43 + $0x118] sm:$0xff]
        %v5949 = vld [vmem:[%s45] sm:$0x1]
        %v5951 = vlaneseq
        %v5952 = vshrl.u32 %v5951, 7
        %v5953 = vsub.s32 0, %v5952
        %v5954 = vrot.slane %v5949, %v5953
        %v5958 = vcombine.high %v5911, %v5911
        %v5960 = vsel %vm5254, %v5912, 0
        %5962 = vmatprep.subr.mxu0 0.0
        %5963 = vmatpush1.msra.mxu0 %v5913
        %5964 = vmatprep.subr.mxu0 0.0
        %5965 = vmatpush1.msra.mxu0 %v5914
        %5966 = vmatprep.subr.mxu0 0.0
        %5967 = vmatpush1.msra.mxu0 %v5915
        %5968 = vmatprep.subr.mxu0 0.0
        %5969 = vmatpush1.msra.mxu0 %v5916
        %5970 = vmatprep.subr.mxu0 0.0
        %5971 = vmatpush1.msra.mxu0 %v5917
        %5972 = vmatprep.subr.mxu0 0.0
        %5973 = vmatpush1.msra.mxu0 %v5918
        %5974 = vmatprep.subr.mxu0 0.0
        %5975 = vmatpush1.msra.mxu0 %v5919
        %5976 = vmatprep.subr.mxu0 0.0
        %5977 = vmatpush1.msra.mxu0 %v5920
        %5978 = vmatprep.subr.mxu0 0.0
        %5979 = vmatpush1.msra.mxu0 %v5921
        %5980 = vmatprep.subr.mxu0 0.0
        %5981 = vmatpush1.msra.mxu0 %v5922
        %5982 = vmatprep.subr.mxu0 0.0
        %5983 = vmatpush1.msra.mxu0 %v5923
        %5984 = vmatprep.subr.mxu0 0.0
        %5985 = vmatpush1.msra.mxu0 %v5924
        %5986 = vmatprep.subr.mxu0 0.0
        %5987 = vmatpush1.msra.mxu0 %v5925
        %5988 = vmatprep.subr.mxu0 0.0
        %5989 = vmatpush1.msra.mxu0 %v5926
        %5990 = vmatprep.subr.mxu0 0.0
        %5991 = vmatpush1.msra.mxu0 %v5927
        %5992 = vmatprep.subr.mxu0 0.0
        %5993 = vmatpush1.msra.mxu0 %v5928
        %5994 = vmatprep.subr.mxu0 0.0
        %5995 = vmatpush1.msra.mxu0 %v5929
        %5996 = vmatprep.subr.mxu0 0.0
        %5997 = vmatpush1.msra.mxu0 %v5930
        %5998 = vmatprep.subr.mxu0 0.0
        %5999 = vmatpush1.msra.mxu0 %v5931
        %6000 = vmatprep.subr.mxu0 0.0
        %6001 = vmatpush1.msra.mxu0 %v5932
        %6002 = vmatprep.subr.mxu0 0.0
        %6003 = vmatpush1.msra.mxu0 %v5933
        %6004 = vmatprep.subr.mxu0 0.0
        %6005 = vmatpush1.msra.mxu0 %v5934
        %6006 = vmatprep.subr.mxu0 0.0
        %6007 = vmatpush1.msra.mxu0 %v5935
        %6008 = vmatprep.subr.mxu0 0.0
        %6009 = vmatpush1.msra.mxu0 %v5936
        %6010 = vmatprep.subr.mxu0 0.0
        %6011 = vmatpush1.msra.mxu0 %v5937
        %6012 = vmatprep.subr.mxu0 0.0
        %6013 = vmatpush1.msra.mxu0 %v5938
        %6014 = vmatprep.subr.mxu0 0.0
        %6015 = vmatpush1.msra.mxu0 %v5939
        %6016 = vmatprep.subr.mxu0 0.0
        %6017 = vmatpush1.msra.mxu0 %v5940
        %6018 = vmatprep.subr.mxu0 0.0
        %6019 = vmatpush1.msra.mxu0 %v5941
        %6020 = vmatprep.subr.mxu0 0.0
        %6021 = vmatpush1.msra.mxu0 %v5942
        %6022 = vmatprep.subr.mxu0 0.0
        %6023 = vmatpush1.msra.mxu0 %v5943
        %6024 = vmatprep.subr.mxu0 0.0
        %6025 = vmatpush1.msra.mxu0 %v5944
        %6026 = vmatprep.mubr.f32.mxu0 %v5958
        %6027 = vmatmul.mubr.f32.gmra.mrb[0].mxu0 %v5911
        %v6028 = vpop.f32.mrb[0].mxu0
        %v6029 = vadd.f32 %v5954, %v6028
        %v6030 = vpop.f32.mrb[0].mxu0
        %6031 = vdwg.mxu0
        %6032 = vmatprep.subr.mxu0 0.0
        %6033 = vmatpush1.msra.mxu0 %v5945
        %6034 = vmatprep.subr.mxu0 0.0
        %6035 = vmatpush1.msra.mxu0 %v5946
        %6036 = vmatprep.subr.mxu0 0.0
        %6037 = vmatpush1.msra.mxu0 %v5947
        %6038 = vmatprep.subr.mxu0 0.0
        %6039 = vmatpush1.msra.mxu0 %v5948
        %6040 = vmatprep.subr.mxu0 0.0
        %6041 = vmatpush1.msra.mxu0 0.0
        %6042 = vmatprep.subr.mxu0 0.0
        %6043 = vmatpush1.msra.mxu0 0.0
        %6044 = vmatprep.subr.mxu0 0.0
        %6045 = vmatpush1.msra.mxu0 0.0
        %6046 = vmatprep.subr.mxu0 0.0
        %6047 = vmatpush1.msra.mxu0 0.0
        %6048 = vmatprep.subr.mxu0 0.0
        %6049 = vmatpush1.msra.mxu0 0.0
        %6050 = vmatprep.subr.mxu0 0.0
        %6051 = vmatpush1.msra.mxu0 0.0
        %6052 = vmatprep.subr.mxu0 0.0
        %6053 = vmatpush1.msra.mxu0 0.0
        %6054 = vmatprep.subr.mxu0 0.0
        %6055 = vmatpush1.msra.mxu0 0.0
        %6056 = vmatprep.subr.mxu0 0.0
        %6057 = vmatpush1.msra.mxu0 0.0
        %6058 = vmatprep.subr.mxu0 0.0
        %6059 = vmatpush1.msra.mxu0 0.0
        %6060 = vmatprep.subr.mxu0 0.0
        %6061 = vmatpush1.msra.mxu0 0.0
        %6062 = vmatprep.subr.mxu0 0.0
        %6063 = vmatpush1.msra.mxu0 0.0
        %6064 = vmatprep.subr.mxu0 0.0
        %6065 = vmatpush1.msra.mxu0 0.0
        %6066 = vmatprep.subr.mxu0 0.0
        %6067 = vmatpush1.msra.mxu0 0.0
        %6068 = vmatprep.subr.mxu0 0.0
        %6069 = vmatpush1.msra.mxu0 0.0
        %6070 = vmatprep.subr.mxu0 0.0
        %6071 = vmatpush1.msra.mxu0 0.0
        %6072 = vmatprep.subr.mxu0 0.0
        %6073 = vmatpush1.msra.mxu0 0.0
        %6074 = vmatprep.subr.mxu0 0.0
        %6075 = vmatpush1.msra.mxu0 0.0
        %6076 = vmatprep.subr.mxu0 0.0
        %6077 = vmatpush1.msra.mxu0 0.0
        %6078 = vmatprep.subr.mxu0 0.0
        %6079 = vmatpush1.msra.mxu0 0.0
        %6080 = vmatprep.subr.mxu0 0.0
        %6081 = vmatpush1.msra.mxu0 0.0
        %6082 = vmatprep.subr.mxu0 0.0
        %6083 = vmatpush1.msra.mxu0 0.0
        %6084 = vmatprep.subr.mxu0 0.0
        %6085 = vmatpush1.msra.mxu0 0.0
        %6086 = vmatprep.subr.mxu0 0.0
        %6087 = vmatpush1.msra.mxu0 0.0
        %6088 = vmatprep.subr.mxu0 0.0
        %6089 = vmatpush1.msra.mxu0 0.0
        %6090 = vmatprep.subr.mxu0 0.0
        %6091 = vmatpush1.msra.mxu0 0.0
        %6092 = vmatprep.subr.mxu0 0.0
        %6093 = vmatpush1.msra.mxu0 0.0
        %6094 = vmatprep.subr.mxu0 0.0
        %6095 = vmatpush1.msra.mxu0 0.0
        %6096 = vmatprep.mubr.f32.mxu0 0.0
        %6097 = vmatmul.mubr.f32.gmra.mrb[0].mxu0 %v5960
        %v6098 = vpop.f32.mrb[0].mxu0
        %v6099 = vadd.f32 %v6029, %v6098
        %v6100 = vpop.f32.mrb[0].mxu0
        %6101 = vdwg.mxu0
        %v6102 = vmax.f32 %v6099, 0.0
        %v6103 = vld [vmem:[%s47] sm:$0x1]
        %v6105 = vlaneseq
        %v6106 = vshrl.u32 %v6105, 7
        %v6107 = vsub.s32 0, %v6106
        %v6108 = vrot.slane %v6103, %v6107
        %v6110 = vmul.f32 %v6102, %v6108
        %v6111 = vld [vmem:[%s49] sm:$0x1]
        %v6113 = vlaneseq
        %v6114 = vshrl.u32 %v6113, 7
        %v6115 = vsub.s32 0, %v6114
        %v6116 = vrot.slane %v6111, %v6115
        %v6118 = vadd.f32 %v6110, %v6116
        %vm6119 = vcmask 519168
        %6120 = vst.msk [vmem:[#allocation8 + $0x8] sm:$0xf] %vm6119, %v6118
        %v6121 = vld [vmem:[#allocation8 + $0x5] sm:$0xf]
        %v6122 = vsel %vm5857, %v6121, 0.0
        %6123 = vst.msk [vmem:[#allocation15] sm:$0xf] %vm6119, %v6122
        %v6124 = vld [vmem:[#allocation8 + $0x6] sm:$0xf]
        %6126 = vrot.lane.b32.xlu0 %v6124, 64
        %v6127 = vpop.permute.xlu0 %6126
        %vm6129 = vcmask 1043968
        %6130 = vst.msk [vmem:[#allocation15] sm:$0xf] %vm6129, %v6127
        %v6131 = vld [vmem:[#allocation8 + $0x7] sm:$0xf]
        %v6132 = vsel %vm5870, %v6131, 0.0
        %6133 = vst.msk [vmem:[#allocation15 + $0x4] sm:$0xf] %vm6119, %v6132
        %v6134 = vld [vmem:[#allocation8 + $0x7] sm:$0xf]
        %v6135 = vsel %vm5857, %v6134, 0.0
        %6137 = vrot.lane.b32.xlu0 %v6135, 64
        %v6138 = vpop.permute.xlu0 %6137
        %6140 = vst.msk [vmem:[#allocation15 + $0x4] sm:$0xf] %vm6129, %v6138
        %v6141 = vld [vmem:[#allocation8 + $0x8] sm:$0xf]
        %6142 = vst.msk [vmem:[#allocation15 + $0x8] sm:$0xf] %vm6119, %v6141
        %v6143 = vld [vmem:[#allocation8 + $0x9] sm:$0xf]
        %v6144 = vsel %vm5870, %v6143, 0.0
        %6146 = vrot.lane.b32.xlu0 %v6144, 64
        %v6147 = vpop.permute.xlu0 %6146
        %6149 = vst.msk [vmem:[#allocation15 + $0x8] sm:$0xf] %vm6129, %v6147
        %v6150 = vld [vmem:[#allocation8 + $0x9] sm:$0xf]
        %v6151 = vsel %vm5857, %v6150, 0.0
        %6152 = vst.msk [vmem:[#allocation15 + $0xc] sm:$0xf] %vm6119, %v6151
        %v6153 = vld [vmem:[#allocation8 + $0xa] sm:$0xf]
        %6155 = vrot.lane.b32.xlu0 %v6153, 64
        %v6156 = vpop.permute.xlu0 %6155
        %6158 = vst.msk [vmem:[#allocation15 + $0xc] sm:$0xf] %vm6129, %v6156
        %v6159 = vld [vmem:[#allocation8 + $0xb] sm:$0xf]
        %v6160 = vsel %vm5870, %v6159, 0.0
        %6161 = vst.msk [vmem:[#allocation15 + $0x10] sm:$0xf] %vm6119, %v6160
        %v6162 = vld [vmem:[#allocation15] sm:$0xff]
        %v6163 = vld [vmem:[#allocation15 + $0x8] sm:$0xff]
        %v6164 = vld [vmem:[#allocation15 + $0x10] sm:$0xf]
        %v6165 = vld [vmem:[%s51] sm:$0xff]
        %v6166 = vld [vmem:[%s51 + $0x8] sm:$0xff]
        %v6167 = vld [vmem:[%s51 + $0x10] sm:$0xff]
        %v6168 = vld [vmem:[%s51 + $0x18] sm:$0xff]
        %v6169 = vld [vmem:[%s51 + $0x20] sm:$0xff]
        %v6170 = vld [vmem:[%s51 + $0x28] sm:$0xff]
        %v6171 = vld [vmem:[%s51 + $0x30] sm:$0xff]
        %v6172 = vld [vmem:[%s51 + $0x38] sm:$0xff]
        %v6173 = vld [vmem:[%s51 + $0x40] sm:$0xff]
        %v6174 = vld [vmem:[%s51 + $0x48] sm:$0xff]
        %v6175 = vld [vmem:[%s51 + $0x50] sm:$0xff]
        %v6176 = vld [vmem:[%s51 + $0x58] sm:$0xff]
        %v6177 = vld [vmem:[%s51 + $0x60] sm:$0xff]
        %v6178 = vld [vmem:[%s51 + $0x68] sm:$0xff]
        %v6179 = vld [vmem:[%s51 + $0x70] sm:$0xff]
        %v6180 = vld [vmem:[%s51 + $0x78] sm:$0xff]
        %v6181 = vld [vmem:[%s51 + $0x80] sm:$0xff]
        %v6182 = vld [vmem:[%s51 + $0x88] sm:$0xff]
        %v6183 = vld [vmem:[%s51 + $0x90] sm:$0xff]
        %v6184 = vld [vmem:[%s51 + $0x98] sm:$0xff]
        %v6185 = vld [vmem:[%s51 + $0xa0] sm:$0xff]
        %v6186 = vld [vmem:[%s51 + $0xa8] sm:$0xff]
        %v6187 = vld [vmem:[%s51 + $0xb0] sm:$0xff]
        %v6188 = vld [vmem:[%s51 + $0xb8] sm:$0xff]
        %v6189 = vld [vmem:[%s51 + $0xc0] sm:$0xff]
        %v6190 = vld [vmem:[%s51 + $0xc8] sm:$0xff]
        %v6191 = vld [vmem:[%s51 + $0xd0] sm:$0xff]
        %v6192 = vld [vmem:[%s51 + $0xd8] sm:$0xff]
        %v6193 = vld [vmem:[%s51 + $0xe0] sm:$0xff]
        %v6194 = vld [vmem:[%s51 + $0xe8] sm:$0xff]
        %v6195 = vld [vmem:[%s51 + $0xf0] sm:$0xff]
        %v6196 = vld [vmem:[%s51 + $0xf8] sm:$0xff]
        %v6197 = vld [vmem:[%s51 + $0x100] sm:$0xff]
        %v6198 = vld [vmem:[%s51 + $0x108] sm:$0xff]
        %v6199 = vld [vmem:[%s51 + $0x110] sm:$0xff]
        %v6200 = vld [vmem:[%s51 + $0x118] sm:$0xff]
        %v6201 = vld [vmem:[%s51 + $0x120] sm:$0xff]
        %v6202 = vld [vmem:[%s51 + $0x128] sm:$0xff]
        %v6203 = vld [vmem:[%s51 + $0x130] sm:$0xff]
        %v6204 = vld [vmem:[%s51 + $0x138] sm:$0xff]
        %v6205 = vld [vmem:[%s51 + $0x140] sm:$0xff]
        %v6206 = vld [vmem:[%s51 + $0x148] sm:$0xff]
        %v6207 = vld [vmem:[%s51 + $0x150] sm:$0xff]
        %v6208 = vld [vmem:[%s51 + $0x158] sm:$0xff]
        %v6209 = vld [vmem:[%s51 + $0x160] sm:$0xff]
        %v6210 = vld [vmem:[%s51 + $0x168] sm:$0xff]
        %v6211 = vld [vmem:[%s51 + $0x170] sm:$0xff]
        %v6212 = vld [vmem:[%s51 + $0x178] sm:$0xff]
        %v6213 = vld [vmem:[%s51 + $0x180] sm:$0xff]
        %v6214 = vld [vmem:[%s51 + $0x188] sm:$0xff]
        %v6215 = vld [vmem:[%s51 + $0x190] sm:$0xff]
        %v6216 = vld [vmem:[%s51 + $0x198] sm:$0xff]
        %v6217 = vld [vmem:[%s51 + $0x1a0] sm:$0xff]
        %v6218 = vld [vmem:[%s51 + $0x1a8] sm:$0xff]
        %v6219 = vld [vmem:[%s51 + $0x1b0] sm:$0xff]
        %v6220 = vld [vmem:[%s51 + $0x1b8] sm:$0xff]
        %v6221 = vld [vmem:[%s51 + $0x1c0] sm:$0xff]
        %v6222 = vld [vmem:[%s51 + $0x1c8] sm:$0xff]
        %v6223 = vld [vmem:[%s51 + $0x1d0] sm:$0xff]
        %v6224 = vld [vmem:[%s51 + $0x1d8] sm:$0xff]
        %v6225 = vld [vmem:[%s51 + $0x1e0] sm:$0xff]
        %v6226 = vld [vmem:[%s51 + $0x1e8] sm:$0xff]
        %v6227 = vld [vmem:[%s51 + $0x1f0] sm:$0xff]
        %v6228 = vld [vmem:[%s51 + $0x1f8] sm:$0xff]
        %v6229 = vld [vmem:[%s51 + $0x200] sm:$0xff]
        %v6230 = vld [vmem:[%s51 + $0x208] sm:$0xff]
        %v6231 = vld [vmem:[%s51 + $0x210] sm:$0xff]
        %v6232 = vld [vmem:[%s51 + $0x218] sm:$0xff]
        %v6233 = vld [vmem:[%s51 + $0x220] sm:$0xff]
        %v6234 = vld [vmem:[%s51 + $0x228] sm:$0xff]
        %v6235 = vld [vmem:[%s51 + $0x230] sm:$0xff]
        %v6236 = vld [vmem:[%s51 + $0x238] sm:$0xff]
        %v6237 = vld [vmem:[%s53] sm:$0x1]
        %v6239 = vlaneseq
        %v6240 = vshrl.u32 %v6239, 7
        %v6241 = vsub.s32 0, %v6240
        %v6242 = vrot.slane %v6237, %v6241
        %v6247 = vcombine.high %v6162, %v6162
        %v6248 = vcombine.high %v6163, %v6163
        %v6251 = vsel %vm5849, %v6164, 0
        %6253 = vmatprep.subr.mxu0 0.0
        %6254 = vmatpush1.msra.mxu0 %v6165
        %6255 = vmatprep.subr.mxu0 0.0
        %6256 = vmatpush1.msra.mxu0 %v6166
        %6257 = vmatprep.subr.mxu0 0.0
        %6258 = vmatpush1.msra.mxu0 %v6167
        %6259 = vmatprep.subr.mxu0 0.0
        %6260 = vmatpush1.msra.mxu0 %v6168
        %6261 = vmatprep.subr.mxu0 0.0
        %6262 = vmatpush1.msra.mxu0 %v6169
        %6263 = vmatprep.subr.mxu0 0.0
        %6264 = vmatpush1.msra.mxu0 %v6170
        %6265 = vmatprep.subr.mxu0 0.0
        %6266 = vmatpush1.msra.mxu0 %v6171
        %6267 = vmatprep.subr.mxu0 0.0
        %6268 = vmatpush1.msra.mxu0 %v6172
        %6269 = vmatprep.subr.mxu0 0.0
        %6270 = vmatpush1.msra.mxu0 %v6173
        %6271 = vmatprep.subr.mxu0 0.0
        %6272 = vmatpush1.msra.mxu0 %v6174
        %6273 = vmatprep.subr.mxu0 0.0
        %6274 = vmatpush1.msra.mxu0 %v6175
        %6275 = vmatprep.subr.mxu0 0.0
        %6276 = vmatpush1.msra.mxu0 %v6176
        %6277 = vmatprep.subr.mxu0 0.0
        %6278 = vmatpush1.msra.mxu0 %v6177
        %6279 = vmatprep.subr.mxu0 0.0
        %6280 = vmatpush1.msra.mxu0 %v6178
        %6281 = vmatprep.subr.mxu0 0.0
        %6282 = vmatpush1.msra.mxu0 %v6179
        %6283 = vmatprep.subr.mxu0 0.0
        %6284 = vmatpush1.msra.mxu0 %v6180
        %6285 = vmatprep.subr.mxu0 0.0
        %6286 = vmatpush1.msra.mxu0 %v6181
        %6287 = vmatprep.subr.mxu0 0.0
        %6288 = vmatpush1.msra.mxu0 %v6182
        %6289 = vmatprep.subr.mxu0 0.0
        %6290 = vmatpush1.msra.mxu0 %v6183
        %6291 = vmatprep.subr.mxu0 0.0
        %6292 = vmatpush1.msra.mxu0 %v6184
        %6293 = vmatprep.subr.mxu0 0.0
        %6294 = vmatpush1.msra.mxu0 %v6185
        %6295 = vmatprep.subr.mxu0 0.0
        %6296 = vmatpush1.msra.mxu0 %v6186
        %6297 = vmatprep.subr.mxu0 0.0
        %6298 = vmatpush1.msra.mxu0 %v6187
        %6299 = vmatprep.subr.mxu0 0.0
        %6300 = vmatpush1.msra.mxu0 %v6188
        %6301 = vmatprep.subr.mxu0 0.0
        %6302 = vmatpush1.msra.mxu0 %v6189
        %6303 = vmatprep.subr.mxu0 0.0
        %6304 = vmatpush1.msra.mxu0 %v6190
        %6305 = vmatprep.subr.mxu0 0.0
        %6306 = vmatpush1.msra.mxu0 %v6191
        %6307 = vmatprep.subr.mxu0 0.0
        %6308 = vmatpush1.msra.mxu0 %v6192
        %6309 = vmatprep.subr.mxu0 0.0
        %6310 = vmatpush1.msra.mxu0 %v6193
        %6311 = vmatprep.subr.mxu0 0.0
        %6312 = vmatpush1.msra.mxu0 %v6194
        %6313 = vmatprep.subr.mxu0 0.0
        %6314 = vmatpush1.msra.mxu0 %v6195
        %6315 = vmatprep.subr.mxu0 0.0
        %6316 = vmatpush1.msra.mxu0 %v6196
        %6317 = vmatprep.mubr.f32.mxu0 %v6247
        %6318 = vmatmul.mubr.f32.gmra.mrb[0].mxu0 %v6162
        %v6319 = vpop.f32.mrb[0].mxu0
        %v6320 = vadd.f32 %v6242, %v6319
        %v6321 = vpop.f32.mrb[0].mxu0
        %6322 = vdwg.mxu0
        %6323 = vmatprep.subr.mxu0 0.0
        %6324 = vmatpush1.msra.mxu0 %v6197
        %6325 = vmatprep.subr.mxu0 0.0
        %6326 = vmatpush1.msra.mxu0 %v6198
        %6327 = vmatprep.subr.mxu0 0.0
        %6328 = vmatpush1.msra.mxu0 %v6199
        %6329 = vmatprep.subr.mxu0 0.0
        %6330 = vmatpush1.msra.mxu0 %v6200
        %6331 = vmatprep.subr.mxu0 0.0
        %6332 = vmatpush1.msra.mxu0 %v6201
        %6333 = vmatprep.subr.mxu0 0.0
        %6334 = vmatpush1.msra.mxu0 %v6202
        %6335 = vmatprep.subr.mxu0 0.0
        %6336 = vmatpush1.msra.mxu0 %v6203
        %6337 = vmatprep.subr.mxu0 0.0
        %6338 = vmatpush1.msra.mxu0 %v6204
        %6339 = vmatprep.subr.mxu0 0.0
        %6340 = vmatpush1.msra.mxu0 %v6205
        %6341 = vmatprep.subr.mxu0 0.0
        %6342 = vmatpush1.msra.mxu0 %v6206
        %6343 = vmatprep.subr.mxu0 0.0
        %6344 = vmatpush1.msra.mxu0 %v6207
        %6345 = vmatprep.subr.mxu0 0.0
        %6346 = vmatpush1.msra.mxu0 %v6208
        %6347 = vmatprep.subr.mxu0 0.0
        %6348 = vmatpush1.msra.mxu0 %v6209
        %6349 = vmatprep.subr.mxu0 0.0
        %6350 = vmatpush1.msra.mxu0 %v6210
        %6351 = vmatprep.subr.mxu0 0.0
        %6352 = vmatpush1.msra.mxu0 %v6211
        %6353 = vmatprep.subr.mxu0 0.0
        %6354 = vmatpush1.msra.mxu0 %v6212
        %6355 = vmatprep.subr.mxu0 0.0
        %6356 = vmatpush1.msra.mxu0 %v6213
        %6357 = vmatprep.subr.mxu0 0.0
        %6358 = vmatpush1.msra.mxu0 %v6214
        %6359 = vmatprep.subr.mxu0 0.0
        %6360 = vmatpush1.msra.mxu0 %v6215
        %6361 = vmatprep.subr.mxu0 0.0
        %6362 = vmatpush1.msra.mxu0 %v6216
        %6363 = vmatprep.subr.mxu0 0.0
        %6364 = vmatpush1.msra.mxu0 %v6217
        %6365 = vmatprep.subr.mxu0 0.0
        %6366 = vmatpush1.msra.mxu0 %v6218
        %6367 = vmatprep.subr.mxu0 0.0
        %6368 = vmatpush1.msra.mxu0 %v6219
        %6369 = vmatprep.subr.mxu0 0.0
        %6370 = vmatpush1.msra.mxu0 %v6220
        %6371 = vmatprep.subr.mxu0 0.0
        %6372 = vmatpush1.msra.mxu0 %v6221
        %6373 = vmatprep.subr.mxu0 0.0
        %6374 = vmatpush1.msra.mxu0 %v6222
        %6375 = vmatprep.subr.mxu0 0.0
        %6376 = vmatpush1.msra.mxu0 %v6223
        %6377 = vmatprep.subr.mxu0 0.0
        %6378 = vmatpush1.msra.mxu0 %v6224
        %6379 = vmatprep.subr.mxu0 0.0
        %6380 = vmatpush1.msra.mxu0 %v6225
        %6381 = vmatprep.subr.mxu0 0.0
        %6382 = vmatpush1.msra.mxu0 %v6226
        %6383 = vmatprep.subr.mxu0 0.0
        %6384 = vmatpush1.msra.mxu0 %v6227
        %6385 = vmatprep.subr.mxu0 0.0
        %6386 = vmatpush1.msra.mxu0 %v6228
        %6387 = vmatprep.mubr.f32.mxu0 %v6248
        %6388 = vmatmul.mubr.f32.gmra.mrb[0].mxu0 %v6163
        %v6389 = vpop.f32.mrb[0].mxu0
        %v6390 = vadd.f32 %v6320, %v6389
        %v6391 = vpop.f32.mrb[0].mxu0
        %6392 = vdwg.mxu0
        %6393 = vmatprep.subr.mxu0 0.0
        %6394 = vmatpush1.msra.mxu0 %v6229
        %6395 = vmatprep.subr.mxu0 0.0
        %6396 = vmatpush1.msra.mxu0 %v6230
        %6397 = vmatprep.subr.mxu0 0.0
        %6398 = vmatpush1.msra.mxu0 %v6231
        %6399 = vmatprep.subr.mxu0 0.0
        %6400 = vmatpush1.msra.mxu0 %v6232
        %6401 = vmatprep.subr.mxu0 0.0
        %6402 = vmatpush1.msra.mxu0 %v6233
        %6403 = vmatprep.subr.mxu0 0.0
        %6404 = vmatpush1.msra.mxu0 %v6234
        %6405 = vmatprep.subr.mxu0 0.0
        %6406 = vmatpush1.msra.mxu0 %v6235
        %6407 = vmatprep.subr.mxu0 0.0
        %6408 = vmatpush1.msra.mxu0 %v6236
        %6409 = vmatprep.subr.mxu0 0.0
        %6410 = vmatpush1.msra.mxu0 0.0
        %6411 = vmatprep.subr.mxu0 0.0
        %6412 = vmatpush1.msra.mxu0 0.0
        %6413 = vmatprep.subr.mxu0 0.0
        %6414 = vmatpush1.msra.mxu0 0.0
        %6415 = vmatprep.subr.mxu0 0.0
        %6416 = vmatpush1.msra.mxu0 0.0
        %6417 = vmatprep.subr.mxu0 0.0
        %6418 = vmatpush1.msra.mxu0 0.0
        %6419 = vmatprep.subr.mxu0 0.0
        %6420 = vmatpush1.msra.mxu0 0.0
        %6421 = vmatprep.subr.mxu0 0.0
        %6422 = vmatpush1.msra.mxu0 0.0
        %6423 = vmatprep.subr.mxu0 0.0
        %6424 = vmatpush1.msra.mxu0 0.0
        %6425 = vmatprep.subr.mxu0 0.0
        %6426 = vmatpush1.msra.mxu0 0.0
        %6427 = vmatprep.subr.mxu0 0.0
        %6428 = vmatpush1.msra.mxu0 0.0
        %6429 = vmatprep.subr.mxu0 0.0
        %6430 = vmatpush1.msra.mxu0 0.0
        %6431 = vmatprep.subr.mxu0 0.0
        %6432 = vmatpush1.msra.mxu0 0.0
        %6433 = vmatprep.subr.mxu0 0.0
        %6434 = vmatpush1.msra.mxu0 0.0
        %6435 = vmatprep.subr.mxu0 0.0
        %6436 = vmatpush1.msra.mxu0 0.0
        %6437 = vmatprep.subr.mxu0 0.0
        %6438 = vmatpush1.msra.mxu0 0.0
        %6439 = vmatprep.subr.mxu0 0.0
        %6440 = vmatpush1.msra.mxu0 0.0
        %6441 = vmatprep.subr.mxu0 0.0
        %6442 = vmatpush1.msra.mxu0 0.0
        %6443 = vmatprep.subr.mxu0 0.0
        %6444 = vmatpush1.msra.mxu0 0.0
        %6445 = vmatprep.subr.mxu0 0.0
        %6446 = vmatpush1.msra.mxu0 0.0
        %6447 = vmatprep.subr.mxu0 0.0
        %6448 = vmatpush1.msra.mxu0 0.0
        %6449 = vmatprep.subr.mxu0 0.0
        %6450 = vmatpush1.msra.mxu0 0.0
        %6451 = vmatprep.subr.mxu0 0.0
        %6452 = vmatpush1.msra.mxu0 0.0
        %6453 = vmatprep.subr.mxu0 0.0
        %6454 = vmatpush1.msra.mxu0 0.0
        %6455 = vmatprep.subr.mxu0 0.0
        %6456 = vmatpush1.msra.mxu0 0.0
        %6457 = vmatprep.mubr.f32.mxu0 0.0
        %6458 = vmatmul.mubr.f32.gmra.mrb[0].mxu0 %v6251
        %v6459 = vpop.f32.mrb[0].mxu0
        %v6460 = vadd.f32 %v6390, %v6459
        %v6461 = vpop.f32.mrb[0].mxu0
        %6462 = vdwg.mxu0
        %v6463 = vmax.f32 %v6460, 0.0
        %v6464 = vld [vmem:[%s55] sm:$0x1]
        %v6466 = vlaneseq
        %v6467 = vshrl.u32 %v6466, 7
        %v6468 = vsub.s32 0, %v6467
        %v6469 = vrot.slane %v6464, %v6468
        %v6471 = vmul.f32 %v6463, %v6469
        %v6472 = vld [vmem:[%s57] sm:$0x1]
        %v6474 = vlaneseq
        %v6475 = vshrl.u32 %v6474, 7
        %v6476 = vsub.s32 0, %v6475
        %v6477 = vrot.slane %v6472, %v6476
        %v6479 = vadd.f32 %v6471, %v6477
        %6480 = vst.msk [vmem:[#allocation22] sm:$0xf] %vm6119, %v6479
        %v6481 = vld [vmem:[#allocation22] ss:$2 sm:$0x3]
        %s6482 = scalar_lea.vmem [#allocation22], 1
        %v6483 = vld [vmem:[%s6482] ss:$2 sm:$0x3]
        %v6484 = vmax.f32 %v6481, %v6483
        %vm6485 = vcmask 517120
        %6486 = vst.msk [vmem:[#allocation23] sm:$0x3] %vm6485, %v6484
        %v6487 = vld [vmem:[#allocation23] sm:$0x1]
        %v6488 = vld [vmem:[#allocation23 + $0x1] sm:$0x1]
        %v6489 = vmax.f32 %v6487, %v6488
        %vm6490 = vcmask 516096
        %6491 = vst.msk [vmem:[#allocation24] sm:$0x1] %vm6490, %v6489
        %v6492 = vld [vmem:[#allocation24] sm:$0x1]
        %v6493 = vld [vmem:[%s59] sm:$0xff]
        %v6494 = vld [vmem:[%s59 + $0x8] sm:$0xff]
        %v6495 = vld [vmem:[%s59 + $0x10] sm:$0xff]
        %v6496 = vld [vmem:[%s59 + $0x18] sm:$0xff]
        %v6497 = vld [vmem:[%s59 + $0x20] sm:$0xff]
        %v6498 = vld [vmem:[%s59 + $0x28] sm:$0xff]
        %v6499 = vld [vmem:[%s59 + $0x30] sm:$0xff]
        %v6500 = vld [vmem:[%s59 + $0x38] sm:$0xff]
        %v6501 = vld [vmem:[%s61] sm:$0x1]
        %v6503 = vsel %vm5849, %v6492, 0
        %6505 = vmatprep.subr.mxu0 0.0
        %6506 = vmatpush1.msra.mxu0 %v6493
        %6507 = vmatprep.subr.mxu0 0.0
        %6508 = vmatpush1.msra.mxu0 %v6494
        %6509 = vmatprep.subr.mxu0 0.0
        %6510 = vmatpush1.msra.mxu0 %v6495
        %6511 = vmatprep.subr.mxu0 0.0
        %6512 = vmatpush1.msra.mxu0 %v6496
        %6513 = vmatprep.subr.mxu0 0.0
        %6514 = vmatpush1.msra.mxu0 %v6497
        %6515 = vmatprep.subr.mxu0 0.0
        %6516 = vmatpush1.msra.mxu0 %v6498
        %6517 = vmatprep.subr.mxu0 0.0
        %6518 = vmatpush1.msra.mxu0 %v6499
        %6519 = vmatprep.subr.mxu0 0.0
        %6520 = vmatpush1.msra.mxu0 %v6500
        %6521 = vmatprep.subr.mxu0 0.0
        %6522 = vmatpush1.msra.mxu0 0.0
        %6523 = vmatprep.subr.mxu0 0.0
        %6524 = vmatpush1.msra.mxu0 0.0
        %6525 = vmatprep.subr.mxu0 0.0
        %6526 = vmatpush1.msra.mxu0 0.0
        %6527 = vmatprep.subr.mxu0 0.0
        %6528 = vmatpush1.msra.mxu0 0.0
        %6529 = vmatprep.subr.mxu0 0.0
        %6530 = vmatpush1.msra.mxu0 0.0
        %6531 = vmatprep.subr.mxu0 0.0
        %6532 = vmatpush1.msra.mxu0 0.0
        %6533 = vmatprep.subr.mxu0 0.0
        %6534 = vmatpush1.msra.mxu0 0.0
        %6535 = vmatprep.subr.mxu0 0.0
        %6536 = vmatpush1.msra.mxu0 0.0
        %6537 = vmatprep.subr.mxu0 0.0
        %6538 = vmatpush1.msra.mxu0 0.0
        %6539 = vmatprep.subr.mxu0 0.0
        %6540 = vmatpush1.msra.mxu0 0.0
        %6541 = vmatprep.subr.mxu0 0.0
        %6542 = vmatpush1.msra.mxu0 0.0
        %6543 = vmatprep.subr.mxu0 0.0
        %6544 = vmatpush1.msra.mxu0 0.0
        %6545 = vmatprep.subr.mxu0 0.0
        %6546 = vmatpush1.msra.mxu0 0.0
        %6547 = vmatprep.subr.mxu0 0.0
        %6548 = vmatpush1.msra.mxu0 0.0
        %6549 = vmatprep.subr.mxu0 0.0
        %6550 = vmatpush1.msra.mxu0 0.0
        %6551 = vmatprep.subr.mxu0 0.0
        %6552 = vmatpush1.msra.mxu0 0.0
        %6553 = vmatprep.subr.mxu0 0.0
        %6554 = vmatpush1.msra.mxu0 0.0
        %6555 = vmatprep.subr.mxu0 0.0
        %6556 = vmatpush1.msra.mxu0 0.0
        %6557 = vmatprep.subr.mxu0 0.0
        %6558 = vmatpush1.msra.mxu0 0.0
        %6559 = vmatprep.subr.mxu0 0.0
        %6560 = vmatpush1.msra.mxu0 0.0
        %6561 = vmatprep.subr.mxu0 0.0
        %6562 = vmatpush1.msra.mxu0 0.0
        %6563 = vmatprep.subr.mxu0 0.0
        %6564 = vmatpush1.msra.mxu0 0.0
        %6565 = vmatprep.subr.mxu0 0.0
        %6566 = vmatpush1.msra.mxu0 0.0
        %6567 = vmatprep.subr.mxu0 0.0
        %6568 = vmatpush1.msra.mxu0 0.0
        %6569 = vmatprep.mubr.f32.mxu0 0.0
        %6570 = vmatmul.mubr.f32.gmra.mrb[0].mxu0 %v6503
        %v6571 = vpop.f32.mrb[0].mxu0
        %v6572 = vadd.f32 %v6501, %v6571
        %v6573 = vpop.f32.mrb[0].mxu0
        %6574 = vdwg.mxu0
        %v6575 = vmax.f32 %v6572, 0.0
        %v6576 = vld [vmem:[%s63] sm:$0xff]
        %v6577 = vld [vmem:[%s63 + $0x8] sm:$0xff]
        %v6578 = vld [vmem:[%s63 + $0x10] sm:$0xff]
        %v6579 = vld [vmem:[%s63 + $0x18] sm:$0xff]
        %v6580 = vld [vmem:[%s63 + $0x20] sm:$0xff]
        %v6581 = vld [vmem:[%s63 + $0x28] sm:$0xff]
        %v6582 = vld [vmem:[%s63 + $0x30] sm:$0xff]
        %v6583 = vld [vmem:[%s63 + $0x38] sm:$0xff]
        %v6584 = vld [vmem:[%s65] sm:$0x1]
        %v6586 = vsel %vm5849, %v6575, 0
        %6588 = vmatprep.subr.mxu0 0.0
        %6589 = vmatpush1.msra.mxu0 %v6576
        %6590 = vmatprep.subr.mxu0 0.0
        %6591 = vmatpush1.msra.mxu0 %v6577
        %6592 = vmatprep.subr.mxu0 0.0
        %6593 = vmatpush1.msra.mxu0 %v6578
        %6594 = vmatprep.subr.mxu0 0.0
        %6595 = vmatpush1.msra.mxu0 %v6579
        %6596 = vmatprep.subr.mxu0 0.0
        %6597 = vmatpush1.msra.mxu0 %v6580
        %6598 = vmatprep.subr.mxu0 0.0
        %6599 = vmatpush1.msra.mxu0 %v6581
        %6600 = vmatprep.subr.mxu0 0.0
        %6601 = vmatpush1.msra.mxu0 %v6582
        %6602 = vmatprep.subr.mxu0 0.0
        %6603 = vmatpush1.msra.mxu0 %v6583
        %6604 = vmatprep.subr.mxu0 0.0
        %6605 = vmatpush1.msra.mxu0 0.0
        %6606 = vmatprep.subr.mxu0 0.0
        %6607 = vmatpush1.msra.mxu0 0.0
        %6608 = vmatprep.subr.mxu0 0.0
        %6609 = vmatpush1.msra.mxu0 0.0
        %6610 = vmatprep.subr.mxu0 0.0
        %6611 = vmatpush1.msra.mxu0 0.0
        %6612 = vmatprep.subr.mxu0 0.0
        %6613 = vmatpush1.msra.mxu0 0.0
        %6614 = vmatprep.subr.mxu0 0.0
        %6615 = vmatpush1.msra.mxu0 0.0
        %6616 = vmatprep.subr.mxu0 0.0
        %6617 = vmatpush1.msra.mxu0 0.0
        %6618 = vmatprep.subr.mxu0 0.0
        %6619 = vmatpush1.msra.mxu0 0.0
        %6620 = vmatprep.subr.mxu0 0.0
        %6621 = vmatpush1.msra.mxu0 0.0
        %6622 = vmatprep.subr.mxu0 0.0
        %6623 = vmatpush1.msra.mxu0 0.0
        %6624 = vmatprep.subr.mxu0 0.0
        %6625 = vmatpush1.msra.mxu0 0.0
        %6626 = vmatprep.subr.mxu0 0.0
        %6627 = vmatpush1.msra.mxu0 0.0
        %6628 = vmatprep.subr.mxu0 0.0
        %6629 = vmatpush1.msra.mxu0 0.0
        %6630 = vmatprep.subr.mxu0 0.0
        %6631 = vmatpush1.msra.mxu0 0.0
        %6632 = vmatprep.subr.mxu0 0.0
        %6633 = vmatpush1.msra.mxu0 0.0
        %6634 = vmatprep.subr.mxu0 0.0
        %6635 = vmatpush1.msra.mxu0 0.0
        %6636 = vmatprep.subr.mxu0 0.0
        %6637 = vmatpush1.msra.mxu0 0.0
        %6638 = vmatprep.subr.mxu0 0.0
        %6639 = vmatpush1.msra.mxu0 0.0
        %6640 = vmatprep.subr.mxu0 0.0
        %6641 = vmatpush1.msra.mxu0 0.0
        %6642 = vmatprep.subr.mxu0 0.0
        %6643 = vmatpush1.msra.mxu0 0.0
        %6644 = vmatprep.subr.mxu0 0.0
        %6645 = vmatpush1.msra.mxu0 0.0
        %6646 = vmatprep.subr.mxu0 0.0
        %6647 = vmatpush1.msra.mxu0 0.0
        %6648 = vmatprep.subr.mxu0 0.0
        %6649 = vmatpush1.msra.mxu0 0.0
        %6650 = vmatprep.subr.mxu0 0.0
        %6651 = vmatpush1.msra.mxu0 0.0
        %6652 = vmatprep.mubr.f32.mxu0 0.0
        %6653 = vmatmul.mubr.f32.gmra.mrb[0].mxu0 %v6586
        %v6654 = vpop.f32.mrb[0].mxu0
        %v6655 = vadd.f32 %v6584, %v6654
        %v6656 = vpop.f32.mrb[0].mxu0
        %6657 = vdwg.mxu0
        %v6658 = vmax.f32 %v6655, 0.0
        %v6659 = vld [vmem:[%s67] sm:$0xff]
        %v6660 = vld [vmem:[%s67 + $0x8] sm:$0xff]
        %v6661 = vld [vmem:[%s67 + $0x10] sm:$0xff]
        %v6662 = vld [vmem:[%s67 + $0x18] sm:$0xff]
        %v6663 = vld [vmem:[%s69] sm:$0x1]
        %v6665 = vsel %vm5254, %v6658, 0
        %6667 = vmatprep.subr.mxu0 0.0
        %6668 = vmatpush1.msra.mxu0 %v6659
        %6669 = vmatprep.subr.mxu0 0.0
        %6670 = vmatpush1.msra.mxu0 %v6660
        %6671 = vmatprep.subr.mxu0 0.0
        %6672 = vmatpush1.msra.mxu0 %v6661
        %6673 = vmatprep.subr.mxu0 0.0
        %6674 = vmatpush1.msra.mxu0 %v6662
        %6675 = vmatprep.subr.mxu0 0.0
        %6676 = vmatpush1.msra.mxu0 0.0
        %6677 = vmatprep.subr.mxu0 0.0
        %6678 = vmatpush1.msra.mxu0 0.0
        %6679 = vmatprep.subr.mxu0 0.0
        %6680 = vmatpush1.msra.mxu0 0.0
        %6681 = vmatprep.subr.mxu0 0.0
        %6682 = vmatpush1.msra.mxu0 0.0
        %6683 = vmatprep.subr.mxu0 0.0
        %6684 = vmatpush1.msra.mxu0 0.0
        %6685 = vmatprep.subr.mxu0 0.0
        %6686 = vmatpush1.msra.mxu0 0.0
        %6687 = vmatprep.subr.mxu0 0.0
        %6688 = vmatpush1.msra.mxu0 0.0
        %6689 = vmatprep.subr.mxu0 0.0
        %6690 = vmatpush1.msra.mxu0 0.0
        %6691 = vmatprep.subr.mxu0 0.0
        %6692 = vmatpush1.msra.mxu0 0.0
        %6693 = vmatprep.subr.mxu0 0.0
        %6694 = vmatpush1.msra.mxu0 0.0
        %6695 = vmatprep.subr.mxu0 0.0
        %6696 = vmatpush1.msra.mxu0 0.0
        %6697 = vmatprep.subr.mxu0 0.0
        %6698 = vmatpush1.msra.mxu0 0.0
        %6699 = vmatprep.subr.mxu0 0.0
        %6700 = vmatpush1.msra.mxu0 0.0
        %6701 = vmatprep.subr.mxu0 0.0
        %6702 = vmatpush1.msra.mxu0 0.0
        %6703 = vmatprep.subr.mxu0 0.0
        %6704 = vmatpush1.msra.mxu0 0.0
        %6705 = vmatprep.subr.mxu0 0.0
        %6706 = vmatpush1.msra.mxu0 0.0
        %6707 = vmatprep.subr.mxu0 0.0
        %6708 = vmatpush1.msra.mxu0 0.0
        %6709 = vmatprep.subr.mxu0 0.0
        %6710 = vmatpush1.msra.mxu0 0.0
        %6711 = vmatprep.subr.mxu0 0.0
        %6712 = vmatpush1.msra.mxu0 0.0
        %6713 = vmatprep.subr.mxu0 0.0
        %6714 = vmatpush1.msra.mxu0 0.0
        %6715 = vmatprep.subr.mxu0 0.0
        %6716 = vmatpush1.msra.mxu0 0.0
        %6717 = vmatprep.subr.mxu0 0.0
        %6718 = vmatpush1.msra.mxu0 0.0
        %6719 = vmatprep.subr.mxu0 0.0
        %6720 = vmatpush1.msra.mxu0 0.0
        %6721 = vmatprep.subr.mxu0 0.0
        %6722 = vmatpush1.msra.mxu0 0.0
        %6723 = vmatprep.subr.mxu0 0.0
        %6724 = vmatpush1.msra.mxu0 0.0
        %6725 = vmatprep.subr.mxu0 0.0
        %6726 = vmatpush1.msra.mxu0 0.0
        %6727 = vmatprep.subr.mxu0 0.0
        %6728 = vmatpush1.msra.mxu0 0.0
        %6729 = vmatprep.subr.mxu0 0.0
        %6730 = vmatpush1.msra.mxu0 0.0
        %6731 = vmatprep.mubr.f32.mxu0 0.0
        %6732 = vmatmul.mubr.f32.gmra.mrb[0].mxu0 %v6665
        %v6733 = vpop.f32.mrb[0].mxu0
        %v6734 = vadd.f32 %v6663, %v6733
        %v6735 = vpop.f32.mrb[0].mxu0
        %6736 = vdwg.mxu0
        %v6737 = vmax.f32 %v6734, 0.0
        %v6738 = vld [vmem:[%s71] sm:$0xff]
        %v6739 = vld [vmem:[%s71 + $0x8] sm:$0xff]
        %v6740 = vld [vmem:[%s73] sm:$0x1]
        %v6742 = vsel %vm3856, %v6737, 0
        %6744 = vmatprep.subr.mxu0 0.0
        %6745 = vmatpush1.msra.mxu0 %v6738
        %6746 = vmatprep.subr.mxu0 0.0
        %6747 = vmatpush1.msra.mxu0 %v6739
        %6748 = vmatprep.subr.mxu0 0.0
        %6749 = vmatpush1.msra.mxu0 0.0
        %6750 = vmatprep.subr.mxu0 0.0
        %6751 = vmatpush1.msra.mxu0 0.0
        %6752 = vmatprep.subr.mxu0 0.0
        %6753 = vmatpush1.msra.mxu0 0.0
        %6754 = vmatprep.subr.mxu0 0.0
        %6755 = vmatpush1.msra.mxu0 0.0
        %6756 = vmatprep.subr.mxu0 0.0
        %6757 = vmatpush1.msra.mxu0 0.0
        %6758 = vmatprep.subr.mxu0 0.0
        %6759 = vmatpush1.msra.mxu0 0.0
        %6760 = vmatprep.subr.mxu0 0.0
        %6761 = vmatpush1.msra.mxu0 0.0
        %6762 = vmatprep.subr.mxu0 0.0
        %6763 = vmatpush1.msra.mxu0 0.0
        %6764 = vmatprep.subr.mxu0 0.0
        %6765 = vmatpush1.msra.mxu0 0.0
        %6766 = vmatprep.subr.mxu0 0.0
        %6767 = vmatpush1.msra.mxu0 0.0
        %6768 = vmatprep.subr.mxu0 0.0
        %6769 = vmatpush1.msra.mxu0 0.0
        %6770 = vmatprep.subr.mxu0 0.0
        %6771 = vmatpush1.msra.mxu0 0.0
        %6772 = vmatprep.subr.mxu0 0.0
        %6773 = vmatpush1.msra.mxu0 0.0
        %6774 = vmatprep.subr.mxu0 0.0
        %6775 = vmatpush1.msra.mxu0 0.0
        %6776 = vmatprep.subr.mxu0 0.0
        %6777 = vmatpush1.msra.mxu0 0.0
        %6778 = vmatprep.subr.mxu0 0.0
        %6779 = vmatpush1.msra.mxu0 0.0
        %6780 = vmatprep.subr.mxu0 0.0
        %6781 = vmatpush1.msra.mxu0 0.0
        %6782 = vmatprep.subr.mxu0 0.0
        %6783 = vmatpush1.msra.mxu0 0.0
        %6784 = vmatprep.subr.mxu0 0.0
        %6785 = vmatpush1.msra.mxu0 0.0
        %6786 = vmatprep.subr.mxu0 0.0
        %6787 = vmatpush1.msra.mxu0 0.0
        %6788 = vmatprep.subr.mxu0 0.0
        %6789 = vmatpush1.msra.mxu0 0.0
        %6790 = vmatprep.subr.mxu0 0.0
        %6791 = vmatpush1.msra.mxu0 0.0
        %6792 = vmatprep.subr.mxu0 0.0
        %6793 = vmatpush1.msra.mxu0 0.0
        %6794 = vmatprep.subr.mxu0 0.0
        %6795 = vmatpush1.msra.mxu0 0.0
        %6796 = vmatprep.subr.mxu0 0.0
        %6797 = vmatpush1.msra.mxu0 0.0
        %6798 = vmatprep.subr.mxu0 0.0
        %6799 = vmatpush1.msra.mxu0 0.0
        %6800 = vmatprep.subr.mxu0 0.0
        %6801 = vmatpush1.msra.mxu0 0.0
        %6802 = vmatprep.subr.mxu0 0.0
        %6803 = vmatpush1.msra.mxu0 0.0
        %6804 = vmatprep.subr.mxu0 0.0
        %6805 = vmatpush1.msra.mxu0 0.0
        %6806 = vmatprep.subr.mxu0 0.0
        %6807 = vmatpush1.msra.mxu0 0.0
        %6808 = vmatprep.mubr.f32.mxu0 0.0
        %6809 = vmatmul.mubr.f32.gmra.mrb[0].mxu0 %v6742
        %v6810 = vpop.f32.mrb[0].mxu0
        %v6811 = vadd.f32 %v6740, %v6810
        %v6812 = vpop.f32.mrb[0].mxu0
        %6813 = vdwg.mxu0
        %vm6814 = vcmask 49152
        %v6815 = vsel %vm6814, %v6811, -inf
        %6816 = vmax.xlane.f32.xlu0 %v6815
        %v6817 = vpop.xlane.xlu0 %6816
        %v6818 = vsub.f32 %v6811, %v6817
        %v6819 = vmul.f32 %v6818, 1.442695
        %v6820 = vpow.pop %v6819
        %v6821 = vsel %vm6814, %v6820, 0.0
        %6822 = vadd.xlane.f32.xlu0 %v6821
        %v6823 = vpop.xlane.xlu0 %6822
        %v6824 = vlog2.pop %v6823
        %v6825 = vmul.f32 %v6824, 0.6931472
        %v6826 = vsub.f32 %v6818, %v6825
        %6827 = vst.msk [vmem:[%s1118] sm:$0x1] %vm6814, %v6826
        %s6828 = sand.u32 %s879, 1
        %s6829 = scalar_lea.sflag [#allocation26], %s6828
        %s6830 = sand.u32 %s879, 1
        %s6831 = scalar_lea.vmem [#allocation25], %s6830
        // Predicated region
        $region169: #{_lambda_.1} parent=167 // pred_check
          %p6832 = pneg %p889
        $region170: #{_lambda_.1} parent=167 // pred_check_branch
          %6834 = sbr.rel (%p6832) target = $region172
        $region171: #{_lambda_.1} parent=167 // pred_region
          %s6836 = ssub.s32 16, 16
          %6837 = vsyncadd %s6829, %s6836
          %s6838 = smul.addr %s89, 16
          %s6839 = scalar_lea.hbm %s75, %s6838
          %s6841 = sshll.u32 %s6831, 4
          %s6842 = int_to_ptr.vmem [resolvable:$true] %s6841
          %6844 = dma.vmem_to_hbm [thread:$0]  %s6842, 16, %s6839, %s6829
        $region172: #{_lambda_.1} parent=167 // pred_fallthru
          _
      $region168: #{_lambda_.1} parent=5 // pred_fallthru
        _
      %p6845 = scmp.le.s32.totalorder 2, %s84
      // Predicated region
      $region173: #{_lambda_.1} parent=5 // pred_check
        %p6846 = pneg %p6845
      $region174: #{_lambda_.1} parent=5 // pred_check_branch
        %6848 = sbr.rel (%p6846) target = $region176
      $region175: #{_lambda_.1} parent=5 // pred_region
        %s6849 = ssub.s32 %s84, 2
        // Predicated region
        $region177: #{_lambda_.1} parent=175 // pred_check
          %p6850 = pneg %p895
        $region178: #{_lambda_.1} parent=175 // pred_check_branch
          %6852 = sbr.rel (%p6850) target = $region180
        $region179: #{_lambda_.1} parent=175 // pred_region
          %s6853 = sand.u32 %s880, 1
          %s6854 = scalar_lea.sflag [#allocation26], %s6853
          %s6855 = sand.u32 %s880, 1
          %s6856 = scalar_lea.vmem [#allocation25], %s6855
          %6857 = dma.done %s6854, 16
        $region180: #{_lambda_.1} parent=175 // pred_fallthru
          _
      $region176: #{_lambda_.1} parent=5 // pred_fallthru
        _
    $region6: #{_lambda_.1} parent=1 // loop_footer
      %s88 = sadd.s32 1, %s84
    $region7: #{_lambda_.1} parent=1 // loop_footer_branch
      %83 = sbr.rel target = $region3
    $region8: #{_lambda_.1} parent=1 // loop_exit
      _
    %6858 = vsyncpa [#allocation26], 1
    %s6859 = scalar_lea.sflag [#allocation26], 1
    %6860 = vsyncpa %s6859, 1

</llo_original>
